<compile_context>
chip_gen: v7x
topology: tpu7x:2x2x1
jax: 0.10.0
libtpu: 0.0.40
codegen_flags: <defaults>
</compile_context>

<pallas_src>
import functools

import jax
import jax.numpy as jnp
from jax import lax
from jax.experimental import pallas as pl
from jax.experimental.pallas import tpu as pltpu

# ----------------------------- small synthetic BigVSAN config -----------------------------
NUM_MELS = 8
UP_INIT_CH = 32
UP_RATES = [2, 2]            # kernel hard-codes stride-2 polyphase (2 phases, 2 taps each)
UP_KERNELS = [4, 4]
RES_KERNELS = [3]            # single resblock per stage (xs / len == identity)
RES_DILATIONS = [[1, 3, 5]]
MEL_FRAMES = 32              # input time length -> output waveform length 128

T0 = MEL_FRAMES              # 32
T1 = T0 * UP_RATES[0]        # 64
T2 = T1 * UP_RATES[1]        # 128
CH0 = UP_INIT_CH             # 32
CH1 = UP_INIT_CH // 2        # 16
CH2 = UP_INIT_CH // 4        # 8

PAD = 8                      # zero lanes kept on each side of every VMEM activation buffer
                             # (>= max conv halo: (3-1)*5//2 = 5)

_VMEM = pl.BlockSpec(memory_space=pltpu.MemorySpace.VMEM)


# ------------------------------------ fused kernel ----------------------------------------
def _fused_bigvsan_kernel(*refs, n_params):
    x_ref = refs[0]
    param_it = iter(refs[1:1 + n_params])
    o_ref = refs[1 + n_params]
    s_in, s_a, s_bx, s_bt, s_cx, s_ct = refs[2 + n_params:]

    def nxt():
        return next(param_it)

    def conv(src, T, K, d, w2_ref, b_ref):
        """'same' dilated conv as one (K*Cin)-contraction matmul over stacked windows."""
        pad = (K - 1) * d // 2
        parts = [src[:, PAD - pad + k * d: PAD - pad + k * d + T] for k in range(K)]
        stacked = jnp.concatenate(parts, axis=0)                      # [K*Cin, T]
        return jnp.dot(w2_ref[...], stacked,
                       preferred_element_type=jnp.float32) + b_ref[...]

    def snake(v, alpha_ref, inv_beta_ref):
        """SnakeBeta: x + (1/(beta+eps)) * sin(alpha*x)^2  (alpha / 1/(beta+eps) prebaked)."""
        s = jnp.sin(v * alpha_ref[...])
        return v + inv_beta_ref[...] * (s * s)

    def upsample2(src, T, wp0_ref, wp1_ref, b_ref):
        """Polyphase ConvTranspose1d (K=4, stride=2, padding=1): 2 taps per output phase."""
        s0 = jnp.concatenate([src[:, PAD - 1: PAD - 1 + T],           # x[m-1]
                              src[:, PAD:     PAD + T]], axis=0)      # x[m]
        s1 = jnp.concatenate([src[:, PAD:     PAD + T],               # x[m]
                              src[:, PAD + 1: PAD + 1 + T]], axis=0)  # x[m+1]
        y0 = jnp.dot(wp0_ref[...], s0, preferred_element_type=jnp.float32) + b_ref[...]
        y1 = jnp.dot(wp1_ref[...], s1, preferred_element_type=jnp.float32) + b_ref[...]
        # interleave even/odd phases with MXU scatter matmuls (stays VMEM-resident)
        T2x = 2 * T
        row = lax.broadcasted_iota(jnp.int32, (T, T2x), 0)
        col = lax.broadcasted_iota(jnp.int32, (T, T2x), 1)
        e0 = (col == 2 * row).astype(jnp.float32)
        e1 = (col == 2 * row + 1).astype(jnp.float32)
        return (jnp.dot(y0, e0, preferred_element_type=jnp.float32)
                + jnp.dot(y1, e1, preferred_element_type=jnp.float32))

    # Zero all scratch once; only the data region [PAD, PAD+T) is ever written afterwards,
    # so the halo lanes stay zero ('same' padding for free).
    for r in (s_in, s_a, s_bx, s_bt, s_cx, s_ct):
        r[...] = jnp.zeros(r.shape, jnp.float32)

    # conv_pre (k=7, 'same')
    s_in[:, PAD:PAD + T0] = x_ref[...]
    s_a[:, PAD:PAD + T0] = conv(s_in, T0, 7, 1, nxt(), nxt())

    # ----- stage 0: upsample x2 (32 -> 16 ch, T 32 -> 64) + AMP resblock (SnakeBeta/conv)
    s_bx[:, PAD:PAD + T1] = upsample2(s_a, T0, nxt(), nxt(), nxt())
    for d in RES_DILATIONS[0]:
        a1_a, a1_ib, c1_w, c1_b, a2_a, a2_ib, c2_w, c2_b = (nxt() for _ in range(8))
        s_bt[:, PAD:PAD + T1] = snake(s_bx[:, PAD:PAD + T1], a1_a, a1_ib)
        xt = conv(s_bt, T1, 3, d, c1_w, c1_b)
        s_bt[:, PAD:PAD + T1] = snake(xt, a2_a, a2_ib)
        xt = conv(s_bt, T1, 3, 1, c2_w, c2_b)
        s_bx[:, PAD:PAD + T1] = xt + s_bx[:, PAD:PAD + T1]    # fused residual add
    # single resblock kernel -> xs / len(RES_KERNELS) is identity

    # ----- stage 1: upsample x2 (16 -> 8 ch, T 64 -> 128) + AMP resblock
    s_cx[:, PAD:PAD + T2] = upsample2(s_bx, T1, nxt(), nxt(), nxt())
    for d in RES_DILATIONS[0]:
        a1_a, a1_ib, c1_w, c1_b, a2_a, a2_ib, c2_w, c2_b = (nxt() for _ in range(8))
        s_ct[:, PAD:PAD + T2] = snake(s_cx[:, PAD:PAD + T2], a1_a, a1_ib)
        xt = conv(s_ct, T2, 3, d, c1_w, c1_b)
        s_ct[:, PAD:PAD + T2] = snake(xt, a2_a, a2_ib)
        xt = conv(s_ct, T2, 3, 1, c2_w, c2_b)
        s_cx[:, PAD:PAD + T2] = xt + s_cx[:, PAD:PAD + T2]

    # post activation + conv_post (k=7) + tanh, written lane-dense ([1, 128])
    s_ct[:, PAD:PAD + T2] = snake(s_cx[:, PAD:PAD + T2], nxt(), nxt())
    o_ref[...] = jnp.tanh(conv(s_ct, T2, 7, 1, nxt(), nxt()))


# ------------------------------ one-time parameter re-layout ------------------------------
def _flatten_conv_w(w):
    """torch Conv1d weight [Cout, Cin, K] -> [Cout, K*Cin] matching the window stacking."""
    c_out, c_in, k = w.shape
    return jnp.transpose(w, (0, 2, 1)).reshape(c_out, k * c_in)


def prepare_params(params):
    """Hoist all weight transposes / flips / exp()s out of the forward pass (run once)."""
    prep = []

    def add_conv(w, b):
        prep.append(_flatten_conv_w(w))
        prep.append(b.reshape(-1, 1))

    def add_upsample(w, b):
        # torch ConvTranspose1d weight [Cin, Cout, K] with K=4, stride=2, padding=1.
        # phase 0 (even outputs): y[2m]   = w[..,1]*x[m]   + w[..,3]*x[m-1]
        # phase 1 (odd  outputs): y[2m+1] = w[..,2]*x[m]   + w[..,0]*x[m+1]
        wp0 = jnp.concatenate([w[:, :, 3].T, w[:, :, 1].T], axis=1)   # [Cout, 2*Cin]
        wp1 = jnp.concatenate([w[:, :, 2].T, w[:, :, 0].T], axis=1)
        prep.extend([wp0, wp1, b.reshape(-1, 1)])

    def add_snake(alpha_log, beta_log):
        prep.append(jnp.exp(alpha_log).reshape(-1, 1))
        prep.append((1.0 / (jnp.exp(beta_log) + 1e-9)).reshape(-1, 1))

    add_conv(params["conv_pre_w"], params["conv_pre_b"])
    for i in range(len(UP_RATES)):
        add_upsample(params[f"up{i}_w"], params[f"up{i}_b"])
        for j in range(len(RES_KERNELS)):
            for d_idx in range(len(RES_DILATIONS[j])):
                p = f"res{i}_{j}_{d_idx}"
                add_snake(params[f"{p}_a1_alpha"], params[f"{p}_a1_beta"])
                add_conv(params[f"{p}_c1_w"], params[f"{p}_c1_b"])
                add_snake(params[f"{p}_a2_alpha"], params[f"{p}_a2_beta"])
                add_conv(params[f"{p}_c2_w"], params[f"{p}_c2_b"])
    add_snake(params["act_post_alpha"], params["act_post_beta"])
    add_conv(params["conv_post_w"], params["conv_post_b"])
    return tuple(jnp.asarray(a, jnp.float32) for a in prep)


# ------------------------------------ model forward ---------------------------------------
@jax.jit
def onnx_wrapper_forward(x, prep):
    """ONNXWrapper.forward: model(x.unsqueeze(0)).squeeze(0); batch==1 is implicit."""
    n_params = len(prep)
    kernel = functools.partial(_fused_bigvsan_kernel, n_params=n_params)
    return pl.pallas_call(
        kernel,
        out_shape=jax.ShapeDtypeStruct((1, T2), jnp.float32),
        in_specs=[_VMEM] * (1 + n_params),
        out_specs=_VMEM,
        scratch_shapes=[
            pltpu.VMEM((NUM_MELS, T0 + 2 * PAD), jnp.float32),   # padded mel input
            pltpu.VMEM((CH0,      T0 + 2 * PAD), jnp.float32),   # conv_pre output
            pltpu.VMEM((CH1,      T1 + 2 * PAD), jnp.float32),   # stage-0 residual x
            pltpu.VMEM((CH1,      T1 + 2 * PAD), jnp.float32),   # stage-0 conv-input tmp
            pltpu.VMEM((CH2,      T2 + 2 * PAD), jnp.float32),   # stage-1 residual x
            pltpu.VMEM((CH2,      T2 + 2 * PAD), jnp.float32),   # stage-1 conv-input tmp
        ],
    )(x, *prep)


# ----------------------------- plain-JAX reference (for checking) -------------------------
def _ref_forward(x, params):
    def conv1d(x, w, b, dilation=1):
        c_out, _, k = w.shape
        t = x.shape[1]
        pad = (k - 1) * dilation // 2
        xp = jnp.pad(x, ((0, 0), (pad, pad)))
        acc = jnp.zeros((c_out, t), jnp.float32)
        for kk in range(k):
            acc = acc + w[:, :, kk] @ xp[:, kk * dilation: kk * dilation + t]
        return acc + b[:, None]

    def conv_t(x, w, b, stride, padding):
        c_in, c_out, k = w.shape
        t = x.shape[1]
        xz = jnp.zeros((c_in, (t - 1) * stride + 1), x.dtype).at[:, ::stride].set(x)
        edge = k - 1 - padding
        xp = jnp.pad(xz, ((0, 0), (edge, edge)))
        w_eq = jnp.flip(jnp.transpose(w, (1, 0, 2)), axis=2)
        t_out = (t - 1) * stride + k - 2 * padding
        acc = jnp.zeros((c_out, t_out), jnp.float32)
        for kk in range(k):
            acc = acc + w_eq[:, :, kk] @ xp[:, kk: kk + t_out]
        return acc + b[:, None]

    def snake(x, a_log, b_log):
        a = jnp.exp(a_log)[:, None]
        bb = jnp.exp(b_log)[:, None]
        s = jnp.sin(a * x)
        return x + (1.0 / (bb + 1e-9)) * s * s

    x = conv1d(x, params["conv_pre_w"], params["conv_pre_b"])
    for i, (r, k_up) in enumerate(zip(UP_RATES, UP_KERNELS)):
        x = conv_t(x, params[f"up{i}_w"], params[f"up{i}_b"], r, (k_up - r) // 2)
        xs = None
        for j, dils in enumerate(RES_DILATIONS):
            out = x
            for d_idx, d in enumerate(dils):
                p = f"res{i}_{j}_{d_idx}"
                xt = snake(out, params[f"{p}_a1_alpha"], params[f"{p}_a1_beta"])
                xt = conv1d(xt, params[f"{p}_c1_w"], params[f"{p}_c1_b"], d)
                xt = snake(xt, params[f"{p}_a2_alpha"], params[f"{p}_a2_beta"])
                xt = conv1d(xt, params[f"{p}_c2_w"], params[f"{p}_c2_b"], 1)
                out = xt + out
            xs = out if xs is None else xs + out
        x = xs / float(len(RES_KERNELS))
    x = snake(x, params["act_post_alpha"], params["act_post_beta"])
    return jnp.tanh(conv1d(x, params["conv_post_w"], params["conv_post_b"]))


# ------------------------------------ parameter init --------------------------------------
def init_params(key):
    params = {}
    keys = iter(jax.random.split(key, 256))

    def w(shape, scale=0.1):
        return jax.random.normal(next(keys), shape, jnp.float32) * scale

    params["conv_pre_w"] = w((UP_INIT_CH, NUM_MELS, 7))
    params["conv_pre_b"] = w((UP_INIT_CH,))
    ch = UP_INIT_CH
    for i, (r, k_up) in enumerate(zip(UP_RATES, UP_KERNELS)):
        ch_out = UP_INIT_CH // (2 ** (i + 1))
        params[f"up{i}_w"] = w((ch, ch_out, k_up))          # ConvTranspose1d: [Cin, Cout, K]
        params[f"up{i}_b"] = w((ch_out,))
        for j, (k_res, dils) in enumerate(zip(RES_KERNELS, RES_DILATIONS)):
            for d_idx, _d in enumerate(dils):
                p = f"res{i}_{j}_{d_idx}"
                params[f"{p}_c1_w"] = w((ch_out, ch_out, k_res))
                params[f"{p}_c1_b"] = w((ch_out,))
                params[f"{p}_c2_w"] = w((ch_out, ch_out, k_res))
                params[f"{p}_c2_b"] = w((ch_out,))
                # SnakeBeta log-scale params init to 0 -> alpha = beta = 1
                params[f"{p}_a1_alpha"] = jnp.zeros((ch_out,), jnp.float32)
                params[f"{p}_a1_beta"] = jnp.zeros((ch_out,), jnp.float32)
                params[f"{p}_a2_alpha"] = jnp.zeros((ch_out,), jnp.float32)
                params[f"{p}_a2_beta"] = jnp.zeros((ch_out,), jnp.float32)
        ch = ch_out
    params["act_post_alpha"] = jnp.zeros((ch,), jnp.float32)
    params["act_post_beta"] = jnp.zeros((ch,), jnp.float32)
    params["conv_post_w"] = w((1, ch, 7))
    params["conv_post_b"] = w((1,))
    return params


# ------------------------------------------ main ------------------------------------------
if __name__ == "__main__":
    key = jax.random.PRNGKey(0)
    k_param, k_in = jax.random.split(key)
    params = init_params(k_param)
    prep = prepare_params(params)    # one-time kernel-friendly re-layout (hoisted)

    # ONNXWrapper input: a single mel spectrogram [num_mels, T]
    x = jax.random.normal(k_in, (NUM_MELS, MEL_FRAMES), jnp.float32)

    y = onnx_wrapper_forward(x, prep)
    jax.block_until_ready(y)

    expected_T = MEL_FRAMES
    for r in UP_RATES:
        expected_T *= r
    assert y.shape == (1, expected_T), y.shape
    assert bool(jnp.all(jnp.isfinite(y)))

    # numerical check against the plain-JAX reference of the same network
    y_ref = _ref_forward(x, params)
    err = float(jnp.max(jnp.abs(y - y_ref)))
    assert err < 1e-3, f"max abs error vs reference: {err}"

    print("KERNEL_OK")
</pallas_src>

<mosaic_0001>
module attributes {stable_mosaic.version = 11 : i64} {
  func.func @_fused_bigvsan_kernel(%arg0: memref<8x32xf32, #tpu.memory_space<vmem>>, %arg1: memref<32x56xf32, #tpu.memory_space<vmem>>, %arg2: memref<32x1xf32, #tpu.memory_space<vmem>>, %arg3: memref<16x64xf32, #tpu.memory_space<vmem>>, %arg4: memref<16x64xf32, #tpu.memory_space<vmem>>, %arg5: memref<16x1xf32, #tpu.memory_space<vmem>>, %arg6: memref<16x1xf32, #tpu.memory_space<vmem>>, %arg7: memref<16x1xf32, #tpu.memory_space<vmem>>, %arg8: memref<16x48xf32, #tpu.memory_space<vmem>>, %arg9: memref<16x1xf32, #tpu.memory_space<vmem>>, %arg10: memref<16x1xf32, #tpu.memory_space<vmem>>, %arg11: memref<16x1xf32, #tpu.memory_space<vmem>>, %arg12: memref<16x48xf32, #tpu.memory_space<vmem>>, %arg13: memref<16x1xf32, #tpu.memory_space<vmem>>, %arg14: memref<16x1xf32, #tpu.memory_space<vmem>>, %arg15: memref<16x1xf32, #tpu.memory_space<vmem>>, %arg16: memref<16x48xf32, #tpu.memory_space<vmem>>, %arg17: memref<16x1xf32, #tpu.memory_space<vmem>>, %arg18: memref<16x1xf32, #tpu.memory_space<vmem>>, %arg19: memref<16x1xf32, #tpu.memory_space<vmem>>, %arg20: memref<16x48xf32, #tpu.memory_space<vmem>>, %arg21: memref<16x1xf32, #tpu.memory_space<vmem>>, %arg22: memref<16x1xf32, #tpu.memory_space<vmem>>, %arg23: memref<16x1xf32, #tpu.memory_space<vmem>>, %arg24: memref<16x48xf32, #tpu.memory_space<vmem>>, %arg25: memref<16x1xf32, #tpu.memory_space<vmem>>, %arg26: memref<16x1xf32, #tpu.memory_space<vmem>>, %arg27: memref<16x1xf32, #tpu.memory_space<vmem>>, %arg28: memref<16x48xf32, #tpu.memory_space<vmem>>, %arg29: memref<16x1xf32, #tpu.memory_space<vmem>>, %arg30: memref<8x32xf32, #tpu.memory_space<vmem>>, %arg31: memref<8x32xf32, #tpu.memory_space<vmem>>, %arg32: memref<8x1xf32, #tpu.memory_space<vmem>>, %arg33: memref<8x1xf32, #tpu.memory_space<vmem>>, %arg34: memref<8x1xf32, #tpu.memory_space<vmem>>, %arg35: memref<8x24xf32, #tpu.memory_space<vmem>>, %arg36: memref<8x1xf32, #tpu.memory_space<vmem>>, %arg37: memref<8x1xf32, #tpu.memory_space<vmem>>, %arg38: memref<8x1xf32, #tpu.memory_space<vmem>>, %arg39: memref<8x24xf32, #tpu.memory_space<vmem>>, %arg40: memref<8x1xf32, #tpu.memory_space<vmem>>, %arg41: memref<8x1xf32, #tpu.memory_space<vmem>>, %arg42: memref<8x1xf32, #tpu.memory_space<vmem>>, %arg43: memref<8x24xf32, #tpu.memory_space<vmem>>, %arg44: memref<8x1xf32, #tpu.memory_space<vmem>>, %arg45: memref<8x1xf32, #tpu.memory_space<vmem>>, %arg46: memref<8x1xf32, #tpu.memory_space<vmem>>, %arg47: memref<8x24xf32, #tpu.memory_space<vmem>>, %arg48: memref<8x1xf32, #tpu.memory_space<vmem>>, %arg49: memref<8x1xf32, #tpu.memory_space<vmem>>, %arg50: memref<8x1xf32, #tpu.memory_space<vmem>>, %arg51: memref<8x24xf32, #tpu.memory_space<vmem>>, %arg52: memref<8x1xf32, #tpu.memory_space<vmem>>, %arg53: memref<8x1xf32, #tpu.memory_space<vmem>>, %arg54: memref<8x1xf32, #tpu.memory_space<vmem>>, %arg55: memref<8x24xf32, #tpu.memory_space<vmem>>, %arg56: memref<8x1xf32, #tpu.memory_space<vmem>>, %arg57: memref<8x1xf32, #tpu.memory_space<vmem>>, %arg58: memref<8x1xf32, #tpu.memory_space<vmem>>, %arg59: memref<1x56xf32, #tpu.memory_space<vmem>>, %arg60: memref<1x1xf32, #tpu.memory_space<vmem>>, %arg61: memref<1x128xf32, #tpu.memory_space<vmem>>, %arg62: memref<8x48xf32, #tpu.memory_space<vmem>>, %arg63: memref<32x48xf32, #tpu.memory_space<vmem>>, %arg64: memref<16x80xf32, #tpu.memory_space<vmem>>, %arg65: memref<16x80xf32, #tpu.memory_space<vmem>>, %arg66: memref<8x144xf32, #tpu.memory_space<vmem>>, %arg67: memref<8x144xf32, #tpu.memory_space<vmem>>) attributes {dimension_semantics = [], scalar_prefetch = 0 : i64, scratch_operands = 6 : i64, tpu.core_type = #tpu.core_type<tc>} {
    %cst = arith.constant 0.000000e+00 : f32
    %0 = vector.broadcast %cst : f32 to vector<8x48xf32>
    %c0 = arith.constant 0 : index
    %c0_0 = arith.constant 0 : index
    %1 = vector.load %arg62[%c0, %c0_0] : memref<8x48xf32, #tpu.memory_space<vmem>>, vector<8x48xf32>
    tpu.vector_store %arg62[%c0, %c0_0], %0 {strides = array<i32>} : memref<8x48xf32, #tpu.memory_space<vmem>>, vector<8x48xf32>,
    %cst_1 = arith.constant 0.000000e+00 : f32
    %2 = vector.broadcast %cst_1 : f32 to vector<32x48xf32>
    %c0_2 = arith.constant 0 : index
    %c0_3 = arith.constant 0 : index
    %3 = vector.load %arg63[%c0_2, %c0_3] : memref<32x48xf32, #tpu.memory_space<vmem>>, vector<32x48xf32>
    tpu.vector_store %arg63[%c0_2, %c0_3], %2 {strides = array<i32>} : memref<32x48xf32, #tpu.memory_space<vmem>>, vector<32x48xf32>,
    %cst_4 = arith.constant 0.000000e+00 : f32
    %4 = vector.broadcast %cst_4 : f32 to vector<16x80xf32>
    %c0_5 = arith.constant 0 : index
    %c0_6 = arith.constant 0 : index
    %5 = vector.load %arg64[%c0_5, %c0_6] : memref<16x80xf32, #tpu.memory_space<vmem>>, vector<16x80xf32>
    tpu.vector_store %arg64[%c0_5, %c0_6], %4 {strides = array<i32>} : memref<16x80xf32, #tpu.memory_space<vmem>>, vector<16x80xf32>,
    %cst_7 = arith.constant 0.000000e+00 : f32
    %6 = vector.broadcast %cst_7 : f32 to vector<16x80xf32>
    %c0_8 = arith.constant 0 : index
    %c0_9 = arith.constant 0 : index
    %7 = vector.load %arg65[%c0_8, %c0_9] : memref<16x80xf32, #tpu.memory_space<vmem>>, vector<16x80xf32>
    tpu.vector_store %arg65[%c0_8, %c0_9], %6 {strides = array<i32>} : memref<16x80xf32, #tpu.memory_space<vmem>>, vector<16x80xf32>,
    %cst_10 = arith.constant 0.000000e+00 : f32
    %8 = vector.broadcast %cst_10 : f32 to vector<8x144xf32>
    %c0_11 = arith.constant 0 : index
    %c0_12 = arith.constant 0 : index
    %9 = vector.load %arg66[%c0_11, %c0_12] : memref<8x144xf32, #tpu.memory_space<vmem>>, vector<8x144xf32>
    tpu.vector_store %arg66[%c0_11, %c0_12], %8 {strides = array<i32>} : memref<8x144xf32, #tpu.memory_space<vmem>>, vector<8x144xf32>,
    %cst_13 = arith.constant 0.000000e+00 : f32
    %10 = vector.broadcast %cst_13 : f32 to vector<8x144xf32>
    %c0_14 = arith.constant 0 : index
    %c0_15 = arith.constant 0 : index
    %11 = vector.load %arg67[%c0_14, %c0_15] : memref<8x144xf32, #tpu.memory_space<vmem>>, vector<8x144xf32>
    tpu.vector_store %arg67[%c0_14, %c0_15], %10 {strides = array<i32>} : memref<8x144xf32, #tpu.memory_space<vmem>>, vector<8x144xf32>,
    %c0_16 = arith.constant 0 : index
    %c0_17 = arith.constant 0 : index
    %12 = vector.load %arg0[%c0_16, %c0_17] : memref<8x32xf32, #tpu.memory_space<vmem>>, vector<8x32xf32>
    %c0_18 = arith.constant 0 : index
    %c8 = arith.constant 8 : index
    %13 = vector.load %arg62[%c0_18, %c8] : memref<8x48xf32, #tpu.memory_space<vmem>>, vector<8x32xf32>
    tpu.vector_store %arg62[%c0_18, %c8], %12 {strides = array<i32>} : memref<8x48xf32, #tpu.memory_space<vmem>>, vector<8x32xf32>,
    %c0_19 = arith.constant 0 : index
    %c5 = arith.constant 5 : index
    %14 = vector.load %arg62[%c0_19, %c5] : memref<8x48xf32, #tpu.memory_space<vmem>>, vector<8x32xf32>
    %c0_20 = arith.constant 0 : index
    %c6 = arith.constant 6 : index
    %15 = vector.load %arg62[%c0_20, %c6] : memref<8x48xf32, #tpu.memory_space<vmem>>, vector<8x32xf32>
    %c0_21 = arith.constant 0 : index
    %c7 = arith.constant 7 : index
    %16 = vector.load %arg62[%c0_21, %c7] : memref<8x48xf32, #tpu.memory_space<vmem>>, vector<8x32xf32>
    %c0_22 = arith.constant 0 : index
    %c8_23 = arith.constant 8 : index
    %17 = vector.load %arg62[%c0_22, %c8_23] : memref<8x48xf32, #tpu.memory_space<vmem>>, vector<8x32xf32>
    %c0_24 = arith.constant 0 : index
    %c9 = arith.constant 9 : index
    %18 = vector.load %arg62[%c0_24, %c9] : memref<8x48xf32, #tpu.memory_space<vmem>>, vector<8x32xf32>
    %c0_25 = arith.constant 0 : index
    %c10 = arith.constant 10 : index
    %19 = vector.load %arg62[%c0_25, %c10] : memref<8x48xf32, #tpu.memory_space<vmem>>, vector<8x32xf32>
    %c0_26 = arith.constant 0 : index
    %c11 = arith.constant 11 : index
    %20 = vector.load %arg62[%c0_26, %c11] : memref<8x48xf32, #tpu.memory_space<vmem>>, vector<8x32xf32>
    %21 = tpu.concatenate %14, %15, %16, %17, %18, %19, %20 in 0 : vector<8x32xf32>, vector<8x32xf32>, vector<8x32xf32>, vector<8x32xf32>, vector<8x32xf32>, vector<8x32xf32>, vector<8x32xf32> -> vector<56x32xf32>
    %c0_27 = arith.constant 0 : index
    %c0_28 = arith.constant 0 : index
    %22 = vector.load %arg1[%c0_27, %c0_28] : memref<32x56xf32, #tpu.memory_space<vmem>>, vector<32x56xf32>
    %cst_29 = arith.constant dense<0.000000e+00> : vector<32x32xf32>
    %23 = tpu.matmul %22, %21, %cst_29 {dimension_numbers = #tpu.dot_dimension_numbers<[1], [0], [0], [1], [0, 0, 1, 1], [], []>} : vector<32x56xf32>, vector<56x32xf32>, vector<32x32xf32> -> vector<32x32xf32>
    %c0_30 = arith.constant 0 : index
    %c0_31 = arith.constant 0 : index
    %24 = vector.load %arg2[%c0_30, %c0_31] : memref<32x1xf32, #tpu.memory_space<vmem>>, vector<32x1xf32>
    %25 = vector.broadcast %24 : vector<32x1xf32> to vector<32x32xf32>
    %26 = arith.addf %23, %25 : vector<32x32xf32>
    %c0_32 = arith.constant 0 : index
    %c8_33 = arith.constant 8 : index
    %27 = vector.load %arg63[%c0_32, %c8_33] : memref<32x48xf32, #tpu.memory_space<vmem>>, vector<32x32xf32>
    tpu.vector_store %arg63[%c0_32, %c8_33], %26 {strides = array<i32>} : memref<32x48xf32, #tpu.memory_space<vmem>>, vector<32x32xf32>,
    %c0_34 = arith.constant 0 : index
    %c7_35 = arith.constant 7 : index
    %28 = vector.load %arg63[%c0_34, %c7_35] : memref<32x48xf32, #tpu.memory_space<vmem>>, vector<32x32xf32>
    %c0_36 = arith.constant 0 : index
    %c8_37 = arith.constant 8 : index
    %29 = vector.load %arg63[%c0_36, %c8_37] : memref<32x48xf32, #tpu.memory_space<vmem>>, vector<32x32xf32>
    %30 = tpu.concatenate %28, %29 in 0 : vector<32x32xf32>, vector<32x32xf32> -> vector<64x32xf32>
    %c0_38 = arith.constant 0 : index
    %c8_39 = arith.constant 8 : index
    %31 = vector.load %arg63[%c0_38, %c8_39] : memref<32x48xf32, #tpu.memory_space<vmem>>, vector<32x32xf32>
    %c0_40 = arith.constant 0 : index
    %c9_41 = arith.constant 9 : index
    %32 = vector.load %arg63[%c0_40, %c9_41] : memref<32x48xf32, #tpu.memory_space<vmem>>, vector<32x32xf32>
    %33 = tpu.concatenate %31, %32 in 0 : vector<32x32xf32>, vector<32x32xf32> -> vector<64x32xf32>
    %c0_42 = arith.constant 0 : index
    %c0_43 = arith.constant 0 : index
    %34 = vector.load %arg3[%c0_42, %c0_43] : memref<16x64xf32, #tpu.memory_space<vmem>>, vector<16x64xf32>
    %cst_44 = arith.constant dense<0.000000e+00> : vector<16x32xf32>
    %35 = tpu.matmul %34, %30, %cst_44 {dimension_numbers = #tpu.dot_dimension_numbers<[1], [0], [0], [1], [0, 0, 1, 1], [], []>} : vector<16x64xf32>, vector<64x32xf32>, vector<16x32xf32> -> vector<16x32xf32>
    %c0_45 = arith.constant 0 : index
    %c0_46 = arith.constant 0 : index
    %36 = vector.load %arg5[%c0_45, %c0_46] : memref<16x1xf32, #tpu.memory_space<vmem>>, vector<16x1xf32>
    %37 = vector.broadcast %36 : vector<16x1xf32> to vector<16x32xf32>
    %38 = arith.addf %35, %37 : vector<16x32xf32>
    %c0_47 = arith.constant 0 : index
    %c0_48 = arith.constant 0 : index
    %39 = vector.load %arg4[%c0_47, %c0_48] : memref<16x64xf32, #tpu.memory_space<vmem>>, vector<16x64xf32>
    %cst_49 = arith.constant dense<0.000000e+00> : vector<16x32xf32>
    %40 = tpu.matmul %39, %33, %cst_49 {dimension_numbers = #tpu.dot_dimension_numbers<[1], [0], [0], [1], [0, 0, 1, 1], [], []>} : vector<16x64xf32>, vector<64x32xf32>, vector<16x32xf32> -> vector<16x32xf32>
    %c0_50 = arith.constant 0 : index
    %c0_51 = arith.constant 0 : index
    %41 = vector.load %arg5[%c0_50, %c0_51] : memref<16x1xf32, #tpu.memory_space<vmem>>, vector<16x1xf32>
    %42 = vector.broadcast %41 : vector<16x1xf32> to vector<16x32xf32>
    %43 = arith.addf %40, %42 : vector<16x32xf32>
    %44 = tpu.iota {dimensions = array<i32: 0>} : vector<32x64xi32>
    %45 = tpu.iota {dimensions = array<i32: 1>} : vector<32x64xi32>
    %c2_i32 = arith.constant 2 : i32
    %46 = vector.broadcast %c2_i32 : i32 to vector<32x64xi32>
    %47 = arith.muli %46, %44 : vector<32x64xi32>
    %48 = arith.cmpi eq, %45, %47 : vector<32x64xi32>
    %49 = arith.extui %48 : vector<32x64xi1> to vector<32x64xi32>
    %50 = arith.sitofp %49 : vector<32x64xi32> to vector<32x64xf32>
    %c2_i32_52 = arith.constant 2 : i32
    %51 = vector.broadcast %c2_i32_52 : i32 to vector<32x64xi32>
    %52 = arith.muli %51, %44 : vector<32x64xi32>
    %c1_i32 = arith.constant 1 : i32
    %53 = vector.broadcast %c1_i32 : i32 to vector<32x64xi32>
    %54 = arith.addi %52, %53 : vector<32x64xi32>
    %55 = arith.cmpi eq, %45, %54 : vector<32x64xi32>
    %56 = arith.extui %55 : vector<32x64xi1> to vector<32x64xi32>
    %57 = arith.sitofp %56 : vector<32x64xi32> to vector<32x64xf32>
    %cst_53 = arith.constant dense<0.000000e+00> : vector<16x64xf32>
    %58 = tpu.matmul %38, %50, %cst_53 {dimension_numbers = #tpu.dot_dimension_numbers<[1], [0], [0], [1], [0, 0, 1, 1], [], []>} : vector<16x32xf32>, vector<32x64xf32>, vector<16x64xf32> -> vector<16x64xf32>
    %cst_54 = arith.constant dense<0.000000e+00> : vector<16x64xf32>
    %59 = tpu.matmul %43, %57, %cst_54 {dimension_numbers = #tpu.dot_dimension_numbers<[1], [0], [0], [1], [0, 0, 1, 1], [], []>} : vector<16x32xf32>, vector<32x64xf32>, vector<16x64xf32> -> vector<16x64xf32>
    %60 = arith.addf %58, %59 : vector<16x64xf32>
    %c0_55 = arith.constant 0 : index
    %c8_56 = arith.constant 8 : index
    %61 = vector.load %arg64[%c0_55, %c8_56] : memref<16x80xf32, #tpu.memory_space<vmem>>, vector<16x64xf32>
    tpu.vector_store %arg64[%c0_55, %c8_56], %60 {strides = array<i32>} : memref<16x80xf32, #tpu.memory_space<vmem>>, vector<16x64xf32>,
    %c0_57 = arith.constant 0 : index
    %c8_58 = arith.constant 8 : index
    %62 = vector.load %arg64[%c0_57, %c8_58] : memref<16x80xf32, #tpu.memory_space<vmem>>, vector<16x64xf32>
    %c0_59 = arith.constant 0 : index
    %c0_60 = arith.constant 0 : index
    %63 = vector.load %arg6[%c0_59, %c0_60] : memref<16x1xf32, #tpu.memory_space<vmem>>, vector<16x1xf32>
    %64 = vector.broadcast %63 : vector<16x1xf32> to vector<16x64xf32>
    %65 = arith.mulf %62, %64 : vector<16x64xf32>
    %66 = math.sin %65 : vector<16x64xf32>
    %c0_61 = arith.constant 0 : index
    %c0_62 = arith.constant 0 : index
    %67 = vector.load %arg7[%c0_61, %c0_62] : memref<16x1xf32, #tpu.memory_space<vmem>>, vector<16x1xf32>
    %68 = arith.mulf %66, %66 : vector<16x64xf32>
    %69 = vector.broadcast %67 : vector<16x1xf32> to vector<16x64xf32>
    %70 = arith.mulf %69, %68 : vector<16x64xf32>
    %71 = arith.addf %62, %70 : vector<16x64xf32>
    %c0_63 = arith.constant 0 : index
    %c8_64 = arith.constant 8 : index
    %72 = vector.load %arg65[%c0_63, %c8_64] : memref<16x80xf32, #tpu.memory_space<vmem>>, vector<16x64xf32>
    tpu.vector_store %arg65[%c0_63, %c8_64], %71 {strides = array<i32>} : memref<16x80xf32, #tpu.memory_space<vmem>>, vector<16x64xf32>,
    %c0_65 = arith.constant 0 : index
    %c7_66 = arith.constant 7 : index
    %73 = vector.load %arg65[%c0_65, %c7_66] : memref<16x80xf32, #tpu.memory_space<vmem>>, vector<16x64xf32>
    %c0_67 = arith.constant 0 : index
    %c8_68 = arith.constant 8 : index
    %74 = vector.load %arg65[%c0_67, %c8_68] : memref<16x80xf32, #tpu.memory_space<vmem>>, vector<16x64xf32>
    %c0_69 = arith.constant 0 : index
    %c9_70 = arith.constant 9 : index
    %75 = vector.load %arg65[%c0_69, %c9_70] : memref<16x80xf32, #tpu.memory_space<vmem>>, vector<16x64xf32>
    %76 = tpu.concatenate %73, %74, %75 in 0 : vector<16x64xf32>, vector<16x64xf32>, vector<16x64xf32> -> vector<48x64xf32>
    %c0_71 = arith.constant 0 : index
    %c0_72 = arith.constant 0 : index
    %77 = vector.load %arg8[%c0_71, %c0_72] : memref<16x48xf32, #tpu.memory_space<vmem>>, vector<16x48xf32>
    %cst_73 = arith.constant dense<0.000000e+00> : vector<16x64xf32>
    %78 = tpu.matmul %77, %76, %cst_73 {dimension_numbers = #tpu.dot_dimension_numbers<[1], [0], [0], [1], [0, 0, 1, 1], [], []>} : vector<16x48xf32>, vector<48x64xf32>, vector<16x64xf32> -> vector<16x64xf32>
    %c0_74 = arith.constant 0 : index
    %c0_75 = arith.constant 0 : index
    %79 = vector.load %arg9[%c0_74, %c0_75] : memref<16x1xf32, #tpu.memory_space<vmem>>, vector<16x1xf32>
    %80 = vector.broadcast %79 : vector<16x1xf32> to vector<16x64xf32>
    %81 = arith.addf %78, %80 : vector<16x64xf32>
    %c0_76 = arith.constant 0 : index
    %c0_77 = arith.constant 0 : index
    %82 = vector.load %arg10[%c0_76, %c0_77] : memref<16x1xf32, #tpu.memory_space<vmem>>, vector<16x1xf32>
    %83 = vector.broadcast %82 : vector<16x1xf32> to vector<16x64xf32>
    %84 = arith.mulf %81, %83 : vector<16x64xf32>
    %85 = math.sin %84 : vector<16x64xf32>
    %c0_78 = arith.constant 0 : index
    %c0_79 = arith.constant 0 : index
    %86 = vector.load %arg11[%c0_78, %c0_79] : memref<16x1xf32, #tpu.memory_space<vmem>>, vector<16x1xf32>
    %87 = arith.mulf %85, %85 : vector<16x64xf32>
    %88 = vector.broadcast %86 : vector<16x1xf32> to vector<16x64xf32>
    %89 = arith.mulf %88, %87 : vector<16x64xf32>
    %90 = arith.addf %81, %89 : vector<16x64xf32>
    %c0_80 = arith.constant 0 : index
    %c8_81 = arith.constant 8 : index
    %91 = vector.load %arg65[%c0_80, %c8_81] : memref<16x80xf32, #tpu.memory_space<vmem>>, vector<16x64xf32>
    tpu.vector_store %arg65[%c0_80, %c8_81], %90 {strides = array<i32>} : memref<16x80xf32, #tpu.memory_space<vmem>>, vector<16x64xf32>,
    %c0_82 = arith.constant 0 : index
    %c7_83 = arith.constant 7 : index
    %92 = vector.load %arg65[%c0_82, %c7_83] : memref<16x80xf32, #tpu.memory_space<vmem>>, vector<16x64xf32>
    %c0_84 = arith.constant 0 : index
    %c8_85 = arith.constant 8 : index
    %93 = vector.load %arg65[%c0_84, %c8_85] : memref<16x80xf32, #tpu.memory_space<vmem>>, vector<16x64xf32>
    %c0_86 = arith.constant 0 : index
    %c9_87 = arith.constant 9 : index
    %94 = vector.load %arg65[%c0_86, %c9_87] : memref<16x80xf32, #tpu.memory_space<vmem>>, vector<16x64xf32>
    %95 = tpu.concatenate %92, %93, %94 in 0 : vector<16x64xf32>, vector<16x64xf32>, vector<16x64xf32> -> vector<48x64xf32>
    %c0_88 = arith.constant 0 : index
    %c0_89 = arith.constant 0 : index
    %96 = vector.load %arg12[%c0_88, %c0_89] : memref<16x48xf32, #tpu.memory_space<vmem>>, vector<16x48xf32>
    %cst_90 = arith.constant dense<0.000000e+00> : vector<16x64xf32>
    %97 = tpu.matmul %96, %95, %cst_90 {dimension_numbers = #tpu.dot_dimension_numbers<[1], [0], [0], [1], [0, 0, 1, 1], [], []>} : vector<16x48xf32>, vector<48x64xf32>, vector<16x64xf32> -> vector<16x64xf32>
    %c0_91 = arith.constant 0 : index
    %c0_92 = arith.constant 0 : index
    %98 = vector.load %arg13[%c0_91, %c0_92] : memref<16x1xf32, #tpu.memory_space<vmem>>, vector<16x1xf32>
    %99 = vector.broadcast %98 : vector<16x1xf32> to vector<16x64xf32>
    %100 = arith.addf %97, %99 : vector<16x64xf32>
    %c0_93 = arith.constant 0 : index
    %c8_94 = arith.constant 8 : index
    %101 = vector.load %arg64[%c0_93, %c8_94] : memref<16x80xf32, #tpu.memory_space<vmem>>, vector<16x64xf32>
    %102 = arith.addf %100, %101 : vector<16x64xf32>
    %c0_95 = arith.constant 0 : index
    %c8_96 = arith.constant 8 : index
    %103 = vector.load %arg64[%c0_95, %c8_96] : memref<16x80xf32, #tpu.memory_space<vmem>>, vector<16x64xf32>
    tpu.vector_store %arg64[%c0_95, %c8_96], %102 {strides = array<i32>} : memref<16x80xf32, #tpu.memory_space<vmem>>, vector<16x64xf32>,
    %c0_97 = arith.constant 0 : index
    %c8_98 = arith.constant 8 : index
    %104 = vector.load %arg64[%c0_97, %c8_98] : memref<16x80xf32, #tpu.memory_space<vmem>>, vector<16x64xf32>
    %c0_99 = arith.constant 0 : index
    %c0_100 = arith.constant 0 : index
    %105 = vector.load %arg14[%c0_99, %c0_100] : memref<16x1xf32, #tpu.memory_space<vmem>>, vector<16x1xf32>
    %106 = vector.broadcast %105 : vector<16x1xf32> to vector<16x64xf32>
    %107 = arith.mulf %104, %106 : vector<16x64xf32>
    %108 = math.sin %107 : vector<16x64xf32>
    %c0_101 = arith.constant 0 : index
    %c0_102 = arith.constant 0 : index
    %109 = vector.load %arg15[%c0_101, %c0_102] : memref<16x1xf32, #tpu.memory_space<vmem>>, vector<16x1xf32>
    %110 = arith.mulf %108, %108 : vector<16x64xf32>
    %111 = vector.broadcast %109 : vector<16x1xf32> to vector<16x64xf32>
    %112 = arith.mulf %111, %110 : vector<16x64xf32>
    %113 = arith.addf %104, %112 : vector<16x64xf32>
    %c0_103 = arith.constant 0 : index
    %c8_104 = arith.constant 8 : index
    %114 = vector.load %arg65[%c0_103, %c8_104] : memref<16x80xf32, #tpu.memory_space<vmem>>, vector<16x64xf32>
    tpu.vector_store %arg65[%c0_103, %c8_104], %113 {strides = array<i32>} : memref<16x80xf32, #tpu.memory_space<vmem>>, vector<16x64xf32>,
    %c0_105 = arith.constant 0 : index
    %c5_106 = arith.constant 5 : index
    %115 = vector.load %arg65[%c0_105, %c5_106] : memref<16x80xf32, #tpu.memory_space<vmem>>, vector<16x64xf32>
    %c0_107 = arith.constant 0 : index
    %c8_108 = arith.constant 8 : index
    %116 = vector.load %arg65[%c0_107, %c8_108] : memref<16x80xf32, #tpu.memory_space<vmem>>, vector<16x64xf32>
    %c0_109 = arith.constant 0 : index
    %c11_110 = arith.constant 11 : index
    %117 = vector.load %arg65[%c0_109, %c11_110] : memref<16x80xf32, #tpu.memory_space<vmem>>, vector<16x64xf32>
    %118 = tpu.concatenate %115, %116, %117 in 0 : vector<16x64xf32>, vector<16x64xf32>, vector<16x64xf32> -> vector<48x64xf32>
    %c0_111 = arith.constant 0 : index
    %c0_112 = arith.constant 0 : index
    %119 = vector.load %arg16[%c0_111, %c0_112] : memref<16x48xf32, #tpu.memory_space<vmem>>, vector<16x48xf32>
    %cst_113 = arith.constant dense<0.000000e+00> : vector<16x64xf32>
    %120 = tpu.matmul %119, %118, %cst_113 {dimension_numbers = #tpu.dot_dimension_numbers<[1], [0], [0], [1], [0, 0, 1, 1], [], []>} : vector<16x48xf32>, vector<48x64xf32>, vector<16x64xf32> -> vector<16x64xf32>
    %c0_114 = arith.constant 0 : index
    %c0_115 = arith.constant 0 : index
    %121 = vector.load %arg17[%c0_114, %c0_115] : memref<16x1xf32, #tpu.memory_space<vmem>>, vector<16x1xf32>
    %122 = vector.broadcast %121 : vector<16x1xf32> to vector<16x64xf32>
    %123 = arith.addf %120, %122 : vector<16x64xf32>
    %c0_116 = arith.constant 0 : index
    %c0_117 = arith.constant 0 : index
    %124 = vector.load %arg18[%c0_116, %c0_117] : memref<16x1xf32, #tpu.memory_space<vmem>>, vector<16x1xf32>
    %125 = vector.broadcast %124 : vector<16x1xf32> to vector<16x64xf32>
    %126 = arith.mulf %123, %125 : vector<16x64xf32>
    %127 = math.sin %126 : vector<16x64xf32>
    %c0_118 = arith.constant 0 : index
    %c0_119 = arith.constant 0 : index
    %128 = vector.load %arg19[%c0_118, %c0_119] : memref<16x1xf32, #tpu.memory_space<vmem>>, vector<16x1xf32>
    %129 = arith.mulf %127, %127 : vector<16x64xf32>
    %130 = vector.broadcast %128 : vector<16x1xf32> to vector<16x64xf32>
    %131 = arith.mulf %130, %129 : vector<16x64xf32>
    %132 = arith.addf %123, %131 : vector<16x64xf32>
    %c0_120 = arith.constant 0 : index
    %c8_121 = arith.constant 8 : index
    %133 = vector.load %arg65[%c0_120, %c8_121] : memref<16x80xf32, #tpu.memory_space<vmem>>, vector<16x64xf32>
    tpu.vector_store %arg65[%c0_120, %c8_121], %132 {strides = array<i32>} : memref<16x80xf32, #tpu.memory_space<vmem>>, vector<16x64xf32>,
    %c0_122 = arith.constant 0 : index
    %c7_123 = arith.constant 7 : index
    %134 = vector.load %arg65[%c0_122, %c7_123] : memref<16x80xf32, #tpu.memory_space<vmem>>, vector<16x64xf32>
    %c0_124 = arith.constant 0 : index
    %c8_125 = arith.constant 8 : index
    %135 = vector.load %arg65[%c0_124, %c8_125] : memref<16x80xf32, #tpu.memory_space<vmem>>, vector<16x64xf32>
    %c0_126 = arith.constant 0 : index
    %c9_127 = arith.constant 9 : index
    %136 = vector.load %arg65[%c0_126, %c9_127] : memref<16x80xf32, #tpu.memory_space<vmem>>, vector<16x64xf32>
    %137 = tpu.concatenate %134, %135, %136 in 0 : vector<16x64xf32>, vector<16x64xf32>, vector<16x64xf32> -> vector<48x64xf32>
    %c0_128 = arith.constant 0 : index
    %c0_129 = arith.constant 0 : index
    %138 = vector.load %arg20[%c0_128, %c0_129] : memref<16x48xf32, #tpu.memory_space<vmem>>, vector<16x48xf32>
    %cst_130 = arith.constant dense<0.000000e+00> : vector<16x64xf32>
    %139 = tpu.matmul %138, %137, %cst_130 {dimension_numbers = #tpu.dot_dimension_numbers<[1], [0], [0], [1], [0, 0, 1, 1], [], []>} : vector<16x48xf32>, vector<48x64xf32>, vector<16x64xf32> -> vector<16x64xf32>
    %c0_131 = arith.constant 0 : index
    %c0_132 = arith.constant 0 : index
    %140 = vector.load %arg21[%c0_131, %c0_132] : memref<16x1xf32, #tpu.memory_space<vmem>>, vector<16x1xf32>
    %141 = vector.broadcast %140 : vector<16x1xf32> to vector<16x64xf32>
    %142 = arith.addf %139, %141 : vector<16x64xf32>
    %c0_133 = arith.constant 0 : index
    %c8_134 = arith.constant 8 : index
    %143 = vector.load %arg64[%c0_133, %c8_134] : memref<16x80xf32, #tpu.memory_space<vmem>>, vector<16x64xf32>
    %144 = arith.addf %142, %143 : vector<16x64xf32>
    %c0_135 = arith.constant 0 : index
    %c8_136 = arith.constant 8 : index
    %145 = vector.load %arg64[%c0_135, %c8_136] : memref<16x80xf32, #tpu.memory_space<vmem>>, vector<16x64xf32>
    tpu.vector_store %arg64[%c0_135, %c8_136], %144 {strides = array<i32>} : memref<16x80xf32, #tpu.memory_space<vmem>>, vector<16x64xf32>,
    %c0_137 = arith.constant 0 : index
    %c8_138 = arith.constant 8 : index
    %146 = vector.load %arg64[%c0_137, %c8_138] : memref<16x80xf32, #tpu.memory_space<vmem>>, vector<16x64xf32>
    %c0_139 = arith.constant 0 : index
    %c0_140 = arith.constant 0 : index
    %147 = vector.load %arg22[%c0_139, %c0_140] : memref<16x1xf32, #tpu.memory_space<vmem>>, vector<16x1xf32>
    %148 = vector.broadcast %147 : vector<16x1xf32> to vector<16x64xf32>
    %149 = arith.mulf %146, %148 : vector<16x64xf32>
    %150 = math.sin %149 : vector<16x64xf32>
    %c0_141 = arith.constant 0 : index
    %c0_142 = arith.constant 0 : index
    %151 = vector.load %arg23[%c0_141, %c0_142] : memref<16x1xf32, #tpu.memory_space<vmem>>, vector<16x1xf32>
    %152 = arith.mulf %150, %150 : vector<16x64xf32>
    %153 = vector.broadcast %151 : vector<16x1xf32> to vector<16x64xf32>
    %154 = arith.mulf %153, %152 : vector<16x64xf32>
    %155 = arith.addf %146, %154 : vector<16x64xf32>
    %c0_143 = arith.constant 0 : index
    %c8_144 = arith.constant 8 : index
    %156 = vector.load %arg65[%c0_143, %c8_144] : memref<16x80xf32, #tpu.memory_space<vmem>>, vector<16x64xf32>
    tpu.vector_store %arg65[%c0_143, %c8_144], %155 {strides = array<i32>} : memref<16x80xf32, #tpu.memory_space<vmem>>, vector<16x64xf32>,
    %c0_145 = arith.constant 0 : index
    %c3 = arith.constant 3 : index
    %157 = vector.load %arg65[%c0_145, %c3] : memref<16x80xf32, #tpu.memory_space<vmem>>, vector<16x64xf32>
    %c0_146 = arith.constant 0 : index
    %c8_147 = arith.constant 8 : index
    %158 = vector.load %arg65[%c0_146, %c8_147] : memref<16x80xf32, #tpu.memory_space<vmem>>, vector<16x64xf32>
    %c0_148 = arith.constant 0 : index
    %c13 = arith.constant 13 : index
    %159 = vector.load %arg65[%c0_148, %c13] : memref<16x80xf32, #tpu.memory_space<vmem>>, vector<16x64xf32>
    %160 = tpu.concatenate %157, %158, %159 in 0 : vector<16x64xf32>, vector<16x64xf32>, vector<16x64xf32> -> vector<48x64xf32>
    %c0_149 = arith.constant 0 : index
    %c0_150 = arith.constant 0 : index
    %161 = vector.load %arg24[%c0_149, %c0_150] : memref<16x48xf32, #tpu.memory_space<vmem>>, vector<16x48xf32>
    %cst_151 = arith.constant dense<0.000000e+00> : vector<16x64xf32>
    %162 = tpu.matmul %161, %160, %cst_151 {dimension_numbers = #tpu.dot_dimension_numbers<[1], [0], [0], [1], [0, 0, 1, 1], [], []>} : vector<16x48xf32>, vector<48x64xf32>, vector<16x64xf32> -> vector<16x64xf32>
    %c0_152 = arith.constant 0 : index
    %c0_153 = arith.constant 0 : index
    %163 = vector.load %arg25[%c0_152, %c0_153] : memref<16x1xf32, #tpu.memory_space<vmem>>, vector<16x1xf32>
    %164 = vector.broadcast %163 : vector<16x1xf32> to vector<16x64xf32>
    %165 = arith.addf %162, %164 : vector<16x64xf32>
    %c0_154 = arith.constant 0 : index
    %c0_155 = arith.constant 0 : index
    %166 = vector.load %arg26[%c0_154, %c0_155] : memref<16x1xf32, #tpu.memory_space<vmem>>, vector<16x1xf32>
    %167 = vector.broadcast %166 : vector<16x1xf32> to vector<16x64xf32>
    %168 = arith.mulf %165, %167 : vector<16x64xf32>
    %169 = math.sin %168 : vector<16x64xf32>
    %c0_156 = arith.constant 0 : index
    %c0_157 = arith.constant 0 : index
    %170 = vector.load %arg27[%c0_156, %c0_157] : memref<16x1xf32, #tpu.memory_space<vmem>>, vector<16x1xf32>
    %171 = arith.mulf %169, %169 : vector<16x64xf32>
    %172 = vector.broadcast %170 : vector<16x1xf32> to vector<16x64xf32>
    %173 = arith.mulf %172, %171 : vector<16x64xf32>
    %174 = arith.addf %165, %173 : vector<16x64xf32>
    %c0_158 = arith.constant 0 : index
    %c8_159 = arith.constant 8 : index
    %175 = vector.load %arg65[%c0_158, %c8_159] : memref<16x80xf32, #tpu.memory_space<vmem>>, vector<16x64xf32>
    tpu.vector_store %arg65[%c0_158, %c8_159], %174 {strides = array<i32>} : memref<16x80xf32, #tpu.memory_space<vmem>>, vector<16x64xf32>,
    %c0_160 = arith.constant 0 : index
    %c7_161 = arith.constant 7 : index
    %176 = vector.load %arg65[%c0_160, %c7_161] : memref<16x80xf32, #tpu.memory_space<vmem>>, vector<16x64xf32>
    %c0_162 = arith.constant 0 : index
    %c8_163 = arith.constant 8 : index
    %177 = vector.load %arg65[%c0_162, %c8_163] : memref<16x80xf32, #tpu.memory_space<vmem>>, vector<16x64xf32>
    %c0_164 = arith.constant 0 : index
    %c9_165 = arith.constant 9 : index
    %178 = vector.load %arg65[%c0_164, %c9_165] : memref<16x80xf32, #tpu.memory_space<vmem>>, vector<16x64xf32>
    %179 = tpu.concatenate %176, %177, %178 in 0 : vector<16x64xf32>, vector<16x64xf32>, vector<16x64xf32> -> vector<48x64xf32>
    %c0_166 = arith.constant 0 : index
    %c0_167 = arith.constant 0 : index
    %180 = vector.load %arg28[%c0_166, %c0_167] : memref<16x48xf32, #tpu.memory_space<vmem>>, vector<16x48xf32>
    %cst_168 = arith.constant dense<0.000000e+00> : vector<16x64xf32>
    %181 = tpu.matmul %180, %179, %cst_168 {dimension_numbers = #tpu.dot_dimension_numbers<[1], [0], [0], [1], [0, 0, 1, 1], [], []>} : vector<16x48xf32>, vector<48x64xf32>, vector<16x64xf32> -> vector<16x64xf32>
    %c0_169 = arith.constant 0 : index
    %c0_170 = arith.constant 0 : index
    %182 = vector.load %arg29[%c0_169, %c0_170] : memref<16x1xf32, #tpu.memory_space<vmem>>, vector<16x1xf32>
    %183 = vector.broadcast %182 : vector<16x1xf32> to vector<16x64xf32>
    %184 = arith.addf %181, %183 : vector<16x64xf32>
    %c0_171 = arith.constant 0 : index
    %c8_172 = arith.constant 8 : index
    %185 = vector.load %arg64[%c0_171, %c8_172] : memref<16x80xf32, #tpu.memory_space<vmem>>, vector<16x64xf32>
    %186 = arith.addf %184, %185 : vector<16x64xf32>
    %c0_173 = arith.constant 0 : index
    %c8_174 = arith.constant 8 : index
    %187 = vector.load %arg64[%c0_173, %c8_174] : memref<16x80xf32, #tpu.memory_space<vmem>>, vector<16x64xf32>
    tpu.vector_store %arg64[%c0_173, %c8_174], %186 {strides = array<i32>} : memref<16x80xf32, #tpu.memory_space<vmem>>, vector<16x64xf32>,
    %c0_175 = arith.constant 0 : index
    %c7_176 = arith.constant 7 : index
    %188 = vector.load %arg64[%c0_175, %c7_176] : memref<16x80xf32, #tpu.memory_space<vmem>>, vector<16x64xf32>
    %c0_177 = arith.constant 0 : index
    %c8_178 = arith.constant 8 : index
    %189 = vector.load %arg64[%c0_177, %c8_178] : memref<16x80xf32, #tpu.memory_space<vmem>>, vector<16x64xf32>
    %190 = tpu.concatenate %188, %189 in 0 : vector<16x64xf32>, vector<16x64xf32> -> vector<32x64xf32>
    %c0_179 = arith.constant 0 : index
    %c8_180 = arith.constant 8 : index
    %191 = vector.load %arg64[%c0_179, %c8_180] : memref<16x80xf32, #tpu.memory_space<vmem>>, vector<16x64xf32>
    %c0_181 = arith.constant 0 : index
    %c9_182 = arith.constant 9 : index
    %192 = vector.load %arg64[%c0_181, %c9_182] : memref<16x80xf32, #tpu.memory_space<vmem>>, vector<16x64xf32>
    %193 = tpu.concatenate %191, %192 in 0 : vector<16x64xf32>, vector<16x64xf32> -> vector<32x64xf32>
    %c0_183 = arith.constant 0 : index
    %c0_184 = arith.constant 0 : index
    %194 = vector.load %arg30[%c0_183, %c0_184] : memref<8x32xf32, #tpu.memory_space<vmem>>, vector<8x32xf32>
    %cst_185 = arith.constant dense<0.000000e+00> : vector<8x64xf32>
    %195 = tpu.matmul %194, %190, %cst_185 {dimension_numbers = #tpu.dot_dimension_numbers<[1], [0], [0], [1], [0, 0, 1, 1], [], []>} : vector<8x32xf32>, vector<32x64xf32>, vector<8x64xf32> -> vector<8x64xf32>
    %c0_186 = arith.constant 0 : index
    %c0_187 = arith.constant 0 : index
    %196 = vector.load %arg32[%c0_186, %c0_187] : memref<8x1xf32, #tpu.memory_space<vmem>>, vector<8x1xf32>
    %197 = vector.broadcast %196 : vector<8x1xf32> to vector<8x64xf32>
    %198 = arith.addf %195, %197 : vector<8x64xf32>
    %c0_188 = arith.constant 0 : index
    %c0_189 = arith.constant 0 : index
    %199 = vector.load %arg31[%c0_188, %c0_189] : memref<8x32xf32, #tpu.memory_space<vmem>>, vector<8x32xf32>
    %cst_190 = arith.constant dense<0.000000e+00> : vector<8x64xf32>
    %200 = tpu.matmul %199, %193, %cst_190 {dimension_numbers = #tpu.dot_dimension_numbers<[1], [0], [0], [1], [0, 0, 1, 1], [], []>} : vector<8x32xf32>, vector<32x64xf32>, vector<8x64xf32> -> vector<8x64xf32>
    %c0_191 = arith.constant 0 : index
    %c0_192 = arith.constant 0 : index
    %201 = vector.load %arg32[%c0_191, %c0_192] : memref<8x1xf32, #tpu.memory_space<vmem>>, vector<8x1xf32>
    %202 = vector.broadcast %201 : vector<8x1xf32> to vector<8x64xf32>
    %203 = arith.addf %200, %202 : vector<8x64xf32>
    %204 = tpu.iota {dimensions = array<i32: 0>} : vector<64x128xi32>
    %205 = tpu.iota {dimensions = array<i32: 1>} : vector<64x128xi32>
    %c2_i32_193 = arith.constant 2 : i32
    %206 = vector.broadcast %c2_i32_193 : i32 to vector<64x128xi32>
    %207 = arith.muli %206, %204 : vector<64x128xi32>
    %208 = arith.cmpi eq, %205, %207 : vector<64x128xi32>
    %209 = arith.extui %208 : vector<64x128xi1> to vector<64x128xi32>
    %210 = arith.sitofp %209 : vector<64x128xi32> to vector<64x128xf32>
    %c2_i32_194 = arith.constant 2 : i32
    %211 = vector.broadcast %c2_i32_194 : i32 to vector<64x128xi32>
    %212 = arith.muli %211, %204 : vector<64x128xi32>
    %c1_i32_195 = arith.constant 1 : i32
    %213 = vector.broadcast %c1_i32_195 : i32 to vector<64x128xi32>
    %214 = arith.addi %212, %213 : vector<64x128xi32>
    %215 = arith.cmpi eq, %205, %214 : vector<64x128xi32>
    %216 = arith.extui %215 : vector<64x128xi1> to vector<64x128xi32>
    %217 = arith.sitofp %216 : vector<64x128xi32> to vector<64x128xf32>
    %cst_196 = arith.constant dense<0.000000e+00> : vector<8x128xf32>
    %218 = tpu.matmul %198, %210, %cst_196 {dimension_numbers = #tpu.dot_dimension_numbers<[1], [0], [0], [1], [0, 0, 1, 1], [], []>} : vector<8x64xf32>, vector<64x128xf32>, vector<8x128xf32> -> vector<8x128xf32>
    %cst_197 = arith.constant dense<0.000000e+00> : vector<8x128xf32>
    %219 = tpu.matmul %203, %217, %cst_197 {dimension_numbers = #tpu.dot_dimension_numbers<[1], [0], [0], [1], [0, 0, 1, 1], [], []>} : vector<8x64xf32>, vector<64x128xf32>, vector<8x128xf32> -> vector<8x128xf32>
    %220 = arith.addf %218, %219 : vector<8x128xf32>
    %c0_198 = arith.constant 0 : index
    %c8_199 = arith.constant 8 : index
    %221 = vector.load %arg66[%c0_198, %c8_199] : memref<8x144xf32, #tpu.memory_space<vmem>>, vector<8x128xf32>
    tpu.vector_store %arg66[%c0_198, %c8_199], %220 {strides = array<i32>} : memref<8x144xf32, #tpu.memory_space<vmem>>, vector<8x128xf32>,
    %c0_200 = arith.constant 0 : index
    %c8_201 = arith.constant 8 : index
    %222 = vector.load %arg66[%c0_200, %c8_201] : memref<8x144xf32, #tpu.memory_space<vmem>>, vector<8x128xf32>
    %c0_202 = arith.constant 0 : index
    %c0_203 = arith.constant 0 : index
    %223 = vector.load %arg33[%c0_202, %c0_203] : memref<8x1xf32, #tpu.memory_space<vmem>>, vector<8x1xf32>
    %224 = vector.broadcast %223 : vector<8x1xf32> to vector<8x128xf32>
    %225 = arith.mulf %222, %224 : vector<8x128xf32>
    %226 = math.sin %225 : vector<8x128xf32>
    %c0_204 = arith.constant 0 : index
    %c0_205 = arith.constant 0 : index
    %227 = vector.load %arg34[%c0_204, %c0_205] : memref<8x1xf32, #tpu.memory_space<vmem>>, vector<8x1xf32>
    %228 = arith.mulf %226, %226 : vector<8x128xf32>
    %229 = vector.broadcast %227 : vector<8x1xf32> to vector<8x128xf32>
    %230 = arith.mulf %229, %228 : vector<8x128xf32>
    %231 = arith.addf %222, %230 : vector<8x128xf32>
    %c0_206 = arith.constant 0 : index
    %c8_207 = arith.constant 8 : index
    %232 = vector.load %arg67[%c0_206, %c8_207] : memref<8x144xf32, #tpu.memory_space<vmem>>, vector<8x128xf32>
    tpu.vector_store %arg67[%c0_206, %c8_207], %231 {strides = array<i32>} : memref<8x144xf32, #tpu.memory_space<vmem>>, vector<8x128xf32>,
    %c0_208 = arith.constant 0 : index
    %c7_209 = arith.constant 7 : index
    %233 = vector.load %arg67[%c0_208, %c7_209] : memref<8x144xf32, #tpu.memory_space<vmem>>, vector<8x128xf32>
    %c0_210 = arith.constant 0 : index
    %c8_211 = arith.constant 8 : index
    %234 = vector.load %arg67[%c0_210, %c8_211] : memref<8x144xf32, #tpu.memory_space<vmem>>, vector<8x128xf32>
    %c0_212 = arith.constant 0 : index
    %c9_213 = arith.constant 9 : index
    %235 = vector.load %arg67[%c0_212, %c9_213] : memref<8x144xf32, #tpu.memory_space<vmem>>, vector<8x128xf32>
    %236 = tpu.concatenate %233, %234, %235 in 0 : vector<8x128xf32>, vector<8x128xf32>, vector<8x128xf32> -> vector<24x128xf32>
    %c0_214 = arith.constant 0 : index
    %c0_215 = arith.constant 0 : index
    %237 = vector.load %arg35[%c0_214, %c0_215] : memref<8x24xf32, #tpu.memory_space<vmem>>, vector<8x24xf32>
    %cst_216 = arith.constant dense<0.000000e+00> : vector<8x128xf32>
    %238 = tpu.matmul %237, %236, %cst_216 {dimension_numbers = #tpu.dot_dimension_numbers<[1], [0], [0], [1], [0, 0, 1, 1], [], []>} : vector<8x24xf32>, vector<24x128xf32>, vector<8x128xf32> -> vector<8x128xf32>
    %c0_217 = arith.constant 0 : index
    %c0_218 = arith.constant 0 : index
    %239 = vector.load %arg36[%c0_217, %c0_218] : memref<8x1xf32, #tpu.memory_space<vmem>>, vector<8x1xf32>
    %240 = vector.broadcast %239 : vector<8x1xf32> to vector<8x128xf32>
    %241 = arith.addf %238, %240 : vector<8x128xf32>
    %c0_219 = arith.constant 0 : index
    %c0_220 = arith.constant 0 : index
    %242 = vector.load %arg37[%c0_219, %c0_220] : memref<8x1xf32, #tpu.memory_space<vmem>>, vector<8x1xf32>
    %243 = vector.broadcast %242 : vector<8x1xf32> to vector<8x128xf32>
    %244 = arith.mulf %241, %243 : vector<8x128xf32>
    %245 = math.sin %244 : vector<8x128xf32>
    %c0_221 = arith.constant 0 : index
    %c0_222 = arith.constant 0 : index
    %246 = vector.load %arg38[%c0_221, %c0_222] : memref<8x1xf32, #tpu.memory_space<vmem>>, vector<8x1xf32>
    %247 = arith.mulf %245, %245 : vector<8x128xf32>
    %248 = vector.broadcast %246 : vector<8x1xf32> to vector<8x128xf32>
    %249 = arith.mulf %248, %247 : vector<8x128xf32>
    %250 = arith.addf %241, %249 : vector<8x128xf32>
    %c0_223 = arith.constant 0 : index
    %c8_224 = arith.constant 8 : index
    %251 = vector.load %arg67[%c0_223, %c8_224] : memref<8x144xf32, #tpu.memory_space<vmem>>, vector<8x128xf32>
    tpu.vector_store %arg67[%c0_223, %c8_224], %250 {strides = array<i32>} : memref<8x144xf32, #tpu.memory_space<vmem>>, vector<8x128xf32>,
    %c0_225 = arith.constant 0 : index
    %c7_226 = arith.constant 7 : index
    %252 = vector.load %arg67[%c0_225, %c7_226] : memref<8x144xf32, #tpu.memory_space<vmem>>, vector<8x128xf32>
    %c0_227 = arith.constant 0 : index
    %c8_228 = arith.constant 8 : index
    %253 = vector.load %arg67[%c0_227, %c8_228] : memref<8x144xf32, #tpu.memory_space<vmem>>, vector<8x128xf32>
    %c0_229 = arith.constant 0 : index
    %c9_230 = arith.constant 9 : index
    %254 = vector.load %arg67[%c0_229, %c9_230] : memref<8x144xf32, #tpu.memory_space<vmem>>, vector<8x128xf32>
    %255 = tpu.concatenate %252, %253, %254 in 0 : vector<8x128xf32>, vector<8x128xf32>, vector<8x128xf32> -> vector<24x128xf32>
    %c0_231 = arith.constant 0 : index
    %c0_232 = arith.constant 0 : index
    %256 = vector.load %arg39[%c0_231, %c0_232] : memref<8x24xf32, #tpu.memory_space<vmem>>, vector<8x24xf32>
    %cst_233 = arith.constant dense<0.000000e+00> : vector<8x128xf32>
    %257 = tpu.matmul %256, %255, %cst_233 {dimension_numbers = #tpu.dot_dimension_numbers<[1], [0], [0], [1], [0, 0, 1, 1], [], []>} : vector<8x24xf32>, vector<24x128xf32>, vector<8x128xf32> -> vector<8x128xf32>
    %c0_234 = arith.constant 0 : index
    %c0_235 = arith.constant 0 : index
    %258 = vector.load %arg40[%c0_234, %c0_235] : memref<8x1xf32, #tpu.memory_space<vmem>>, vector<8x1xf32>
    %259 = vector.broadcast %258 : vector<8x1xf32> to vector<8x128xf32>
    %260 = arith.addf %257, %259 : vector<8x128xf32>
    %c0_236 = arith.constant 0 : index
    %c8_237 = arith.constant 8 : index
    %261 = vector.load %arg66[%c0_236, %c8_237] : memref<8x144xf32, #tpu.memory_space<vmem>>, vector<8x128xf32>
    %262 = arith.addf %260, %261 : vector<8x128xf32>
    %c0_238 = arith.constant 0 : index
    %c8_239 = arith.constant 8 : index
    %263 = vector.load %arg66[%c0_238, %c8_239] : memref<8x144xf32, #tpu.memory_space<vmem>>, vector<8x128xf32>
    tpu.vector_store %arg66[%c0_238, %c8_239], %262 {strides = array<i32>} : memref<8x144xf32, #tpu.memory_space<vmem>>, vector<8x128xf32>,
    %c0_240 = arith.constant 0 : index
    %c8_241 = arith.constant 8 : index
    %264 = vector.load %arg66[%c0_240, %c8_241] : memref<8x144xf32, #tpu.memory_space<vmem>>, vector<8x128xf32>
    %c0_242 = arith.constant 0 : index
    %c0_243 = arith.constant 0 : index
    %265 = vector.load %arg41[%c0_242, %c0_243] : memref<8x1xf32, #tpu.memory_space<vmem>>, vector<8x1xf32>
    %266 = vector.broadcast %265 : vector<8x1xf32> to vector<8x128xf32>
    %267 = arith.mulf %264, %266 : vector<8x128xf32>
    %268 = math.sin %267 : vector<8x128xf32>
    %c0_244 = arith.constant 0 : index
    %c0_245 = arith.constant 0 : index
    %269 = vector.load %arg42[%c0_244, %c0_245] : memref<8x1xf32, #tpu.memory_space<vmem>>, vector<8x1xf32>
    %270 = arith.mulf %268, %268 : vector<8x128xf32>
    %271 = vector.broadcast %269 : vector<8x1xf32> to vector<8x128xf32>
    %272 = arith.mulf %271, %270 : vector<8x128xf32>
    %273 = arith.addf %264, %272 : vector<8x128xf32>
    %c0_246 = arith.constant 0 : index
    %c8_247 = arith.constant 8 : index
    %274 = vector.load %arg67[%c0_246, %c8_247] : memref<8x144xf32, #tpu.memory_space<vmem>>, vector<8x128xf32>
    tpu.vector_store %arg67[%c0_246, %c8_247], %273 {strides = array<i32>} : memref<8x144xf32, #tpu.memory_space<vmem>>, vector<8x128xf32>,
    %c0_248 = arith.constant 0 : index
    %c5_249 = arith.constant 5 : index
    %275 = vector.load %arg67[%c0_248, %c5_249] : memref<8x144xf32, #tpu.memory_space<vmem>>, vector<8x128xf32>
    %c0_250 = arith.constant 0 : index
    %c8_251 = arith.constant 8 : index
    %276 = vector.load %arg67[%c0_250, %c8_251] : memref<8x144xf32, #tpu.memory_space<vmem>>, vector<8x128xf32>
    %c0_252 = arith.constant 0 : index
    %c11_253 = arith.constant 11 : index
    %277 = vector.load %arg67[%c0_252, %c11_253] : memref<8x144xf32, #tpu.memory_space<vmem>>, vector<8x128xf32>
    %278 = tpu.concatenate %275, %276, %277 in 0 : vector<8x128xf32>, vector<8x128xf32>, vector<8x128xf32> -> vector<24x128xf32>
    %c0_254 = arith.constant 0 : index
    %c0_255 = arith.constant 0 : index
    %279 = vector.load %arg43[%c0_254, %c0_255] : memref<8x24xf32, #tpu.memory_space<vmem>>, vector<8x24xf32>
    %cst_256 = arith.constant dense<0.000000e+00> : vector<8x128xf32>
    %280 = tpu.matmul %279, %278, %cst_256 {dimension_numbers = #tpu.dot_dimension_numbers<[1], [0], [0], [1], [0, 0, 1, 1], [], []>} : vector<8x24xf32>, vector<24x128xf32>, vector<8x128xf32> -> vector<8x128xf32>
    %c0_257 = arith.constant 0 : index
    %c0_258 = arith.constant 0 : index
    %281 = vector.load %arg44[%c0_257, %c0_258] : memref<8x1xf32, #tpu.memory_space<vmem>>, vector<8x1xf32>
    %282 = vector.broadcast %281 : vector<8x1xf32> to vector<8x128xf32>
    %283 = arith.addf %280, %282 : vector<8x128xf32>
    %c0_259 = arith.constant 0 : index
    %c0_260 = arith.constant 0 : index
    %284 = vector.load %arg45[%c0_259, %c0_260] : memref<8x1xf32, #tpu.memory_space<vmem>>, vector<8x1xf32>
    %285 = vector.broadcast %284 : vector<8x1xf32> to vector<8x128xf32>
    %286 = arith.mulf %283, %285 : vector<8x128xf32>
    %287 = math.sin %286 : vector<8x128xf32>
    %c0_261 = arith.constant 0 : index
    %c0_262 = arith.constant 0 : index
    %288 = vector.load %arg46[%c0_261, %c0_262] : memref<8x1xf32, #tpu.memory_space<vmem>>, vector<8x1xf32>
    %289 = arith.mulf %287, %287 : vector<8x128xf32>
    %290 = vector.broadcast %288 : vector<8x1xf32> to vector<8x128xf32>
    %291 = arith.mulf %290, %289 : vector<8x128xf32>
    %292 = arith.addf %283, %291 : vector<8x128xf32>
    %c0_263 = arith.constant 0 : index
    %c8_264 = arith.constant 8 : index
    %293 = vector.load %arg67[%c0_263, %c8_264] : memref<8x144xf32, #tpu.memory_space<vmem>>, vector<8x128xf32>
    tpu.vector_store %arg67[%c0_263, %c8_264], %292 {strides = array<i32>} : memref<8x144xf32, #tpu.memory_space<vmem>>, vector<8x128xf32>,
    %c0_265 = arith.constant 0 : index
    %c7_266 = arith.constant 7 : index
    %294 = vector.load %arg67[%c0_265, %c7_266] : memref<8x144xf32, #tpu.memory_space<vmem>>, vector<8x128xf32>
    %c0_267 = arith.constant 0 : index
    %c8_268 = arith.constant 8 : index
    %295 = vector.load %arg67[%c0_267, %c8_268] : memref<8x144xf32, #tpu.memory_space<vmem>>, vector<8x128xf32>
    %c0_269 = arith.constant 0 : index
    %c9_270 = arith.constant 9 : index
    %296 = vector.load %arg67[%c0_269, %c9_270] : memref<8x144xf32, #tpu.memory_space<vmem>>, vector<8x128xf32>
    %297 = tpu.concatenate %294, %295, %296 in 0 : vector<8x128xf32>, vector<8x128xf32>, vector<8x128xf32> -> vector<24x128xf32>
    %c0_271 = arith.constant 0 : index
    %c0_272 = arith.constant 0 : index
    %298 = vector.load %arg47[%c0_271, %c0_272] : memref<8x24xf32, #tpu.memory_space<vmem>>, vector<8x24xf32>
    %cst_273 = arith.constant dense<0.000000e+00> : vector<8x128xf32>
    %299 = tpu.matmul %298, %297, %cst_273 {dimension_numbers = #tpu.dot_dimension_numbers<[1], [0], [0], [1], [0, 0, 1, 1], [], []>} : vector<8x24xf32>, vector<24x128xf32>, vector<8x128xf32> -> vector<8x128xf32>
    %c0_274 = arith.constant 0 : index
    %c0_275 = arith.constant 0 : index
    %300 = vector.load %arg48[%c0_274, %c0_275] : memref<8x1xf32, #tpu.memory_space<vmem>>, vector<8x1xf32>
    %301 = vector.broadcast %300 : vector<8x1xf32> to vector<8x128xf32>
    %302 = arith.addf %299, %301 : vector<8x128xf32>
    %c0_276 = arith.constant 0 : index
    %c8_277 = arith.constant 8 : index
    %303 = vector.load %arg66[%c0_276, %c8_277] : memref<8x144xf32, #tpu.memory_space<vmem>>, vector<8x128xf32>
    %304 = arith.addf %302, %303 : vector<8x128xf32>
    %c0_278 = arith.constant 0 : index
    %c8_279 = arith.constant 8 : index
    %305 = vector.load %arg66[%c0_278, %c8_279] : memref<8x144xf32, #tpu.memory_space<vmem>>, vector<8x128xf32>
    tpu.vector_store %arg66[%c0_278, %c8_279], %304 {strides = array<i32>} : memref<8x144xf32, #tpu.memory_space<vmem>>, vector<8x128xf32>,
    %c0_280 = arith.constant 0 : index
    %c8_281 = arith.constant 8 : index
    %306 = vector.load %arg66[%c0_280, %c8_281] : memref<8x144xf32, #tpu.memory_space<vmem>>, vector<8x128xf32>
    %c0_282 = arith.constant 0 : index
    %c0_283 = arith.constant 0 : index
    %307 = vector.load %arg49[%c0_282, %c0_283] : memref<8x1xf32, #tpu.memory_space<vmem>>, vector<8x1xf32>
    %308 = vector.broadcast %307 : vector<8x1xf32> to vector<8x128xf32>
    %309 = arith.mulf %306, %308 : vector<8x128xf32>
    %310 = math.sin %309 : vector<8x128xf32>
    %c0_284 = arith.constant 0 : index
    %c0_285 = arith.constant 0 : index
    %311 = vector.load %arg50[%c0_284, %c0_285] : memref<8x1xf32, #tpu.memory_space<vmem>>, vector<8x1xf32>
    %312 = arith.mulf %310, %310 : vector<8x128xf32>
    %313 = vector.broadcast %311 : vector<8x1xf32> to vector<8x128xf32>
    %314 = arith.mulf %313, %312 : vector<8x128xf32>
    %315 = arith.addf %306, %314 : vector<8x128xf32>
    %c0_286 = arith.constant 0 : index
    %c8_287 = arith.constant 8 : index
    %316 = vector.load %arg67[%c0_286, %c8_287] : memref<8x144xf32, #tpu.memory_space<vmem>>, vector<8x128xf32>
    tpu.vector_store %arg67[%c0_286, %c8_287], %315 {strides = array<i32>} : memref<8x144xf32, #tpu.memory_space<vmem>>, vector<8x128xf32>,
    %c0_288 = arith.constant 0 : index
    %c3_289 = arith.constant 3 : index
    %317 = vector.load %arg67[%c0_288, %c3_289] : memref<8x144xf32, #tpu.memory_space<vmem>>, vector<8x128xf32>
    %c0_290 = arith.constant 0 : index
    %c8_291 = arith.constant 8 : index
    %318 = vector.load %arg67[%c0_290, %c8_291] : memref<8x144xf32, #tpu.memory_space<vmem>>, vector<8x128xf32>
    %c0_292 = arith.constant 0 : index
    %c13_293 = arith.constant 13 : index
    %319 = vector.load %arg67[%c0_292, %c13_293] : memref<8x144xf32, #tpu.memory_space<vmem>>, vector<8x128xf32>
    %320 = tpu.concatenate %317, %318, %319 in 0 : vector<8x128xf32>, vector<8x128xf32>, vector<8x128xf32> -> vector<24x128xf32>
    %c0_294 = arith.constant 0 : index
    %c0_295 = arith.constant 0 : index
    %321 = vector.load %arg51[%c0_294, %c0_295] : memref<8x24xf32, #tpu.memory_space<vmem>>, vector<8x24xf32>
    %cst_296 = arith.constant dense<0.000000e+00> : vector<8x128xf32>
    %322 = tpu.matmul %321, %320, %cst_296 {dimension_numbers = #tpu.dot_dimension_numbers<[1], [0], [0], [1], [0, 0, 1, 1], [], []>} : vector<8x24xf32>, vector<24x128xf32>, vector<8x128xf32> -> vector<8x128xf32>
    %c0_297 = arith.constant 0 : index
    %c0_298 = arith.constant 0 : index
    %323 = vector.load %arg52[%c0_297, %c0_298] : memref<8x1xf32, #tpu.memory_space<vmem>>, vector<8x1xf32>
    %324 = vector.broadcast %323 : vector<8x1xf32> to vector<8x128xf32>
    %325 = arith.addf %322, %324 : vector<8x128xf32>
    %c0_299 = arith.constant 0 : index
    %c0_300 = arith.constant 0 : index
    %326 = vector.load %arg53[%c0_299, %c0_300] : memref<8x1xf32, #tpu.memory_space<vmem>>, vector<8x1xf32>
    %327 = vector.broadcast %326 : vector<8x1xf32> to vector<8x128xf32>
    %328 = arith.mulf %325, %327 : vector<8x128xf32>
    %329 = math.sin %328 : vector<8x128xf32>
    %c0_301 = arith.constant 0 : index
    %c0_302 = arith.constant 0 : index
    %330 = vector.load %arg54[%c0_301, %c0_302] : memref<8x1xf32, #tpu.memory_space<vmem>>, vector<8x1xf32>
    %331 = arith.mulf %329, %329 : vector<8x128xf32>
    %332 = vector.broadcast %330 : vector<8x1xf32> to vector<8x128xf32>
    %333 = arith.mulf %332, %331 : vector<8x128xf32>
    %334 = arith.addf %325, %333 : vector<8x128xf32>
    %c0_303 = arith.constant 0 : index
    %c8_304 = arith.constant 8 : index
    %335 = vector.load %arg67[%c0_303, %c8_304] : memref<8x144xf32, #tpu.memory_space<vmem>>, vector<8x128xf32>
    tpu.vector_store %arg67[%c0_303, %c8_304], %334 {strides = array<i32>} : memref<8x144xf32, #tpu.memory_space<vmem>>, vector<8x128xf32>,
    %c0_305 = arith.constant 0 : index
    %c7_306 = arith.constant 7 : index
    %336 = vector.load %arg67[%c0_305, %c7_306] : memref<8x144xf32, #tpu.memory_space<vmem>>, vector<8x128xf32>
    %c0_307 = arith.constant 0 : index
    %c8_308 = arith.constant 8 : index
    %337 = vector.load %arg67[%c0_307, %c8_308] : memref<8x144xf32, #tpu.memory_space<vmem>>, vector<8x128xf32>
    %c0_309 = arith.constant 0 : index
    %c9_310 = arith.constant 9 : index
    %338 = vector.load %arg67[%c0_309, %c9_310] : memref<8x144xf32, #tpu.memory_space<vmem>>, vector<8x128xf32>
    %339 = tpu.concatenate %336, %337, %338 in 0 : vector<8x128xf32>, vector<8x128xf32>, vector<8x128xf32> -> vector<24x128xf32>
    %c0_311 = arith.constant 0 : index
    %c0_312 = arith.constant 0 : index
    %340 = vector.load %arg55[%c0_311, %c0_312] : memref<8x24xf32, #tpu.memory_space<vmem>>, vector<8x24xf32>
    %cst_313 = arith.constant dense<0.000000e+00> : vector<8x128xf32>
    %341 = tpu.matmul %340, %339, %cst_313 {dimension_numbers = #tpu.dot_dimension_numbers<[1], [0], [0], [1], [0, 0, 1, 1], [], []>} : vector<8x24xf32>, vector<24x128xf32>, vector<8x128xf32> -> vector<8x128xf32>
    %c0_314 = arith.constant 0 : index
    %c0_315 = arith.constant 0 : index
    %342 = vector.load %arg56[%c0_314, %c0_315] : memref<8x1xf32, #tpu.memory_space<vmem>>, vector<8x1xf32>
    %343 = vector.broadcast %342 : vector<8x1xf32> to vector<8x128xf32>
    %344 = arith.addf %341, %343 : vector<8x128xf32>
    %c0_316 = arith.constant 0 : index
    %c8_317 = arith.constant 8 : index
    %345 = vector.load %arg66[%c0_316, %c8_317] : memref<8x144xf32, #tpu.memory_space<vmem>>, vector<8x128xf32>
    %346 = arith.addf %344, %345 : vector<8x128xf32>
    %c0_318 = arith.constant 0 : index
    %c8_319 = arith.constant 8 : index
    %347 = vector.load %arg66[%c0_318, %c8_319] : memref<8x144xf32, #tpu.memory_space<vmem>>, vector<8x128xf32>
    tpu.vector_store %arg66[%c0_318, %c8_319], %346 {strides = array<i32>} : memref<8x144xf32, #tpu.memory_space<vmem>>, vector<8x128xf32>,
    %c0_320 = arith.constant 0 : index
    %c8_321 = arith.constant 8 : index
    %348 = vector.load %arg66[%c0_320, %c8_321] : memref<8x144xf32, #tpu.memory_space<vmem>>, vector<8x128xf32>
    %c0_322 = arith.constant 0 : index
    %c0_323 = arith.constant 0 : index
    %349 = vector.load %arg57[%c0_322, %c0_323] : memref<8x1xf32, #tpu.memory_space<vmem>>, vector<8x1xf32>
    %350 = vector.broadcast %349 : vector<8x1xf32> to vector<8x128xf32>
    %351 = arith.mulf %348, %350 : vector<8x128xf32>
    %352 = math.sin %351 : vector<8x128xf32>
    %c0_324 = arith.constant 0 : index
    %c0_325 = arith.constant 0 : index
    %353 = vector.load %arg58[%c0_324, %c0_325] : memref<8x1xf32, #tpu.memory_space<vmem>>, vector<8x1xf32>
    %354 = arith.mulf %352, %352 : vector<8x128xf32>
    %355 = vector.broadcast %353 : vector<8x1xf32> to vector<8x128xf32>
    %356 = arith.mulf %355, %354 : vector<8x128xf32>
    %357 = arith.addf %348, %356 : vector<8x128xf32>
    %c0_326 = arith.constant 0 : index
    %c8_327 = arith.constant 8 : index
    %358 = vector.load %arg67[%c0_326, %c8_327] : memref<8x144xf32, #tpu.memory_space<vmem>>, vector<8x128xf32>
    tpu.vector_store %arg67[%c0_326, %c8_327], %357 {strides = array<i32>} : memref<8x144xf32, #tpu.memory_space<vmem>>, vector<8x128xf32>,
    %c0_328 = arith.constant 0 : index
    %c5_329 = arith.constant 5 : index
    %359 = vector.load %arg67[%c0_328, %c5_329] : memref<8x144xf32, #tpu.memory_space<vmem>>, vector<8x128xf32>
    %c0_330 = arith.constant 0 : index
    %c6_331 = arith.constant 6 : index
    %360 = vector.load %arg67[%c0_330, %c6_331] : memref<8x144xf32, #tpu.memory_space<vmem>>, vector<8x128xf32>
    %c0_332 = arith.constant 0 : index
    %c7_333 = arith.constant 7 : index
    %361 = vector.load %arg67[%c0_332, %c7_333] : memref<8x144xf32, #tpu.memory_space<vmem>>, vector<8x128xf32>
    %c0_334 = arith.constant 0 : index
    %c8_335 = arith.constant 8 : index
    %362 = vector.load %arg67[%c0_334, %c8_335] : memref<8x144xf32, #tpu.memory_space<vmem>>, vector<8x128xf32>
    %c0_336 = arith.constant 0 : index
    %c9_337 = arith.constant 9 : index
    %363 = vector.load %arg67[%c0_336, %c9_337] : memref<8x144xf32, #tpu.memory_space<vmem>>, vector<8x128xf32>
    %c0_338 = arith.constant 0 : index
    %c10_339 = arith.constant 10 : index
    %364 = vector.load %arg67[%c0_338, %c10_339] : memref<8x144xf32, #tpu.memory_space<vmem>>, vector<8x128xf32>
    %c0_340 = arith.constant 0 : index
    %c11_341 = arith.constant 11 : index
    %365 = vector.load %arg67[%c0_340, %c11_341] : memref<8x144xf32, #tpu.memory_space<vmem>>, vector<8x128xf32>
    %366 = tpu.concatenate %359, %360, %361, %362, %363, %364, %365 in 0 : vector<8x128xf32>, vector<8x128xf32>, vector<8x128xf32>, vector<8x128xf32>, vector<8x128xf32>, vector<8x128xf32>, vector<8x128xf32> -> vector<56x128xf32>
    %c0_342 = arith.constant 0 : index
    %c0_343 = arith.constant 0 : index
    %367 = vector.load %arg59[%c0_342, %c0_343] : memref<1x56xf32, #tpu.memory_space<vmem>>, vector<1x56xf32>
    %cst_344 = arith.constant dense<0.000000e+00> : vector<1x128xf32>
    %368 = tpu.matmul %367, %366, %cst_344 {dimension_numbers = #tpu.dot_dimension_numbers<[1], [0], [0], [1], [0, 0, 1, 1], [], []>} : vector<1x56xf32>, vector<56x128xf32>, vector<1x128xf32> -> vector<1x128xf32>
    %c0_345 = arith.constant 0 : index
    %c0_346 = arith.constant 0 : index
    %369 = vector.load %arg60[%c0_345, %c0_346] : memref<1x1xf32, #tpu.memory_space<vmem>>, vector<1x1xf32>
    %370 = vector.broadcast %369 : vector<1x1xf32> to vector<1x128xf32>
    %371 = arith.addf %368, %370 : vector<1x128xf32>
    %372 = math.tanh %371 : vector<1x128xf32>
    %c0_347 = arith.constant 0 : index
    %c0_348 = arith.constant 0 : index
    %373 = vector.load %arg61[%c0_347, %c0_348] : memref<1x128xf32, #tpu.memory_space<vmem>>, vector<1x128xf32>
    tpu.vector_store %arg61[%c0_347, %c0_348], %372 {strides = array<i32>} : memref<1x128xf32, #tpu.memory_space<vmem>>, vector<1x128xf32>,
    return
  }
}

</mosaic_0001>

<llo_original>
// kernel: onnx_wrapper_forward.1
$region0: #{onnx_wrapper_forward.1}
  #allocation0 [shape = 'u32[]', space=smem, size = 0x4, offset = 0x4, fixed_abs, tag = 'smem constant byte address 0x4 - core index']
  #allocation1 [shape = 'u32[144,128]{1,0:T(1,128)}', space=vmem, size = 0x12000, scoped, tag = 'internal scratch']
  #allocation2 [shape = 'f32[8,48]{1,0:T(8,128)}', space=vmem, size = 0x1000, scoped, tag = 'scratch operand']
  #allocation3 [shape = 'f32[32,48]{1,0:T(8,128)}', space=vmem, size = 0x4000, scoped, tag = 'scratch operand']
  #allocation4 [shape = 'f32[16,80]{1,0:T(8,128)}', space=vmem, size = 0x2000, scoped, tag = 'scratch operand']
  #allocation5 [shape = 'f32[16,80]{1,0:T(8,128)}', space=vmem, size = 0x2000, scoped, tag = 'scratch operand']
  #allocation6 [shape = 'f32[8,144]{1,0:T(8,128)}', space=vmem, size = 0x2000, scoped, tag = 'scratch operand']
  #allocation7 [shape = 'f32[8,144]{1,0:T(8,128)}', space=vmem, size = 0x2000, scoped, tag = 'scratch operand']
  #allocation8 [shape = 'f32[1,1]{1,0:T(1,128)S(1)}', space=vmem, size = 0x200, scoped, tag = 'scoped memory for onnx_wrapper_forward.1']
  %s0 = inlined_call_operand.smem [shape: u32[62], index: -1, kind: input, shape index: {}]
  %s1 = sld [smem:[%s0]]
  %s2 = scalar_lea.smem %s0, 1
  %s3 = sld [smem:[%s2]]
  %s4 = scalar_lea.smem %s0, 2
  %s5 = sld [smem:[%s4]]
  %s6 = scalar_lea.smem %s0, 3
  %s7 = sld [smem:[%s6]]
  %s8 = scalar_lea.smem %s0, 4
  %s9 = sld [smem:[%s8]]
  %s10 = scalar_lea.smem %s0, 5
  %s11 = sld [smem:[%s10]]
  %s12 = scalar_lea.smem %s0, 6
  %s13 = sld [smem:[%s12]]
  %s14 = scalar_lea.smem %s0, 7
  %s15 = sld [smem:[%s14]]
  %s16 = scalar_lea.smem %s0, 8
  %s17 = sld [smem:[%s16]]
  %s18 = scalar_lea.smem %s0, 9
  %s19 = sld [smem:[%s18]]
  %s20 = scalar_lea.smem %s0, 10
  %s21 = sld [smem:[%s20]]
  %s22 = scalar_lea.smem %s0, 11
  %s23 = sld [smem:[%s22]]
  %s24 = scalar_lea.smem %s0, 12
  %s25 = sld [smem:[%s24]]
  %s26 = scalar_lea.smem %s0, 13
  %s27 = sld [smem:[%s26]]
  %s28 = scalar_lea.smem %s0, 14
  %s29 = sld [smem:[%s28]]
  %s30 = scalar_lea.smem %s0, 15
  %s31 = sld [smem:[%s30]]
  %s32 = scalar_lea.smem %s0, 16
  %s33 = sld [smem:[%s32]]
  %s34 = scalar_lea.smem %s0, 17
  %s35 = sld [smem:[%s34]]
  %s36 = scalar_lea.smem %s0, 18
  %s37 = sld [smem:[%s36]]
  %s38 = scalar_lea.smem %s0, 19
  %s39 = sld [smem:[%s38]]
  %s40 = scalar_lea.smem %s0, 20
  %s41 = sld [smem:[%s40]]
  %s42 = scalar_lea.smem %s0, 21
  %s43 = sld [smem:[%s42]]
  %s44 = scalar_lea.smem %s0, 22
  %s45 = sld [smem:[%s44]]
  %s46 = scalar_lea.smem %s0, 23
  %s47 = sld [smem:[%s46]]
  %s48 = scalar_lea.smem %s0, 24
  %s49 = sld [smem:[%s48]]
  %s50 = scalar_lea.smem %s0, 25
  %s51 = sld [smem:[%s50]]
  %s52 = scalar_lea.smem %s0, 26
  %s53 = sld [smem:[%s52]]
  %s54 = scalar_lea.smem %s0, 27
  %s55 = sld [smem:[%s54]]
  %s56 = scalar_lea.smem %s0, 28
  %s57 = sld [smem:[%s56]]
  %s58 = scalar_lea.smem %s0, 29
  %s59 = sld [smem:[%s58]]
  %s60 = scalar_lea.smem %s0, 30
  %s61 = sld [smem:[%s60]]
  %s62 = scalar_lea.smem %s0, 31
  %s63 = sld [smem:[%s62]]
  %s64 = scalar_lea.smem %s0, 32
  %s65 = sld [smem:[%s64]]
  %s66 = scalar_lea.smem %s0, 33
  %s67 = sld [smem:[%s66]]
  %s68 = scalar_lea.smem %s0, 34
  %s69 = sld [smem:[%s68]]
  %s70 = scalar_lea.smem %s0, 35
  %s71 = sld [smem:[%s70]]
  %s72 = scalar_lea.smem %s0, 36
  %s73 = sld [smem:[%s72]]
  %s74 = scalar_lea.smem %s0, 37
  %s75 = sld [smem:[%s74]]
  %s76 = scalar_lea.smem %s0, 38
  %s77 = sld [smem:[%s76]]
  %s78 = scalar_lea.smem %s0, 39
  %s79 = sld [smem:[%s78]]
  %s80 = scalar_lea.smem %s0, 40
  %s81 = sld [smem:[%s80]]
  %s82 = scalar_lea.smem %s0, 41
  %s83 = sld [smem:[%s82]]
  %s84 = scalar_lea.smem %s0, 42
  %s85 = sld [smem:[%s84]]
  %s86 = scalar_lea.smem %s0, 43
  %s87 = sld [smem:[%s86]]
  %s88 = scalar_lea.smem %s0, 44
  %s89 = sld [smem:[%s88]]
  %s90 = scalar_lea.smem %s0, 45
  %s91 = sld [smem:[%s90]]
  %s92 = scalar_lea.smem %s0, 46
  %s93 = sld [smem:[%s92]]
  %s94 = scalar_lea.smem %s0, 47
  %s95 = sld [smem:[%s94]]
  %s96 = scalar_lea.smem %s0, 48
  %s97 = sld [smem:[%s96]]
  %s98 = scalar_lea.smem %s0, 49
  %s99 = sld [smem:[%s98]]
  %s100 = scalar_lea.smem %s0, 50
  %s101 = sld [smem:[%s100]]
  %s102 = scalar_lea.smem %s0, 51
  %s103 = sld [smem:[%s102]]
  %s104 = scalar_lea.smem %s0, 52
  %s105 = sld [smem:[%s104]]
  %s106 = scalar_lea.smem %s0, 53
  %s107 = sld [smem:[%s106]]
  %s108 = scalar_lea.smem %s0, 54
  %s109 = sld [smem:[%s108]]
  %s110 = scalar_lea.smem %s0, 55
  %s111 = sld [smem:[%s110]]
  %s112 = scalar_lea.smem %s0, 56
  %s113 = sld [smem:[%s112]]
  %s114 = scalar_lea.smem %s0, 57
  %s115 = sld [smem:[%s114]]
  %s116 = scalar_lea.smem %s0, 58
  %s117 = sld [smem:[%s116]]
  %s118 = scalar_lea.smem %s0, 59
  %s119 = sld [smem:[%s118]]
  %s120 = scalar_lea.smem %s0, 60
  %s121 = sld [smem:[%s120]]
  %s122 = scalar_lea.smem %s0, 61
  %s123 = sld [smem:[%s122]]
  %s124 = sld [smem:[#allocation0]]
  $region254: #{onnx_wrapper_forward.1} parent=0
    _
  %s126 = ssub.s32 1, %s124
  %s127 = scalar_select 0, %s126, %s124
  %v128 = vstv %s121
  %129 = vst [vmem:[#allocation8] sm:$0x1] %v128
  $region1: #{onnx_wrapper_forward.1} parent=0
    #allocation9 [shape = 'u8[512]{0}', space=vmem, size = 0x400, scoped, tag = 'output window, operand 0, single buffered']
    #allocation10 [shape = 's32[1]{0}', space=sflag, size = 0x4, scoped, tag = 'scoped memory for onnx_wrapper_forward.1']
    %130 = vsyncpa [#allocation10], 0
    // Predicated region
    $region2: #{onnx_wrapper_forward.1} parent=1 // pred_check
      _
    $region3: #{onnx_wrapper_forward.1} parent=1 // pred_check_branch
      %132 = sbr.rel (0) target = $region5
    $region4: #{onnx_wrapper_forward.1} parent=1 // pred_region
      _
    $region5: #{onnx_wrapper_forward.1} parent=1 // pred_fallthru
      _
    // Predicated region
    $region6: #{onnx_wrapper_forward.1} parent=1 // pred_check
      _
    $region7: #{onnx_wrapper_forward.1} parent=1 // pred_check_branch
      %134 = sbr.rel (0) target = $region9
    $region8: #{onnx_wrapper_forward.1} parent=1 // pred_region
      _
    $region9: #{onnx_wrapper_forward.1} parent=1 // pred_fallthru
      _
    // Predicated region
    $region10: #{onnx_wrapper_forward.1} parent=1 // pred_check
      _
    $region11: #{onnx_wrapper_forward.1} parent=1 // pred_check_branch
      %136 = sbr.rel (0) target = $region13
    $region12: #{onnx_wrapper_forward.1} parent=1 // pred_region
      _
    $region13: #{onnx_wrapper_forward.1} parent=1 // pred_fallthru
      _
    // Predicated region
    $region14: #{onnx_wrapper_forward.1} parent=1 // pred_check
      _
    $region15: #{onnx_wrapper_forward.1} parent=1 // pred_check_branch
      %138 = sbr.rel (0) target = $region17
    $region16: #{onnx_wrapper_forward.1} parent=1 // pred_region
      _
    $region17: #{onnx_wrapper_forward.1} parent=1 // pred_fallthru
      _
    // Predicated region
    $region18: #{onnx_wrapper_forward.1} parent=1 // pred_check
      _
    $region19: #{onnx_wrapper_forward.1} parent=1 // pred_check_branch
      %140 = sbr.rel (0) target = $region21
    $region20: #{onnx_wrapper_forward.1} parent=1 // pred_region
      _
    $region21: #{onnx_wrapper_forward.1} parent=1 // pred_fallthru
      _
    // Predicated region
    $region22: #{onnx_wrapper_forward.1} parent=1 // pred_check
      _
    $region23: #{onnx_wrapper_forward.1} parent=1 // pred_check_branch
      %142 = sbr.rel (0) target = $region25
    $region24: #{onnx_wrapper_forward.1} parent=1 // pred_region
      _
    $region25: #{onnx_wrapper_forward.1} parent=1 // pred_fallthru
      _
    // Predicated region
    $region26: #{onnx_wrapper_forward.1} parent=1 // pred_check
      _
    $region27: #{onnx_wrapper_forward.1} parent=1 // pred_check_branch
      %144 = sbr.rel (0) target = $region29
    $region28: #{onnx_wrapper_forward.1} parent=1 // pred_region
      _
    $region29: #{onnx_wrapper_forward.1} parent=1 // pred_fallthru
      _
    // Predicated region
    $region30: #{onnx_wrapper_forward.1} parent=1 // pred_check
      _
    $region31: #{onnx_wrapper_forward.1} parent=1 // pred_check_branch
      %146 = sbr.rel (0) target = $region33
    $region32: #{onnx_wrapper_forward.1} parent=1 // pred_region
      _
    $region33: #{onnx_wrapper_forward.1} parent=1 // pred_fallthru
      _
    // Predicated region
    $region34: #{onnx_wrapper_forward.1} parent=1 // pred_check
      _
    $region35: #{onnx_wrapper_forward.1} parent=1 // pred_check_branch
      %148 = sbr.rel (0) target = $region37
    $region36: #{onnx_wrapper_forward.1} parent=1 // pred_region
      _
    $region37: #{onnx_wrapper_forward.1} parent=1 // pred_fallthru
      _
    // Predicated region
    $region38: #{onnx_wrapper_forward.1} parent=1 // pred_check
      _
    $region39: #{onnx_wrapper_forward.1} parent=1 // pred_check_branch
      %150 = sbr.rel (0) target = $region41
    $region40: #{onnx_wrapper_forward.1} parent=1 // pred_region
      _
    $region41: #{onnx_wrapper_forward.1} parent=1 // pred_fallthru
      _
    // Predicated region
    $region42: #{onnx_wrapper_forward.1} parent=1 // pred_check
      _
    $region43: #{onnx_wrapper_forward.1} parent=1 // pred_check_branch
      %152 = sbr.rel (0) target = $region45
    $region44: #{onnx_wrapper_forward.1} parent=1 // pred_region
      _
    $region45: #{onnx_wrapper_forward.1} parent=1 // pred_fallthru
      _
    // Predicated region
    $region46: #{onnx_wrapper_forward.1} parent=1 // pred_check
      _
    $region47: #{onnx_wrapper_forward.1} parent=1 // pred_check_branch
      %154 = sbr.rel (0) target = $region49
    $region48: #{onnx_wrapper_forward.1} parent=1 // pred_region
      _
    $region49: #{onnx_wrapper_forward.1} parent=1 // pred_fallthru
      _
    // Predicated region
    $region50: #{onnx_wrapper_forward.1} parent=1 // pred_check
      _
    $region51: #{onnx_wrapper_forward.1} parent=1 // pred_check_branch
      %156 = sbr.rel (0) target = $region53
    $region52: #{onnx_wrapper_forward.1} parent=1 // pred_region
      _
    $region53: #{onnx_wrapper_forward.1} parent=1 // pred_fallthru
      _
    // Predicated region
    $region54: #{onnx_wrapper_forward.1} parent=1 // pred_check
      _
    $region55: #{onnx_wrapper_forward.1} parent=1 // pred_check_branch
      %158 = sbr.rel (0) target = $region57
    $region56: #{onnx_wrapper_forward.1} parent=1 // pred_region
      _
    $region57: #{onnx_wrapper_forward.1} parent=1 // pred_fallthru
      _
    // Predicated region
    $region58: #{onnx_wrapper_forward.1} parent=1 // pred_check
      _
    $region59: #{onnx_wrapper_forward.1} parent=1 // pred_check_branch
      %160 = sbr.rel (0) target = $region61
    $region60: #{onnx_wrapper_forward.1} parent=1 // pred_region
      _
    $region61: #{onnx_wrapper_forward.1} parent=1 // pred_fallthru
      _
    // Predicated region
    $region62: #{onnx_wrapper_forward.1} parent=1 // pred_check
      _
    $region63: #{onnx_wrapper_forward.1} parent=1 // pred_check_branch
      %162 = sbr.rel (0) target = $region65
    $region64: #{onnx_wrapper_forward.1} parent=1 // pred_region
      _
    $region65: #{onnx_wrapper_forward.1} parent=1 // pred_fallthru
      _
    // Predicated region
    $region66: #{onnx_wrapper_forward.1} parent=1 // pred_check
      _
    $region67: #{onnx_wrapper_forward.1} parent=1 // pred_check_branch
      %164 = sbr.rel (0) target = $region69
    $region68: #{onnx_wrapper_forward.1} parent=1 // pred_region
      _
    $region69: #{onnx_wrapper_forward.1} parent=1 // pred_fallthru
      _
    // Predicated region
    $region70: #{onnx_wrapper_forward.1} parent=1 // pred_check
      _
    $region71: #{onnx_wrapper_forward.1} parent=1 // pred_check_branch
      %166 = sbr.rel (0) target = $region73
    $region72: #{onnx_wrapper_forward.1} parent=1 // pred_region
      _
    $region73: #{onnx_wrapper_forward.1} parent=1 // pred_fallthru
      _
    // Predicated region
    $region74: #{onnx_wrapper_forward.1} parent=1 // pred_check
      _
    $region75: #{onnx_wrapper_forward.1} parent=1 // pred_check_branch
      %168 = sbr.rel (0) target = $region77
    $region76: #{onnx_wrapper_forward.1} parent=1 // pred_region
      _
    $region77: #{onnx_wrapper_forward.1} parent=1 // pred_fallthru
      _
    // Predicated region
    $region78: #{onnx_wrapper_forward.1} parent=1 // pred_check
      _
    $region79: #{onnx_wrapper_forward.1} parent=1 // pred_check_branch
      %170 = sbr.rel (0) target = $region81
    $region80: #{onnx_wrapper_forward.1} parent=1 // pred_region
      _
    $region81: #{onnx_wrapper_forward.1} parent=1 // pred_fallthru
      _
    // Predicated region
    $region82: #{onnx_wrapper_forward.1} parent=1 // pred_check
      _
    $region83: #{onnx_wrapper_forward.1} parent=1 // pred_check_branch
      %172 = sbr.rel (0) target = $region85
    $region84: #{onnx_wrapper_forward.1} parent=1 // pred_region
      _
    $region85: #{onnx_wrapper_forward.1} parent=1 // pred_fallthru
      _
    // Predicated region
    $region86: #{onnx_wrapper_forward.1} parent=1 // pred_check
      _
    $region87: #{onnx_wrapper_forward.1} parent=1 // pred_check_branch
      %174 = sbr.rel (0) target = $region89
    $region88: #{onnx_wrapper_forward.1} parent=1 // pred_region
      _
    $region89: #{onnx_wrapper_forward.1} parent=1 // pred_fallthru
      _
    // Predicated region
    $region90: #{onnx_wrapper_forward.1} parent=1 // pred_check
      _
    $region91: #{onnx_wrapper_forward.1} parent=1 // pred_check_branch
      %176 = sbr.rel (0) target = $region93
    $region92: #{onnx_wrapper_forward.1} parent=1 // pred_region
      _
    $region93: #{onnx_wrapper_forward.1} parent=1 // pred_fallthru
      _
    // Predicated region
    $region94: #{onnx_wrapper_forward.1} parent=1 // pred_check
      _
    $region95: #{onnx_wrapper_forward.1} parent=1 // pred_check_branch
      %178 = sbr.rel (0) target = $region97
    $region96: #{onnx_wrapper_forward.1} parent=1 // pred_region
      _
    $region97: #{onnx_wrapper_forward.1} parent=1 // pred_fallthru
      _
    // Predicated region
    $region98: #{onnx_wrapper_forward.1} parent=1 // pred_check
      _
    $region99: #{onnx_wrapper_forward.1} parent=1 // pred_check_branch
      %180 = sbr.rel (0) target = $region101
    $region100: #{onnx_wrapper_forward.1} parent=1 // pred_region
      _
    $region101: #{onnx_wrapper_forward.1} parent=1 // pred_fallthru
      _
    // Predicated region
    $region102: #{onnx_wrapper_forward.1} parent=1 // pred_check
      _
    $region103: #{onnx_wrapper_forward.1} parent=1 // pred_check_branch
      %182 = sbr.rel (0) target = $region105
    $region104: #{onnx_wrapper_forward.1} parent=1 // pred_region
      _
    $region105: #{onnx_wrapper_forward.1} parent=1 // pred_fallthru
      _
    // Predicated region
    $region106: #{onnx_wrapper_forward.1} parent=1 // pred_check
      _
    $region107: #{onnx_wrapper_forward.1} parent=1 // pred_check_branch
      %184 = sbr.rel (0) target = $region109
    $region108: #{onnx_wrapper_forward.1} parent=1 // pred_region
      _
    $region109: #{onnx_wrapper_forward.1} parent=1 // pred_fallthru
      _
    // Predicated region
    $region110: #{onnx_wrapper_forward.1} parent=1 // pred_check
      _
    $region111: #{onnx_wrapper_forward.1} parent=1 // pred_check_branch
      %186 = sbr.rel (0) target = $region113
    $region112: #{onnx_wrapper_forward.1} parent=1 // pred_region
      _
    $region113: #{onnx_wrapper_forward.1} parent=1 // pred_fallthru
      _
    // Predicated region
    $region114: #{onnx_wrapper_forward.1} parent=1 // pred_check
      _
    $region115: #{onnx_wrapper_forward.1} parent=1 // pred_check_branch
      %188 = sbr.rel (0) target = $region117
    $region116: #{onnx_wrapper_forward.1} parent=1 // pred_region
      _
    $region117: #{onnx_wrapper_forward.1} parent=1 // pred_fallthru
      _
    // Predicated region
    $region118: #{onnx_wrapper_forward.1} parent=1 // pred_check
      _
    $region119: #{onnx_wrapper_forward.1} parent=1 // pred_check_branch
      %190 = sbr.rel (0) target = $region121
    $region120: #{onnx_wrapper_forward.1} parent=1 // pred_region
      _
    $region121: #{onnx_wrapper_forward.1} parent=1 // pred_fallthru
      _
    // Predicated region
    $region122: #{onnx_wrapper_forward.1} parent=1 // pred_check
      _
    $region123: #{onnx_wrapper_forward.1} parent=1 // pred_check_branch
      %192 = sbr.rel (0) target = $region125
    $region124: #{onnx_wrapper_forward.1} parent=1 // pred_region
      _
    $region125: #{onnx_wrapper_forward.1} parent=1 // pred_fallthru
      _
    // Predicated region
    $region126: #{onnx_wrapper_forward.1} parent=1 // pred_check
      _
    $region127: #{onnx_wrapper_forward.1} parent=1 // pred_check_branch
      %194 = sbr.rel (0) target = $region129
    $region128: #{onnx_wrapper_forward.1} parent=1 // pred_region
      _
    $region129: #{onnx_wrapper_forward.1} parent=1 // pred_fallthru
      _
    // Predicated region
    $region130: #{onnx_wrapper_forward.1} parent=1 // pred_check
      _
    $region131: #{onnx_wrapper_forward.1} parent=1 // pred_check_branch
      %196 = sbr.rel (0) target = $region133
    $region132: #{onnx_wrapper_forward.1} parent=1 // pred_region
      _
    $region133: #{onnx_wrapper_forward.1} parent=1 // pred_fallthru
      _
    // Predicated region
    $region134: #{onnx_wrapper_forward.1} parent=1 // pred_check
      _
    $region135: #{onnx_wrapper_forward.1} parent=1 // pred_check_branch
      %198 = sbr.rel (0) target = $region137
    $region136: #{onnx_wrapper_forward.1} parent=1 // pred_region
      _
    $region137: #{onnx_wrapper_forward.1} parent=1 // pred_fallthru
      _
    // Predicated region
    $region138: #{onnx_wrapper_forward.1} parent=1 // pred_check
      _
    $region139: #{onnx_wrapper_forward.1} parent=1 // pred_check_branch
      %200 = sbr.rel (0) target = $region141
    $region140: #{onnx_wrapper_forward.1} parent=1 // pred_region
      _
    $region141: #{onnx_wrapper_forward.1} parent=1 // pred_fallthru
      _
    // Predicated region
    $region142: #{onnx_wrapper_forward.1} parent=1 // pred_check
      _
    $region143: #{onnx_wrapper_forward.1} parent=1 // pred_check_branch
      %202 = sbr.rel (0) target = $region145
    $region144: #{onnx_wrapper_forward.1} parent=1 // pred_region
      _
    $region145: #{onnx_wrapper_forward.1} parent=1 // pred_fallthru
      _
    // Predicated region
    $region146: #{onnx_wrapper_forward.1} parent=1 // pred_check
      _
    $region147: #{onnx_wrapper_forward.1} parent=1 // pred_check_branch
      %204 = sbr.rel (0) target = $region149
    $region148: #{onnx_wrapper_forward.1} parent=1 // pred_region
      _
    $region149: #{onnx_wrapper_forward.1} parent=1 // pred_fallthru
      _
    // Predicated region
    $region150: #{onnx_wrapper_forward.1} parent=1 // pred_check
      _
    $region151: #{onnx_wrapper_forward.1} parent=1 // pred_check_branch
      %206 = sbr.rel (0) target = $region153
    $region152: #{onnx_wrapper_forward.1} parent=1 // pred_region
      _
    $region153: #{onnx_wrapper_forward.1} parent=1 // pred_fallthru
      _
    // Predicated region
    $region154: #{onnx_wrapper_forward.1} parent=1 // pred_check
      _
    $region155: #{onnx_wrapper_forward.1} parent=1 // pred_check_branch
      %208 = sbr.rel (0) target = $region157
    $region156: #{onnx_wrapper_forward.1} parent=1 // pred_region
      _
    $region157: #{onnx_wrapper_forward.1} parent=1 // pred_fallthru
      _
    // Predicated region
    $region158: #{onnx_wrapper_forward.1} parent=1 // pred_check
      _
    $region159: #{onnx_wrapper_forward.1} parent=1 // pred_check_branch
      %210 = sbr.rel (0) target = $region161
    $region160: #{onnx_wrapper_forward.1} parent=1 // pred_region
      _
    $region161: #{onnx_wrapper_forward.1} parent=1 // pred_fallthru
      _
    // Predicated region
    $region162: #{onnx_wrapper_forward.1} parent=1 // pred_check
      _
    $region163: #{onnx_wrapper_forward.1} parent=1 // pred_check_branch
      %212 = sbr.rel (0) target = $region165
    $region164: #{onnx_wrapper_forward.1} parent=1 // pred_region
      _
    $region165: #{onnx_wrapper_forward.1} parent=1 // pred_fallthru
      _
    // Predicated region
    $region166: #{onnx_wrapper_forward.1} parent=1 // pred_check
      _
    $region167: #{onnx_wrapper_forward.1} parent=1 // pred_check_branch
      %214 = sbr.rel (0) target = $region169
    $region168: #{onnx_wrapper_forward.1} parent=1 // pred_region
      _
    $region169: #{onnx_wrapper_forward.1} parent=1 // pred_fallthru
      _
    // Predicated region
    $region170: #{onnx_wrapper_forward.1} parent=1 // pred_check
      _
    $region171: #{onnx_wrapper_forward.1} parent=1 // pred_check_branch
      %216 = sbr.rel (0) target = $region173
    $region172: #{onnx_wrapper_forward.1} parent=1 // pred_region
      _
    $region173: #{onnx_wrapper_forward.1} parent=1 // pred_fallthru
      _
    // Predicated region
    $region174: #{onnx_wrapper_forward.1} parent=1 // pred_check
      _
    $region175: #{onnx_wrapper_forward.1} parent=1 // pred_check_branch
      %218 = sbr.rel (0) target = $region177
    $region176: #{onnx_wrapper_forward.1} parent=1 // pred_region
      _
    $region177: #{onnx_wrapper_forward.1} parent=1 // pred_fallthru
      _
    // Predicated region
    $region178: #{onnx_wrapper_forward.1} parent=1 // pred_check
      _
    $region179: #{onnx_wrapper_forward.1} parent=1 // pred_check_branch
      %220 = sbr.rel (0) target = $region181
    $region180: #{onnx_wrapper_forward.1} parent=1 // pred_region
      _
    $region181: #{onnx_wrapper_forward.1} parent=1 // pred_fallthru
      _
    // Predicated region
    $region182: #{onnx_wrapper_forward.1} parent=1 // pred_check
      _
    $region183: #{onnx_wrapper_forward.1} parent=1 // pred_check_branch
      %222 = sbr.rel (0) target = $region185
    $region184: #{onnx_wrapper_forward.1} parent=1 // pred_region
      _
    $region185: #{onnx_wrapper_forward.1} parent=1 // pred_fallthru
      _
    // Predicated region
    $region186: #{onnx_wrapper_forward.1} parent=1 // pred_check
      _
    $region187: #{onnx_wrapper_forward.1} parent=1 // pred_check_branch
      %224 = sbr.rel (0) target = $region189
    $region188: #{onnx_wrapper_forward.1} parent=1 // pred_region
      _
    $region189: #{onnx_wrapper_forward.1} parent=1 // pred_fallthru
      _
    // Predicated region
    $region190: #{onnx_wrapper_forward.1} parent=1 // pred_check
      _
    $region191: #{onnx_wrapper_forward.1} parent=1 // pred_check_branch
      %226 = sbr.rel (0) target = $region193
    $region192: #{onnx_wrapper_forward.1} parent=1 // pred_region
      _
    $region193: #{onnx_wrapper_forward.1} parent=1 // pred_fallthru
      _
    // Predicated region
    $region194: #{onnx_wrapper_forward.1} parent=1 // pred_check
      _
    $region195: #{onnx_wrapper_forward.1} parent=1 // pred_check_branch
      %228 = sbr.rel (0) target = $region197
    $region196: #{onnx_wrapper_forward.1} parent=1 // pred_region
      _
    $region197: #{onnx_wrapper_forward.1} parent=1 // pred_fallthru
      _
    // Predicated region
    $region198: #{onnx_wrapper_forward.1} parent=1 // pred_check
      _
    $region199: #{onnx_wrapper_forward.1} parent=1 // pred_check_branch
      %230 = sbr.rel (0) target = $region201
    $region200: #{onnx_wrapper_forward.1} parent=1 // pred_region
      _
    $region201: #{onnx_wrapper_forward.1} parent=1 // pred_fallthru
      _
    // Predicated region
    $region202: #{onnx_wrapper_forward.1} parent=1 // pred_check
      _
    $region203: #{onnx_wrapper_forward.1} parent=1 // pred_check_branch
      %232 = sbr.rel (0) target = $region205
    $region204: #{onnx_wrapper_forward.1} parent=1 // pred_region
      _
    $region205: #{onnx_wrapper_forward.1} parent=1 // pred_fallthru
      _
    // Predicated region
    $region206: #{onnx_wrapper_forward.1} parent=1 // pred_check
      _
    $region207: #{onnx_wrapper_forward.1} parent=1 // pred_check_branch
      %234 = sbr.rel (0) target = $region209
    $region208: #{onnx_wrapper_forward.1} parent=1 // pred_region
      _
    $region209: #{onnx_wrapper_forward.1} parent=1 // pred_fallthru
      _
    // Predicated region
    $region210: #{onnx_wrapper_forward.1} parent=1 // pred_check
      _
    $region211: #{onnx_wrapper_forward.1} parent=1 // pred_check_branch
      %236 = sbr.rel (0) target = $region213
    $region212: #{onnx_wrapper_forward.1} parent=1 // pred_region
      _
    $region213: #{onnx_wrapper_forward.1} parent=1 // pred_fallthru
      _
    // Predicated region
    $region214: #{onnx_wrapper_forward.1} parent=1 // pred_check
      _
    $region215: #{onnx_wrapper_forward.1} parent=1 // pred_check_branch
      %238 = sbr.rel (0) target = $region217
    $region216: #{onnx_wrapper_forward.1} parent=1 // pred_region
      _
    $region217: #{onnx_wrapper_forward.1} parent=1 // pred_fallthru
      _
    // Predicated region
    $region218: #{onnx_wrapper_forward.1} parent=1 // pred_check
      _
    $region219: #{onnx_wrapper_forward.1} parent=1 // pred_check_branch
      %240 = sbr.rel (0) target = $region221
    $region220: #{onnx_wrapper_forward.1} parent=1 // pred_region
      _
    $region221: #{onnx_wrapper_forward.1} parent=1 // pred_fallthru
      _
    // Predicated region
    $region222: #{onnx_wrapper_forward.1} parent=1 // pred_check
      _
    $region223: #{onnx_wrapper_forward.1} parent=1 // pred_check_branch
      %242 = sbr.rel (0) target = $region225
    $region224: #{onnx_wrapper_forward.1} parent=1 // pred_region
      _
    $region225: #{onnx_wrapper_forward.1} parent=1 // pred_fallthru
      _
    // Predicated region
    $region226: #{onnx_wrapper_forward.1} parent=1 // pred_check
      _
    $region227: #{onnx_wrapper_forward.1} parent=1 // pred_check_branch
      %244 = sbr.rel (0) target = $region229
    $region228: #{onnx_wrapper_forward.1} parent=1 // pred_region
      _
    $region229: #{onnx_wrapper_forward.1} parent=1 // pred_fallthru
      _
    // Predicated region
    $region230: #{onnx_wrapper_forward.1} parent=1 // pred_check
      _
    $region231: #{onnx_wrapper_forward.1} parent=1 // pred_check_branch
      %246 = sbr.rel (0) target = $region233
    $region232: #{onnx_wrapper_forward.1} parent=1 // pred_region
      _
    $region233: #{onnx_wrapper_forward.1} parent=1 // pred_fallthru
      _
    // Predicated region
    $region234: #{onnx_wrapper_forward.1} parent=1 // pred_check
      _
    $region235: #{onnx_wrapper_forward.1} parent=1 // pred_check_branch
      %248 = sbr.rel (0) target = $region237
    $region236: #{onnx_wrapper_forward.1} parent=1 // pred_region
      _
    $region237: #{onnx_wrapper_forward.1} parent=1 // pred_fallthru
      _
    // Predicated region
    $region238: #{onnx_wrapper_forward.1} parent=1 // pred_check
      _
    $region239: #{onnx_wrapper_forward.1} parent=1 // pred_check_branch
      %250 = sbr.rel (0) target = $region241
    $region240: #{onnx_wrapper_forward.1} parent=1 // pred_region
      _
    $region241: #{onnx_wrapper_forward.1} parent=1 // pred_fallthru
      _
    // Predicated region
    $region242: #{onnx_wrapper_forward.1} parent=1 // pred_check
      _
    $region243: #{onnx_wrapper_forward.1} parent=1 // pred_check_branch
      %252 = sbr.rel (0) target = $region245
    $region244: #{onnx_wrapper_forward.1} parent=1 // pred_region
      _
    $region245: #{onnx_wrapper_forward.1} parent=1 // pred_fallthru
      _
    %vm253 = vcmask 392192
    %254 = vst.msk [vmem:[#allocation2] sm:$0xff] %vm253, 0.0
    %255 = vst.msk [vmem:[#allocation3] sm:$0xff] %vm253, 0.0
    %256 = vst.msk [vmem:[#allocation3 + $0x8] sm:$0xff] %vm253, 0.0
    %257 = vst.msk [vmem:[#allocation3 + $0x10] sm:$0xff] %vm253, 0.0
    %258 = vst.msk [vmem:[#allocation3 + $0x18] sm:$0xff] %vm253, 0.0
    %vm259 = vcmask 654336
    %260 = vst.msk [vmem:[#allocation4] sm:$0xff] %vm259, 0.0
    %261 = vst.msk [vmem:[#allocation4 + $0x8] sm:$0xff] %vm259, 0.0
    %262 = vst.msk [vmem:[#allocation5] sm:$0xff] %vm259, 0.0
    %263 = vst.msk [vmem:[#allocation5 + $0x8] sm:$0xff] %vm259, 0.0
    %264 = vst [vmem:[#allocation6] sm:$0xff] 0.0
    %vm265 = vcmask 130048
    %266 = vst.msk [vmem:[#allocation6 + $0x8] sm:$0xff] %vm265, 0.0
    %267 = vst [vmem:[#allocation7] sm:$0xff] 0.0
    %268 = vst.msk [vmem:[#allocation7 + $0x8] sm:$0xff] %vm265, 0.0
    %v269 = vld [vmem:[%s1] sm:$0xff]
    %271 = vrot.lane.b32.xlu0 %v269, 8
    %v272 = vpop.permute.xlu0 %271
    %vm274 = vcmask 326720
    %275 = vst.msk [vmem:[#allocation2] sm:$0xff] %vm274, %v272
    %v276 = vld [vmem:[#allocation2] sm:$0xff]
    %278 = vrot.lane.b32.xlu0 %v276, 127
    %v279 = vpop.permute.xlu0 %278
    %280 = vrot.lane.b32.xlu0 %v276, 126
    %v281 = vpop.permute.xlu0 %280
    %282 = vrot.lane.b32.xlu0 %v276, 125
    %v283 = vpop.permute.xlu0 %282
    %284 = vrot.lane.b32.xlu0 %v276, 124
    %v285 = vpop.permute.xlu0 %284
    %286 = vrot.lane.b32.xlu0 %v276, 123
    %v287 = vpop.permute.xlu0 %286
    %288 = vrot.lane.b32.xlu0 %v276, 122
    %v289 = vpop.permute.xlu0 %288
    %v290 = vld [vmem:[%s3] sm:$0xff]
    %v291 = vld [vmem:[%s3 + $0x8] sm:$0xff]
    %v292 = vld [vmem:[%s3 + $0x10] sm:$0xff]
    %v293 = vld [vmem:[%s3 + $0x18] sm:$0xff]
    %v294 = vld [vmem:[%s5] sm:$0xff]
    %v295 = vld [vmem:[%s5 + $0x8] sm:$0xff]
    %v296 = vld [vmem:[%s5 + $0x10] sm:$0xff]
    %v297 = vld [vmem:[%s5 + $0x18] sm:$0xff]
    %299 = vset.pattern.permute.xlu0 0
    %300 = vperm.xlu0 %299, %v294
    %v301 = vpop.permute.xlu0 %300
    %304 = vset.pattern.permute.xlu0 0
    %305 = vperm.xlu0 %304, %v295
    %v306 = vpop.permute.xlu0 %305
    %309 = vset.pattern.permute.xlu0 0
    %310 = vperm.xlu0 %309, %v296
    %v311 = vpop.permute.xlu0 %310
    %314 = vset.pattern.permute.xlu0 0
    %315 = vperm.xlu0 %314, %v297
    %v316 = vpop.permute.xlu0 %315
    %318 = vrot.lane.b32.xlu0 %v279, 123
    %v319 = vpop.permute.xlu0 %318
    %320 = vrot.lane.b32.xlu0 %v281, 123
    %v321 = vpop.permute.xlu0 %320
    %322 = vrot.lane.b32.xlu0 %v283, 123
    %v323 = vpop.permute.xlu0 %322
    %324 = vrot.lane.b32.xlu0 %v285, 123
    %v325 = vpop.permute.xlu0 %324
    %326 = vrot.lane.b32.xlu0 %v287, 123
    %v327 = vpop.permute.xlu0 %326
    %328 = vrot.lane.b32.xlu0 %v289, 123
    %v329 = vpop.permute.xlu0 %328
    %vm337 = vcmask 457728
    %v339 = vsel %vm337, %v290, 0
    %v342 = vsel %vm337, %v291, 0
    %v345 = vsel %vm337, %v292, 0
    %v348 = vsel %vm337, %v293, 0
    %350 = vmatprep.subr.mxu0 0.0
    %351 = vmatpush1.msra.mxu0 %v287
    %352 = vmatprep.subr.mxu0 0.0
    %353 = vmatpush1.msra.mxu0 %v319
    %354 = vmatprep.subr.mxu0 0.0
    %355 = vmatpush1.msra.mxu0 %v321
    %356 = vmatprep.subr.mxu0 0.0
    %357 = vmatpush1.msra.mxu0 %v323
    %358 = vmatprep.subr.mxu0 0.0
    %359 = vmatpush1.msra.mxu0 %v325
    %360 = vmatprep.subr.mxu0 0.0
    %361 = vmatpush1.msra.mxu0 %v327
    %362 = vmatprep.subr.mxu0 0.0
    %363 = vmatpush1.msra.mxu0 %v329
    %364 = vmatprep.subr.mxu0 0.0
    %365 = vmatpush1.msra.mxu0 0.0
    %366 = vmatprep.subr.mxu0 0.0
    %367 = vmatpush1.msra.mxu0 0.0
    %368 = vmatprep.subr.mxu0 0.0
    %369 = vmatpush1.msra.mxu0 0.0
    %370 = vmatprep.subr.mxu0 0.0
    %371 = vmatpush1.msra.mxu0 0.0
    %372 = vmatprep.subr.mxu0 0.0
    %373 = vmatpush1.msra.mxu0 0.0
    %374 = vmatprep.subr.mxu0 0.0
    %375 = vmatpush1.msra.mxu0 0.0
    %376 = vmatprep.subr.mxu0 0.0
    %377 = vmatpush1.msra.mxu0 0.0
    %378 = vmatprep.subr.mxu0 0.0
    %379 = vmatpush1.msra.mxu0 0.0
    %380 = vmatprep.subr.mxu0 0.0
    %381 = vmatpush1.msra.mxu0 0.0
    %382 = vmatprep.subr.mxu0 0.0
    %383 = vmatpush1.msra.mxu0 0.0
    %384 = vmatprep.subr.mxu0 0.0
    %385 = vmatpush1.msra.mxu0 0.0
    %386 = vmatprep.subr.mxu0 0.0
    %387 = vmatpush1.msra.mxu0 0.0
    %388 = vmatprep.subr.mxu0 0.0
    %389 = vmatpush1.msra.mxu0 0.0
    %390 = vmatprep.subr.mxu0 0.0
    %391 = vmatpush1.msra.mxu0 0.0
    %392 = vmatprep.subr.mxu0 0.0
    %393 = vmatpush1.msra.mxu0 0.0
    %394 = vmatprep.subr.mxu0 0.0
    %395 = vmatpush1.msra.mxu0 0.0
    %396 = vmatprep.subr.mxu0 0.0
    %397 = vmatpush1.msra.mxu0 0.0
    %398 = vmatprep.subr.mxu0 0.0
    %399 = vmatpush1.msra.mxu0 0.0
    %400 = vmatprep.subr.mxu0 0.0
    %401 = vmatpush1.msra.mxu0 0.0
    %402 = vmatprep.subr.mxu0 0.0
    %403 = vmatpush1.msra.mxu0 0.0
    %404 = vmatprep.subr.mxu0 0.0
    %405 = vmatpush1.msra.mxu0 0.0
    %406 = vmatprep.subr.mxu0 0.0
    %407 = vmatpush1.msra.mxu0 0.0
    %408 = vmatprep.subr.mxu0 0.0
    %409 = vmatpush1.msra.mxu0 0.0
    %410 = vmatprep.subr.mxu0 0.0
    %411 = vmatpush1.msra.mxu0 0.0
    %412 = vmatprep.subr.mxu0 0.0
    %413 = vmatpush1.msra.mxu0 0.0
    %414 = vmatprep.mubr.f32.mxu0 0.0
    %415 = vmatmul.mubr.f32.gmra.mrb[0].mxu0 %v339
    %v416 = vpop.f32.mrb[0].mxu0
    %v417 = vadd.f32 %v301, %v416
    %v418 = vpop.f32.mrb[0].mxu0
    %419 = vmatprep.mubr.f32.mxu0 0.0
    %420 = vmatmul.mubr.f32.gmra.mrb[0].mxu0 %v342
    %v421 = vpop.f32.mrb[0].mxu0
    %v422 = vadd.f32 %v306, %v421
    %v423 = vpop.f32.mrb[0].mxu0
    %424 = vmatprep.mubr.f32.mxu0 0.0
    %425 = vmatmul.mubr.f32.gmra.mrb[0].mxu0 %v345
    %v426 = vpop.f32.mrb[0].mxu0
    %v427 = vadd.f32 %v311, %v426
    %v428 = vpop.f32.mrb[0].mxu0
    %429 = vmatprep.mubr.f32.mxu0 0.0
    %430 = vmatmul.mubr.f32.gmra.mrb[0].mxu0 %v348
    %v431 = vpop.f32.mrb[0].mxu0
    %v432 = vadd.f32 %v316, %v431
    %v433 = vpop.f32.mrb[0].mxu0
    %434 = vdwg.mxu0
    %439 = vrot.lane.b32.xlu0 %v417, 8
    %v440 = vpop.permute.xlu0 %439
    %441 = vrot.lane.b32.xlu0 %v422, 8
    %v442 = vpop.permute.xlu0 %441
    %443 = vrot.lane.b32.xlu0 %v427, 8
    %v444 = vpop.permute.xlu0 %443
    %445 = vrot.lane.b32.xlu0 %v432, 8
    %v446 = vpop.permute.xlu0 %445
    %451 = vst.msk [vmem:[#allocation3] sm:$0xff] %vm274, %v440
    %452 = vst.msk [vmem:[#allocation3 + $0x8] sm:$0xff] %vm274, %v442
    %453 = vst.msk [vmem:[#allocation3 + $0x10] sm:$0xff] %vm274, %v444
    %454 = vst.msk [vmem:[#allocation3 + $0x18] sm:$0xff] %vm274, %v446
    %v455 = vld [vmem:[#allocation3] sm:$0xff]
    %v456 = vld [vmem:[#allocation3 + $0x8] sm:$0xff]
    %v457 = vld [vmem:[#allocation3 + $0x10] sm:$0xff]
    %v458 = vld [vmem:[#allocation3 + $0x18] sm:$0xff]
    %463 = vrot.lane.b32.xlu0 %v455, 127
    %v464 = vpop.permute.xlu0 %463
    %465 = vrot.lane.b32.xlu0 %v456, 127
    %v466 = vpop.permute.xlu0 %465
    %467 = vrot.lane.b32.xlu0 %v457, 127
    %v468 = vpop.permute.xlu0 %467
    %469 = vrot.lane.b32.xlu0 %v458, 127
    %v470 = vpop.permute.xlu0 %469
    %v471 = vld [vmem:[%s7] sm:$0xff]
    %v472 = vld [vmem:[%s7 + $0x8] sm:$0xff]
    %v473 = vld [vmem:[%s11] sm:$0xff]
    %v474 = vld [vmem:[%s11 + $0x8] sm:$0xff]
    %476 = vset.pattern.permute.xlu0 0
    %477 = vperm.xlu0 %476, %v473
    %v478 = vpop.permute.xlu0 %477
    %481 = vset.pattern.permute.xlu0 0
    %482 = vperm.xlu0 %481, %v474
    %v483 = vpop.permute.xlu0 %482
    %485 = vrot.lane.b32.xlu0 %v455, 121
    %v486 = vpop.permute.xlu0 %485
    %487 = vrot.lane.b32.xlu0 %v456, 121
    %v488 = vpop.permute.xlu0 %487
    %489 = vrot.lane.b32.xlu0 %v457, 121
    %v490 = vpop.permute.xlu0 %489
    %491 = vrot.lane.b32.xlu0 %v458, 121
    %v492 = vpop.permute.xlu0 %491
    %493 = vrot.lane.b32.xlu0 %v464, 121
    %v494 = vpop.permute.xlu0 %493
    %495 = vrot.lane.b32.xlu0 %v466, 121
    %v496 = vpop.permute.xlu0 %495
    %497 = vrot.lane.b32.xlu0 %v468, 121
    %v498 = vpop.permute.xlu0 %497
    %499 = vrot.lane.b32.xlu0 %v470, 121
    %v500 = vpop.permute.xlu0 %499
    %vm509 = vcmask 523264
    %v511 = vsel %vm509, %v471, 0
    %v514 = vsel %vm509, %v472, 0
    %516 = vmatprep.subr.mxu0 0.0
    %517 = vmatpush1.msra.mxu0 %v486
    %518 = vmatprep.subr.mxu0 0.0
    %519 = vmatpush1.msra.mxu0 %v488
    %520 = vmatprep.subr.mxu0 0.0
    %521 = vmatpush1.msra.mxu0 %v490
    %522 = vmatprep.subr.mxu0 0.0
    %523 = vmatpush1.msra.mxu0 %v492
    %524 = vmatprep.subr.mxu0 0.0
    %525 = vmatpush1.msra.mxu0 %v494
    %526 = vmatprep.subr.mxu0 0.0
    %527 = vmatpush1.msra.mxu0 %v496
    %528 = vmatprep.subr.mxu0 0.0
    %529 = vmatpush1.msra.mxu0 %v498
    %530 = vmatprep.subr.mxu0 0.0
    %531 = vmatpush1.msra.mxu0 %v500
    %532 = vmatprep.subr.mxu0 0.0
    %533 = vmatpush1.msra.mxu0 0.0
    %534 = vmatprep.subr.mxu0 0.0
    %535 = vmatpush1.msra.mxu0 0.0
    %536 = vmatprep.subr.mxu0 0.0
    %537 = vmatpush1.msra.mxu0 0.0
    %538 = vmatprep.subr.mxu0 0.0
    %539 = vmatpush1.msra.mxu0 0.0
    %540 = vmatprep.subr.mxu0 0.0
    %541 = vmatpush1.msra.mxu0 0.0
    %542 = vmatprep.subr.mxu0 0.0
    %543 = vmatpush1.msra.mxu0 0.0
    %544 = vmatprep.subr.mxu0 0.0
    %545 = vmatpush1.msra.mxu0 0.0
    %546 = vmatprep.subr.mxu0 0.0
    %547 = vmatpush1.msra.mxu0 0.0
    %548 = vmatprep.subr.mxu0 0.0
    %549 = vmatpush1.msra.mxu0 0.0
    %550 = vmatprep.subr.mxu0 0.0
    %551 = vmatpush1.msra.mxu0 0.0
    %552 = vmatprep.subr.mxu0 0.0
    %553 = vmatpush1.msra.mxu0 0.0
    %554 = vmatprep.subr.mxu0 0.0
    %555 = vmatpush1.msra.mxu0 0.0
    %556 = vmatprep.subr.mxu0 0.0
    %557 = vmatpush1.msra.mxu0 0.0
    %558 = vmatprep.subr.mxu0 0.0
    %559 = vmatpush1.msra.mxu0 0.0
    %560 = vmatprep.subr.mxu0 0.0
    %561 = vmatpush1.msra.mxu0 0.0
    %562 = vmatprep.subr.mxu0 0.0
    %563 = vmatpush1.msra.mxu0 0.0
    %564 = vmatprep.subr.mxu0 0.0
    %565 = vmatpush1.msra.mxu0 0.0
    %566 = vmatprep.subr.mxu0 0.0
    %567 = vmatpush1.msra.mxu0 0.0
    %568 = vmatprep.subr.mxu0 0.0
    %569 = vmatpush1.msra.mxu0 0.0
    %570 = vmatprep.subr.mxu0 0.0
    %571 = vmatpush1.msra.mxu0 0.0
    %572 = vmatprep.subr.mxu0 0.0
    %573 = vmatpush1.msra.mxu0 0.0
    %574 = vmatprep.subr.mxu0 0.0
    %575 = vmatpush1.msra.mxu0 0.0
    %576 = vmatprep.subr.mxu0 0.0
    %577 = vmatpush1.msra.mxu0 0.0
    %578 = vmatprep.subr.mxu0 0.0
    %579 = vmatpush1.msra.mxu0 0.0
    %580 = vmatprep.mubr.f32.mxu0 0.0
    %581 = vmatmul.mubr.f32.gmra.mrb[0].mxu0 %v511
    %v582 = vpop.f32.mrb[0].mxu0
    %v583 = vadd.f32 %v478, %v582
    %v584 = vpop.f32.mrb[0].mxu0
    %585 = vmatprep.mubr.f32.mxu0 0.0
    %586 = vmatmul.mubr.f32.gmra.mrb[0].mxu0 %v514
    %v587 = vpop.f32.mrb[0].mxu0
    %v588 = vadd.f32 %v483, %v587
    %v589 = vpop.f32.mrb[0].mxu0
    %590 = vdwg.mxu0
    %v591 = vld [vmem:[%s9] sm:$0xff]
    %v592 = vld [vmem:[%s9 + $0x8] sm:$0xff]
    %593 = vrot.lane.b32.xlu0 %v455, 120
    %v594 = vpop.permute.xlu0 %593
    %595 = vrot.lane.b32.xlu0 %v456, 120
    %v596 = vpop.permute.xlu0 %595
    %597 = vrot.lane.b32.xlu0 %v457, 120
    %v598 = vpop.permute.xlu0 %597
    %599 = vrot.lane.b32.xlu0 %v458, 120
    %v600 = vpop.permute.xlu0 %599
    %601 = vrot.lane.b32.xlu0 %v464, 120
    %v602 = vpop.permute.xlu0 %601
    %603 = vrot.lane.b32.xlu0 %v466, 120
    %v604 = vpop.permute.xlu0 %603
    %605 = vrot.lane.b32.xlu0 %v468, 120
    %v606 = vpop.permute.xlu0 %605
    %607 = vrot.lane.b32.xlu0 %v470, 120
    %v608 = vpop.permute.xlu0 %607
    %v618 = vsel %vm509, %v591, 0
    %v621 = vsel %vm509, %v592, 0
    %623 = vmatprep.subr.mxu0 0.0
    %624 = vmatpush1.msra.mxu0 %v594
    %625 = vmatprep.subr.mxu0 0.0
    %626 = vmatpush1.msra.mxu0 %v596
    %627 = vmatprep.subr.mxu0 0.0
    %628 = vmatpush1.msra.mxu0 %v598
    %629 = vmatprep.subr.mxu0 0.0
    %630 = vmatpush1.msra.mxu0 %v600
    %631 = vmatprep.subr.mxu0 0.0
    %632 = vmatpush1.msra.mxu0 %v602
    %633 = vmatprep.subr.mxu0 0.0
    %634 = vmatpush1.msra.mxu0 %v604
    %635 = vmatprep.subr.mxu0 0.0
    %636 = vmatpush1.msra.mxu0 %v606
    %637 = vmatprep.subr.mxu0 0.0
    %638 = vmatpush1.msra.mxu0 %v608
    %639 = vmatprep.subr.mxu0 0.0
    %640 = vmatpush1.msra.mxu0 0.0
    %641 = vmatprep.subr.mxu0 0.0
    %642 = vmatpush1.msra.mxu0 0.0
    %643 = vmatprep.subr.mxu0 0.0
    %644 = vmatpush1.msra.mxu0 0.0
    %645 = vmatprep.subr.mxu0 0.0
    %646 = vmatpush1.msra.mxu0 0.0
    %647 = vmatprep.subr.mxu0 0.0
    %648 = vmatpush1.msra.mxu0 0.0
    %649 = vmatprep.subr.mxu0 0.0
    %650 = vmatpush1.msra.mxu0 0.0
    %651 = vmatprep.subr.mxu0 0.0
    %652 = vmatpush1.msra.mxu0 0.0
    %653 = vmatprep.subr.mxu0 0.0
    %654 = vmatpush1.msra.mxu0 0.0
    %655 = vmatprep.subr.mxu0 0.0
    %656 = vmatpush1.msra.mxu0 0.0
    %657 = vmatprep.subr.mxu0 0.0
    %658 = vmatpush1.msra.mxu0 0.0
    %659 = vmatprep.subr.mxu0 0.0
    %660 = vmatpush1.msra.mxu0 0.0
    %661 = vmatprep.subr.mxu0 0.0
    %662 = vmatpush1.msra.mxu0 0.0
    %663 = vmatprep.subr.mxu0 0.0
    %664 = vmatpush1.msra.mxu0 0.0
    %665 = vmatprep.subr.mxu0 0.0
    %666 = vmatpush1.msra.mxu0 0.0
    %667 = vmatprep.subr.mxu0 0.0
    %668 = vmatpush1.msra.mxu0 0.0
    %669 = vmatprep.subr.mxu0 0.0
    %670 = vmatpush1.msra.mxu0 0.0
    %671 = vmatprep.subr.mxu0 0.0
    %672 = vmatpush1.msra.mxu0 0.0
    %673 = vmatprep.subr.mxu0 0.0
    %674 = vmatpush1.msra.mxu0 0.0
    %675 = vmatprep.subr.mxu0 0.0
    %676 = vmatpush1.msra.mxu0 0.0
    %677 = vmatprep.subr.mxu0 0.0
    %678 = vmatpush1.msra.mxu0 0.0
    %679 = vmatprep.subr.mxu0 0.0
    %680 = vmatpush1.msra.mxu0 0.0
    %681 = vmatprep.subr.mxu0 0.0
    %682 = vmatpush1.msra.mxu0 0.0
    %683 = vmatprep.subr.mxu0 0.0
    %684 = vmatpush1.msra.mxu0 0.0
    %685 = vmatprep.subr.mxu0 0.0
    %686 = vmatpush1.msra.mxu0 0.0
    %687 = vmatprep.mubr.f32.mxu0 0.0
    %688 = vmatmul.mubr.f32.gmra.mrb[0].mxu0 %v618
    %v689 = vpop.f32.mrb[0].mxu0
    %v690 = vadd.f32 %v478, %v689
    %v691 = vpop.f32.mrb[0].mxu0
    %692 = vmatprep.mubr.f32.mxu0 0.0
    %693 = vmatmul.mubr.f32.gmra.mrb[0].mxu0 %v621
    %v694 = vpop.f32.mrb[0].mxu0
    %v695 = vadd.f32 %v483, %v694
    %v696 = vpop.f32.mrb[0].mxu0
    %697 = vdwg.mxu0
    %v698 = vlaneseq
    %v699 = vshrl.u32 %v698, 7
    %v700 = vadd.s32 %v699, 8
    %v701 = vadd.s32 %v699, 16
    %v702 = vadd.s32 %v699, 24
    %v703 = vlaneseq
    %v704 = vand.u32 %v703, 127
    %v705 = vmul.u32 %v699, 2
    %v706 = vmul.u32 %v700, 2
    %v707 = vmul.u32 %v701, 2
    %v708 = vmul.u32 %v702, 2
    %vm709 = vcmp.eq.s32.totalorder %v704, %v705
    %vm710 = vcmp.eq.s32.totalorder %v704, %v706
    %vm711 = vcmp.eq.s32.totalorder %v704, %v707
    %vm712 = vcmp.eq.s32.totalorder %v704, %v708
    %v713 = vsel %vm709, 1, 0
    %v714 = vsel %vm710, 1, 0
    %v715 = vsel %vm711, 1, 0
    %v716 = vsel %vm712, 1, 0
    %v717 = vcvt.s32.f32 %v713
    %v718 = vcvt.s32.f32 %v714
    %v719 = vcvt.s32.f32 %v715
    %v720 = vcvt.s32.f32 %v716
    %v721 = vadd.s32 %v705, 1
    %v722 = vadd.s32 %v706, 1
    %v723 = vadd.s32 %v707, 1
    %v724 = vadd.s32 %v708, 1
    %vm725 = vcmp.eq.s32.totalorder %v704, %v721
    %vm726 = vcmp.eq.s32.totalorder %v704, %v722
    %vm727 = vcmp.eq.s32.totalorder %v704, %v723
    %vm728 = vcmp.eq.s32.totalorder %v704, %v724
    %v729 = vsel %vm725, 1, 0
    %v730 = vsel %vm726, 1, 0
    %v731 = vsel %vm727, 1, 0
    %v732 = vsel %vm728, 1, 0
    %v733 = vcvt.s32.f32 %v729
    %v734 = vcvt.s32.f32 %v730
    %v735 = vcvt.s32.f32 %v731
    %v736 = vcvt.s32.f32 %v732
    %vm737 = vcmask 261120
    %v739 = vsel %vm737, %v690, 0
    %v742 = vsel %vm737, %v695, 0
    %744 = vmatprep.subr.mxu0 0.0
    %745 = vmatpush1.msra.mxu0 %v733
    %746 = vmatprep.subr.mxu0 0.0
    %747 = vmatpush1.msra.mxu0 %v734
    %748 = vmatprep.subr.mxu0 0.0
    %749 = vmatpush1.msra.mxu0 %v735
    %750 = vmatprep.subr.mxu0 0.0
    %751 = vmatpush1.msra.mxu0 %v736
    %752 = vmatprep.subr.mxu0 0.0
    %753 = vmatpush1.msra.mxu0 0.0
    %754 = vmatprep.subr.mxu0 0.0
    %755 = vmatpush1.msra.mxu0 0.0
    %756 = vmatprep.subr.mxu0 0.0
    %757 = vmatpush1.msra.mxu0 0.0
    %758 = vmatprep.subr.mxu0 0.0
    %759 = vmatpush1.msra.mxu0 0.0
    %760 = vmatprep.subr.mxu0 0.0
    %761 = vmatpush1.msra.mxu0 0.0
    %762 = vmatprep.subr.mxu0 0.0
    %763 = vmatpush1.msra.mxu0 0.0
    %764 = vmatprep.subr.mxu0 0.0
    %765 = vmatpush1.msra.mxu0 0.0
    %766 = vmatprep.subr.mxu0 0.0
    %767 = vmatpush1.msra.mxu0 0.0
    %768 = vmatprep.subr.mxu0 0.0
    %769 = vmatpush1.msra.mxu0 0.0
    %770 = vmatprep.subr.mxu0 0.0
    %771 = vmatpush1.msra.mxu0 0.0
    %772 = vmatprep.subr.mxu0 0.0
    %773 = vmatpush1.msra.mxu0 0.0
    %774 = vmatprep.subr.mxu0 0.0
    %775 = vmatpush1.msra.mxu0 0.0
    %776 = vmatprep.subr.mxu0 0.0
    %777 = vmatpush1.msra.mxu0 0.0
    %778 = vmatprep.subr.mxu0 0.0
    %779 = vmatpush1.msra.mxu0 0.0
    %780 = vmatprep.subr.mxu0 0.0
    %781 = vmatpush1.msra.mxu0 0.0
    %782 = vmatprep.subr.mxu0 0.0
    %783 = vmatpush1.msra.mxu0 0.0
    %784 = vmatprep.subr.mxu0 0.0
    %785 = vmatpush1.msra.mxu0 0.0
    %786 = vmatprep.subr.mxu0 0.0
    %787 = vmatpush1.msra.mxu0 0.0
    %788 = vmatprep.subr.mxu0 0.0
    %789 = vmatpush1.msra.mxu0 0.0
    %790 = vmatprep.subr.mxu0 0.0
    %791 = vmatpush1.msra.mxu0 0.0
    %792 = vmatprep.subr.mxu0 0.0
    %793 = vmatpush1.msra.mxu0 0.0
    %794 = vmatprep.subr.mxu0 0.0
    %795 = vmatpush1.msra.mxu0 0.0
    %796 = vmatprep.subr.mxu0 0.0
    %797 = vmatpush1.msra.mxu0 0.0
    %798 = vmatprep.subr.mxu0 0.0
    %799 = vmatpush1.msra.mxu0 0.0
    %800 = vmatprep.subr.mxu0 0.0
    %801 = vmatpush1.msra.mxu0 0.0
    %802 = vmatprep.subr.mxu0 0.0
    %803 = vmatpush1.msra.mxu0 0.0
    %804 = vmatprep.subr.mxu0 0.0
    %805 = vmatpush1.msra.mxu0 0.0
    %806 = vmatprep.subr.mxu0 0.0
    %807 = vmatpush1.msra.mxu0 0.0
    %808 = vmatprep.mubr.f32.mxu0 0.0
    %809 = vmatmul.mubr.f32.gmra.mrb[0].mxu0 %v739
    %v810 = vpop.f32.mrb[0].mxu0
    %v811 = vadd.f32 0.0, %v810
    %v812 = vpop.f32.mrb[0].mxu0
    %813 = vmatprep.mubr.f32.mxu0 0.0
    %814 = vmatmul.mubr.f32.gmra.mrb[0].mxu0 %v742
    %v815 = vpop.f32.mrb[0].mxu0
    %v816 = vadd.f32 0.0, %v815
    %v817 = vpop.f32.mrb[0].mxu0
    %818 = vdwg.mxu0
    %v820 = vsel %vm737, %v583, 0
    %v823 = vsel %vm737, %v588, 0
    %825 = vmatprep.subr.mxu0 0.0
    %826 = vmatpush1.msra.mxu0 %v717
    %827 = vmatprep.subr.mxu0 0.0
    %828 = vmatpush1.msra.mxu0 %v718
    %829 = vmatprep.subr.mxu0 0.0
    %830 = vmatpush1.msra.mxu0 %v719
    %831 = vmatprep.subr.mxu0 0.0
    %832 = vmatpush1.msra.mxu0 %v720
    %833 = vmatprep.subr.mxu0 0.0
    %834 = vmatpush1.msra.mxu0 0.0
    %835 = vmatprep.subr.mxu0 0.0
    %836 = vmatpush1.msra.mxu0 0.0
    %837 = vmatprep.subr.mxu0 0.0
    %838 = vmatpush1.msra.mxu0 0.0
    %839 = vmatprep.subr.mxu0 0.0
    %840 = vmatpush1.msra.mxu0 0.0
    %841 = vmatprep.subr.mxu0 0.0
    %842 = vmatpush1.msra.mxu0 0.0
    %843 = vmatprep.subr.mxu0 0.0
    %844 = vmatpush1.msra.mxu0 0.0
    %845 = vmatprep.subr.mxu0 0.0
    %846 = vmatpush1.msra.mxu0 0.0
    %847 = vmatprep.subr.mxu0 0.0
    %848 = vmatpush1.msra.mxu0 0.0
    %849 = vmatprep.subr.mxu0 0.0
    %850 = vmatpush1.msra.mxu0 0.0
    %851 = vmatprep.subr.mxu0 0.0
    %852 = vmatpush1.msra.mxu0 0.0
    %853 = vmatprep.subr.mxu0 0.0
    %854 = vmatpush1.msra.mxu0 0.0
    %855 = vmatprep.subr.mxu0 0.0
    %856 = vmatpush1.msra.mxu0 0.0
    %857 = vmatprep.subr.mxu0 0.0
    %858 = vmatpush1.msra.mxu0 0.0
    %859 = vmatprep.subr.mxu0 0.0
    %860 = vmatpush1.msra.mxu0 0.0
    %861 = vmatprep.subr.mxu0 0.0
    %862 = vmatpush1.msra.mxu0 0.0
    %863 = vmatprep.subr.mxu0 0.0
    %864 = vmatpush1.msra.mxu0 0.0
    %865 = vmatprep.subr.mxu0 0.0
    %866 = vmatpush1.msra.mxu0 0.0
    %867 = vmatprep.subr.mxu0 0.0
    %868 = vmatpush1.msra.mxu0 0.0
    %869 = vmatprep.subr.mxu0 0.0
    %870 = vmatpush1.msra.mxu0 0.0
    %871 = vmatprep.subr.mxu0 0.0
    %872 = vmatpush1.msra.mxu0 0.0
    %873 = vmatprep.subr.mxu0 0.0
    %874 = vmatpush1.msra.mxu0 0.0
    %875 = vmatprep.subr.mxu0 0.0
    %876 = vmatpush1.msra.mxu0 0.0
    %877 = vmatprep.subr.mxu0 0.0
    %878 = vmatpush1.msra.mxu0 0.0
    %879 = vmatprep.subr.mxu0 0.0
    %880 = vmatpush1.msra.mxu0 0.0
    %881 = vmatprep.subr.mxu0 0.0
    %882 = vmatpush1.msra.mxu0 0.0
    %883 = vmatprep.subr.mxu0 0.0
    %884 = vmatpush1.msra.mxu0 0.0
    %885 = vmatprep.subr.mxu0 0.0
    %886 = vmatpush1.msra.mxu0 0.0
    %887 = vmatprep.subr.mxu0 0.0
    %888 = vmatpush1.msra.mxu0 0.0
    %889 = vmatprep.mubr.f32.mxu0 0.0
    %890 = vmatmul.mubr.f32.gmra.mrb[0].mxu0 %v820
    %v891 = vpop.f32.mrb[0].mxu0
    %v892 = vadd.f32 %v811, %v891
    %v893 = vpop.f32.mrb[0].mxu0
    %894 = vmatprep.mubr.f32.mxu0 0.0
    %895 = vmatmul.mubr.f32.gmra.mrb[0].mxu0 %v823
    %v896 = vpop.f32.mrb[0].mxu0
    %v897 = vadd.f32 %v816, %v896
    %v898 = vpop.f32.mrb[0].mxu0
    %899 = vdwg.mxu0
    %902 = vrot.lane.b32.xlu0 %v892, 8
    %v903 = vpop.permute.xlu0 %902
    %904 = vrot.lane.b32.xlu0 %v897, 8
    %v905 = vpop.permute.xlu0 %904
    %vm908 = vcmask 588864
    %909 = vst.msk [vmem:[#allocation4] sm:$0xff] %vm908, %v903
    %910 = vst.msk [vmem:[#allocation4 + $0x8] sm:$0xff] %vm908, %v905
    %v911 = vld [vmem:[#allocation4] sm:$0xff]
    %v912 = vld [vmem:[#allocation4 + $0x8] sm:$0xff]
    %v913 = vld [vmem:[%s13] sm:$0xff]
    %v914 = vld [vmem:[%s13 + $0x8] sm:$0xff]
    %916 = vset.pattern.permute.xlu0 0
    %917 = vperm.xlu0 %916, %v913
    %v918 = vpop.permute.xlu0 %917
    %921 = vset.pattern.permute.xlu0 0
    %922 = vperm.xlu0 %921, %v914
    %v923 = vpop.permute.xlu0 %922
    %v925 = vmul.f32 %v911, %v918
    %v926 = vmul.f32 %v912, %v923
    %v927 = vand.u32 2147483647, %v925
    %vm928 = vcmp.le.f32.partialorder %v927, 0.7853982
    %vm929 = vcmp.lt.s32.totalorder %v925, 0
    %v930 = vand.u32 %v925, 2139095040
    %v931 = vshrl.u32 %v930, 23
    %v932 = vsub.s32 %v931, 127
    %v933 = vand.u32 2147483647, %v925
    %v934 = vand.u32 %v933, 8388607
    %v935 = vor.u32 %v934, 8388608
    %v936 = vsub.s32 0, %v935
    %v937 = vadd.s32 %v932, 1
    %vm938 = vcmp.gt.s32.totalorder %v937, 0
    %v939 = vsel %vm938, %v937, 0
    %v940 = vshrl.u32 %v939, 5
    %v941 = vand.u32 %v939, 31
    %v942 = vsub.s32 32, %v941
    %v943 = vshrl.u32 683565275, %v942
    %v944 = vshll.u32 683565275, %v941
    %v945 = vshrl.u32 2475754826, %v942
    %v946 = vor.u32 %v944, %v945
    %v947 = vshll.u32 2475754826, %v941
    %v948 = vshrl.u32 2131351028, %v942
    %v949 = vor.u32 %v947, %v948
    %v950 = vshll.u32 2131351028, %v941
    %v951 = vshrl.u32 2102212464, %v942
    %v952 = vor.u32 %v950, %v951
    %v953 = vshll.u32 2102212464, %v941
    %v954 = vshrl.u32 920167782, %v942
    %v955 = vor.u32 %v953, %v954
    %v956 = vshll.u32 920167782, %v941
    %v957 = vshrl.u32 1326507024, %v942
    %v958 = vor.u32 %v956, %v957
    %vm959 = vcmp.lt.s32.totalorder %v940, 1
    %vm960 = vcmp.lt.s32.totalorder %v940, 2
    %vm961 = vcmp.lt.s32.totalorder %v940, 3
    %vm962 = vcmp.lt.s32.totalorder %v940, 4
    %v963 = vsel %vm959, %v943, %v946
    %v964 = vsel %vm962, %v952, 2102212464
    %v965 = vsel %vm961, %v949, %v964
    %v966 = vsel %vm960, %v963, %v965
    %v967 = vsel %vm959, %v946, %v949
    %v968 = vsel %vm962, %v955, 920167782
    %v969 = vsel %vm961, %v952, %v968
    %v970 = vsel %vm960, %v967, %v969
    %v971 = vsel %vm959, %v949, %v952
    %v972 = vsel %vm962, %v958, 1326507024
    %v973 = vsel %vm961, %v955, %v972
    %v974 = vsel %vm960, %v971, %v973
    %v975 = vshll.u32 %v935, 8
    %v976 = vmul.u32.u64.compose %v975, %v974
    %v977 = vextract.low.u32 %v976
    %v978 = vextract.high.u32 %v976
    %v979 = vmul.u32.u64.compose %v975, %v970
    %v980 = vextract.low.u32 %v979
    %v981 = vextract.high.u32 %v979
    %v982 = vmul.u32 %v975, %v966
    %v983 = vadd.s32 %v978, %v980
    %vm984 = vc.u32 %v978, %v980
    %v985 = vadd.s32 %v981, 1
    %v986 = vsel %vm984, %v985, %v981
    %v987 = vadd.s32 %v982, %v986
    %v988 = vadd.s32 %v987, 536870912
    %v989 = vshrl.u32 %v988, 30
    %v990 = vshll.u32 %v989, 30
    %v991 = vsub.s32 %v987, %v990
    %vm992 = vcmp.lt.s32.totalorder %v991, 0
    %v993 = vsub.s32 0, %v991
    %v994 = vsel %vm992, %v993, %v991
    %v995 = vclz %v994
    %v996 = vsub.s32 %v995, 2
    %vm997 = vcmp.gt.s32.totalorder 0, %v996
    %v998 = vsel %vm997, 0, %v996
    %v999 = vsub.s32 32, %v998
    %v1000 = vshll.u32 %v991, %v998
    %v1001 = vshrl.u32 %v983, %v999
    %v1002 = vor.u32 %v1000, %v1001
    %v1003 = vsub.s32 4294967266, %v998
    %v1004 = vadd.s32 %v1003, 127
    %v1005 = vshll.u32 %v1004, 23
    %v1006 = vor.u32 4788187, %v1005
    %v1007 = vand.u32 2147483647, %v1006
    %v1009 = vcvt.s32.f32 %v1002
    %v1010 = vmul.f32 %v1009, %v1007
    %v1011 = vxor.u32 %v1010, 2147483648
    %v1012 = vsel %vm929, %v1011, %v1010
    %v1013 = vsub.s32 4, %v989
    %v1014 = vsel %vm929, %v1013, %v989
    %v1015 = vsel %vm928, %v925, %v1012
    %v1016 = vsel %vm928, 0, %v1014
    %v1017 = vcosq.f32.pop %v1015
    %v1018 = vsinq.f32.pop %v1015
    %vm1019 = vweird.f32 %v925
    %v1020 = vadd.s32 %v1016, 3
    %v1021 = vand.u32 %v1020, 3
    %vm1022 = vcmp.lt.s32.totalorder %v1021, 2
    %vm1023 = vcmp.eq.s32.totalorder %v1021, 0
    %v1024 = vxor.u32 %v1018, 2147483648
    %v1025 = vsel %vm1023, %v1017, %v1024
    %vm1026 = vcmp.eq.s32.totalorder %v1021, 2
    %v1027 = vxor.u32 %v1017, 2147483648
    %v1028 = vsel %vm1026, %v1027, %v1018
    %v1029 = vsel %vm1022, %v1025, %v1028
    %v1030 = vsel %vm1019, nan, %v1029
    %v1031 = vand.u32 2147483647, %v926
    %vm1032 = vcmp.le.f32.partialorder %v1031, 0.7853982
    %vm1033 = vcmp.lt.s32.totalorder %v926, 0
    %v1034 = vand.u32 %v926, 2139095040
    %v1035 = vshrl.u32 %v1034, 23
    %v1036 = vsub.s32 %v1035, 127
    %v1037 = vand.u32 2147483647, %v926
    %v1038 = vand.u32 %v1037, 8388607
    %v1039 = vor.u32 %v1038, 8388608
    %v1040 = vsub.s32 0, %v1039
    %v1041 = vadd.s32 %v1036, 1
    %vm1042 = vcmp.gt.s32.totalorder %v1041, 0
    %v1043 = vsel %vm1042, %v1041, 0
    %v1044 = vshrl.u32 %v1043, 5
    %v1045 = vand.u32 %v1043, 31
    %v1046 = vsub.s32 32, %v1045
    %v1047 = vshrl.u32 683565275, %v1046
    %v1048 = vshll.u32 683565275, %v1045
    %v1049 = vshrl.u32 2475754826, %v1046
    %v1050 = vor.u32 %v1048, %v1049
    %v1051 = vshll.u32 2475754826, %v1045
    %v1052 = vshrl.u32 2131351028, %v1046
    %v1053 = vor.u32 %v1051, %v1052
    %v1054 = vshll.u32 2131351028, %v1045
    %v1055 = vshrl.u32 2102212464, %v1046
    %v1056 = vor.u32 %v1054, %v1055
    %v1057 = vshll.u32 2102212464, %v1045
    %v1058 = vshrl.u32 920167782, %v1046
    %v1059 = vor.u32 %v1057, %v1058
    %v1060 = vshll.u32 920167782, %v1045
    %v1061 = vshrl.u32 1326507024, %v1046
    %v1062 = vor.u32 %v1060, %v1061
    %vm1063 = vcmp.lt.s32.totalorder %v1044, 1
    %vm1064 = vcmp.lt.s32.totalorder %v1044, 2
    %vm1065 = vcmp.lt.s32.totalorder %v1044, 3
    %vm1066 = vcmp.lt.s32.totalorder %v1044, 4
    %v1067 = vsel %vm1063, %v1047, %v1050
    %v1068 = vsel %vm1066, %v1056, 2102212464
    %v1069 = vsel %vm1065, %v1053, %v1068
    %v1070 = vsel %vm1064, %v1067, %v1069
    %v1071 = vsel %vm1063, %v1050, %v1053
    %v1072 = vsel %vm1066, %v1059, 920167782
    %v1073 = vsel %vm1065, %v1056, %v1072
    %v1074 = vsel %vm1064, %v1071, %v1073
    %v1075 = vsel %vm1063, %v1053, %v1056
    %v1076 = vsel %vm1066, %v1062, 1326507024
    %v1077 = vsel %vm1065, %v1059, %v1076
    %v1078 = vsel %vm1064, %v1075, %v1077
    %v1079 = vshll.u32 %v1039, 8
    %v1080 = vmul.u32.u64.compose %v1079, %v1078
    %v1081 = vextract.low.u32 %v1080
    %v1082 = vextract.high.u32 %v1080
    %v1083 = vmul.u32.u64.compose %v1079, %v1074
    %v1084 = vextract.low.u32 %v1083
    %v1085 = vextract.high.u32 %v1083
    %v1086 = vmul.u32 %v1079, %v1070
    %v1087 = vadd.s32 %v1082, %v1084
    %vm1088 = vc.u32 %v1082, %v1084
    %v1089 = vadd.s32 %v1085, 1
    %v1090 = vsel %vm1088, %v1089, %v1085
    %v1091 = vadd.s32 %v1086, %v1090
    %v1092 = vadd.s32 %v1091, 536870912
    %v1093 = vshrl.u32 %v1092, 30
    %v1094 = vshll.u32 %v1093, 30
    %v1095 = vsub.s32 %v1091, %v1094
    %vm1096 = vcmp.lt.s32.totalorder %v1095, 0
    %v1097 = vsub.s32 0, %v1095
    %v1098 = vsel %vm1096, %v1097, %v1095
    %v1099 = vclz %v1098
    %v1100 = vsub.s32 %v1099, 2
    %vm1101 = vcmp.gt.s32.totalorder 0, %v1100
    %v1102 = vsel %vm1101, 0, %v1100
    %v1103 = vsub.s32 32, %v1102
    %v1104 = vshll.u32 %v1095, %v1102
    %v1105 = vshrl.u32 %v1087, %v1103
    %v1106 = vor.u32 %v1104, %v1105
    %v1107 = vsub.s32 4294967266, %v1102
    %v1108 = vadd.s32 %v1107, 127
    %v1109 = vshll.u32 %v1108, 23
    %v1110 = vor.u32 4788187, %v1109
    %v1111 = vand.u32 2147483647, %v1110
    %v1113 = vcvt.s32.f32 %v1106
    %v1114 = vmul.f32 %v1113, %v1111
    %v1115 = vxor.u32 %v1114, 2147483648
    %v1116 = vsel %vm1033, %v1115, %v1114
    %v1117 = vsub.s32 4, %v1093
    %v1118 = vsel %vm1033, %v1117, %v1093
    %v1119 = vsel %vm1032, %v926, %v1116
    %v1120 = vsel %vm1032, 0, %v1118
    %v1121 = vcosq.f32.pop %v1119
    %v1122 = vsinq.f32.pop %v1119
    %vm1123 = vweird.f32 %v926
    %v1124 = vadd.s32 %v1120, 3
    %v1125 = vand.u32 %v1124, 3
    %vm1126 = vcmp.lt.s32.totalorder %v1125, 2
    %vm1127 = vcmp.eq.s32.totalorder %v1125, 0
    %v1128 = vxor.u32 %v1122, 2147483648
    %v1129 = vsel %vm1127, %v1121, %v1128
    %vm1130 = vcmp.eq.s32.totalorder %v1125, 2
    %v1131 = vxor.u32 %v1121, 2147483648
    %v1132 = vsel %vm1130, %v1131, %v1122
    %v1133 = vsel %vm1126, %v1129, %v1132
    %v1134 = vsel %vm1123, nan, %v1133
    %v1135 = vld [vmem:[%s15] sm:$0xff]
    %v1136 = vld [vmem:[%s15 + $0x8] sm:$0xff]
    %v1137 = vmul.f32 %v1030, %v1030
    %v1138 = vmul.f32 %v1134, %v1134
    %1140 = vset.pattern.permute.xlu0 0
    %1141 = vperm.xlu0 %1140, %v1135
    %v1142 = vpop.permute.xlu0 %1141
    %1145 = vset.pattern.permute.xlu0 0
    %1146 = vperm.xlu0 %1145, %v1136
    %v1147 = vpop.permute.xlu0 %1146
    %v1149 = vmul.f32 %v1142, %v1137
    %v1150 = vmul.f32 %v1147, %v1138
    %v1151 = vadd.f32 %v911, %v1149
    %v1152 = vadd.f32 %v912, %v1150
    %1153 = vst.msk [vmem:[#allocation5] sm:$0xff] %vm908, %v1151
    %1154 = vst.msk [vmem:[#allocation5 + $0x8] sm:$0xff] %vm908, %v1152
    %v1155 = vld [vmem:[#allocation5] sm:$0xff]
    %v1156 = vld [vmem:[#allocation5 + $0x8] sm:$0xff]
    %1159 = vrot.lane.b32.xlu0 %v1155, 127
    %v1160 = vpop.permute.xlu0 %1159
    %1161 = vrot.lane.b32.xlu0 %v1156, 127
    %v1162 = vpop.permute.xlu0 %1161
    %1163 = vrot.lane.b32.xlu0 %v1155, 126
    %v1164 = vpop.permute.xlu0 %1163
    %1165 = vrot.lane.b32.xlu0 %v1156, 126
    %v1166 = vpop.permute.xlu0 %1165
    %v1167 = vld [vmem:[%s17] sm:$0xff]
    %v1168 = vld [vmem:[%s17 + $0x8] sm:$0xff]
    %v1169 = vld [vmem:[%s19] sm:$0xff]
    %v1170 = vld [vmem:[%s19 + $0x8] sm:$0xff]
    %1172 = vset.pattern.permute.xlu0 0
    %1173 = vperm.xlu0 %1172, %v1169
    %v1174 = vpop.permute.xlu0 %1173
    %1177 = vset.pattern.permute.xlu0 0
    %1178 = vperm.xlu0 %1177, %v1170
    %v1179 = vpop.permute.xlu0 %1178
    %1181 = vrot.lane.b32.xlu0 %v1155, 121
    %v1182 = vpop.permute.xlu0 %1181
    %1183 = vrot.lane.b32.xlu0 %v1156, 121
    %v1184 = vpop.permute.xlu0 %1183
    %1185 = vrot.lane.b32.xlu0 %v1160, 121
    %v1186 = vpop.permute.xlu0 %1185
    %1187 = vrot.lane.b32.xlu0 %v1162, 121
    %v1188 = vpop.permute.xlu0 %1187
    %1189 = vrot.lane.b32.xlu0 %v1164, 121
    %v1190 = vpop.permute.xlu0 %1189
    %1191 = vrot.lane.b32.xlu0 %v1166, 121
    %v1192 = vpop.permute.xlu0 %1191
    %v1200 = vsel %vm253, %v1167, 0
    %v1203 = vsel %vm253, %v1168, 0
    %1205 = vmatprep.subr.mxu0 0.0
    %1206 = vmatpush1.msra.mxu0 %v1182
    %1207 = vmatprep.subr.mxu0 0.0
    %1208 = vmatpush1.msra.mxu0 %v1184
    %1209 = vmatprep.subr.mxu0 0.0
    %1210 = vmatpush1.msra.mxu0 %v1186
    %1211 = vmatprep.subr.mxu0 0.0
    %1212 = vmatpush1.msra.mxu0 %v1188
    %1213 = vmatprep.subr.mxu0 0.0
    %1214 = vmatpush1.msra.mxu0 %v1190
    %1215 = vmatprep.subr.mxu0 0.0
    %1216 = vmatpush1.msra.mxu0 %v1192
    %1217 = vmatprep.subr.mxu0 0.0
    %1218 = vmatpush1.msra.mxu0 0.0
    %1219 = vmatprep.subr.mxu0 0.0
    %1220 = vmatpush1.msra.mxu0 0.0
    %1221 = vmatprep.subr.mxu0 0.0
    %1222 = vmatpush1.msra.mxu0 0.0
    %1223 = vmatprep.subr.mxu0 0.0
    %1224 = vmatpush1.msra.mxu0 0.0
    %1225 = vmatprep.subr.mxu0 0.0
    %1226 = vmatpush1.msra.mxu0 0.0
    %1227 = vmatprep.subr.mxu0 0.0
    %1228 = vmatpush1.msra.mxu0 0.0
    %1229 = vmatprep.subr.mxu0 0.0
    %1230 = vmatpush1.msra.mxu0 0.0
    %1231 = vmatprep.subr.mxu0 0.0
    %1232 = vmatpush1.msra.mxu0 0.0
    %1233 = vmatprep.subr.mxu0 0.0
    %1234 = vmatpush1.msra.mxu0 0.0
    %1235 = vmatprep.subr.mxu0 0.0
    %1236 = vmatpush1.msra.mxu0 0.0
    %1237 = vmatprep.subr.mxu0 0.0
    %1238 = vmatpush1.msra.mxu0 0.0
    %1239 = vmatprep.subr.mxu0 0.0
    %1240 = vmatpush1.msra.mxu0 0.0
    %1241 = vmatprep.subr.mxu0 0.0
    %1242 = vmatpush1.msra.mxu0 0.0
    %1243 = vmatprep.subr.mxu0 0.0
    %1244 = vmatpush1.msra.mxu0 0.0
    %1245 = vmatprep.subr.mxu0 0.0
    %1246 = vmatpush1.msra.mxu0 0.0
    %1247 = vmatprep.subr.mxu0 0.0
    %1248 = vmatpush1.msra.mxu0 0.0
    %1249 = vmatprep.subr.mxu0 0.0
    %1250 = vmatpush1.msra.mxu0 0.0
    %1251 = vmatprep.subr.mxu0 0.0
    %1252 = vmatpush1.msra.mxu0 0.0
    %1253 = vmatprep.subr.mxu0 0.0
    %1254 = vmatpush1.msra.mxu0 0.0
    %1255 = vmatprep.subr.mxu0 0.0
    %1256 = vmatpush1.msra.mxu0 0.0
    %1257 = vmatprep.subr.mxu0 0.0
    %1258 = vmatpush1.msra.mxu0 0.0
    %1259 = vmatprep.subr.mxu0 0.0
    %1260 = vmatpush1.msra.mxu0 0.0
    %1261 = vmatprep.subr.mxu0 0.0
    %1262 = vmatpush1.msra.mxu0 0.0
    %1263 = vmatprep.subr.mxu0 0.0
    %1264 = vmatpush1.msra.mxu0 0.0
    %1265 = vmatprep.subr.mxu0 0.0
    %1266 = vmatpush1.msra.mxu0 0.0
    %1267 = vmatprep.subr.mxu0 0.0
    %1268 = vmatpush1.msra.mxu0 0.0
    %1269 = vmatprep.mubr.f32.mxu0 0.0
    %1270 = vmatmul.mubr.f32.gmra.mrb[0].mxu0 %v1200
    %v1271 = vpop.f32.mrb[0].mxu0
    %v1272 = vadd.f32 %v1174, %v1271
    %v1273 = vpop.f32.mrb[0].mxu0
    %1274 = vmatprep.mubr.f32.mxu0 0.0
    %1275 = vmatmul.mubr.f32.gmra.mrb[0].mxu0 %v1203
    %v1276 = vpop.f32.mrb[0].mxu0
    %v1277 = vadd.f32 %v1179, %v1276
    %v1278 = vpop.f32.mrb[0].mxu0
    %1279 = vdwg.mxu0
    %v1280 = vld [vmem:[%s21] sm:$0xff]
    %v1281 = vld [vmem:[%s21 + $0x8] sm:$0xff]
    %1283 = vset.pattern.permute.xlu0 0
    %1284 = vperm.xlu0 %1283, %v1280
    %v1285 = vpop.permute.xlu0 %1284
    %1288 = vset.pattern.permute.xlu0 0
    %1289 = vperm.xlu0 %1288, %v1281
    %v1290 = vpop.permute.xlu0 %1289
    %v1292 = vmul.f32 %v1272, %v1285
    %v1293 = vmul.f32 %v1277, %v1290
    %v1294 = vand.u32 2147483647, %v1292
    %vm1295 = vcmp.le.f32.partialorder %v1294, 0.7853982
    %vm1296 = vcmp.lt.s32.totalorder %v1292, 0
    %v1297 = vand.u32 %v1292, 2139095040
    %v1298 = vshrl.u32 %v1297, 23
    %v1299 = vsub.s32 %v1298, 127
    %v1300 = vand.u32 2147483647, %v1292
    %v1301 = vand.u32 %v1300, 8388607
    %v1302 = vor.u32 %v1301, 8388608
    %v1303 = vsub.s32 0, %v1302
    %v1304 = vadd.s32 %v1299, 1
    %vm1305 = vcmp.gt.s32.totalorder %v1304, 0
    %v1306 = vsel %vm1305, %v1304, 0
    %v1307 = vshrl.u32 %v1306, 5
    %v1308 = vand.u32 %v1306, 31
    %v1309 = vsub.s32 32, %v1308
    %v1310 = vshrl.u32 683565275, %v1309
    %v1311 = vshll.u32 683565275, %v1308
    %v1312 = vshrl.u32 2475754826, %v1309
    %v1313 = vor.u32 %v1311, %v1312
    %v1314 = vshll.u32 2475754826, %v1308
    %v1315 = vshrl.u32 2131351028, %v1309
    %v1316 = vor.u32 %v1314, %v1315
    %v1317 = vshll.u32 2131351028, %v1308
    %v1318 = vshrl.u32 2102212464, %v1309
    %v1319 = vor.u32 %v1317, %v1318
    %v1320 = vshll.u32 2102212464, %v1308
    %v1321 = vshrl.u32 920167782, %v1309
    %v1322 = vor.u32 %v1320, %v1321
    %v1323 = vshll.u32 920167782, %v1308
    %v1324 = vshrl.u32 1326507024, %v1309
    %v1325 = vor.u32 %v1323, %v1324
    %vm1326 = vcmp.lt.s32.totalorder %v1307, 1
    %vm1327 = vcmp.lt.s32.totalorder %v1307, 2
    %vm1328 = vcmp.lt.s32.totalorder %v1307, 3
    %vm1329 = vcmp.lt.s32.totalorder %v1307, 4
    %v1330 = vsel %vm1326, %v1310, %v1313
    %v1331 = vsel %vm1329, %v1319, 2102212464
    %v1332 = vsel %vm1328, %v1316, %v1331
    %v1333 = vsel %vm1327, %v1330, %v1332
    %v1334 = vsel %vm1326, %v1313, %v1316
    %v1335 = vsel %vm1329, %v1322, 920167782
    %v1336 = vsel %vm1328, %v1319, %v1335
    %v1337 = vsel %vm1327, %v1334, %v1336
    %v1338 = vsel %vm1326, %v1316, %v1319
    %v1339 = vsel %vm1329, %v1325, 1326507024
    %v1340 = vsel %vm1328, %v1322, %v1339
    %v1341 = vsel %vm1327, %v1338, %v1340
    %v1342 = vshll.u32 %v1302, 8
    %v1343 = vmul.u32.u64.compose %v1342, %v1341
    %v1344 = vextract.low.u32 %v1343
    %v1345 = vextract.high.u32 %v1343
    %v1346 = vmul.u32.u64.compose %v1342, %v1337
    %v1347 = vextract.low.u32 %v1346
    %v1348 = vextract.high.u32 %v1346
    %v1349 = vmul.u32 %v1342, %v1333
    %v1350 = vadd.s32 %v1345, %v1347
    %vm1351 = vc.u32 %v1345, %v1347
    %v1352 = vadd.s32 %v1348, 1
    %v1353 = vsel %vm1351, %v1352, %v1348
    %v1354 = vadd.s32 %v1349, %v1353
    %v1355 = vadd.s32 %v1354, 536870912
    %v1356 = vshrl.u32 %v1355, 30
    %v1357 = vshll.u32 %v1356, 30
    %v1358 = vsub.s32 %v1354, %v1357
    %vm1359 = vcmp.lt.s32.totalorder %v1358, 0
    %v1360 = vsub.s32 0, %v1358
    %v1361 = vsel %vm1359, %v1360, %v1358
    %v1362 = vclz %v1361
    %v1363 = vsub.s32 %v1362, 2
    %vm1364 = vcmp.gt.s32.totalorder 0, %v1363
    %v1365 = vsel %vm1364, 0, %v1363
    %v1366 = vsub.s32 32, %v1365
    %v1367 = vshll.u32 %v1358, %v1365
    %v1368 = vshrl.u32 %v1350, %v1366
    %v1369 = vor.u32 %v1367, %v1368
    %v1370 = vsub.s32 4294967266, %v1365
    %v1371 = vadd.s32 %v1370, 127
    %v1372 = vshll.u32 %v1371, 23
    %v1373 = vor.u32 4788187, %v1372
    %v1374 = vand.u32 2147483647, %v1373
    %v1376 = vcvt.s32.f32 %v1369
    %v1377 = vmul.f32 %v1376, %v1374
    %v1378 = vxor.u32 %v1377, 2147483648
    %v1379 = vsel %vm1296, %v1378, %v1377
    %v1380 = vsub.s32 4, %v1356
    %v1381 = vsel %vm1296, %v1380, %v1356
    %v1382 = vsel %vm1295, %v1292, %v1379
    %v1383 = vsel %vm1295, 0, %v1381
    %v1384 = vcosq.f32.pop %v1382
    %v1385 = vsinq.f32.pop %v1382
    %vm1386 = vweird.f32 %v1292
    %v1387 = vadd.s32 %v1383, 3
    %v1388 = vand.u32 %v1387, 3
    %vm1389 = vcmp.lt.s32.totalorder %v1388, 2
    %vm1390 = vcmp.eq.s32.totalorder %v1388, 0
    %v1391 = vxor.u32 %v1385, 2147483648
    %v1392 = vsel %vm1390, %v1384, %v1391
    %vm1393 = vcmp.eq.s32.totalorder %v1388, 2
    %v1394 = vxor.u32 %v1384, 2147483648
    %v1395 = vsel %vm1393, %v1394, %v1385
    %v1396 = vsel %vm1389, %v1392, %v1395
    %v1397 = vsel %vm1386, nan, %v1396
    %v1398 = vand.u32 2147483647, %v1293
    %vm1399 = vcmp.le.f32.partialorder %v1398, 0.7853982
    %vm1400 = vcmp.lt.s32.totalorder %v1293, 0
    %v1401 = vand.u32 %v1293, 2139095040
    %v1402 = vshrl.u32 %v1401, 23
    %v1403 = vsub.s32 %v1402, 127
    %v1404 = vand.u32 2147483647, %v1293
    %v1405 = vand.u32 %v1404, 8388607
    %v1406 = vor.u32 %v1405, 8388608
    %v1407 = vsub.s32 0, %v1406
    %v1408 = vadd.s32 %v1403, 1
    %vm1409 = vcmp.gt.s32.totalorder %v1408, 0
    %v1410 = vsel %vm1409, %v1408, 0
    %v1411 = vshrl.u32 %v1410, 5
    %v1412 = vand.u32 %v1410, 31
    %v1413 = vsub.s32 32, %v1412
    %v1414 = vshrl.u32 683565275, %v1413
    %v1415 = vshll.u32 683565275, %v1412
    %v1416 = vshrl.u32 2475754826, %v1413
    %v1417 = vor.u32 %v1415, %v1416
    %v1418 = vshll.u32 2475754826, %v1412
    %v1419 = vshrl.u32 2131351028, %v1413
    %v1420 = vor.u32 %v1418, %v1419
    %v1421 = vshll.u32 2131351028, %v1412
    %v1422 = vshrl.u32 2102212464, %v1413
    %v1423 = vor.u32 %v1421, %v1422
    %v1424 = vshll.u32 2102212464, %v1412
    %v1425 = vshrl.u32 920167782, %v1413
    %v1426 = vor.u32 %v1424, %v1425
    %v1427 = vshll.u32 920167782, %v1412
    %v1428 = vshrl.u32 1326507024, %v1413
    %v1429 = vor.u32 %v1427, %v1428
    %vm1430 = vcmp.lt.s32.totalorder %v1411, 1
    %vm1431 = vcmp.lt.s32.totalorder %v1411, 2
    %vm1432 = vcmp.lt.s32.totalorder %v1411, 3
    %vm1433 = vcmp.lt.s32.totalorder %v1411, 4
    %v1434 = vsel %vm1430, %v1414, %v1417
    %v1435 = vsel %vm1433, %v1423, 2102212464
    %v1436 = vsel %vm1432, %v1420, %v1435
    %v1437 = vsel %vm1431, %v1434, %v1436
    %v1438 = vsel %vm1430, %v1417, %v1420
    %v1439 = vsel %vm1433, %v1426, 920167782
    %v1440 = vsel %vm1432, %v1423, %v1439
    %v1441 = vsel %vm1431, %v1438, %v1440
    %v1442 = vsel %vm1430, %v1420, %v1423
    %v1443 = vsel %vm1433, %v1429, 1326507024
    %v1444 = vsel %vm1432, %v1426, %v1443
    %v1445 = vsel %vm1431, %v1442, %v1444
    %v1446 = vshll.u32 %v1406, 8
    %v1447 = vmul.u32.u64.compose %v1446, %v1445
    %v1448 = vextract.low.u32 %v1447
    %v1449 = vextract.high.u32 %v1447
    %v1450 = vmul.u32.u64.compose %v1446, %v1441
    %v1451 = vextract.low.u32 %v1450
    %v1452 = vextract.high.u32 %v1450
    %v1453 = vmul.u32 %v1446, %v1437
    %v1454 = vadd.s32 %v1449, %v1451
    %vm1455 = vc.u32 %v1449, %v1451
    %v1456 = vadd.s32 %v1452, 1
    %v1457 = vsel %vm1455, %v1456, %v1452
    %v1458 = vadd.s32 %v1453, %v1457
    %v1459 = vadd.s32 %v1458, 536870912
    %v1460 = vshrl.u32 %v1459, 30
    %v1461 = vshll.u32 %v1460, 30
    %v1462 = vsub.s32 %v1458, %v1461
    %vm1463 = vcmp.lt.s32.totalorder %v1462, 0
    %v1464 = vsub.s32 0, %v1462
    %v1465 = vsel %vm1463, %v1464, %v1462
    %v1466 = vclz %v1465
    %v1467 = vsub.s32 %v1466, 2
    %vm1468 = vcmp.gt.s32.totalorder 0, %v1467
    %v1469 = vsel %vm1468, 0, %v1467
    %v1470 = vsub.s32 32, %v1469
    %v1471 = vshll.u32 %v1462, %v1469
    %v1472 = vshrl.u32 %v1454, %v1470
    %v1473 = vor.u32 %v1471, %v1472
    %v1474 = vsub.s32 4294967266, %v1469
    %v1475 = vadd.s32 %v1474, 127
    %v1476 = vshll.u32 %v1475, 23
    %v1477 = vor.u32 4788187, %v1476
    %v1478 = vand.u32 2147483647, %v1477
    %v1480 = vcvt.s32.f32 %v1473
    %v1481 = vmul.f32 %v1480, %v1478
    %v1482 = vxor.u32 %v1481, 2147483648
    %v1483 = vsel %vm1400, %v1482, %v1481
    %v1484 = vsub.s32 4, %v1460
    %v1485 = vsel %vm1400, %v1484, %v1460
    %v1486 = vsel %vm1399, %v1293, %v1483
    %v1487 = vsel %vm1399, 0, %v1485
    %v1488 = vcosq.f32.pop %v1486
    %v1489 = vsinq.f32.pop %v1486
    %vm1490 = vweird.f32 %v1293
    %v1491 = vadd.s32 %v1487, 3
    %v1492 = vand.u32 %v1491, 3
    %vm1493 = vcmp.lt.s32.totalorder %v1492, 2
    %vm1494 = vcmp.eq.s32.totalorder %v1492, 0
    %v1495 = vxor.u32 %v1489, 2147483648
    %v1496 = vsel %vm1494, %v1488, %v1495
    %vm1497 = vcmp.eq.s32.totalorder %v1492, 2
    %v1498 = vxor.u32 %v1488, 2147483648
    %v1499 = vsel %vm1497, %v1498, %v1489
    %v1500 = vsel %vm1493, %v1496, %v1499
    %v1501 = vsel %vm1490, nan, %v1500
    %v1502 = vld [vmem:[%s23] sm:$0xff]
    %v1503 = vld [vmem:[%s23 + $0x8] sm:$0xff]
    %v1504 = vmul.f32 %v1397, %v1397
    %v1505 = vmul.f32 %v1501, %v1501
    %1507 = vset.pattern.permute.xlu0 0
    %1508 = vperm.xlu0 %1507, %v1502
    %v1509 = vpop.permute.xlu0 %1508
    %1512 = vset.pattern.permute.xlu0 0
    %1513 = vperm.xlu0 %1512, %v1503
    %v1514 = vpop.permute.xlu0 %1513
    %v1516 = vmul.f32 %v1509, %v1504
    %v1517 = vmul.f32 %v1514, %v1505
    %v1518 = vadd.f32 %v1272, %v1516
    %v1519 = vadd.f32 %v1277, %v1517
    %1522 = vrot.lane.b32.xlu0 %v1518, 8
    %v1523 = vpop.permute.xlu0 %1522
    %1524 = vrot.lane.b32.xlu0 %v1519, 8
    %v1525 = vpop.permute.xlu0 %1524
    %1528 = vst.msk [vmem:[#allocation5] sm:$0xff] %vm908, %v1523
    %1529 = vst.msk [vmem:[#allocation5 + $0x8] sm:$0xff] %vm908, %v1525
    %v1530 = vld [vmem:[#allocation5] sm:$0xff]
    %v1531 = vld [vmem:[#allocation5 + $0x8] sm:$0xff]
    %1534 = vrot.lane.b32.xlu0 %v1530, 127
    %v1535 = vpop.permute.xlu0 %1534
    %1536 = vrot.lane.b32.xlu0 %v1531, 127
    %v1537 = vpop.permute.xlu0 %1536
    %1538 = vrot.lane.b32.xlu0 %v1530, 126
    %v1539 = vpop.permute.xlu0 %1538
    %1540 = vrot.lane.b32.xlu0 %v1531, 126
    %v1541 = vpop.permute.xlu0 %1540
    %v1542 = vld [vmem:[%s25] sm:$0xff]
    %v1543 = vld [vmem:[%s25 + $0x8] sm:$0xff]
    %v1544 = vld [vmem:[%s27] sm:$0xff]
    %v1545 = vld [vmem:[%s27 + $0x8] sm:$0xff]
    %1547 = vset.pattern.permute.xlu0 0
    %1548 = vperm.xlu0 %1547, %v1544
    %v1549 = vpop.permute.xlu0 %1548
    %1552 = vset.pattern.permute.xlu0 0
    %1553 = vperm.xlu0 %1552, %v1545
    %v1554 = vpop.permute.xlu0 %1553
    %1556 = vrot.lane.b32.xlu0 %v1530, 121
    %v1557 = vpop.permute.xlu0 %1556
    %1558 = vrot.lane.b32.xlu0 %v1531, 121
    %v1559 = vpop.permute.xlu0 %1558
    %1560 = vrot.lane.b32.xlu0 %v1535, 121
    %v1561 = vpop.permute.xlu0 %1560
    %1562 = vrot.lane.b32.xlu0 %v1537, 121
    %v1563 = vpop.permute.xlu0 %1562
    %1564 = vrot.lane.b32.xlu0 %v1539, 121
    %v1565 = vpop.permute.xlu0 %1564
    %1566 = vrot.lane.b32.xlu0 %v1541, 121
    %v1567 = vpop.permute.xlu0 %1566
    %v1575 = vsel %vm253, %v1542, 0
    %v1578 = vsel %vm253, %v1543, 0
    %1580 = vmatprep.subr.mxu0 0.0
    %1581 = vmatpush1.msra.mxu0 %v1557
    %1582 = vmatprep.subr.mxu0 0.0
    %1583 = vmatpush1.msra.mxu0 %v1559
    %1584 = vmatprep.subr.mxu0 0.0
    %1585 = vmatpush1.msra.mxu0 %v1561
    %1586 = vmatprep.subr.mxu0 0.0
    %1587 = vmatpush1.msra.mxu0 %v1563
    %1588 = vmatprep.subr.mxu0 0.0
    %1589 = vmatpush1.msra.mxu0 %v1565
    %1590 = vmatprep.subr.mxu0 0.0
    %1591 = vmatpush1.msra.mxu0 %v1567
    %1592 = vmatprep.subr.mxu0 0.0
    %1593 = vmatpush1.msra.mxu0 0.0
    %1594 = vmatprep.subr.mxu0 0.0
    %1595 = vmatpush1.msra.mxu0 0.0
    %1596 = vmatprep.subr.mxu0 0.0
    %1597 = vmatpush1.msra.mxu0 0.0
    %1598 = vmatprep.subr.mxu0 0.0
    %1599 = vmatpush1.msra.mxu0 0.0
    %1600 = vmatprep.subr.mxu0 0.0
    %1601 = vmatpush1.msra.mxu0 0.0
    %1602 = vmatprep.subr.mxu0 0.0
    %1603 = vmatpush1.msra.mxu0 0.0
    %1604 = vmatprep.subr.mxu0 0.0
    %1605 = vmatpush1.msra.mxu0 0.0
    %1606 = vmatprep.subr.mxu0 0.0
    %1607 = vmatpush1.msra.mxu0 0.0
    %1608 = vmatprep.subr.mxu0 0.0
    %1609 = vmatpush1.msra.mxu0 0.0
    %1610 = vmatprep.subr.mxu0 0.0
    %1611 = vmatpush1.msra.mxu0 0.0
    %1612 = vmatprep.subr.mxu0 0.0
    %1613 = vmatpush1.msra.mxu0 0.0
    %1614 = vmatprep.subr.mxu0 0.0
    %1615 = vmatpush1.msra.mxu0 0.0
    %1616 = vmatprep.subr.mxu0 0.0
    %1617 = vmatpush1.msra.mxu0 0.0
    %1618 = vmatprep.subr.mxu0 0.0
    %1619 = vmatpush1.msra.mxu0 0.0
    %1620 = vmatprep.subr.mxu0 0.0
    %1621 = vmatpush1.msra.mxu0 0.0
    %1622 = vmatprep.subr.mxu0 0.0
    %1623 = vmatpush1.msra.mxu0 0.0
    %1624 = vmatprep.subr.mxu0 0.0
    %1625 = vmatpush1.msra.mxu0 0.0
    %1626 = vmatprep.subr.mxu0 0.0
    %1627 = vmatpush1.msra.mxu0 0.0
    %1628 = vmatprep.subr.mxu0 0.0
    %1629 = vmatpush1.msra.mxu0 0.0
    %1630 = vmatprep.subr.mxu0 0.0
    %1631 = vmatpush1.msra.mxu0 0.0
    %1632 = vmatprep.subr.mxu0 0.0
    %1633 = vmatpush1.msra.mxu0 0.0
    %1634 = vmatprep.subr.mxu0 0.0
    %1635 = vmatpush1.msra.mxu0 0.0
    %1636 = vmatprep.subr.mxu0 0.0
    %1637 = vmatpush1.msra.mxu0 0.0
    %1638 = vmatprep.subr.mxu0 0.0
    %1639 = vmatpush1.msra.mxu0 0.0
    %1640 = vmatprep.subr.mxu0 0.0
    %1641 = vmatpush1.msra.mxu0 0.0
    %1642 = vmatprep.subr.mxu0 0.0
    %1643 = vmatpush1.msra.mxu0 0.0
    %1644 = vmatprep.mubr.f32.mxu0 0.0
    %1645 = vmatmul.mubr.f32.gmra.mrb[0].mxu0 %v1575
    %v1646 = vpop.f32.mrb[0].mxu0
    %v1647 = vadd.f32 %v1549, %v1646
    %v1648 = vpop.f32.mrb[0].mxu0
    %1649 = vmatprep.mubr.f32.mxu0 0.0
    %1650 = vmatmul.mubr.f32.gmra.mrb[0].mxu0 %v1578
    %v1651 = vpop.f32.mrb[0].mxu0
    %v1652 = vadd.f32 %v1554, %v1651
    %v1653 = vpop.f32.mrb[0].mxu0
    %1654 = vdwg.mxu0
    %v1655 = vld [vmem:[#allocation4] sm:$0xff]
    %v1656 = vld [vmem:[#allocation4 + $0x8] sm:$0xff]
    %1659 = vrot.lane.b32.xlu0 %v1655, 120
    %v1660 = vpop.permute.xlu0 %1659
    %1661 = vrot.lane.b32.xlu0 %v1656, 120
    %v1662 = vpop.permute.xlu0 %1661
    %v1665 = vadd.f32 %v1647, %v1660
    %v1666 = vadd.f32 %v1652, %v1662
    %1669 = vrot.lane.b32.xlu0 %v1665, 8
    %v1670 = vpop.permute.xlu0 %1669
    %1671 = vrot.lane.b32.xlu0 %v1666, 8
    %v1672 = vpop.permute.xlu0 %1671
    %1675 = vst.msk [vmem:[#allocation4] sm:$0xff] %vm908, %v1670
    %1676 = vst.msk [vmem:[#allocation4 + $0x8] sm:$0xff] %vm908, %v1672
    %v1677 = vld [vmem:[#allocation4] sm:$0xff]
    %v1678 = vld [vmem:[#allocation4 + $0x8] sm:$0xff]
    %v1679 = vld [vmem:[%s29] sm:$0xff]
    %v1680 = vld [vmem:[%s29 + $0x8] sm:$0xff]
    %1682 = vset.pattern.permute.xlu0 0
    %1683 = vperm.xlu0 %1682, %v1679
    %v1684 = vpop.permute.xlu0 %1683
    %1687 = vset.pattern.permute.xlu0 0
    %1688 = vperm.xlu0 %1687, %v1680
    %v1689 = vpop.permute.xlu0 %1688
    %v1691 = vmul.f32 %v1677, %v1684
    %v1692 = vmul.f32 %v1678, %v1689
    %v1693 = vand.u32 2147483647, %v1691
    %vm1694 = vcmp.le.f32.partialorder %v1693, 0.7853982
    %vm1695 = vcmp.lt.s32.totalorder %v1691, 0
    %v1696 = vand.u32 %v1691, 2139095040
    %v1697 = vshrl.u32 %v1696, 23
    %v1698 = vsub.s32 %v1697, 127
    %v1699 = vand.u32 2147483647, %v1691
    %v1700 = vand.u32 %v1699, 8388607
    %v1701 = vor.u32 %v1700, 8388608
    %v1702 = vsub.s32 0, %v1701
    %v1703 = vadd.s32 %v1698, 1
    %vm1704 = vcmp.gt.s32.totalorder %v1703, 0
    %v1705 = vsel %vm1704, %v1703, 0
    %v1706 = vshrl.u32 %v1705, 5
    %v1707 = vand.u32 %v1705, 31
    %v1708 = vsub.s32 32, %v1707
    %v1709 = vshrl.u32 683565275, %v1708
    %v1710 = vshll.u32 683565275, %v1707
    %v1711 = vshrl.u32 2475754826, %v1708
    %v1712 = vor.u32 %v1710, %v1711
    %v1713 = vshll.u32 2475754826, %v1707
    %v1714 = vshrl.u32 2131351028, %v1708
    %v1715 = vor.u32 %v1713, %v1714
    %v1716 = vshll.u32 2131351028, %v1707
    %v1717 = vshrl.u32 2102212464, %v1708
    %v1718 = vor.u32 %v1716, %v1717
    %v1719 = vshll.u32 2102212464, %v1707
    %v1720 = vshrl.u32 920167782, %v1708
    %v1721 = vor.u32 %v1719, %v1720
    %v1722 = vshll.u32 920167782, %v1707
    %v1723 = vshrl.u32 1326507024, %v1708
    %v1724 = vor.u32 %v1722, %v1723
    %vm1725 = vcmp.lt.s32.totalorder %v1706, 1
    %vm1726 = vcmp.lt.s32.totalorder %v1706, 2
    %vm1727 = vcmp.lt.s32.totalorder %v1706, 3
    %vm1728 = vcmp.lt.s32.totalorder %v1706, 4
    %v1729 = vsel %vm1725, %v1709, %v1712
    %v1730 = vsel %vm1728, %v1718, 2102212464
    %v1731 = vsel %vm1727, %v1715, %v1730
    %v1732 = vsel %vm1726, %v1729, %v1731
    %v1733 = vsel %vm1725, %v1712, %v1715
    %v1734 = vsel %vm1728, %v1721, 920167782
    %v1735 = vsel %vm1727, %v1718, %v1734
    %v1736 = vsel %vm1726, %v1733, %v1735
    %v1737 = vsel %vm1725, %v1715, %v1718
    %v1738 = vsel %vm1728, %v1724, 1326507024
    %v1739 = vsel %vm1727, %v1721, %v1738
    %v1740 = vsel %vm1726, %v1737, %v1739
    %v1741 = vshll.u32 %v1701, 8
    %v1742 = vmul.u32.u64.compose %v1741, %v1740
    %v1743 = vextract.low.u32 %v1742
    %v1744 = vextract.high.u32 %v1742
    %v1745 = vmul.u32.u64.compose %v1741, %v1736
    %v1746 = vextract.low.u32 %v1745
    %v1747 = vextract.high.u32 %v1745
    %v1748 = vmul.u32 %v1741, %v1732
    %v1749 = vadd.s32 %v1744, %v1746
    %vm1750 = vc.u32 %v1744, %v1746
    %v1751 = vadd.s32 %v1747, 1
    %v1752 = vsel %vm1750, %v1751, %v1747
    %v1753 = vadd.s32 %v1748, %v1752
    %v1754 = vadd.s32 %v1753, 536870912
    %v1755 = vshrl.u32 %v1754, 30
    %v1756 = vshll.u32 %v1755, 30
    %v1757 = vsub.s32 %v1753, %v1756
    %vm1758 = vcmp.lt.s32.totalorder %v1757, 0
    %v1759 = vsub.s32 0, %v1757
    %v1760 = vsel %vm1758, %v1759, %v1757
    %v1761 = vclz %v1760
    %v1762 = vsub.s32 %v1761, 2
    %vm1763 = vcmp.gt.s32.totalorder 0, %v1762
    %v1764 = vsel %vm1763, 0, %v1762
    %v1765 = vsub.s32 32, %v1764
    %v1766 = vshll.u32 %v1757, %v1764
    %v1767 = vshrl.u32 %v1749, %v1765
    %v1768 = vor.u32 %v1766, %v1767
    %v1769 = vsub.s32 4294967266, %v1764
    %v1770 = vadd.s32 %v1769, 127
    %v1771 = vshll.u32 %v1770, 23
    %v1772 = vor.u32 4788187, %v1771
    %v1773 = vand.u32 2147483647, %v1772
    %v1775 = vcvt.s32.f32 %v1768
    %v1776 = vmul.f32 %v1775, %v1773
    %v1777 = vxor.u32 %v1776, 2147483648
    %v1778 = vsel %vm1695, %v1777, %v1776
    %v1779 = vsub.s32 4, %v1755
    %v1780 = vsel %vm1695, %v1779, %v1755
    %v1781 = vsel %vm1694, %v1691, %v1778
    %v1782 = vsel %vm1694, 0, %v1780
    %v1783 = vcosq.f32.pop %v1781
    %v1784 = vsinq.f32.pop %v1781
    %vm1785 = vweird.f32 %v1691
    %v1786 = vadd.s32 %v1782, 3
    %v1787 = vand.u32 %v1786, 3
    %vm1788 = vcmp.lt.s32.totalorder %v1787, 2
    %vm1789 = vcmp.eq.s32.totalorder %v1787, 0
    %v1790 = vxor.u32 %v1784, 2147483648
    %v1791 = vsel %vm1789, %v1783, %v1790
    %vm1792 = vcmp.eq.s32.totalorder %v1787, 2
    %v1793 = vxor.u32 %v1783, 2147483648
    %v1794 = vsel %vm1792, %v1793, %v1784
    %v1795 = vsel %vm1788, %v1791, %v1794
    %v1796 = vsel %vm1785, nan, %v1795
    %v1797 = vand.u32 2147483647, %v1692
    %vm1798 = vcmp.le.f32.partialorder %v1797, 0.7853982
    %vm1799 = vcmp.lt.s32.totalorder %v1692, 0
    %v1800 = vand.u32 %v1692, 2139095040
    %v1801 = vshrl.u32 %v1800, 23
    %v1802 = vsub.s32 %v1801, 127
    %v1803 = vand.u32 2147483647, %v1692
    %v1804 = vand.u32 %v1803, 8388607
    %v1805 = vor.u32 %v1804, 8388608
    %v1806 = vsub.s32 0, %v1805
    %v1807 = vadd.s32 %v1802, 1
    %vm1808 = vcmp.gt.s32.totalorder %v1807, 0
    %v1809 = vsel %vm1808, %v1807, 0
    %v1810 = vshrl.u32 %v1809, 5
    %v1811 = vand.u32 %v1809, 31
    %v1812 = vsub.s32 32, %v1811
    %v1813 = vshrl.u32 683565275, %v1812
    %v1814 = vshll.u32 683565275, %v1811
    %v1815 = vshrl.u32 2475754826, %v1812
    %v1816 = vor.u32 %v1814, %v1815
    %v1817 = vshll.u32 2475754826, %v1811
    %v1818 = vshrl.u32 2131351028, %v1812
    %v1819 = vor.u32 %v1817, %v1818
    %v1820 = vshll.u32 2131351028, %v1811
    %v1821 = vshrl.u32 2102212464, %v1812
    %v1822 = vor.u32 %v1820, %v1821
    %v1823 = vshll.u32 2102212464, %v1811
    %v1824 = vshrl.u32 920167782, %v1812
    %v1825 = vor.u32 %v1823, %v1824
    %v1826 = vshll.u32 920167782, %v1811
    %v1827 = vshrl.u32 1326507024, %v1812
    %v1828 = vor.u32 %v1826, %v1827
    %vm1829 = vcmp.lt.s32.totalorder %v1810, 1
    %vm1830 = vcmp.lt.s32.totalorder %v1810, 2
    %vm1831 = vcmp.lt.s32.totalorder %v1810, 3
    %vm1832 = vcmp.lt.s32.totalorder %v1810, 4
    %v1833 = vsel %vm1829, %v1813, %v1816
    %v1834 = vsel %vm1832, %v1822, 2102212464
    %v1835 = vsel %vm1831, %v1819, %v1834
    %v1836 = vsel %vm1830, %v1833, %v1835
    %v1837 = vsel %vm1829, %v1816, %v1819
    %v1838 = vsel %vm1832, %v1825, 920167782
    %v1839 = vsel %vm1831, %v1822, %v1838
    %v1840 = vsel %vm1830, %v1837, %v1839
    %v1841 = vsel %vm1829, %v1819, %v1822
    %v1842 = vsel %vm1832, %v1828, 1326507024
    %v1843 = vsel %vm1831, %v1825, %v1842
    %v1844 = vsel %vm1830, %v1841, %v1843
    %v1845 = vshll.u32 %v1805, 8
    %v1846 = vmul.u32.u64.compose %v1845, %v1844
    %v1847 = vextract.low.u32 %v1846
    %v1848 = vextract.high.u32 %v1846
    %v1849 = vmul.u32.u64.compose %v1845, %v1840
    %v1850 = vextract.low.u32 %v1849
    %v1851 = vextract.high.u32 %v1849
    %v1852 = vmul.u32 %v1845, %v1836
    %v1853 = vadd.s32 %v1848, %v1850
    %vm1854 = vc.u32 %v1848, %v1850
    %v1855 = vadd.s32 %v1851, 1
    %v1856 = vsel %vm1854, %v1855, %v1851
    %v1857 = vadd.s32 %v1852, %v1856
    %v1858 = vadd.s32 %v1857, 536870912
    %v1859 = vshrl.u32 %v1858, 30
    %v1860 = vshll.u32 %v1859, 30
    %v1861 = vsub.s32 %v1857, %v1860
    %vm1862 = vcmp.lt.s32.totalorder %v1861, 0
    %v1863 = vsub.s32 0, %v1861
    %v1864 = vsel %vm1862, %v1863, %v1861
    %v1865 = vclz %v1864
    %v1866 = vsub.s32 %v1865, 2
    %vm1867 = vcmp.gt.s32.totalorder 0, %v1866
    %v1868 = vsel %vm1867, 0, %v1866
    %v1869 = vsub.s32 32, %v1868
    %v1870 = vshll.u32 %v1861, %v1868
    %v1871 = vshrl.u32 %v1853, %v1869
    %v1872 = vor.u32 %v1870, %v1871
    %v1873 = vsub.s32 4294967266, %v1868
    %v1874 = vadd.s32 %v1873, 127
    %v1875 = vshll.u32 %v1874, 23
    %v1876 = vor.u32 4788187, %v1875
    %v1877 = vand.u32 2147483647, %v1876
    %v1879 = vcvt.s32.f32 %v1872
    %v1880 = vmul.f32 %v1879, %v1877
    %v1881 = vxor.u32 %v1880, 2147483648
    %v1882 = vsel %vm1799, %v1881, %v1880
    %v1883 = vsub.s32 4, %v1859
    %v1884 = vsel %vm1799, %v1883, %v1859
    %v1885 = vsel %vm1798, %v1692, %v1882
    %v1886 = vsel %vm1798, 0, %v1884
    %v1887 = vcosq.f32.pop %v1885
    %v1888 = vsinq.f32.pop %v1885
    %vm1889 = vweird.f32 %v1692
    %v1890 = vadd.s32 %v1886, 3
    %v1891 = vand.u32 %v1890, 3
    %vm1892 = vcmp.lt.s32.totalorder %v1891, 2
    %vm1893 = vcmp.eq.s32.totalorder %v1891, 0
    %v1894 = vxor.u32 %v1888, 2147483648
    %v1895 = vsel %vm1893, %v1887, %v1894
    %vm1896 = vcmp.eq.s32.totalorder %v1891, 2
    %v1897 = vxor.u32 %v1887, 2147483648
    %v1898 = vsel %vm1896, %v1897, %v1888
    %v1899 = vsel %vm1892, %v1895, %v1898
    %v1900 = vsel %vm1889, nan, %v1899
    %v1901 = vld [vmem:[%s31] sm:$0xff]
    %v1902 = vld [vmem:[%s31 + $0x8] sm:$0xff]
    %v1903 = vmul.f32 %v1796, %v1796
    %v1904 = vmul.f32 %v1900, %v1900
    %1906 = vset.pattern.permute.xlu0 0
    %1907 = vperm.xlu0 %1906, %v1901
    %v1908 = vpop.permute.xlu0 %1907
    %1911 = vset.pattern.permute.xlu0 0
    %1912 = vperm.xlu0 %1911, %v1902
    %v1913 = vpop.permute.xlu0 %1912
    %v1915 = vmul.f32 %v1908, %v1903
    %v1916 = vmul.f32 %v1913, %v1904
    %v1917 = vadd.f32 %v1677, %v1915
    %v1918 = vadd.f32 %v1678, %v1916
    %1919 = vst.msk [vmem:[#allocation5] sm:$0xff] %vm908, %v1917
    %1920 = vst.msk [vmem:[#allocation5 + $0x8] sm:$0xff] %vm908, %v1918
    %v1921 = vld [vmem:[#allocation5] sm:$0xff]
    %v1922 = vld [vmem:[#allocation5 + $0x8] sm:$0xff]
    %1925 = vrot.lane.b32.xlu0 %v1921, 125
    %v1926 = vpop.permute.xlu0 %1925
    %1927 = vrot.lane.b32.xlu0 %v1922, 125
    %v1928 = vpop.permute.xlu0 %1927
    %1929 = vrot.lane.b32.xlu0 %v1921, 122
    %v1930 = vpop.permute.xlu0 %1929
    %1931 = vrot.lane.b32.xlu0 %v1922, 122
    %v1932 = vpop.permute.xlu0 %1931
    %v1933 = vld [vmem:[%s33] sm:$0xff]
    %v1934 = vld [vmem:[%s33 + $0x8] sm:$0xff]
    %v1935 = vld [vmem:[%s35] sm:$0xff]
    %v1936 = vld [vmem:[%s35 + $0x8] sm:$0xff]
    %1938 = vset.pattern.permute.xlu0 0
    %1939 = vperm.xlu0 %1938, %v1935
    %v1940 = vpop.permute.xlu0 %1939
    %1943 = vset.pattern.permute.xlu0 0
    %1944 = vperm.xlu0 %1943, %v1936
    %v1945 = vpop.permute.xlu0 %1944
    %1947 = vrot.lane.b32.xlu0 %v1921, 123
    %v1948 = vpop.permute.xlu0 %1947
    %1949 = vrot.lane.b32.xlu0 %v1922, 123
    %v1950 = vpop.permute.xlu0 %1949
    %1951 = vrot.lane.b32.xlu0 %v1926, 123
    %v1952 = vpop.permute.xlu0 %1951
    %1953 = vrot.lane.b32.xlu0 %v1928, 123
    %v1954 = vpop.permute.xlu0 %1953
    %1955 = vrot.lane.b32.xlu0 %v1930, 123
    %v1956 = vpop.permute.xlu0 %1955
    %1957 = vrot.lane.b32.xlu0 %v1932, 123
    %v1958 = vpop.permute.xlu0 %1957
    %v1966 = vsel %vm253, %v1933, 0
    %v1969 = vsel %vm253, %v1934, 0
    %1971 = vmatprep.subr.mxu0 0.0
    %1972 = vmatpush1.msra.mxu0 %v1948
    %1973 = vmatprep.subr.mxu0 0.0
    %1974 = vmatpush1.msra.mxu0 %v1950
    %1975 = vmatprep.subr.mxu0 0.0
    %1976 = vmatpush1.msra.mxu0 %v1952
    %1977 = vmatprep.subr.mxu0 0.0
    %1978 = vmatpush1.msra.mxu0 %v1954
    %1979 = vmatprep.subr.mxu0 0.0
    %1980 = vmatpush1.msra.mxu0 %v1956
    %1981 = vmatprep.subr.mxu0 0.0
    %1982 = vmatpush1.msra.mxu0 %v1958
    %1983 = vmatprep.subr.mxu0 0.0
    %1984 = vmatpush1.msra.mxu0 0.0
    %1985 = vmatprep.subr.mxu0 0.0
    %1986 = vmatpush1.msra.mxu0 0.0
    %1987 = vmatprep.subr.mxu0 0.0
    %1988 = vmatpush1.msra.mxu0 0.0
    %1989 = vmatprep.subr.mxu0 0.0
    %1990 = vmatpush1.msra.mxu0 0.0
    %1991 = vmatprep.subr.mxu0 0.0
    %1992 = vmatpush1.msra.mxu0 0.0
    %1993 = vmatprep.subr.mxu0 0.0
    %1994 = vmatpush1.msra.mxu0 0.0
    %1995 = vmatprep.subr.mxu0 0.0
    %1996 = vmatpush1.msra.mxu0 0.0
    %1997 = vmatprep.subr.mxu0 0.0
    %1998 = vmatpush1.msra.mxu0 0.0
    %1999 = vmatprep.subr.mxu0 0.0
    %2000 = vmatpush1.msra.mxu0 0.0
    %2001 = vmatprep.subr.mxu0 0.0
    %2002 = vmatpush1.msra.mxu0 0.0
    %2003 = vmatprep.subr.mxu0 0.0
    %2004 = vmatpush1.msra.mxu0 0.0
    %2005 = vmatprep.subr.mxu0 0.0
    %2006 = vmatpush1.msra.mxu0 0.0
    %2007 = vmatprep.subr.mxu0 0.0
    %2008 = vmatpush1.msra.mxu0 0.0
    %2009 = vmatprep.subr.mxu0 0.0
    %2010 = vmatpush1.msra.mxu0 0.0
    %2011 = vmatprep.subr.mxu0 0.0
    %2012 = vmatpush1.msra.mxu0 0.0
    %2013 = vmatprep.subr.mxu0 0.0
    %2014 = vmatpush1.msra.mxu0 0.0
    %2015 = vmatprep.subr.mxu0 0.0
    %2016 = vmatpush1.msra.mxu0 0.0
    %2017 = vmatprep.subr.mxu0 0.0
    %2018 = vmatpush1.msra.mxu0 0.0
    %2019 = vmatprep.subr.mxu0 0.0
    %2020 = vmatpush1.msra.mxu0 0.0
    %2021 = vmatprep.subr.mxu0 0.0
    %2022 = vmatpush1.msra.mxu0 0.0
    %2023 = vmatprep.subr.mxu0 0.0
    %2024 = vmatpush1.msra.mxu0 0.0
    %2025 = vmatprep.subr.mxu0 0.0
    %2026 = vmatpush1.msra.mxu0 0.0
    %2027 = vmatprep.subr.mxu0 0.0
    %2028 = vmatpush1.msra.mxu0 0.0
    %2029 = vmatprep.subr.mxu0 0.0
    %2030 = vmatpush1.msra.mxu0 0.0
    %2031 = vmatprep.subr.mxu0 0.0
    %2032 = vmatpush1.msra.mxu0 0.0
    %2033 = vmatprep.subr.mxu0 0.0
    %2034 = vmatpush1.msra.mxu0 0.0
    %2035 = vmatprep.mubr.f32.mxu0 0.0
    %2036 = vmatmul.mubr.f32.gmra.mrb[0].mxu0 %v1966
    %v2037 = vpop.f32.mrb[0].mxu0
    %v2038 = vadd.f32 %v1940, %v2037
    %v2039 = vpop.f32.mrb[0].mxu0
    %2040 = vmatprep.mubr.f32.mxu0 0.0
    %2041 = vmatmul.mubr.f32.gmra.mrb[0].mxu0 %v1969
    %v2042 = vpop.f32.mrb[0].mxu0
    %v2043 = vadd.f32 %v1945, %v2042
    %v2044 = vpop.f32.mrb[0].mxu0
    %2045 = vdwg.mxu0
    %v2046 = vld [vmem:[%s37] sm:$0xff]
    %v2047 = vld [vmem:[%s37 + $0x8] sm:$0xff]
    %2049 = vset.pattern.permute.xlu0 0
    %2050 = vperm.xlu0 %2049, %v2046
    %v2051 = vpop.permute.xlu0 %2050
    %2054 = vset.pattern.permute.xlu0 0
    %2055 = vperm.xlu0 %2054, %v2047
    %v2056 = vpop.permute.xlu0 %2055
    %v2058 = vmul.f32 %v2038, %v2051
    %v2059 = vmul.f32 %v2043, %v2056
    %v2060 = vand.u32 2147483647, %v2058
    %vm2061 = vcmp.le.f32.partialorder %v2060, 0.7853982
    %vm2062 = vcmp.lt.s32.totalorder %v2058, 0
    %v2063 = vand.u32 %v2058, 2139095040
    %v2064 = vshrl.u32 %v2063, 23
    %v2065 = vsub.s32 %v2064, 127
    %v2066 = vand.u32 2147483647, %v2058
    %v2067 = vand.u32 %v2066, 8388607
    %v2068 = vor.u32 %v2067, 8388608
    %v2069 = vsub.s32 0, %v2068
    %v2070 = vadd.s32 %v2065, 1
    %vm2071 = vcmp.gt.s32.totalorder %v2070, 0
    %v2072 = vsel %vm2071, %v2070, 0
    %v2073 = vshrl.u32 %v2072, 5
    %v2074 = vand.u32 %v2072, 31
    %v2075 = vsub.s32 32, %v2074
    %v2076 = vshrl.u32 683565275, %v2075
    %v2077 = vshll.u32 683565275, %v2074
    %v2078 = vshrl.u32 2475754826, %v2075
    %v2079 = vor.u32 %v2077, %v2078
    %v2080 = vshll.u32 2475754826, %v2074
    %v2081 = vshrl.u32 2131351028, %v2075
    %v2082 = vor.u32 %v2080, %v2081
    %v2083 = vshll.u32 2131351028, %v2074
    %v2084 = vshrl.u32 2102212464, %v2075
    %v2085 = vor.u32 %v2083, %v2084
    %v2086 = vshll.u32 2102212464, %v2074
    %v2087 = vshrl.u32 920167782, %v2075
    %v2088 = vor.u32 %v2086, %v2087
    %v2089 = vshll.u32 920167782, %v2074
    %v2090 = vshrl.u32 1326507024, %v2075
    %v2091 = vor.u32 %v2089, %v2090
    %vm2092 = vcmp.lt.s32.totalorder %v2073, 1
    %vm2093 = vcmp.lt.s32.totalorder %v2073, 2
    %vm2094 = vcmp.lt.s32.totalorder %v2073, 3
    %vm2095 = vcmp.lt.s32.totalorder %v2073, 4
    %v2096 = vsel %vm2092, %v2076, %v2079
    %v2097 = vsel %vm2095, %v2085, 2102212464
    %v2098 = vsel %vm2094, %v2082, %v2097
    %v2099 = vsel %vm2093, %v2096, %v2098
    %v2100 = vsel %vm2092, %v2079, %v2082
    %v2101 = vsel %vm2095, %v2088, 920167782
    %v2102 = vsel %vm2094, %v2085, %v2101
    %v2103 = vsel %vm2093, %v2100, %v2102
    %v2104 = vsel %vm2092, %v2082, %v2085
    %v2105 = vsel %vm2095, %v2091, 1326507024
    %v2106 = vsel %vm2094, %v2088, %v2105
    %v2107 = vsel %vm2093, %v2104, %v2106
    %v2108 = vshll.u32 %v2068, 8
    %v2109 = vmul.u32.u64.compose %v2108, %v2107
    %v2110 = vextract.low.u32 %v2109
    %v2111 = vextract.high.u32 %v2109
    %v2112 = vmul.u32.u64.compose %v2108, %v2103
    %v2113 = vextract.low.u32 %v2112
    %v2114 = vextract.high.u32 %v2112
    %v2115 = vmul.u32 %v2108, %v2099
    %v2116 = vadd.s32 %v2111, %v2113
    %vm2117 = vc.u32 %v2111, %v2113
    %v2118 = vadd.s32 %v2114, 1
    %v2119 = vsel %vm2117, %v2118, %v2114
    %v2120 = vadd.s32 %v2115, %v2119
    %v2121 = vadd.s32 %v2120, 536870912
    %v2122 = vshrl.u32 %v2121, 30
    %v2123 = vshll.u32 %v2122, 30
    %v2124 = vsub.s32 %v2120, %v2123
    %vm2125 = vcmp.lt.s32.totalorder %v2124, 0
    %v2126 = vsub.s32 0, %v2124
    %v2127 = vsel %vm2125, %v2126, %v2124
    %v2128 = vclz %v2127
    %v2129 = vsub.s32 %v2128, 2
    %vm2130 = vcmp.gt.s32.totalorder 0, %v2129
    %v2131 = vsel %vm2130, 0, %v2129
    %v2132 = vsub.s32 32, %v2131
    %v2133 = vshll.u32 %v2124, %v2131
    %v2134 = vshrl.u32 %v2116, %v2132
    %v2135 = vor.u32 %v2133, %v2134
    %v2136 = vsub.s32 4294967266, %v2131
    %v2137 = vadd.s32 %v2136, 127
    %v2138 = vshll.u32 %v2137, 23
    %v2139 = vor.u32 4788187, %v2138
    %v2140 = vand.u32 2147483647, %v2139
    %v2142 = vcvt.s32.f32 %v2135
    %v2143 = vmul.f32 %v2142, %v2140
    %v2144 = vxor.u32 %v2143, 2147483648
    %v2145 = vsel %vm2062, %v2144, %v2143
    %v2146 = vsub.s32 4, %v2122
    %v2147 = vsel %vm2062, %v2146, %v2122
    %v2148 = vsel %vm2061, %v2058, %v2145
    %v2149 = vsel %vm2061, 0, %v2147
    %v2150 = vcosq.f32.pop %v2148
    %v2151 = vsinq.f32.pop %v2148
    %vm2152 = vweird.f32 %v2058
    %v2153 = vadd.s32 %v2149, 3
    %v2154 = vand.u32 %v2153, 3
    %vm2155 = vcmp.lt.s32.totalorder %v2154, 2
    %vm2156 = vcmp.eq.s32.totalorder %v2154, 0
    %v2157 = vxor.u32 %v2151, 2147483648
    %v2158 = vsel %vm2156, %v2150, %v2157
    %vm2159 = vcmp.eq.s32.totalorder %v2154, 2
    %v2160 = vxor.u32 %v2150, 2147483648
    %v2161 = vsel %vm2159, %v2160, %v2151
    %v2162 = vsel %vm2155, %v2158, %v2161
    %v2163 = vsel %vm2152, nan, %v2162
    %v2164 = vand.u32 2147483647, %v2059
    %vm2165 = vcmp.le.f32.partialorder %v2164, 0.7853982
    %vm2166 = vcmp.lt.s32.totalorder %v2059, 0
    %v2167 = vand.u32 %v2059, 2139095040
    %v2168 = vshrl.u32 %v2167, 23
    %v2169 = vsub.s32 %v2168, 127
    %v2170 = vand.u32 2147483647, %v2059
    %v2171 = vand.u32 %v2170, 8388607
    %v2172 = vor.u32 %v2171, 8388608
    %v2173 = vsub.s32 0, %v2172
    %v2174 = vadd.s32 %v2169, 1
    %vm2175 = vcmp.gt.s32.totalorder %v2174, 0
    %v2176 = vsel %vm2175, %v2174, 0
    %v2177 = vshrl.u32 %v2176, 5
    %v2178 = vand.u32 %v2176, 31
    %v2179 = vsub.s32 32, %v2178
    %v2180 = vshrl.u32 683565275, %v2179
    %v2181 = vshll.u32 683565275, %v2178
    %v2182 = vshrl.u32 2475754826, %v2179
    %v2183 = vor.u32 %v2181, %v2182
    %v2184 = vshll.u32 2475754826, %v2178
    %v2185 = vshrl.u32 2131351028, %v2179
    %v2186 = vor.u32 %v2184, %v2185
    %v2187 = vshll.u32 2131351028, %v2178
    %v2188 = vshrl.u32 2102212464, %v2179
    %v2189 = vor.u32 %v2187, %v2188
    %v2190 = vshll.u32 2102212464, %v2178
    %v2191 = vshrl.u32 920167782, %v2179
    %v2192 = vor.u32 %v2190, %v2191
    %v2193 = vshll.u32 920167782, %v2178
    %v2194 = vshrl.u32 1326507024, %v2179
    %v2195 = vor.u32 %v2193, %v2194
    %vm2196 = vcmp.lt.s32.totalorder %v2177, 1
    %vm2197 = vcmp.lt.s32.totalorder %v2177, 2
    %vm2198 = vcmp.lt.s32.totalorder %v2177, 3
    %vm2199 = vcmp.lt.s32.totalorder %v2177, 4
    %v2200 = vsel %vm2196, %v2180, %v2183
    %v2201 = vsel %vm2199, %v2189, 2102212464
    %v2202 = vsel %vm2198, %v2186, %v2201
    %v2203 = vsel %vm2197, %v2200, %v2202
    %v2204 = vsel %vm2196, %v2183, %v2186
    %v2205 = vsel %vm2199, %v2192, 920167782
    %v2206 = vsel %vm2198, %v2189, %v2205
    %v2207 = vsel %vm2197, %v2204, %v2206
    %v2208 = vsel %vm2196, %v2186, %v2189
    %v2209 = vsel %vm2199, %v2195, 1326507024
    %v2210 = vsel %vm2198, %v2192, %v2209
    %v2211 = vsel %vm2197, %v2208, %v2210
    %v2212 = vshll.u32 %v2172, 8
    %v2213 = vmul.u32.u64.compose %v2212, %v2211
    %v2214 = vextract.low.u32 %v2213
    %v2215 = vextract.high.u32 %v2213
    %v2216 = vmul.u32.u64.compose %v2212, %v2207
    %v2217 = vextract.low.u32 %v2216
    %v2218 = vextract.high.u32 %v2216
    %v2219 = vmul.u32 %v2212, %v2203
    %v2220 = vadd.s32 %v2215, %v2217
    %vm2221 = vc.u32 %v2215, %v2217
    %v2222 = vadd.s32 %v2218, 1
    %v2223 = vsel %vm2221, %v2222, %v2218
    %v2224 = vadd.s32 %v2219, %v2223
    %v2225 = vadd.s32 %v2224, 536870912
    %v2226 = vshrl.u32 %v2225, 30
    %v2227 = vshll.u32 %v2226, 30
    %v2228 = vsub.s32 %v2224, %v2227
    %vm2229 = vcmp.lt.s32.totalorder %v2228, 0
    %v2230 = vsub.s32 0, %v2228
    %v2231 = vsel %vm2229, %v2230, %v2228
    %v2232 = vclz %v2231
    %v2233 = vsub.s32 %v2232, 2
    %vm2234 = vcmp.gt.s32.totalorder 0, %v2233
    %v2235 = vsel %vm2234, 0, %v2233
    %v2236 = vsub.s32 32, %v2235
    %v2237 = vshll.u32 %v2228, %v2235
    %v2238 = vshrl.u32 %v2220, %v2236
    %v2239 = vor.u32 %v2237, %v2238
    %v2240 = vsub.s32 4294967266, %v2235
    %v2241 = vadd.s32 %v2240, 127
    %v2242 = vshll.u32 %v2241, 23
    %v2243 = vor.u32 4788187, %v2242
    %v2244 = vand.u32 2147483647, %v2243
    %v2246 = vcvt.s32.f32 %v2239
    %v2247 = vmul.f32 %v2246, %v2244
    %v2248 = vxor.u32 %v2247, 2147483648
    %v2249 = vsel %vm2166, %v2248, %v2247
    %v2250 = vsub.s32 4, %v2226
    %v2251 = vsel %vm2166, %v2250, %v2226
    %v2252 = vsel %vm2165, %v2059, %v2249
    %v2253 = vsel %vm2165, 0, %v2251
    %v2254 = vcosq.f32.pop %v2252
    %v2255 = vsinq.f32.pop %v2252
    %vm2256 = vweird.f32 %v2059
    %v2257 = vadd.s32 %v2253, 3
    %v2258 = vand.u32 %v2257, 3
    %vm2259 = vcmp.lt.s32.totalorder %v2258, 2
    %vm2260 = vcmp.eq.s32.totalorder %v2258, 0
    %v2261 = vxor.u32 %v2255, 2147483648
    %v2262 = vsel %vm2260, %v2254, %v2261
    %vm2263 = vcmp.eq.s32.totalorder %v2258, 2
    %v2264 = vxor.u32 %v2254, 2147483648
    %v2265 = vsel %vm2263, %v2264, %v2255
    %v2266 = vsel %vm2259, %v2262, %v2265
    %v2267 = vsel %vm2256, nan, %v2266
    %v2268 = vld [vmem:[%s39] sm:$0xff]
    %v2269 = vld [vmem:[%s39 + $0x8] sm:$0xff]
    %v2270 = vmul.f32 %v2163, %v2163
    %v2271 = vmul.f32 %v2267, %v2267
    %2273 = vset.pattern.permute.xlu0 0
    %2274 = vperm.xlu0 %2273, %v2268
    %v2275 = vpop.permute.xlu0 %2274
    %2278 = vset.pattern.permute.xlu0 0
    %2279 = vperm.xlu0 %2278, %v2269
    %v2280 = vpop.permute.xlu0 %2279
    %v2282 = vmul.f32 %v2275, %v2270
    %v2283 = vmul.f32 %v2280, %v2271
    %v2284 = vadd.f32 %v2038, %v2282
    %v2285 = vadd.f32 %v2043, %v2283
    %2288 = vrot.lane.b32.xlu0 %v2284, 8
    %v2289 = vpop.permute.xlu0 %2288
    %2290 = vrot.lane.b32.xlu0 %v2285, 8
    %v2291 = vpop.permute.xlu0 %2290
    %2294 = vst.msk [vmem:[#allocation5] sm:$0xff] %vm908, %v2289
    %2295 = vst.msk [vmem:[#allocation5 + $0x8] sm:$0xff] %vm908, %v2291
    %v2296 = vld [vmem:[#allocation5] sm:$0xff]
    %v2297 = vld [vmem:[#allocation5 + $0x8] sm:$0xff]
    %2300 = vrot.lane.b32.xlu0 %v2296, 127
    %v2301 = vpop.permute.xlu0 %2300
    %2302 = vrot.lane.b32.xlu0 %v2297, 127
    %v2303 = vpop.permute.xlu0 %2302
    %2304 = vrot.lane.b32.xlu0 %v2296, 126
    %v2305 = vpop.permute.xlu0 %2304
    %2306 = vrot.lane.b32.xlu0 %v2297, 126
    %v2307 = vpop.permute.xlu0 %2306
    %v2308 = vld [vmem:[%s41] sm:$0xff]
    %v2309 = vld [vmem:[%s41 + $0x8] sm:$0xff]
    %v2310 = vld [vmem:[%s43] sm:$0xff]
    %v2311 = vld [vmem:[%s43 + $0x8] sm:$0xff]
    %2313 = vset.pattern.permute.xlu0 0
    %2314 = vperm.xlu0 %2313, %v2310
    %v2315 = vpop.permute.xlu0 %2314
    %2318 = vset.pattern.permute.xlu0 0
    %2319 = vperm.xlu0 %2318, %v2311
    %v2320 = vpop.permute.xlu0 %2319
    %2322 = vrot.lane.b32.xlu0 %v2296, 121
    %v2323 = vpop.permute.xlu0 %2322
    %2324 = vrot.lane.b32.xlu0 %v2297, 121
    %v2325 = vpop.permute.xlu0 %2324
    %2326 = vrot.lane.b32.xlu0 %v2301, 121
    %v2327 = vpop.permute.xlu0 %2326
    %2328 = vrot.lane.b32.xlu0 %v2303, 121
    %v2329 = vpop.permute.xlu0 %2328
    %2330 = vrot.lane.b32.xlu0 %v2305, 121
    %v2331 = vpop.permute.xlu0 %2330
    %2332 = vrot.lane.b32.xlu0 %v2307, 121
    %v2333 = vpop.permute.xlu0 %2332
    %v2341 = vsel %vm253, %v2308, 0
    %v2344 = vsel %vm253, %v2309, 0
    %2346 = vmatprep.subr.mxu0 0.0
    %2347 = vmatpush1.msra.mxu0 %v2323
    %2348 = vmatprep.subr.mxu0 0.0
    %2349 = vmatpush1.msra.mxu0 %v2325
    %2350 = vmatprep.subr.mxu0 0.0
    %2351 = vmatpush1.msra.mxu0 %v2327
    %2352 = vmatprep.subr.mxu0 0.0
    %2353 = vmatpush1.msra.mxu0 %v2329
    %2354 = vmatprep.subr.mxu0 0.0
    %2355 = vmatpush1.msra.mxu0 %v2331
    %2356 = vmatprep.subr.mxu0 0.0
    %2357 = vmatpush1.msra.mxu0 %v2333
    %2358 = vmatprep.subr.mxu0 0.0
    %2359 = vmatpush1.msra.mxu0 0.0
    %2360 = vmatprep.subr.mxu0 0.0
    %2361 = vmatpush1.msra.mxu0 0.0
    %2362 = vmatprep.subr.mxu0 0.0
    %2363 = vmatpush1.msra.mxu0 0.0
    %2364 = vmatprep.subr.mxu0 0.0
    %2365 = vmatpush1.msra.mxu0 0.0
    %2366 = vmatprep.subr.mxu0 0.0
    %2367 = vmatpush1.msra.mxu0 0.0
    %2368 = vmatprep.subr.mxu0 0.0
    %2369 = vmatpush1.msra.mxu0 0.0
    %2370 = vmatprep.subr.mxu0 0.0
    %2371 = vmatpush1.msra.mxu0 0.0
    %2372 = vmatprep.subr.mxu0 0.0
    %2373 = vmatpush1.msra.mxu0 0.0
    %2374 = vmatprep.subr.mxu0 0.0
    %2375 = vmatpush1.msra.mxu0 0.0
    %2376 = vmatprep.subr.mxu0 0.0
    %2377 = vmatpush1.msra.mxu0 0.0
    %2378 = vmatprep.subr.mxu0 0.0
    %2379 = vmatpush1.msra.mxu0 0.0
    %2380 = vmatprep.subr.mxu0 0.0
    %2381 = vmatpush1.msra.mxu0 0.0
    %2382 = vmatprep.subr.mxu0 0.0
    %2383 = vmatpush1.msra.mxu0 0.0
    %2384 = vmatprep.subr.mxu0 0.0
    %2385 = vmatpush1.msra.mxu0 0.0
    %2386 = vmatprep.subr.mxu0 0.0
    %2387 = vmatpush1.msra.mxu0 0.0
    %2388 = vmatprep.subr.mxu0 0.0
    %2389 = vmatpush1.msra.mxu0 0.0
    %2390 = vmatprep.subr.mxu0 0.0
    %2391 = vmatpush1.msra.mxu0 0.0
    %2392 = vmatprep.subr.mxu0 0.0
    %2393 = vmatpush1.msra.mxu0 0.0
    %2394 = vmatprep.subr.mxu0 0.0
    %2395 = vmatpush1.msra.mxu0 0.0
    %2396 = vmatprep.subr.mxu0 0.0
    %2397 = vmatpush1.msra.mxu0 0.0
    %2398 = vmatprep.subr.mxu0 0.0
    %2399 = vmatpush1.msra.mxu0 0.0
    %2400 = vmatprep.subr.mxu0 0.0
    %2401 = vmatpush1.msra.mxu0 0.0
    %2402 = vmatprep.subr.mxu0 0.0
    %2403 = vmatpush1.msra.mxu0 0.0
    %2404 = vmatprep.subr.mxu0 0.0
    %2405 = vmatpush1.msra.mxu0 0.0
    %2406 = vmatprep.subr.mxu0 0.0
    %2407 = vmatpush1.msra.mxu0 0.0
    %2408 = vmatprep.subr.mxu0 0.0
    %2409 = vmatpush1.msra.mxu0 0.0
    %2410 = vmatprep.mubr.f32.mxu0 0.0
    %2411 = vmatmul.mubr.f32.gmra.mrb[0].mxu0 %v2341
    %v2412 = vpop.f32.mrb[0].mxu0
    %v2413 = vadd.f32 %v2315, %v2412
    %v2414 = vpop.f32.mrb[0].mxu0
    %2415 = vmatprep.mubr.f32.mxu0 0.0
    %2416 = vmatmul.mubr.f32.gmra.mrb[0].mxu0 %v2344
    %v2417 = vpop.f32.mrb[0].mxu0
    %v2418 = vadd.f32 %v2320, %v2417
    %v2419 = vpop.f32.mrb[0].mxu0
    %2420 = vdwg.mxu0
    %v2421 = vld [vmem:[#allocation4] sm:$0xff]
    %v2422 = vld [vmem:[#allocation4 + $0x8] sm:$0xff]
    %2425 = vrot.lane.b32.xlu0 %v2421, 120
    %v2426 = vpop.permute.xlu0 %2425
    %2427 = vrot.lane.b32.xlu0 %v2422, 120
    %v2428 = vpop.permute.xlu0 %2427
    %v2431 = vadd.f32 %v2413, %v2426
    %v2432 = vadd.f32 %v2418, %v2428
    %2435 = vrot.lane.b32.xlu0 %v2431, 8
    %v2436 = vpop.permute.xlu0 %2435
    %2437 = vrot.lane.b32.xlu0 %v2432, 8
    %v2438 = vpop.permute.xlu0 %2437
    %2441 = vst.msk [vmem:[#allocation4] sm:$0xff] %vm908, %v2436
    %2442 = vst.msk [vmem:[#allocation4 + $0x8] sm:$0xff] %vm908, %v2438
    %v2443 = vld [vmem:[#allocation4] sm:$0xff]
    %v2444 = vld [vmem:[#allocation4 + $0x8] sm:$0xff]
    %v2445 = vld [vmem:[%s45] sm:$0xff]
    %v2446 = vld [vmem:[%s45 + $0x8] sm:$0xff]
    %2448 = vset.pattern.permute.xlu0 0
    %2449 = vperm.xlu0 %2448, %v2445
    %v2450 = vpop.permute.xlu0 %2449
    %2453 = vset.pattern.permute.xlu0 0
    %2454 = vperm.xlu0 %2453, %v2446
    %v2455 = vpop.permute.xlu0 %2454
    %v2457 = vmul.f32 %v2443, %v2450
    %v2458 = vmul.f32 %v2444, %v2455
    %v2459 = vand.u32 2147483647, %v2457
    %vm2460 = vcmp.le.f32.partialorder %v2459, 0.7853982
    %vm2461 = vcmp.lt.s32.totalorder %v2457, 0
    %v2462 = vand.u32 %v2457, 2139095040
    %v2463 = vshrl.u32 %v2462, 23
    %v2464 = vsub.s32 %v2463, 127
    %v2465 = vand.u32 2147483647, %v2457
    %v2466 = vand.u32 %v2465, 8388607
    %v2467 = vor.u32 %v2466, 8388608
    %v2468 = vsub.s32 0, %v2467
    %v2469 = vadd.s32 %v2464, 1
    %vm2470 = vcmp.gt.s32.totalorder %v2469, 0
    %v2471 = vsel %vm2470, %v2469, 0
    %v2472 = vshrl.u32 %v2471, 5
    %v2473 = vand.u32 %v2471, 31
    %v2474 = vsub.s32 32, %v2473
    %v2475 = vshrl.u32 683565275, %v2474
    %v2476 = vshll.u32 683565275, %v2473
    %v2477 = vshrl.u32 2475754826, %v2474
    %v2478 = vor.u32 %v2476, %v2477
    %v2479 = vshll.u32 2475754826, %v2473
    %v2480 = vshrl.u32 2131351028, %v2474
    %v2481 = vor.u32 %v2479, %v2480
    %v2482 = vshll.u32 2131351028, %v2473
    %v2483 = vshrl.u32 2102212464, %v2474
    %v2484 = vor.u32 %v2482, %v2483
    %v2485 = vshll.u32 2102212464, %v2473
    %v2486 = vshrl.u32 920167782, %v2474
    %v2487 = vor.u32 %v2485, %v2486
    %v2488 = vshll.u32 920167782, %v2473
    %v2489 = vshrl.u32 1326507024, %v2474
    %v2490 = vor.u32 %v2488, %v2489
    %vm2491 = vcmp.lt.s32.totalorder %v2472, 1
    %vm2492 = vcmp.lt.s32.totalorder %v2472, 2
    %vm2493 = vcmp.lt.s32.totalorder %v2472, 3
    %vm2494 = vcmp.lt.s32.totalorder %v2472, 4
    %v2495 = vsel %vm2491, %v2475, %v2478
    %v2496 = vsel %vm2494, %v2484, 2102212464
    %v2497 = vsel %vm2493, %v2481, %v2496
    %v2498 = vsel %vm2492, %v2495, %v2497
    %v2499 = vsel %vm2491, %v2478, %v2481
    %v2500 = vsel %vm2494, %v2487, 920167782
    %v2501 = vsel %vm2493, %v2484, %v2500
    %v2502 = vsel %vm2492, %v2499, %v2501
    %v2503 = vsel %vm2491, %v2481, %v2484
    %v2504 = vsel %vm2494, %v2490, 1326507024
    %v2505 = vsel %vm2493, %v2487, %v2504
    %v2506 = vsel %vm2492, %v2503, %v2505
    %v2507 = vshll.u32 %v2467, 8
    %v2508 = vmul.u32.u64.compose %v2507, %v2506
    %v2509 = vextract.low.u32 %v2508
    %v2510 = vextract.high.u32 %v2508
    %v2511 = vmul.u32.u64.compose %v2507, %v2502
    %v2512 = vextract.low.u32 %v2511
    %v2513 = vextract.high.u32 %v2511
    %v2514 = vmul.u32 %v2507, %v2498
    %v2515 = vadd.s32 %v2510, %v2512
    %vm2516 = vc.u32 %v2510, %v2512
    %v2517 = vadd.s32 %v2513, 1
    %v2518 = vsel %vm2516, %v2517, %v2513
    %v2519 = vadd.s32 %v2514, %v2518
    %v2520 = vadd.s32 %v2519, 536870912
    %v2521 = vshrl.u32 %v2520, 30
    %v2522 = vshll.u32 %v2521, 30
    %v2523 = vsub.s32 %v2519, %v2522
    %vm2524 = vcmp.lt.s32.totalorder %v2523, 0
    %v2525 = vsub.s32 0, %v2523
    %v2526 = vsel %vm2524, %v2525, %v2523
    %v2527 = vclz %v2526
    %v2528 = vsub.s32 %v2527, 2
    %vm2529 = vcmp.gt.s32.totalorder 0, %v2528
    %v2530 = vsel %vm2529, 0, %v2528
    %v2531 = vsub.s32 32, %v2530
    %v2532 = vshll.u32 %v2523, %v2530
    %v2533 = vshrl.u32 %v2515, %v2531
    %v2534 = vor.u32 %v2532, %v2533
    %v2535 = vsub.s32 4294967266, %v2530
    %v2536 = vadd.s32 %v2535, 127
    %v2537 = vshll.u32 %v2536, 23
    %v2538 = vor.u32 4788187, %v2537
    %v2539 = vand.u32 2147483647, %v2538
    %v2541 = vcvt.s32.f32 %v2534
    %v2542 = vmul.f32 %v2541, %v2539
    %v2543 = vxor.u32 %v2542, 2147483648
    %v2544 = vsel %vm2461, %v2543, %v2542
    %v2545 = vsub.s32 4, %v2521
    %v2546 = vsel %vm2461, %v2545, %v2521
    %v2547 = vsel %vm2460, %v2457, %v2544
    %v2548 = vsel %vm2460, 0, %v2546
    %v2549 = vcosq.f32.pop %v2547
    %v2550 = vsinq.f32.pop %v2547
    %vm2551 = vweird.f32 %v2457
    %v2552 = vadd.s32 %v2548, 3
    %v2553 = vand.u32 %v2552, 3
    %vm2554 = vcmp.lt.s32.totalorder %v2553, 2
    %vm2555 = vcmp.eq.s32.totalorder %v2553, 0
    %v2556 = vxor.u32 %v2550, 2147483648
    %v2557 = vsel %vm2555, %v2549, %v2556
    %vm2558 = vcmp.eq.s32.totalorder %v2553, 2
    %v2559 = vxor.u32 %v2549, 2147483648
    %v2560 = vsel %vm2558, %v2559, %v2550
    %v2561 = vsel %vm2554, %v2557, %v2560
    %v2562 = vsel %vm2551, nan, %v2561
    %v2563 = vand.u32 2147483647, %v2458
    %vm2564 = vcmp.le.f32.partialorder %v2563, 0.7853982
    %vm2565 = vcmp.lt.s32.totalorder %v2458, 0
    %v2566 = vand.u32 %v2458, 2139095040
    %v2567 = vshrl.u32 %v2566, 23
    %v2568 = vsub.s32 %v2567, 127
    %v2569 = vand.u32 2147483647, %v2458
    %v2570 = vand.u32 %v2569, 8388607
    %v2571 = vor.u32 %v2570, 8388608
    %v2572 = vsub.s32 0, %v2571
    %v2573 = vadd.s32 %v2568, 1
    %vm2574 = vcmp.gt.s32.totalorder %v2573, 0
    %v2575 = vsel %vm2574, %v2573, 0
    %v2576 = vshrl.u32 %v2575, 5
    %v2577 = vand.u32 %v2575, 31
    %v2578 = vsub.s32 32, %v2577
    %v2579 = vshrl.u32 683565275, %v2578
    %v2580 = vshll.u32 683565275, %v2577
    %v2581 = vshrl.u32 2475754826, %v2578
    %v2582 = vor.u32 %v2580, %v2581
    %v2583 = vshll.u32 2475754826, %v2577
    %v2584 = vshrl.u32 2131351028, %v2578
    %v2585 = vor.u32 %v2583, %v2584
    %v2586 = vshll.u32 2131351028, %v2577
    %v2587 = vshrl.u32 2102212464, %v2578
    %v2588 = vor.u32 %v2586, %v2587
    %v2589 = vshll.u32 2102212464, %v2577
    %v2590 = vshrl.u32 920167782, %v2578
    %v2591 = vor.u32 %v2589, %v2590
    %v2592 = vshll.u32 920167782, %v2577
    %v2593 = vshrl.u32 1326507024, %v2578
    %v2594 = vor.u32 %v2592, %v2593
    %vm2595 = vcmp.lt.s32.totalorder %v2576, 1
    %vm2596 = vcmp.lt.s32.totalorder %v2576, 2
    %vm2597 = vcmp.lt.s32.totalorder %v2576, 3
    %vm2598 = vcmp.lt.s32.totalorder %v2576, 4
    %v2599 = vsel %vm2595, %v2579, %v2582
    %v2600 = vsel %vm2598, %v2588, 2102212464
    %v2601 = vsel %vm2597, %v2585, %v2600
    %v2602 = vsel %vm2596, %v2599, %v2601
    %v2603 = vsel %vm2595, %v2582, %v2585
    %v2604 = vsel %vm2598, %v2591, 920167782
    %v2605 = vsel %vm2597, %v2588, %v2604
    %v2606 = vsel %vm2596, %v2603, %v2605
    %v2607 = vsel %vm2595, %v2585, %v2588
    %v2608 = vsel %vm2598, %v2594, 1326507024
    %v2609 = vsel %vm2597, %v2591, %v2608
    %v2610 = vsel %vm2596, %v2607, %v2609
    %v2611 = vshll.u32 %v2571, 8
    %v2612 = vmul.u32.u64.compose %v2611, %v2610
    %v2613 = vextract.low.u32 %v2612
    %v2614 = vextract.high.u32 %v2612
    %v2615 = vmul.u32.u64.compose %v2611, %v2606
    %v2616 = vextract.low.u32 %v2615
    %v2617 = vextract.high.u32 %v2615
    %v2618 = vmul.u32 %v2611, %v2602
    %v2619 = vadd.s32 %v2614, %v2616
    %vm2620 = vc.u32 %v2614, %v2616
    %v2621 = vadd.s32 %v2617, 1
    %v2622 = vsel %vm2620, %v2621, %v2617
    %v2623 = vadd.s32 %v2618, %v2622
    %v2624 = vadd.s32 %v2623, 536870912
    %v2625 = vshrl.u32 %v2624, 30
    %v2626 = vshll.u32 %v2625, 30
    %v2627 = vsub.s32 %v2623, %v2626
    %vm2628 = vcmp.lt.s32.totalorder %v2627, 0
    %v2629 = vsub.s32 0, %v2627
    %v2630 = vsel %vm2628, %v2629, %v2627
    %v2631 = vclz %v2630
    %v2632 = vsub.s32 %v2631, 2
    %vm2633 = vcmp.gt.s32.totalorder 0, %v2632
    %v2634 = vsel %vm2633, 0, %v2632
    %v2635 = vsub.s32 32, %v2634
    %v2636 = vshll.u32 %v2627, %v2634
    %v2637 = vshrl.u32 %v2619, %v2635
    %v2638 = vor.u32 %v2636, %v2637
    %v2639 = vsub.s32 4294967266, %v2634
    %v2640 = vadd.s32 %v2639, 127
    %v2641 = vshll.u32 %v2640, 23
    %v2642 = vor.u32 4788187, %v2641
    %v2643 = vand.u32 2147483647, %v2642
    %v2645 = vcvt.s32.f32 %v2638
    %v2646 = vmul.f32 %v2645, %v2643
    %v2647 = vxor.u32 %v2646, 2147483648
    %v2648 = vsel %vm2565, %v2647, %v2646
    %v2649 = vsub.s32 4, %v2625
    %v2650 = vsel %vm2565, %v2649, %v2625
    %v2651 = vsel %vm2564, %v2458, %v2648
    %v2652 = vsel %vm2564, 0, %v2650
    %v2653 = vcosq.f32.pop %v2651
    %v2654 = vsinq.f32.pop %v2651
    %vm2655 = vweird.f32 %v2458
    %v2656 = vadd.s32 %v2652, 3
    %v2657 = vand.u32 %v2656, 3
    %vm2658 = vcmp.lt.s32.totalorder %v2657, 2
    %vm2659 = vcmp.eq.s32.totalorder %v2657, 0
    %v2660 = vxor.u32 %v2654, 2147483648
    %v2661 = vsel %vm2659, %v2653, %v2660
    %vm2662 = vcmp.eq.s32.totalorder %v2657, 2
    %v2663 = vxor.u32 %v2653, 2147483648
    %v2664 = vsel %vm2662, %v2663, %v2654
    %v2665 = vsel %vm2658, %v2661, %v2664
    %v2666 = vsel %vm2655, nan, %v2665
    %v2667 = vld [vmem:[%s47] sm:$0xff]
    %v2668 = vld [vmem:[%s47 + $0x8] sm:$0xff]
    %v2669 = vmul.f32 %v2562, %v2562
    %v2670 = vmul.f32 %v2666, %v2666
    %2672 = vset.pattern.permute.xlu0 0
    %2673 = vperm.xlu0 %2672, %v2667
    %v2674 = vpop.permute.xlu0 %2673
    %2677 = vset.pattern.permute.xlu0 0
    %2678 = vperm.xlu0 %2677, %v2668
    %v2679 = vpop.permute.xlu0 %2678
    %v2681 = vmul.f32 %v2674, %v2669
    %v2682 = vmul.f32 %v2679, %v2670
    %v2683 = vadd.f32 %v2443, %v2681
    %v2684 = vadd.f32 %v2444, %v2682
    %2685 = vst.msk [vmem:[#allocation5] sm:$0xff] %vm908, %v2683
    %2686 = vst.msk [vmem:[#allocation5 + $0x8] sm:$0xff] %vm908, %v2684
    %v2687 = vld [vmem:[#allocation5] sm:$0xff]
    %v2688 = vld [vmem:[#allocation5 + $0x8] sm:$0xff]
    %2691 = vrot.lane.b32.xlu0 %v2687, 123
    %v2692 = vpop.permute.xlu0 %2691
    %2693 = vrot.lane.b32.xlu0 %v2688, 123
    %v2694 = vpop.permute.xlu0 %2693
    %2695 = vrot.lane.b32.xlu0 %v2687, 118
    %v2696 = vpop.permute.xlu0 %2695
    %2697 = vrot.lane.b32.xlu0 %v2688, 118
    %v2698 = vpop.permute.xlu0 %2697
    %v2699 = vld [vmem:[%s49] sm:$0xff]
    %v2700 = vld [vmem:[%s49 + $0x8] sm:$0xff]
    %v2701 = vld [vmem:[%s51] sm:$0xff]
    %v2702 = vld [vmem:[%s51 + $0x8] sm:$0xff]
    %2704 = vset.pattern.permute.xlu0 0
    %2705 = vperm.xlu0 %2704, %v2701
    %v2706 = vpop.permute.xlu0 %2705
    %2709 = vset.pattern.permute.xlu0 0
    %2710 = vperm.xlu0 %2709, %v2702
    %v2711 = vpop.permute.xlu0 %2710
    %2713 = vrot.lane.b32.xlu0 %v2687, 125
    %v2714 = vpop.permute.xlu0 %2713
    %2715 = vrot.lane.b32.xlu0 %v2688, 125
    %v2716 = vpop.permute.xlu0 %2715
    %2717 = vrot.lane.b32.xlu0 %v2692, 125
    %v2718 = vpop.permute.xlu0 %2717
    %2719 = vrot.lane.b32.xlu0 %v2694, 125
    %v2720 = vpop.permute.xlu0 %2719
    %2721 = vrot.lane.b32.xlu0 %v2696, 125
    %v2722 = vpop.permute.xlu0 %2721
    %2723 = vrot.lane.b32.xlu0 %v2698, 125
    %v2724 = vpop.permute.xlu0 %2723
    %v2732 = vsel %vm253, %v2699, 0
    %v2735 = vsel %vm253, %v2700, 0
    %2737 = vmatprep.subr.mxu0 0.0
    %2738 = vmatpush1.msra.mxu0 %v2714
    %2739 = vmatprep.subr.mxu0 0.0
    %2740 = vmatpush1.msra.mxu0 %v2716
    %2741 = vmatprep.subr.mxu0 0.0
    %2742 = vmatpush1.msra.mxu0 %v2718
    %2743 = vmatprep.subr.mxu0 0.0
    %2744 = vmatpush1.msra.mxu0 %v2720
    %2745 = vmatprep.subr.mxu0 0.0
    %2746 = vmatpush1.msra.mxu0 %v2722
    %2747 = vmatprep.subr.mxu0 0.0
    %2748 = vmatpush1.msra.mxu0 %v2724
    %2749 = vmatprep.subr.mxu0 0.0
    %2750 = vmatpush1.msra.mxu0 0.0
    %2751 = vmatprep.subr.mxu0 0.0
    %2752 = vmatpush1.msra.mxu0 0.0
    %2753 = vmatprep.subr.mxu0 0.0
    %2754 = vmatpush1.msra.mxu0 0.0
    %2755 = vmatprep.subr.mxu0 0.0
    %2756 = vmatpush1.msra.mxu0 0.0
    %2757 = vmatprep.subr.mxu0 0.0
    %2758 = vmatpush1.msra.mxu0 0.0
    %2759 = vmatprep.subr.mxu0 0.0
    %2760 = vmatpush1.msra.mxu0 0.0
    %2761 = vmatprep.subr.mxu0 0.0
    %2762 = vmatpush1.msra.mxu0 0.0
    %2763 = vmatprep.subr.mxu0 0.0
    %2764 = vmatpush1.msra.mxu0 0.0
    %2765 = vmatprep.subr.mxu0 0.0
    %2766 = vmatpush1.msra.mxu0 0.0
    %2767 = vmatprep.subr.mxu0 0.0
    %2768 = vmatpush1.msra.mxu0 0.0
    %2769 = vmatprep.subr.mxu0 0.0
    %2770 = vmatpush1.msra.mxu0 0.0
    %2771 = vmatprep.subr.mxu0 0.0
    %2772 = vmatpush1.msra.mxu0 0.0
    %2773 = vmatprep.subr.mxu0 0.0
    %2774 = vmatpush1.msra.mxu0 0.0
    %2775 = vmatprep.subr.mxu0 0.0
    %2776 = vmatpush1.msra.mxu0 0.0
    %2777 = vmatprep.subr.mxu0 0.0
    %2778 = vmatpush1.msra.mxu0 0.0
    %2779 = vmatprep.subr.mxu0 0.0
    %2780 = vmatpush1.msra.mxu0 0.0
    %2781 = vmatprep.subr.mxu0 0.0
    %2782 = vmatpush1.msra.mxu0 0.0
    %2783 = vmatprep.subr.mxu0 0.0
    %2784 = vmatpush1.msra.mxu0 0.0
    %2785 = vmatprep.subr.mxu0 0.0
    %2786 = vmatpush1.msra.mxu0 0.0
    %2787 = vmatprep.subr.mxu0 0.0
    %2788 = vmatpush1.msra.mxu0 0.0
    %2789 = vmatprep.subr.mxu0 0.0
    %2790 = vmatpush1.msra.mxu0 0.0
    %2791 = vmatprep.subr.mxu0 0.0
    %2792 = vmatpush1.msra.mxu0 0.0
    %2793 = vmatprep.subr.mxu0 0.0
    %2794 = vmatpush1.msra.mxu0 0.0
    %2795 = vmatprep.subr.mxu0 0.0
    %2796 = vmatpush1.msra.mxu0 0.0
    %2797 = vmatprep.subr.mxu0 0.0
    %2798 = vmatpush1.msra.mxu0 0.0
    %2799 = vmatprep.subr.mxu0 0.0
    %2800 = vmatpush1.msra.mxu0 0.0
    %2801 = vmatprep.mubr.f32.mxu0 0.0
    %2802 = vmatmul.mubr.f32.gmra.mrb[0].mxu0 %v2732
    %v2803 = vpop.f32.mrb[0].mxu0
    %v2804 = vadd.f32 %v2706, %v2803
    %v2805 = vpop.f32.mrb[0].mxu0
    %2806 = vmatprep.mubr.f32.mxu0 0.0
    %2807 = vmatmul.mubr.f32.gmra.mrb[0].mxu0 %v2735
    %v2808 = vpop.f32.mrb[0].mxu0
    %v2809 = vadd.f32 %v2711, %v2808
    %v2810 = vpop.f32.mrb[0].mxu0
    %2811 = vdwg.mxu0
    %v2812 = vld [vmem:[%s53] sm:$0xff]
    %v2813 = vld [vmem:[%s53 + $0x8] sm:$0xff]
    %2815 = vset.pattern.permute.xlu0 0
    %2816 = vperm.xlu0 %2815, %v2812
    %v2817 = vpop.permute.xlu0 %2816
    %2820 = vset.pattern.permute.xlu0 0
    %2821 = vperm.xlu0 %2820, %v2813
    %v2822 = vpop.permute.xlu0 %2821
    %v2824 = vmul.f32 %v2804, %v2817
    %v2825 = vmul.f32 %v2809, %v2822
    %v2826 = vand.u32 2147483647, %v2824
    %vm2827 = vcmp.le.f32.partialorder %v2826, 0.7853982
    %vm2828 = vcmp.lt.s32.totalorder %v2824, 0
    %v2829 = vand.u32 %v2824, 2139095040
    %v2830 = vshrl.u32 %v2829, 23
    %v2831 = vsub.s32 %v2830, 127
    %v2832 = vand.u32 2147483647, %v2824
    %v2833 = vand.u32 %v2832, 8388607
    %v2834 = vor.u32 %v2833, 8388608
    %v2835 = vsub.s32 0, %v2834
    %v2836 = vadd.s32 %v2831, 1
    %vm2837 = vcmp.gt.s32.totalorder %v2836, 0
    %v2838 = vsel %vm2837, %v2836, 0
    %v2839 = vshrl.u32 %v2838, 5
    %v2840 = vand.u32 %v2838, 31
    %v2841 = vsub.s32 32, %v2840
    %v2842 = vshrl.u32 683565275, %v2841
    %v2843 = vshll.u32 683565275, %v2840
    %v2844 = vshrl.u32 2475754826, %v2841
    %v2845 = vor.u32 %v2843, %v2844
    %v2846 = vshll.u32 2475754826, %v2840
    %v2847 = vshrl.u32 2131351028, %v2841
    %v2848 = vor.u32 %v2846, %v2847
    %v2849 = vshll.u32 2131351028, %v2840
    %v2850 = vshrl.u32 2102212464, %v2841
    %v2851 = vor.u32 %v2849, %v2850
    %v2852 = vshll.u32 2102212464, %v2840
    %v2853 = vshrl.u32 920167782, %v2841
    %v2854 = vor.u32 %v2852, %v2853
    %v2855 = vshll.u32 920167782, %v2840
    %v2856 = vshrl.u32 1326507024, %v2841
    %v2857 = vor.u32 %v2855, %v2856
    %vm2858 = vcmp.lt.s32.totalorder %v2839, 1
    %vm2859 = vcmp.lt.s32.totalorder %v2839, 2
    %vm2860 = vcmp.lt.s32.totalorder %v2839, 3
    %vm2861 = vcmp.lt.s32.totalorder %v2839, 4
    %v2862 = vsel %vm2858, %v2842, %v2845
    %v2863 = vsel %vm2861, %v2851, 2102212464
    %v2864 = vsel %vm2860, %v2848, %v2863
    %v2865 = vsel %vm2859, %v2862, %v2864
    %v2866 = vsel %vm2858, %v2845, %v2848
    %v2867 = vsel %vm2861, %v2854, 920167782
    %v2868 = vsel %vm2860, %v2851, %v2867
    %v2869 = vsel %vm2859, %v2866, %v2868
    %v2870 = vsel %vm2858, %v2848, %v2851
    %v2871 = vsel %vm2861, %v2857, 1326507024
    %v2872 = vsel %vm2860, %v2854, %v2871
    %v2873 = vsel %vm2859, %v2870, %v2872
    %v2874 = vshll.u32 %v2834, 8
    %v2875 = vmul.u32.u64.compose %v2874, %v2873
    %v2876 = vextract.low.u32 %v2875
    %v2877 = vextract.high.u32 %v2875
    %v2878 = vmul.u32.u64.compose %v2874, %v2869
    %v2879 = vextract.low.u32 %v2878
    %v2880 = vextract.high.u32 %v2878
    %v2881 = vmul.u32 %v2874, %v2865
    %v2882 = vadd.s32 %v2877, %v2879
    %vm2883 = vc.u32 %v2877, %v2879
    %v2884 = vadd.s32 %v2880, 1
    %v2885 = vsel %vm2883, %v2884, %v2880
    %v2886 = vadd.s32 %v2881, %v2885
    %v2887 = vadd.s32 %v2886, 536870912
    %v2888 = vshrl.u32 %v2887, 30
    %v2889 = vshll.u32 %v2888, 30
    %v2890 = vsub.s32 %v2886, %v2889
    %vm2891 = vcmp.lt.s32.totalorder %v2890, 0
    %v2892 = vsub.s32 0, %v2890
    %v2893 = vsel %vm2891, %v2892, %v2890
    %v2894 = vclz %v2893
    %v2895 = vsub.s32 %v2894, 2
    %vm2896 = vcmp.gt.s32.totalorder 0, %v2895
    %v2897 = vsel %vm2896, 0, %v2895
    %v2898 = vsub.s32 32, %v2897
    %v2899 = vshll.u32 %v2890, %v2897
    %v2900 = vshrl.u32 %v2882, %v2898
    %v2901 = vor.u32 %v2899, %v2900
    %v2902 = vsub.s32 4294967266, %v2897
    %v2903 = vadd.s32 %v2902, 127
    %v2904 = vshll.u32 %v2903, 23
    %v2905 = vor.u32 4788187, %v2904
    %v2906 = vand.u32 2147483647, %v2905
    %v2908 = vcvt.s32.f32 %v2901
    %v2909 = vmul.f32 %v2908, %v2906
    %v2910 = vxor.u32 %v2909, 2147483648
    %v2911 = vsel %vm2828, %v2910, %v2909
    %v2912 = vsub.s32 4, %v2888
    %v2913 = vsel %vm2828, %v2912, %v2888
    %v2914 = vsel %vm2827, %v2824, %v2911
    %v2915 = vsel %vm2827, 0, %v2913
    %v2916 = vcosq.f32.pop %v2914
    %v2917 = vsinq.f32.pop %v2914
    %vm2918 = vweird.f32 %v2824
    %v2919 = vadd.s32 %v2915, 3
    %v2920 = vand.u32 %v2919, 3
    %vm2921 = vcmp.lt.s32.totalorder %v2920, 2
    %vm2922 = vcmp.eq.s32.totalorder %v2920, 0
    %v2923 = vxor.u32 %v2917, 2147483648
    %v2924 = vsel %vm2922, %v2916, %v2923
    %vm2925 = vcmp.eq.s32.totalorder %v2920, 2
    %v2926 = vxor.u32 %v2916, 2147483648
    %v2927 = vsel %vm2925, %v2926, %v2917
    %v2928 = vsel %vm2921, %v2924, %v2927
    %v2929 = vsel %vm2918, nan, %v2928
    %v2930 = vand.u32 2147483647, %v2825
    %vm2931 = vcmp.le.f32.partialorder %v2930, 0.7853982
    %vm2932 = vcmp.lt.s32.totalorder %v2825, 0
    %v2933 = vand.u32 %v2825, 2139095040
    %v2934 = vshrl.u32 %v2933, 23
    %v2935 = vsub.s32 %v2934, 127
    %v2936 = vand.u32 2147483647, %v2825
    %v2937 = vand.u32 %v2936, 8388607
    %v2938 = vor.u32 %v2937, 8388608
    %v2939 = vsub.s32 0, %v2938
    %v2940 = vadd.s32 %v2935, 1
    %vm2941 = vcmp.gt.s32.totalorder %v2940, 0
    %v2942 = vsel %vm2941, %v2940, 0
    %v2943 = vshrl.u32 %v2942, 5
    %v2944 = vand.u32 %v2942, 31
    %v2945 = vsub.s32 32, %v2944
    %v2946 = vshrl.u32 683565275, %v2945
    %v2947 = vshll.u32 683565275, %v2944
    %v2948 = vshrl.u32 2475754826, %v2945
    %v2949 = vor.u32 %v2947, %v2948
    %v2950 = vshll.u32 2475754826, %v2944
    %v2951 = vshrl.u32 2131351028, %v2945
    %v2952 = vor.u32 %v2950, %v2951
    %v2953 = vshll.u32 2131351028, %v2944
    %v2954 = vshrl.u32 2102212464, %v2945
    %v2955 = vor.u32 %v2953, %v2954
    %v2956 = vshll.u32 2102212464, %v2944
    %v2957 = vshrl.u32 920167782, %v2945
    %v2958 = vor.u32 %v2956, %v2957
    %v2959 = vshll.u32 920167782, %v2944
    %v2960 = vshrl.u32 1326507024, %v2945
    %v2961 = vor.u32 %v2959, %v2960
    %vm2962 = vcmp.lt.s32.totalorder %v2943, 1
    %vm2963 = vcmp.lt.s32.totalorder %v2943, 2
    %vm2964 = vcmp.lt.s32.totalorder %v2943, 3
    %vm2965 = vcmp.lt.s32.totalorder %v2943, 4
    %v2966 = vsel %vm2962, %v2946, %v2949
    %v2967 = vsel %vm2965, %v2955, 2102212464
    %v2968 = vsel %vm2964, %v2952, %v2967
    %v2969 = vsel %vm2963, %v2966, %v2968
    %v2970 = vsel %vm2962, %v2949, %v2952
    %v2971 = vsel %vm2965, %v2958, 920167782
    %v2972 = vsel %vm2964, %v2955, %v2971
    %v2973 = vsel %vm2963, %v2970, %v2972
    %v2974 = vsel %vm2962, %v2952, %v2955
    %v2975 = vsel %vm2965, %v2961, 1326507024
    %v2976 = vsel %vm2964, %v2958, %v2975
    %v2977 = vsel %vm2963, %v2974, %v2976
    %v2978 = vshll.u32 %v2938, 8
    %v2979 = vmul.u32.u64.compose %v2978, %v2977
    %v2980 = vextract.low.u32 %v2979
    %v2981 = vextract.high.u32 %v2979
    %v2982 = vmul.u32.u64.compose %v2978, %v2973
    %v2983 = vextract.low.u32 %v2982
    %v2984 = vextract.high.u32 %v2982
    %v2985 = vmul.u32 %v2978, %v2969
    %v2986 = vadd.s32 %v2981, %v2983
    %vm2987 = vc.u32 %v2981, %v2983
    %v2988 = vadd.s32 %v2984, 1
    %v2989 = vsel %vm2987, %v2988, %v2984
    %v2990 = vadd.s32 %v2985, %v2989
    %v2991 = vadd.s32 %v2990, 536870912
    %v2992 = vshrl.u32 %v2991, 30
    %v2993 = vshll.u32 %v2992, 30
    %v2994 = vsub.s32 %v2990, %v2993
    %vm2995 = vcmp.lt.s32.totalorder %v2994, 0
    %v2996 = vsub.s32 0, %v2994
    %v2997 = vsel %vm2995, %v2996, %v2994
    %v2998 = vclz %v2997
    %v2999 = vsub.s32 %v2998, 2
    %vm3000 = vcmp.gt.s32.totalorder 0, %v2999
    %v3001 = vsel %vm3000, 0, %v2999
    %v3002 = vsub.s32 32, %v3001
    %v3003 = vshll.u32 %v2994, %v3001
    %v3004 = vshrl.u32 %v2986, %v3002
    %v3005 = vor.u32 %v3003, %v3004
    %v3006 = vsub.s32 4294967266, %v3001
    %v3007 = vadd.s32 %v3006, 127
    %v3008 = vshll.u32 %v3007, 23
    %v3009 = vor.u32 4788187, %v3008
    %v3010 = vand.u32 2147483647, %v3009
    %v3012 = vcvt.s32.f32 %v3005
    %v3013 = vmul.f32 %v3012, %v3010
    %v3014 = vxor.u32 %v3013, 2147483648
    %v3015 = vsel %vm2932, %v3014, %v3013
    %v3016 = vsub.s32 4, %v2992
    %v3017 = vsel %vm2932, %v3016, %v2992
    %v3018 = vsel %vm2931, %v2825, %v3015
    %v3019 = vsel %vm2931, 0, %v3017
    %v3020 = vcosq.f32.pop %v3018
    %v3021 = vsinq.f32.pop %v3018
    %vm3022 = vweird.f32 %v2825
    %v3023 = vadd.s32 %v3019, 3
    %v3024 = vand.u32 %v3023, 3
    %vm3025 = vcmp.lt.s32.totalorder %v3024, 2
    %vm3026 = vcmp.eq.s32.totalorder %v3024, 0
    %v3027 = vxor.u32 %v3021, 2147483648
    %v3028 = vsel %vm3026, %v3020, %v3027
    %vm3029 = vcmp.eq.s32.totalorder %v3024, 2
    %v3030 = vxor.u32 %v3020, 2147483648
    %v3031 = vsel %vm3029, %v3030, %v3021
    %v3032 = vsel %vm3025, %v3028, %v3031
    %v3033 = vsel %vm3022, nan, %v3032
    %v3034 = vld [vmem:[%s55] sm:$0xff]
    %v3035 = vld [vmem:[%s55 + $0x8] sm:$0xff]
    %v3036 = vmul.f32 %v2929, %v2929
    %v3037 = vmul.f32 %v3033, %v3033
    %3039 = vset.pattern.permute.xlu0 0
    %3040 = vperm.xlu0 %3039, %v3034
    %v3041 = vpop.permute.xlu0 %3040
    %3044 = vset.pattern.permute.xlu0 0
    %3045 = vperm.xlu0 %3044, %v3035
    %v3046 = vpop.permute.xlu0 %3045
    %v3048 = vmul.f32 %v3041, %v3036
    %v3049 = vmul.f32 %v3046, %v3037
    %v3050 = vadd.f32 %v2804, %v3048
    %v3051 = vadd.f32 %v2809, %v3049
    %3054 = vrot.lane.b32.xlu0 %v3050, 8
    %v3055 = vpop.permute.xlu0 %3054
    %3056 = vrot.lane.b32.xlu0 %v3051, 8
    %v3057 = vpop.permute.xlu0 %3056
    %3060 = vst.msk [vmem:[#allocation5] sm:$0xff] %vm908, %v3055
    %3061 = vst.msk [vmem:[#allocation5 + $0x8] sm:$0xff] %vm908, %v3057
    %v3062 = vld [vmem:[#allocation5] sm:$0xff]
    %v3063 = vld [vmem:[#allocation5 + $0x8] sm:$0xff]
    %3066 = vrot.lane.b32.xlu0 %v3062, 127
    %v3067 = vpop.permute.xlu0 %3066
    %3068 = vrot.lane.b32.xlu0 %v3063, 127
    %v3069 = vpop.permute.xlu0 %3068
    %3070 = vrot.lane.b32.xlu0 %v3062, 126
    %v3071 = vpop.permute.xlu0 %3070
    %3072 = vrot.lane.b32.xlu0 %v3063, 126
    %v3073 = vpop.permute.xlu0 %3072
    %v3074 = vld [vmem:[%s57] sm:$0xff]
    %v3075 = vld [vmem:[%s57 + $0x8] sm:$0xff]
    %v3076 = vld [vmem:[%s59] sm:$0xff]
    %v3077 = vld [vmem:[%s59 + $0x8] sm:$0xff]
    %3079 = vset.pattern.permute.xlu0 0
    %3080 = vperm.xlu0 %3079, %v3076
    %v3081 = vpop.permute.xlu0 %3080
    %3084 = vset.pattern.permute.xlu0 0
    %3085 = vperm.xlu0 %3084, %v3077
    %v3086 = vpop.permute.xlu0 %3085
    %3088 = vrot.lane.b32.xlu0 %v3062, 121
    %v3089 = vpop.permute.xlu0 %3088
    %3090 = vrot.lane.b32.xlu0 %v3063, 121
    %v3091 = vpop.permute.xlu0 %3090
    %3092 = vrot.lane.b32.xlu0 %v3067, 121
    %v3093 = vpop.permute.xlu0 %3092
    %3094 = vrot.lane.b32.xlu0 %v3069, 121
    %v3095 = vpop.permute.xlu0 %3094
    %3096 = vrot.lane.b32.xlu0 %v3071, 121
    %v3097 = vpop.permute.xlu0 %3096
    %3098 = vrot.lane.b32.xlu0 %v3073, 121
    %v3099 = vpop.permute.xlu0 %3098
    %v3107 = vsel %vm253, %v3074, 0
    %v3110 = vsel %vm253, %v3075, 0
    %3112 = vmatprep.subr.mxu0 0.0
    %3113 = vmatpush1.msra.mxu0 %v3089
    %3114 = vmatprep.subr.mxu0 0.0
    %3115 = vmatpush1.msra.mxu0 %v3091
    %3116 = vmatprep.subr.mxu0 0.0
    %3117 = vmatpush1.msra.mxu0 %v3093
    %3118 = vmatprep.subr.mxu0 0.0
    %3119 = vmatpush1.msra.mxu0 %v3095
    %3120 = vmatprep.subr.mxu0 0.0
    %3121 = vmatpush1.msra.mxu0 %v3097
    %3122 = vmatprep.subr.mxu0 0.0
    %3123 = vmatpush1.msra.mxu0 %v3099
    %3124 = vmatprep.subr.mxu0 0.0
    %3125 = vmatpush1.msra.mxu0 0.0
    %3126 = vmatprep.subr.mxu0 0.0
    %3127 = vmatpush1.msra.mxu0 0.0
    %3128 = vmatprep.subr.mxu0 0.0
    %3129 = vmatpush1.msra.mxu0 0.0
    %3130 = vmatprep.subr.mxu0 0.0
    %3131 = vmatpush1.msra.mxu0 0.0
    %3132 = vmatprep.subr.mxu0 0.0
    %3133 = vmatpush1.msra.mxu0 0.0
    %3134 = vmatprep.subr.mxu0 0.0
    %3135 = vmatpush1.msra.mxu0 0.0
    %3136 = vmatprep.subr.mxu0 0.0
    %3137 = vmatpush1.msra.mxu0 0.0
    %3138 = vmatprep.subr.mxu0 0.0
    %3139 = vmatpush1.msra.mxu0 0.0
    %3140 = vmatprep.subr.mxu0 0.0
    %3141 = vmatpush1.msra.mxu0 0.0
    %3142 = vmatprep.subr.mxu0 0.0
    %3143 = vmatpush1.msra.mxu0 0.0
    %3144 = vmatprep.subr.mxu0 0.0
    %3145 = vmatpush1.msra.mxu0 0.0
    %3146 = vmatprep.subr.mxu0 0.0
    %3147 = vmatpush1.msra.mxu0 0.0
    %3148 = vmatprep.subr.mxu0 0.0
    %3149 = vmatpush1.msra.mxu0 0.0
    %3150 = vmatprep.subr.mxu0 0.0
    %3151 = vmatpush1.msra.mxu0 0.0
    %3152 = vmatprep.subr.mxu0 0.0
    %3153 = vmatpush1.msra.mxu0 0.0
    %3154 = vmatprep.subr.mxu0 0.0
    %3155 = vmatpush1.msra.mxu0 0.0
    %3156 = vmatprep.subr.mxu0 0.0
    %3157 = vmatpush1.msra.mxu0 0.0
    %3158 = vmatprep.subr.mxu0 0.0
    %3159 = vmatpush1.msra.mxu0 0.0
    %3160 = vmatprep.subr.mxu0 0.0
    %3161 = vmatpush1.msra.mxu0 0.0
    %3162 = vmatprep.subr.mxu0 0.0
    %3163 = vmatpush1.msra.mxu0 0.0
    %3164 = vmatprep.subr.mxu0 0.0
    %3165 = vmatpush1.msra.mxu0 0.0
    %3166 = vmatprep.subr.mxu0 0.0
    %3167 = vmatpush1.msra.mxu0 0.0
    %3168 = vmatprep.subr.mxu0 0.0
    %3169 = vmatpush1.msra.mxu0 0.0
    %3170 = vmatprep.subr.mxu0 0.0
    %3171 = vmatpush1.msra.mxu0 0.0
    %3172 = vmatprep.subr.mxu0 0.0
    %3173 = vmatpush1.msra.mxu0 0.0
    %3174 = vmatprep.subr.mxu0 0.0
    %3175 = vmatpush1.msra.mxu0 0.0
    %3176 = vmatprep.mubr.f32.mxu0 0.0
    %3177 = vmatmul.mubr.f32.gmra.mrb[0].mxu0 %v3107
    %v3178 = vpop.f32.mrb[0].mxu0
    %v3179 = vadd.f32 %v3081, %v3178
    %v3180 = vpop.f32.mrb[0].mxu0
    %3181 = vmatprep.mubr.f32.mxu0 0.0
    %3182 = vmatmul.mubr.f32.gmra.mrb[0].mxu0 %v3110
    %v3183 = vpop.f32.mrb[0].mxu0
    %v3184 = vadd.f32 %v3086, %v3183
    %v3185 = vpop.f32.mrb[0].mxu0
    %3186 = vdwg.mxu0
    %v3187 = vld [vmem:[#allocation4] sm:$0xff]
    %v3188 = vld [vmem:[#allocation4 + $0x8] sm:$0xff]
    %3191 = vrot.lane.b32.xlu0 %v3187, 120
    %v3192 = vpop.permute.xlu0 %3191
    %3193 = vrot.lane.b32.xlu0 %v3188, 120
    %v3194 = vpop.permute.xlu0 %3193
    %v3197 = vadd.f32 %v3179, %v3192
    %v3198 = vadd.f32 %v3184, %v3194
    %3201 = vrot.lane.b32.xlu0 %v3197, 8
    %v3202 = vpop.permute.xlu0 %3201
    %3203 = vrot.lane.b32.xlu0 %v3198, 8
    %v3204 = vpop.permute.xlu0 %3203
    %3207 = vst.msk [vmem:[#allocation4] sm:$0xff] %vm908, %v3202
    %3208 = vst.msk [vmem:[#allocation4 + $0x8] sm:$0xff] %vm908, %v3204
    %v3209 = vld [vmem:[#allocation4] sm:$0xff]
    %v3210 = vld [vmem:[#allocation4 + $0x8] sm:$0xff]
    %3213 = vrot.lane.b32.xlu0 %v3209, 127
    %v3214 = vpop.permute.xlu0 %3213
    %3215 = vrot.lane.b32.xlu0 %v3210, 127
    %v3216 = vpop.permute.xlu0 %3215
    %v3217 = vld [vmem:[%s61] sm:$0xff]
    %v3218 = vld [vmem:[%s65] sm:$0xff]
    %3220 = vset.pattern.permute.xlu0 0
    %3221 = vperm.xlu0 %3220, %v3218
    %v3222 = vpop.permute.xlu0 %3221
    %3224 = vrot.lane.b32.xlu0 %v3209, 121
    %v3225 = vpop.permute.xlu0 %3224
    %3226 = vrot.lane.b32.xlu0 %v3210, 121
    %v3227 = vpop.permute.xlu0 %3226
    %3228 = vrot.lane.b32.xlu0 %v3214, 121
    %v3229 = vpop.permute.xlu0 %3228
    %3230 = vrot.lane.b32.xlu0 %v3216, 121
    %v3231 = vpop.permute.xlu0 %3230
    %v3237 = vsel %vm737, %v3217, 0
    %3239 = vmatprep.subr.mxu0 0.0
    %3240 = vmatpush1.msra.mxu0 %v3225
    %3241 = vmatprep.subr.mxu0 0.0
    %3242 = vmatpush1.msra.mxu0 %v3227
    %3243 = vmatprep.subr.mxu0 0.0
    %3244 = vmatpush1.msra.mxu0 %v3229
    %3245 = vmatprep.subr.mxu0 0.0
    %3246 = vmatpush1.msra.mxu0 %v3231
    %3247 = vmatprep.subr.mxu0 0.0
    %3248 = vmatpush1.msra.mxu0 0.0
    %3249 = vmatprep.subr.mxu0 0.0
    %3250 = vmatpush1.msra.mxu0 0.0
    %3251 = vmatprep.subr.mxu0 0.0
    %3252 = vmatpush1.msra.mxu0 0.0
    %3253 = vmatprep.subr.mxu0 0.0
    %3254 = vmatpush1.msra.mxu0 0.0
    %3255 = vmatprep.subr.mxu0 0.0
    %3256 = vmatpush1.msra.mxu0 0.0
    %3257 = vmatprep.subr.mxu0 0.0
    %3258 = vmatpush1.msra.mxu0 0.0
    %3259 = vmatprep.subr.mxu0 0.0
    %3260 = vmatpush1.msra.mxu0 0.0
    %3261 = vmatprep.subr.mxu0 0.0
    %3262 = vmatpush1.msra.mxu0 0.0
    %3263 = vmatprep.subr.mxu0 0.0
    %3264 = vmatpush1.msra.mxu0 0.0
    %3265 = vmatprep.subr.mxu0 0.0
    %3266 = vmatpush1.msra.mxu0 0.0
    %3267 = vmatprep.subr.mxu0 0.0
    %3268 = vmatpush1.msra.mxu0 0.0
    %3269 = vmatprep.subr.mxu0 0.0
    %3270 = vmatpush1.msra.mxu0 0.0
    %3271 = vmatprep.subr.mxu0 0.0
    %3272 = vmatpush1.msra.mxu0 0.0
    %3273 = vmatprep.subr.mxu0 0.0
    %3274 = vmatpush1.msra.mxu0 0.0
    %3275 = vmatprep.subr.mxu0 0.0
    %3276 = vmatpush1.msra.mxu0 0.0
    %3277 = vmatprep.subr.mxu0 0.0
    %3278 = vmatpush1.msra.mxu0 0.0
    %3279 = vmatprep.subr.mxu0 0.0
    %3280 = vmatpush1.msra.mxu0 0.0
    %3281 = vmatprep.subr.mxu0 0.0
    %3282 = vmatpush1.msra.mxu0 0.0
    %3283 = vmatprep.subr.mxu0 0.0
    %3284 = vmatpush1.msra.mxu0 0.0
    %3285 = vmatprep.subr.mxu0 0.0
    %3286 = vmatpush1.msra.mxu0 0.0
    %3287 = vmatprep.subr.mxu0 0.0
    %3288 = vmatpush1.msra.mxu0 0.0
    %3289 = vmatprep.subr.mxu0 0.0
    %3290 = vmatpush1.msra.mxu0 0.0
    %3291 = vmatprep.subr.mxu0 0.0
    %3292 = vmatpush1.msra.mxu0 0.0
    %3293 = vmatprep.subr.mxu0 0.0
    %3294 = vmatpush1.msra.mxu0 0.0
    %3295 = vmatprep.subr.mxu0 0.0
    %3296 = vmatpush1.msra.mxu0 0.0
    %3297 = vmatprep.subr.mxu0 0.0
    %3298 = vmatpush1.msra.mxu0 0.0
    %3299 = vmatprep.subr.mxu0 0.0
    %3300 = vmatpush1.msra.mxu0 0.0
    %3301 = vmatprep.subr.mxu0 0.0
    %3302 = vmatpush1.msra.mxu0 0.0
    %3303 = vmatprep.mubr.f32.mxu0 0.0
    %3304 = vmatmul.mubr.f32.gmra.mrb[0].mxu0 %v3237
    %v3305 = vpop.f32.mrb[0].mxu0
    %v3306 = vadd.f32 %v3222, %v3305
    %v3307 = vpop.f32.mrb[0].mxu0
    %3308 = vdwg.mxu0
    %v3309 = vld [vmem:[%s63] sm:$0xff]
    %3310 = vrot.lane.b32.xlu0 %v3209, 120
    %v3311 = vpop.permute.xlu0 %3310
    %3312 = vrot.lane.b32.xlu0 %v3210, 120
    %v3313 = vpop.permute.xlu0 %3312
    %3314 = vrot.lane.b32.xlu0 %v3214, 120
    %v3315 = vpop.permute.xlu0 %3314
    %3316 = vrot.lane.b32.xlu0 %v3216, 120
    %v3317 = vpop.permute.xlu0 %3316
    %v3323 = vsel %vm737, %v3309, 0
    %3325 = vmatprep.subr.mxu0 0.0
    %3326 = vmatpush1.msra.mxu0 %v3311
    %3327 = vmatprep.subr.mxu0 0.0
    %3328 = vmatpush1.msra.mxu0 %v3313
    %3329 = vmatprep.subr.mxu0 0.0
    %3330 = vmatpush1.msra.mxu0 %v3315
    %3331 = vmatprep.subr.mxu0 0.0
    %3332 = vmatpush1.msra.mxu0 %v3317
    %3333 = vmatprep.subr.mxu0 0.0
    %3334 = vmatpush1.msra.mxu0 0.0
    %3335 = vmatprep.subr.mxu0 0.0
    %3336 = vmatpush1.msra.mxu0 0.0
    %3337 = vmatprep.subr.mxu0 0.0
    %3338 = vmatpush1.msra.mxu0 0.0
    %3339 = vmatprep.subr.mxu0 0.0
    %3340 = vmatpush1.msra.mxu0 0.0
    %3341 = vmatprep.subr.mxu0 0.0
    %3342 = vmatpush1.msra.mxu0 0.0
    %3343 = vmatprep.subr.mxu0 0.0
    %3344 = vmatpush1.msra.mxu0 0.0
    %3345 = vmatprep.subr.mxu0 0.0
    %3346 = vmatpush1.msra.mxu0 0.0
    %3347 = vmatprep.subr.mxu0 0.0
    %3348 = vmatpush1.msra.mxu0 0.0
    %3349 = vmatprep.subr.mxu0 0.0
    %3350 = vmatpush1.msra.mxu0 0.0
    %3351 = vmatprep.subr.mxu0 0.0
    %3352 = vmatpush1.msra.mxu0 0.0
    %3353 = vmatprep.subr.mxu0 0.0
    %3354 = vmatpush1.msra.mxu0 0.0
    %3355 = vmatprep.subr.mxu0 0.0
    %3356 = vmatpush1.msra.mxu0 0.0
    %3357 = vmatprep.subr.mxu0 0.0
    %3358 = vmatpush1.msra.mxu0 0.0
    %3359 = vmatprep.subr.mxu0 0.0
    %3360 = vmatpush1.msra.mxu0 0.0
    %3361 = vmatprep.subr.mxu0 0.0
    %3362 = vmatpush1.msra.mxu0 0.0
    %3363 = vmatprep.subr.mxu0 0.0
    %3364 = vmatpush1.msra.mxu0 0.0
    %3365 = vmatprep.subr.mxu0 0.0
    %3366 = vmatpush1.msra.mxu0 0.0
    %3367 = vmatprep.subr.mxu0 0.0
    %3368 = vmatpush1.msra.mxu0 0.0
    %3369 = vmatprep.subr.mxu0 0.0
    %3370 = vmatpush1.msra.mxu0 0.0
    %3371 = vmatprep.subr.mxu0 0.0
    %3372 = vmatpush1.msra.mxu0 0.0
    %3373 = vmatprep.subr.mxu0 0.0
    %3374 = vmatpush1.msra.mxu0 0.0
    %3375 = vmatprep.subr.mxu0 0.0
    %3376 = vmatpush1.msra.mxu0 0.0
    %3377 = vmatprep.subr.mxu0 0.0
    %3378 = vmatpush1.msra.mxu0 0.0
    %3379 = vmatprep.subr.mxu0 0.0
    %3380 = vmatpush1.msra.mxu0 0.0
    %3381 = vmatprep.subr.mxu0 0.0
    %3382 = vmatpush1.msra.mxu0 0.0
    %3383 = vmatprep.subr.mxu0 0.0
    %3384 = vmatpush1.msra.mxu0 0.0
    %3385 = vmatprep.subr.mxu0 0.0
    %3386 = vmatpush1.msra.mxu0 0.0
    %3387 = vmatprep.subr.mxu0 0.0
    %3388 = vmatpush1.msra.mxu0 0.0
    %3389 = vmatprep.mubr.f32.mxu0 0.0
    %3390 = vmatmul.mubr.f32.gmra.mrb[0].mxu0 %v3323
    %v3391 = vpop.f32.mrb[0].mxu0
    %v3392 = vadd.f32 %v3222, %v3391
    %v3393 = vpop.f32.mrb[0].mxu0
    %3394 = vdwg.mxu0
    %v3395 = vadd.s32 %v699, 32
    %v3396 = vadd.s32 %v699, 40
    %v3397 = vadd.s32 %v699, 48
    %v3398 = vadd.s32 %v699, 56
    %v3399 = vmul.u32 %v3395, 2
    %v3400 = vmul.u32 %v3396, 2
    %v3401 = vmul.u32 %v3397, 2
    %v3402 = vmul.u32 %v3398, 2
    %vm3403 = vcmp.eq.s32.totalorder %v704, %v3399
    %vm3404 = vcmp.eq.s32.totalorder %v704, %v3400
    %vm3405 = vcmp.eq.s32.totalorder %v704, %v3401
    %vm3406 = vcmp.eq.s32.totalorder %v704, %v3402
    %v3407 = vsel %vm3403, 1, 0
    %v3408 = vsel %vm3404, 1, 0
    %v3409 = vsel %vm3405, 1, 0
    %v3410 = vsel %vm3406, 1, 0
    %v3411 = vcvt.s32.f32 %v3407
    %v3412 = vcvt.s32.f32 %v3408
    %v3413 = vcvt.s32.f32 %v3409
    %v3414 = vcvt.s32.f32 %v3410
    %v3415 = vadd.s32 %v3399, 1
    %v3416 = vadd.s32 %v3400, 1
    %v3417 = vadd.s32 %v3401, 1
    %v3418 = vadd.s32 %v3402, 1
    %vm3419 = vcmp.eq.s32.totalorder %v704, %v3415
    %vm3420 = vcmp.eq.s32.totalorder %v704, %v3416
    %vm3421 = vcmp.eq.s32.totalorder %v704, %v3417
    %vm3422 = vcmp.eq.s32.totalorder %v704, %v3418
    %v3423 = vsel %vm3419, 1, 0
    %v3424 = vsel %vm3420, 1, 0
    %v3425 = vsel %vm3421, 1, 0
    %v3426 = vsel %vm3422, 1, 0
    %v3427 = vcvt.s32.f32 %v3423
    %v3428 = vcvt.s32.f32 %v3424
    %v3429 = vcvt.s32.f32 %v3425
    %v3430 = vcvt.s32.f32 %v3426
    %v3432 = vsel %vm509, %v3392, 0
    %3434 = vmatprep.subr.mxu0 0.0
    %3435 = vmatpush1.msra.mxu0 %v733
    %3436 = vmatprep.subr.mxu0 0.0
    %3437 = vmatpush1.msra.mxu0 %v734
    %3438 = vmatprep.subr.mxu0 0.0
    %3439 = vmatpush1.msra.mxu0 %v735
    %3440 = vmatprep.subr.mxu0 0.0
    %3441 = vmatpush1.msra.mxu0 %v736
    %3442 = vmatprep.subr.mxu0 0.0
    %3443 = vmatpush1.msra.mxu0 %v3427
    %3444 = vmatprep.subr.mxu0 0.0
    %3445 = vmatpush1.msra.mxu0 %v3428
    %3446 = vmatprep.subr.mxu0 0.0
    %3447 = vmatpush1.msra.mxu0 %v3429
    %3448 = vmatprep.subr.mxu0 0.0
    %3449 = vmatpush1.msra.mxu0 %v3430
    %3450 = vmatprep.subr.mxu0 0.0
    %3451 = vmatpush1.msra.mxu0 0.0
    %3452 = vmatprep.subr.mxu0 0.0
    %3453 = vmatpush1.msra.mxu0 0.0
    %3454 = vmatprep.subr.mxu0 0.0
    %3455 = vmatpush1.msra.mxu0 0.0
    %3456 = vmatprep.subr.mxu0 0.0
    %3457 = vmatpush1.msra.mxu0 0.0
    %3458 = vmatprep.subr.mxu0 0.0
    %3459 = vmatpush1.msra.mxu0 0.0
    %3460 = vmatprep.subr.mxu0 0.0
    %3461 = vmatpush1.msra.mxu0 0.0
    %3462 = vmatprep.subr.mxu0 0.0
    %3463 = vmatpush1.msra.mxu0 0.0
    %3464 = vmatprep.subr.mxu0 0.0
    %3465 = vmatpush1.msra.mxu0 0.0
    %3466 = vmatprep.subr.mxu0 0.0
    %3467 = vmatpush1.msra.mxu0 0.0
    %3468 = vmatprep.subr.mxu0 0.0
    %3469 = vmatpush1.msra.mxu0 0.0
    %3470 = vmatprep.subr.mxu0 0.0
    %3471 = vmatpush1.msra.mxu0 0.0
    %3472 = vmatprep.subr.mxu0 0.0
    %3473 = vmatpush1.msra.mxu0 0.0
    %3474 = vmatprep.subr.mxu0 0.0
    %3475 = vmatpush1.msra.mxu0 0.0
    %3476 = vmatprep.subr.mxu0 0.0
    %3477 = vmatpush1.msra.mxu0 0.0
    %3478 = vmatprep.subr.mxu0 0.0
    %3479 = vmatpush1.msra.mxu0 0.0
    %3480 = vmatprep.subr.mxu0 0.0
    %3481 = vmatpush1.msra.mxu0 0.0
    %3482 = vmatprep.subr.mxu0 0.0
    %3483 = vmatpush1.msra.mxu0 0.0
    %3484 = vmatprep.subr.mxu0 0.0
    %3485 = vmatpush1.msra.mxu0 0.0
    %3486 = vmatprep.subr.mxu0 0.0
    %3487 = vmatpush1.msra.mxu0 0.0
    %3488 = vmatprep.subr.mxu0 0.0
    %3489 = vmatpush1.msra.mxu0 0.0
    %3490 = vmatprep.subr.mxu0 0.0
    %3491 = vmatpush1.msra.mxu0 0.0
    %3492 = vmatprep.subr.mxu0 0.0
    %3493 = vmatpush1.msra.mxu0 0.0
    %3494 = vmatprep.subr.mxu0 0.0
    %3495 = vmatpush1.msra.mxu0 0.0
    %3496 = vmatprep.subr.mxu0 0.0
    %3497 = vmatpush1.msra.mxu0 0.0
    %3498 = vmatprep.mubr.f32.mxu0 0.0
    %3499 = vmatmul.mubr.f32.gmra.mrb[0].mxu0 %v3432
    %v3500 = vpop.f32.mrb[0].mxu0
    %v3501 = vadd.f32 0.0, %v3500
    %v3502 = vpop.f32.mrb[0].mxu0
    %3503 = vdwg.mxu0
    %v3505 = vsel %vm509, %v3306, 0
    %3507 = vmatprep.subr.mxu0 0.0
    %3508 = vmatpush1.msra.mxu0 %v717
    %3509 = vmatprep.subr.mxu0 0.0
    %3510 = vmatpush1.msra.mxu0 %v718
    %3511 = vmatprep.subr.mxu0 0.0
    %3512 = vmatpush1.msra.mxu0 %v719
    %3513 = vmatprep.subr.mxu0 0.0
    %3514 = vmatpush1.msra.mxu0 %v720
    %3515 = vmatprep.subr.mxu0 0.0
    %3516 = vmatpush1.msra.mxu0 %v3411
    %3517 = vmatprep.subr.mxu0 0.0
    %3518 = vmatpush1.msra.mxu0 %v3412
    %3519 = vmatprep.subr.mxu0 0.0
    %3520 = vmatpush1.msra.mxu0 %v3413
    %3521 = vmatprep.subr.mxu0 0.0
    %3522 = vmatpush1.msra.mxu0 %v3414
    %3523 = vmatprep.subr.mxu0 0.0
    %3524 = vmatpush1.msra.mxu0 0.0
    %3525 = vmatprep.subr.mxu0 0.0
    %3526 = vmatpush1.msra.mxu0 0.0
    %3527 = vmatprep.subr.mxu0 0.0
    %3528 = vmatpush1.msra.mxu0 0.0
    %3529 = vmatprep.subr.mxu0 0.0
    %3530 = vmatpush1.msra.mxu0 0.0
    %3531 = vmatprep.subr.mxu0 0.0
    %3532 = vmatpush1.msra.mxu0 0.0
    %3533 = vmatprep.subr.mxu0 0.0
    %3534 = vmatpush1.msra.mxu0 0.0
    %3535 = vmatprep.subr.mxu0 0.0
    %3536 = vmatpush1.msra.mxu0 0.0
    %3537 = vmatprep.subr.mxu0 0.0
    %3538 = vmatpush1.msra.mxu0 0.0
    %3539 = vmatprep.subr.mxu0 0.0
    %3540 = vmatpush1.msra.mxu0 0.0
    %3541 = vmatprep.subr.mxu0 0.0
    %3542 = vmatpush1.msra.mxu0 0.0
    %3543 = vmatprep.subr.mxu0 0.0
    %3544 = vmatpush1.msra.mxu0 0.0
    %3545 = vmatprep.subr.mxu0 0.0
    %3546 = vmatpush1.msra.mxu0 0.0
    %3547 = vmatprep.subr.mxu0 0.0
    %3548 = vmatpush1.msra.mxu0 0.0
    %3549 = vmatprep.subr.mxu0 0.0
    %3550 = vmatpush1.msra.mxu0 0.0
    %3551 = vmatprep.subr.mxu0 0.0
    %3552 = vmatpush1.msra.mxu0 0.0
    %3553 = vmatprep.subr.mxu0 0.0
    %3554 = vmatpush1.msra.mxu0 0.0
    %3555 = vmatprep.subr.mxu0 0.0
    %3556 = vmatpush1.msra.mxu0 0.0
    %3557 = vmatprep.subr.mxu0 0.0
    %3558 = vmatpush1.msra.mxu0 0.0
    %3559 = vmatprep.subr.mxu0 0.0
    %3560 = vmatpush1.msra.mxu0 0.0
    %3561 = vmatprep.subr.mxu0 0.0
    %3562 = vmatpush1.msra.mxu0 0.0
    %3563 = vmatprep.subr.mxu0 0.0
    %3564 = vmatpush1.msra.mxu0 0.0
    %3565 = vmatprep.subr.mxu0 0.0
    %3566 = vmatpush1.msra.mxu0 0.0
    %3567 = vmatprep.subr.mxu0 0.0
    %3568 = vmatpush1.msra.mxu0 0.0
    %3569 = vmatprep.subr.mxu0 0.0
    %3570 = vmatpush1.msra.mxu0 0.0
    %3571 = vmatprep.mubr.f32.mxu0 0.0
    %3572 = vmatmul.mubr.f32.gmra.mrb[0].mxu0 %v3505
    %v3573 = vpop.f32.mrb[0].mxu0
    %v3574 = vadd.f32 %v3501, %v3573
    %v3575 = vpop.f32.mrb[0].mxu0
    %3576 = vdwg.mxu0
    %3578 = vrot.lane.b32.xlu0 %v3574, 8
    %v3579 = vpop.permute.xlu0 %3578
    %vm3581 = vcmask 1047616
    %3582 = vst.msk [vmem:[#allocation6] sm:$0xff] %vm3581, %v3579
    %vm3583 = vcmask 64512
    %3584 = vst.msk [vmem:[#allocation6 + $0x8] sm:$0xff] %vm3583, %v3579
    %v3585 = vld [vmem:[#allocation6] sm:$0xff]
    %v3586 = vld [vmem:[#allocation6 + $0x8] sm:$0xff]
    %v3587 = vld [vmem:[%s67] sm:$0xff]
    %3589 = vset.pattern.permute.xlu0 0
    %3590 = vperm.xlu0 %3589, %v3587
    %v3591 = vpop.permute.xlu0 %3590
    %v3593 = vmul.f32 %v3585, %v3591
    %v3594 = vmul.f32 %v3586, %v3591
    %v3595 = vand.u32 2147483647, %v3593
    %vm3596 = vcmp.le.f32.partialorder %v3595, 0.7853982
    %vm3597 = vcmp.lt.s32.totalorder %v3593, 0
    %v3598 = vand.u32 %v3593, 2139095040
    %v3599 = vshrl.u32 %v3598, 23
    %v3600 = vsub.s32 %v3599, 127
    %v3601 = vand.u32 2147483647, %v3593
    %v3602 = vand.u32 %v3601, 8388607
    %v3603 = vor.u32 %v3602, 8388608
    %v3604 = vsub.s32 0, %v3603
    %v3605 = vadd.s32 %v3600, 1
    %vm3606 = vcmp.gt.s32.totalorder %v3605, 0
    %v3607 = vsel %vm3606, %v3605, 0
    %v3608 = vshrl.u32 %v3607, 5
    %v3609 = vand.u32 %v3607, 31
    %v3610 = vsub.s32 32, %v3609
    %v3611 = vshrl.u32 683565275, %v3610
    %v3612 = vshll.u32 683565275, %v3609
    %v3613 = vshrl.u32 2475754826, %v3610
    %v3614 = vor.u32 %v3612, %v3613
    %v3615 = vshll.u32 2475754826, %v3609
    %v3616 = vshrl.u32 2131351028, %v3610
    %v3617 = vor.u32 %v3615, %v3616
    %v3618 = vshll.u32 2131351028, %v3609
    %v3619 = vshrl.u32 2102212464, %v3610
    %v3620 = vor.u32 %v3618, %v3619
    %v3621 = vshll.u32 2102212464, %v3609
    %v3622 = vshrl.u32 920167782, %v3610
    %v3623 = vor.u32 %v3621, %v3622
    %v3624 = vshll.u32 920167782, %v3609
    %v3625 = vshrl.u32 1326507024, %v3610
    %v3626 = vor.u32 %v3624, %v3625
    %vm3627 = vcmp.lt.s32.totalorder %v3608, 1
    %vm3628 = vcmp.lt.s32.totalorder %v3608, 2
    %vm3629 = vcmp.lt.s32.totalorder %v3608, 3
    %vm3630 = vcmp.lt.s32.totalorder %v3608, 4
    %v3631 = vsel %vm3627, %v3611, %v3614
    %v3632 = vsel %vm3630, %v3620, 2102212464
    %v3633 = vsel %vm3629, %v3617, %v3632
    %v3634 = vsel %vm3628, %v3631, %v3633
    %v3635 = vsel %vm3627, %v3614, %v3617
    %v3636 = vsel %vm3630, %v3623, 920167782
    %v3637 = vsel %vm3629, %v3620, %v3636
    %v3638 = vsel %vm3628, %v3635, %v3637
    %v3639 = vsel %vm3627, %v3617, %v3620
    %v3640 = vsel %vm3630, %v3626, 1326507024
    %v3641 = vsel %vm3629, %v3623, %v3640
    %v3642 = vsel %vm3628, %v3639, %v3641
    %v3643 = vshll.u32 %v3603, 8
    %v3644 = vmul.u32.u64.compose %v3643, %v3642
    %v3645 = vextract.low.u32 %v3644
    %v3646 = vextract.high.u32 %v3644
    %v3647 = vmul.u32.u64.compose %v3643, %v3638
    %v3648 = vextract.low.u32 %v3647
    %v3649 = vextract.high.u32 %v3647
    %v3650 = vmul.u32 %v3643, %v3634
    %v3651 = vadd.s32 %v3646, %v3648
    %vm3652 = vc.u32 %v3646, %v3648
    %v3653 = vadd.s32 %v3649, 1
    %v3654 = vsel %vm3652, %v3653, %v3649
    %v3655 = vadd.s32 %v3650, %v3654
    %v3656 = vadd.s32 %v3655, 536870912
    %v3657 = vshrl.u32 %v3656, 30
    %v3658 = vshll.u32 %v3657, 30
    %v3659 = vsub.s32 %v3655, %v3658
    %vm3660 = vcmp.lt.s32.totalorder %v3659, 0
    %v3661 = vsub.s32 0, %v3659
    %v3662 = vsel %vm3660, %v3661, %v3659
    %v3663 = vclz %v3662
    %v3664 = vsub.s32 %v3663, 2
    %vm3665 = vcmp.gt.s32.totalorder 0, %v3664
    %v3666 = vsel %vm3665, 0, %v3664
    %v3667 = vsub.s32 32, %v3666
    %v3668 = vshll.u32 %v3659, %v3666
    %v3669 = vshrl.u32 %v3651, %v3667
    %v3670 = vor.u32 %v3668, %v3669
    %v3671 = vsub.s32 4294967266, %v3666
    %v3672 = vadd.s32 %v3671, 127
    %v3673 = vshll.u32 %v3672, 23
    %v3674 = vor.u32 4788187, %v3673
    %v3675 = vand.u32 2147483647, %v3674
    %v3677 = vcvt.s32.f32 %v3670
    %v3678 = vmul.f32 %v3677, %v3675
    %v3679 = vxor.u32 %v3678, 2147483648
    %v3680 = vsel %vm3597, %v3679, %v3678
    %v3681 = vsub.s32 4, %v3657
    %v3682 = vsel %vm3597, %v3681, %v3657
    %v3683 = vsel %vm3596, %v3593, %v3680
    %v3684 = vsel %vm3596, 0, %v3682
    %v3685 = vcosq.f32.pop %v3683
    %v3686 = vsinq.f32.pop %v3683
    %vm3687 = vweird.f32 %v3593
    %v3688 = vadd.s32 %v3684, 3
    %v3689 = vand.u32 %v3688, 3
    %vm3690 = vcmp.lt.s32.totalorder %v3689, 2
    %vm3691 = vcmp.eq.s32.totalorder %v3689, 0
    %v3692 = vxor.u32 %v3686, 2147483648
    %v3693 = vsel %vm3691, %v3685, %v3692
    %vm3694 = vcmp.eq.s32.totalorder %v3689, 2
    %v3695 = vxor.u32 %v3685, 2147483648
    %v3696 = vsel %vm3694, %v3695, %v3686
    %v3697 = vsel %vm3690, %v3693, %v3696
    %v3698 = vsel %vm3687, nan, %v3697
    %v3699 = vand.u32 2147483647, %v3594
    %vm3700 = vcmp.le.f32.partialorder %v3699, 0.7853982
    %vm3701 = vcmp.lt.s32.totalorder %v3594, 0
    %v3702 = vand.u32 %v3594, 2139095040
    %v3703 = vshrl.u32 %v3702, 23
    %v3704 = vsub.s32 %v3703, 127
    %v3705 = vand.u32 2147483647, %v3594
    %v3706 = vand.u32 %v3705, 8388607
    %v3707 = vor.u32 %v3706, 8388608
    %v3708 = vsub.s32 0, %v3707
    %v3709 = vadd.s32 %v3704, 1
    %vm3710 = vcmp.gt.s32.totalorder %v3709, 0
    %v3711 = vsel %vm3710, %v3709, 0
    %v3712 = vshrl.u32 %v3711, 5
    %v3713 = vand.u32 %v3711, 31
    %v3714 = vsub.s32 32, %v3713
    %v3715 = vshrl.u32 683565275, %v3714
    %v3716 = vshll.u32 683565275, %v3713
    %v3717 = vshrl.u32 2475754826, %v3714
    %v3718 = vor.u32 %v3716, %v3717
    %v3719 = vshll.u32 2475754826, %v3713
    %v3720 = vshrl.u32 2131351028, %v3714
    %v3721 = vor.u32 %v3719, %v3720
    %v3722 = vshll.u32 2131351028, %v3713
    %v3723 = vshrl.u32 2102212464, %v3714
    %v3724 = vor.u32 %v3722, %v3723
    %v3725 = vshll.u32 2102212464, %v3713
    %v3726 = vshrl.u32 920167782, %v3714
    %v3727 = vor.u32 %v3725, %v3726
    %v3728 = vshll.u32 920167782, %v3713
    %v3729 = vshrl.u32 1326507024, %v3714
    %v3730 = vor.u32 %v3728, %v3729
    %vm3731 = vcmp.lt.s32.totalorder %v3712, 1
    %vm3732 = vcmp.lt.s32.totalorder %v3712, 2
    %vm3733 = vcmp.lt.s32.totalorder %v3712, 3
    %vm3734 = vcmp.lt.s32.totalorder %v3712, 4
    %v3735 = vsel %vm3731, %v3715, %v3718
    %v3736 = vsel %vm3734, %v3724, 2102212464
    %v3737 = vsel %vm3733, %v3721, %v3736
    %v3738 = vsel %vm3732, %v3735, %v3737
    %v3739 = vsel %vm3731, %v3718, %v3721
    %v3740 = vsel %vm3734, %v3727, 920167782
    %v3741 = vsel %vm3733, %v3724, %v3740
    %v3742 = vsel %vm3732, %v3739, %v3741
    %v3743 = vsel %vm3731, %v3721, %v3724
    %v3744 = vsel %vm3734, %v3730, 1326507024
    %v3745 = vsel %vm3733, %v3727, %v3744
    %v3746 = vsel %vm3732, %v3743, %v3745
    %v3747 = vshll.u32 %v3707, 8
    %v3748 = vmul.u32.u64.compose %v3747, %v3746
    %v3749 = vextract.low.u32 %v3748
    %v3750 = vextract.high.u32 %v3748
    %v3751 = vmul.u32.u64.compose %v3747, %v3742
    %v3752 = vextract.low.u32 %v3751
    %v3753 = vextract.high.u32 %v3751
    %v3754 = vmul.u32 %v3747, %v3738
    %v3755 = vadd.s32 %v3750, %v3752
    %vm3756 = vc.u32 %v3750, %v3752
    %v3757 = vadd.s32 %v3753, 1
    %v3758 = vsel %vm3756, %v3757, %v3753
    %v3759 = vadd.s32 %v3754, %v3758
    %v3760 = vadd.s32 %v3759, 536870912
    %v3761 = vshrl.u32 %v3760, 30
    %v3762 = vshll.u32 %v3761, 30
    %v3763 = vsub.s32 %v3759, %v3762
    %vm3764 = vcmp.lt.s32.totalorder %v3763, 0
    %v3765 = vsub.s32 0, %v3763
    %v3766 = vsel %vm3764, %v3765, %v3763
    %v3767 = vclz %v3766
    %v3768 = vsub.s32 %v3767, 2
    %vm3769 = vcmp.gt.s32.totalorder 0, %v3768
    %v3770 = vsel %vm3769, 0, %v3768
    %v3771 = vsub.s32 32, %v3770
    %v3772 = vshll.u32 %v3763, %v3770
    %v3773 = vshrl.u32 %v3755, %v3771
    %v3774 = vor.u32 %v3772, %v3773
    %v3775 = vsub.s32 4294967266, %v3770
    %v3776 = vadd.s32 %v3775, 127
    %v3777 = vshll.u32 %v3776, 23
    %v3778 = vor.u32 4788187, %v3777
    %v3779 = vand.u32 2147483647, %v3778
    %v3781 = vcvt.s32.f32 %v3774
    %v3782 = vmul.f32 %v3781, %v3779
    %v3783 = vxor.u32 %v3782, 2147483648
    %v3784 = vsel %vm3701, %v3783, %v3782
    %v3785 = vsub.s32 4, %v3761
    %v3786 = vsel %vm3701, %v3785, %v3761
    %v3787 = vsel %vm3700, %v3594, %v3784
    %v3788 = vsel %vm3700, 0, %v3786
    %v3789 = vcosq.f32.pop %v3787
    %v3790 = vsinq.f32.pop %v3787
    %vm3791 = vweird.f32 %v3594
    %v3792 = vadd.s32 %v3788, 3
    %v3793 = vand.u32 %v3792, 3
    %vm3794 = vcmp.lt.s32.totalorder %v3793, 2
    %vm3795 = vcmp.eq.s32.totalorder %v3793, 0
    %v3796 = vxor.u32 %v3790, 2147483648
    %v3797 = vsel %vm3795, %v3789, %v3796
    %vm3798 = vcmp.eq.s32.totalorder %v3793, 2
    %v3799 = vxor.u32 %v3789, 2147483648
    %v3800 = vsel %vm3798, %v3799, %v3790
    %v3801 = vsel %vm3794, %v3797, %v3800
    %v3802 = vsel %vm3791, nan, %v3801
    %v3803 = vld [vmem:[%s69] sm:$0xff]
    %v3804 = vmul.f32 %v3698, %v3698
    %v3805 = vmul.f32 %v3802, %v3802
    %3807 = vset.pattern.permute.xlu0 0
    %3808 = vperm.xlu0 %3807, %v3803
    %v3809 = vpop.permute.xlu0 %3808
    %v3811 = vmul.f32 %v3809, %v3804
    %v3812 = vmul.f32 %v3809, %v3805
    %v3813 = vadd.f32 %v3585, %v3811
    %v3814 = vadd.f32 %v3586, %v3812
    %3815 = vst.msk [vmem:[#allocation7] sm:$0xff] %vm3581, %v3813
    %3816 = vst.msk [vmem:[#allocation7 + $0x8] sm:$0xff] %vm3583, %v3814
    %v3817 = vld [vmem:[#allocation7] sm:$0xff]
    %v3818 = vld [vmem:[#allocation7 + $0x8] sm:$0xff]
    %3821 = vrot.lane.b32.xlu0 %v3817, 127
    %v3822 = vpop.permute.xlu0 %3821
    %3823 = vrot.lane.b32.xlu0 %v3818, 127
    %v3824 = vpop.permute.xlu0 %3823
    %vm3825 = vcmask 1039360
    %v3826 = vsel %vm3825, %v3822, %v3824
    %3827 = vrot.lane.b32.xlu0 %v3817, 126
    %v3828 = vpop.permute.xlu0 %3827
    %3829 = vrot.lane.b32.xlu0 %v3818, 126
    %v3830 = vpop.permute.xlu0 %3829
    %vm3831 = vcmask 1031168
    %v3832 = vsel %vm3831, %v3828, %v3830
    %v3833 = vld [vmem:[%s71] sm:$0xff]
    %v3834 = vld [vmem:[%s73] sm:$0xff]
    %3836 = vset.pattern.permute.xlu0 0
    %3837 = vperm.xlu0 %3836, %v3834
    %v3838 = vpop.permute.xlu0 %3837
    %3840 = vrot.lane.b32.xlu0 %v3817, 121
    %v3841 = vpop.permute.xlu0 %3840
    %3842 = vrot.lane.b32.xlu0 %v3818, 121
    %v3843 = vpop.permute.xlu0 %3842
    %3844 = vrot.lane.b32.xlu0 %v3826, 121
    %v3845 = vpop.permute.xlu0 %3844
    %3846 = vrot.lane.b32.xlu0 %v3824, 121
    %v3847 = vpop.permute.xlu0 %3846
    %3848 = vrot.lane.b32.xlu0 %v3832, 121
    %v3849 = vpop.permute.xlu0 %3848
    %3850 = vrot.lane.b32.xlu0 %v3830, 121
    %v3851 = vpop.permute.xlu0 %3850
    %vm3852 = vcmask 990208
    %v3853 = vsel %vm3852, %v3841, %v3843
    %v3854 = vsel %vm3852, %v3845, %v3847
    %v3855 = vsel %vm3852, %v3849, %v3851
    %vm3859 = vcmask 195584
    %v3861 = vsel %vm3859, %v3833, 0
    %3863 = vmatprep.subr.mxu0 0.0
    %3864 = vmatpush1.msra.mxu0 %v3853
    %3865 = vmatprep.subr.mxu0 0.0
    %3866 = vmatpush1.msra.mxu0 %v3854
    %3867 = vmatprep.subr.mxu0 0.0
    %3868 = vmatpush1.msra.mxu0 %v3855
    %3869 = vmatprep.subr.mxu0 0.0
    %3870 = vmatpush1.msra.mxu0 0.0
    %3871 = vmatprep.subr.mxu0 0.0
    %3872 = vmatpush1.msra.mxu0 0.0
    %3873 = vmatprep.subr.mxu0 0.0
    %3874 = vmatpush1.msra.mxu0 0.0
    %3875 = vmatprep.subr.mxu0 0.0
    %3876 = vmatpush1.msra.mxu0 0.0
    %3877 = vmatprep.subr.mxu0 0.0
    %3878 = vmatpush1.msra.mxu0 0.0
    %3879 = vmatprep.subr.mxu0 0.0
    %3880 = vmatpush1.msra.mxu0 0.0
    %3881 = vmatprep.subr.mxu0 0.0
    %3882 = vmatpush1.msra.mxu0 0.0
    %3883 = vmatprep.subr.mxu0 0.0
    %3884 = vmatpush1.msra.mxu0 0.0
    %3885 = vmatprep.subr.mxu0 0.0
    %3886 = vmatpush1.msra.mxu0 0.0
    %3887 = vmatprep.subr.mxu0 0.0
    %3888 = vmatpush1.msra.mxu0 0.0
    %3889 = vmatprep.subr.mxu0 0.0
    %3890 = vmatpush1.msra.mxu0 0.0
    %3891 = vmatprep.subr.mxu0 0.0
    %3892 = vmatpush1.msra.mxu0 0.0
    %3893 = vmatprep.subr.mxu0 0.0
    %3894 = vmatpush1.msra.mxu0 0.0
    %3895 = vmatprep.subr.mxu0 0.0
    %3896 = vmatpush1.msra.mxu0 0.0
    %3897 = vmatprep.subr.mxu0 0.0
    %3898 = vmatpush1.msra.mxu0 0.0
    %3899 = vmatprep.subr.mxu0 0.0
    %3900 = vmatpush1.msra.mxu0 0.0
    %3901 = vmatprep.subr.mxu0 0.0
    %3902 = vmatpush1.msra.mxu0 0.0
    %3903 = vmatprep.subr.mxu0 0.0
    %3904 = vmatpush1.msra.mxu0 0.0
    %3905 = vmatprep.subr.mxu0 0.0
    %3906 = vmatpush1.msra.mxu0 0.0
    %3907 = vmatprep.subr.mxu0 0.0
    %3908 = vmatpush1.msra.mxu0 0.0
    %3909 = vmatprep.subr.mxu0 0.0
    %3910 = vmatpush1.msra.mxu0 0.0
    %3911 = vmatprep.subr.mxu0 0.0
    %3912 = vmatpush1.msra.mxu0 0.0
    %3913 = vmatprep.subr.mxu0 0.0
    %3914 = vmatpush1.msra.mxu0 0.0
    %3915 = vmatprep.subr.mxu0 0.0
    %3916 = vmatpush1.msra.mxu0 0.0
    %3917 = vmatprep.subr.mxu0 0.0
    %3918 = vmatpush1.msra.mxu0 0.0
    %3919 = vmatprep.subr.mxu0 0.0
    %3920 = vmatpush1.msra.mxu0 0.0
    %3921 = vmatprep.subr.mxu0 0.0
    %3922 = vmatpush1.msra.mxu0 0.0
    %3923 = vmatprep.subr.mxu0 0.0
    %3924 = vmatpush1.msra.mxu0 0.0
    %3925 = vmatprep.subr.mxu0 0.0
    %3926 = vmatpush1.msra.mxu0 0.0
    %3927 = vmatprep.mubr.f32.mxu0 0.0
    %3928 = vmatmul.mubr.f32.gmra.mrb[0].mxu0 %v3861
    %v3929 = vpop.f32.mrb[0].mxu0
    %v3930 = vadd.f32 %v3838, %v3929
    %v3931 = vpop.f32.mrb[0].mxu0
    %3932 = vdwg.mxu0
    %v3933 = vld [vmem:[%s75] sm:$0xff]
    %3935 = vset.pattern.permute.xlu0 0
    %3936 = vperm.xlu0 %3935, %v3933
    %v3937 = vpop.permute.xlu0 %3936
    %v3939 = vmul.f32 %v3930, %v3937
    %v3940 = vand.u32 2147483647, %v3939
    %vm3941 = vcmp.le.f32.partialorder %v3940, 0.7853982
    %vm3942 = vcmp.lt.s32.totalorder %v3939, 0
    %v3943 = vand.u32 %v3939, 2139095040
    %v3944 = vshrl.u32 %v3943, 23
    %v3945 = vsub.s32 %v3944, 127
    %v3946 = vand.u32 2147483647, %v3939
    %v3947 = vand.u32 %v3946, 8388607
    %v3948 = vor.u32 %v3947, 8388608
    %v3949 = vsub.s32 0, %v3948
    %v3950 = vadd.s32 %v3945, 1
    %vm3951 = vcmp.gt.s32.totalorder %v3950, 0
    %v3952 = vsel %vm3951, %v3950, 0
    %v3953 = vshrl.u32 %v3952, 5
    %v3954 = vand.u32 %v3952, 31
    %v3955 = vsub.s32 32, %v3954
    %v3956 = vshrl.u32 683565275, %v3955
    %v3957 = vshll.u32 683565275, %v3954
    %v3958 = vshrl.u32 2475754826, %v3955
    %v3959 = vor.u32 %v3957, %v3958
    %v3960 = vshll.u32 2475754826, %v3954
    %v3961 = vshrl.u32 2131351028, %v3955
    %v3962 = vor.u32 %v3960, %v3961
    %v3963 = vshll.u32 2131351028, %v3954
    %v3964 = vshrl.u32 2102212464, %v3955
    %v3965 = vor.u32 %v3963, %v3964
    %v3966 = vshll.u32 2102212464, %v3954
    %v3967 = vshrl.u32 920167782, %v3955
    %v3968 = vor.u32 %v3966, %v3967
    %v3969 = vshll.u32 920167782, %v3954
    %v3970 = vshrl.u32 1326507024, %v3955
    %v3971 = vor.u32 %v3969, %v3970
    %vm3972 = vcmp.lt.s32.totalorder %v3953, 1
    %vm3973 = vcmp.lt.s32.totalorder %v3953, 2
    %vm3974 = vcmp.lt.s32.totalorder %v3953, 3
    %vm3975 = vcmp.lt.s32.totalorder %v3953, 4
    %v3976 = vsel %vm3972, %v3956, %v3959
    %v3977 = vsel %vm3975, %v3965, 2102212464
    %v3978 = vsel %vm3974, %v3962, %v3977
    %v3979 = vsel %vm3973, %v3976, %v3978
    %v3980 = vsel %vm3972, %v3959, %v3962
    %v3981 = vsel %vm3975, %v3968, 920167782
    %v3982 = vsel %vm3974, %v3965, %v3981
    %v3983 = vsel %vm3973, %v3980, %v3982
    %v3984 = vsel %vm3972, %v3962, %v3965
    %v3985 = vsel %vm3975, %v3971, 1326507024
    %v3986 = vsel %vm3974, %v3968, %v3985
    %v3987 = vsel %vm3973, %v3984, %v3986
    %v3988 = vshll.u32 %v3948, 8
    %v3989 = vmul.u32.u64.compose %v3988, %v3987
    %v3990 = vextract.low.u32 %v3989
    %v3991 = vextract.high.u32 %v3989
    %v3992 = vmul.u32.u64.compose %v3988, %v3983
    %v3993 = vextract.low.u32 %v3992
    %v3994 = vextract.high.u32 %v3992
    %v3995 = vmul.u32 %v3988, %v3979
    %v3996 = vadd.s32 %v3991, %v3993
    %vm3997 = vc.u32 %v3991, %v3993
    %v3998 = vadd.s32 %v3994, 1
    %v3999 = vsel %vm3997, %v3998, %v3994
    %v4000 = vadd.s32 %v3995, %v3999
    %v4001 = vadd.s32 %v4000, 536870912
    %v4002 = vshrl.u32 %v4001, 30
    %v4003 = vshll.u32 %v4002, 30
    %v4004 = vsub.s32 %v4000, %v4003
    %vm4005 = vcmp.lt.s32.totalorder %v4004, 0
    %v4006 = vsub.s32 0, %v4004
    %v4007 = vsel %vm4005, %v4006, %v4004
    %v4008 = vclz %v4007
    %v4009 = vsub.s32 %v4008, 2
    %vm4010 = vcmp.gt.s32.totalorder 0, %v4009
    %v4011 = vsel %vm4010, 0, %v4009
    %v4012 = vsub.s32 32, %v4011
    %v4013 = vshll.u32 %v4004, %v4011
    %v4014 = vshrl.u32 %v3996, %v4012
    %v4015 = vor.u32 %v4013, %v4014
    %v4016 = vsub.s32 4294967266, %v4011
    %v4017 = vadd.s32 %v4016, 127
    %v4018 = vshll.u32 %v4017, 23
    %v4019 = vor.u32 4788187, %v4018
    %v4020 = vand.u32 2147483647, %v4019
    %v4022 = vcvt.s32.f32 %v4015
    %v4023 = vmul.f32 %v4022, %v4020
    %v4024 = vxor.u32 %v4023, 2147483648
    %v4025 = vsel %vm3942, %v4024, %v4023
    %v4026 = vsub.s32 4, %v4002
    %v4027 = vsel %vm3942, %v4026, %v4002
    %v4028 = vsel %vm3941, %v3939, %v4025
    %v4029 = vsel %vm3941, 0, %v4027
    %v4030 = vcosq.f32.pop %v4028
    %v4031 = vsinq.f32.pop %v4028
    %vm4032 = vweird.f32 %v3939
    %v4033 = vadd.s32 %v4029, 3
    %v4034 = vand.u32 %v4033, 3
    %vm4035 = vcmp.lt.s32.totalorder %v4034, 2
    %vm4036 = vcmp.eq.s32.totalorder %v4034, 0
    %v4037 = vxor.u32 %v4031, 2147483648
    %v4038 = vsel %vm4036, %v4030, %v4037
    %vm4039 = vcmp.eq.s32.totalorder %v4034, 2
    %v4040 = vxor.u32 %v4030, 2147483648
    %v4041 = vsel %vm4039, %v4040, %v4031
    %v4042 = vsel %vm4035, %v4038, %v4041
    %v4043 = vsel %vm4032, nan, %v4042
    %v4044 = vld [vmem:[%s77] sm:$0xff]
    %v4045 = vmul.f32 %v4043, %v4043
    %4047 = vset.pattern.permute.xlu0 0
    %4048 = vperm.xlu0 %4047, %v4044
    %v4049 = vpop.permute.xlu0 %4048
    %v4051 = vmul.f32 %v4049, %v4045
    %v4052 = vadd.f32 %v3930, %v4051
    %4054 = vrot.lane.b32.xlu0 %v4052, 8
    %v4055 = vpop.permute.xlu0 %4054
    %4057 = vst.msk [vmem:[#allocation7] sm:$0xff] %vm3581, %v4055
    %4058 = vst.msk [vmem:[#allocation7 + $0x8] sm:$0xff] %vm3583, %v4055
    %v4059 = vld [vmem:[#allocation7] sm:$0xff]
    %v4060 = vld [vmem:[#allocation7 + $0x8] sm:$0xff]
    %4063 = vrot.lane.b32.xlu0 %v4059, 127
    %v4064 = vpop.permute.xlu0 %4063
    %4065 = vrot.lane.b32.xlu0 %v4060, 127
    %v4066 = vpop.permute.xlu0 %4065
    %v4067 = vsel %vm3825, %v4064, %v4066
    %4068 = vrot.lane.b32.xlu0 %v4059, 126
    %v4069 = vpop.permute.xlu0 %4068
    %4070 = vrot.lane.b32.xlu0 %v4060, 126
    %v4071 = vpop.permute.xlu0 %4070
    %v4072 = vsel %vm3831, %v4069, %v4071
    %v4073 = vld [vmem:[%s79] sm:$0xff]
    %v4074 = vld [vmem:[%s81] sm:$0xff]
    %4076 = vset.pattern.permute.xlu0 0
    %4077 = vperm.xlu0 %4076, %v4074
    %v4078 = vpop.permute.xlu0 %4077
    %4080 = vrot.lane.b32.xlu0 %v4059, 121
    %v4081 = vpop.permute.xlu0 %4080
    %4082 = vrot.lane.b32.xlu0 %v4060, 121
    %v4083 = vpop.permute.xlu0 %4082
    %4084 = vrot.lane.b32.xlu0 %v4067, 121
    %v4085 = vpop.permute.xlu0 %4084
    %4086 = vrot.lane.b32.xlu0 %v4066, 121
    %v4087 = vpop.permute.xlu0 %4086
    %4088 = vrot.lane.b32.xlu0 %v4072, 121
    %v4089 = vpop.permute.xlu0 %4088
    %4090 = vrot.lane.b32.xlu0 %v4071, 121
    %v4091 = vpop.permute.xlu0 %4090
    %v4092 = vsel %vm3852, %v4081, %v4083
    %v4093 = vsel %vm3852, %v4085, %v4087
    %v4094 = vsel %vm3852, %v4089, %v4091
    %v4099 = vsel %vm3859, %v4073, 0
    %4101 = vmatprep.subr.mxu0 0.0
    %4102 = vmatpush1.msra.mxu0 %v4092
    %4103 = vmatprep.subr.mxu0 0.0
    %4104 = vmatpush1.msra.mxu0 %v4093
    %4105 = vmatprep.subr.mxu0 0.0
    %4106 = vmatpush1.msra.mxu0 %v4094
    %4107 = vmatprep.subr.mxu0 0.0
    %4108 = vmatpush1.msra.mxu0 0.0
    %4109 = vmatprep.subr.mxu0 0.0
    %4110 = vmatpush1.msra.mxu0 0.0
    %4111 = vmatprep.subr.mxu0 0.0
    %4112 = vmatpush1.msra.mxu0 0.0
    %4113 = vmatprep.subr.mxu0 0.0
    %4114 = vmatpush1.msra.mxu0 0.0
    %4115 = vmatprep.subr.mxu0 0.0
    %4116 = vmatpush1.msra.mxu0 0.0
    %4117 = vmatprep.subr.mxu0 0.0
    %4118 = vmatpush1.msra.mxu0 0.0
    %4119 = vmatprep.subr.mxu0 0.0
    %4120 = vmatpush1.msra.mxu0 0.0
    %4121 = vmatprep.subr.mxu0 0.0
    %4122 = vmatpush1.msra.mxu0 0.0
    %4123 = vmatprep.subr.mxu0 0.0
    %4124 = vmatpush1.msra.mxu0 0.0
    %4125 = vmatprep.subr.mxu0 0.0
    %4126 = vmatpush1.msra.mxu0 0.0
    %4127 = vmatprep.subr.mxu0 0.0
    %4128 = vmatpush1.msra.mxu0 0.0
    %4129 = vmatprep.subr.mxu0 0.0
    %4130 = vmatpush1.msra.mxu0 0.0
    %4131 = vmatprep.subr.mxu0 0.0
    %4132 = vmatpush1.msra.mxu0 0.0
    %4133 = vmatprep.subr.mxu0 0.0
    %4134 = vmatpush1.msra.mxu0 0.0
    %4135 = vmatprep.subr.mxu0 0.0
    %4136 = vmatpush1.msra.mxu0 0.0
    %4137 = vmatprep.subr.mxu0 0.0
    %4138 = vmatpush1.msra.mxu0 0.0
    %4139 = vmatprep.subr.mxu0 0.0
    %4140 = vmatpush1.msra.mxu0 0.0
    %4141 = vmatprep.subr.mxu0 0.0
    %4142 = vmatpush1.msra.mxu0 0.0
    %4143 = vmatprep.subr.mxu0 0.0
    %4144 = vmatpush1.msra.mxu0 0.0
    %4145 = vmatprep.subr.mxu0 0.0
    %4146 = vmatpush1.msra.mxu0 0.0
    %4147 = vmatprep.subr.mxu0 0.0
    %4148 = vmatpush1.msra.mxu0 0.0
    %4149 = vmatprep.subr.mxu0 0.0
    %4150 = vmatpush1.msra.mxu0 0.0
    %4151 = vmatprep.subr.mxu0 0.0
    %4152 = vmatpush1.msra.mxu0 0.0
    %4153 = vmatprep.subr.mxu0 0.0
    %4154 = vmatpush1.msra.mxu0 0.0
    %4155 = vmatprep.subr.mxu0 0.0
    %4156 = vmatpush1.msra.mxu0 0.0
    %4157 = vmatprep.subr.mxu0 0.0
    %4158 = vmatpush1.msra.mxu0 0.0
    %4159 = vmatprep.subr.mxu0 0.0
    %4160 = vmatpush1.msra.mxu0 0.0
    %4161 = vmatprep.subr.mxu0 0.0
    %4162 = vmatpush1.msra.mxu0 0.0
    %4163 = vmatprep.subr.mxu0 0.0
    %4164 = vmatpush1.msra.mxu0 0.0
    %4165 = vmatprep.mubr.f32.mxu0 0.0
    %4166 = vmatmul.mubr.f32.gmra.mrb[0].mxu0 %v4099
    %v4167 = vpop.f32.mrb[0].mxu0
    %v4168 = vadd.f32 %v4078, %v4167
    %v4169 = vpop.f32.mrb[0].mxu0
    %4170 = vdwg.mxu0
    %v4171 = vld [vmem:[#allocation6] sm:$0xff]
    %v4172 = vld [vmem:[#allocation6 + $0x8] sm:$0xff]
    %4175 = vrot.lane.b32.xlu0 %v4171, 120
    %v4176 = vpop.permute.xlu0 %4175
    %4177 = vrot.lane.b32.xlu0 %v4172, 120
    %v4178 = vpop.permute.xlu0 %4177
    %vm4179 = vcmask 982016
    %v4180 = vsel %vm4179, %v4176, %v4178
    %v4182 = vadd.f32 %v4168, %v4180
    %4184 = vrot.lane.b32.xlu0 %v4182, 8
    %v4185 = vpop.permute.xlu0 %4184
    %4187 = vst.msk [vmem:[#allocation6] sm:$0xff] %vm3581, %v4185
    %4188 = vst.msk [vmem:[#allocation6 + $0x8] sm:$0xff] %vm3583, %v4185
    %v4189 = vld [vmem:[#allocation6] sm:$0xff]
    %v4190 = vld [vmem:[#allocation6 + $0x8] sm:$0xff]
    %v4191 = vld [vmem:[%s83] sm:$0xff]
    %4193 = vset.pattern.permute.xlu0 0
    %4194 = vperm.xlu0 %4193, %v4191
    %v4195 = vpop.permute.xlu0 %4194
    %v4197 = vmul.f32 %v4189, %v4195
    %v4198 = vmul.f32 %v4190, %v4195
    %v4199 = vand.u32 2147483647, %v4197
    %vm4200 = vcmp.le.f32.partialorder %v4199, 0.7853982
    %vm4201 = vcmp.lt.s32.totalorder %v4197, 0
    %v4202 = vand.u32 %v4197, 2139095040
    %v4203 = vshrl.u32 %v4202, 23
    %v4204 = vsub.s32 %v4203, 127
    %v4205 = vand.u32 2147483647, %v4197
    %v4206 = vand.u32 %v4205, 8388607
    %v4207 = vor.u32 %v4206, 8388608
    %v4208 = vsub.s32 0, %v4207
    %v4209 = vadd.s32 %v4204, 1
    %vm4210 = vcmp.gt.s32.totalorder %v4209, 0
    %v4211 = vsel %vm4210, %v4209, 0
    %v4212 = vshrl.u32 %v4211, 5
    %v4213 = vand.u32 %v4211, 31
    %v4214 = vsub.s32 32, %v4213
    %v4215 = vshrl.u32 683565275, %v4214
    %v4216 = vshll.u32 683565275, %v4213
    %v4217 = vshrl.u32 2475754826, %v4214
    %v4218 = vor.u32 %v4216, %v4217
    %v4219 = vshll.u32 2475754826, %v4213
    %v4220 = vshrl.u32 2131351028, %v4214
    %v4221 = vor.u32 %v4219, %v4220
    %v4222 = vshll.u32 2131351028, %v4213
    %v4223 = vshrl.u32 2102212464, %v4214
    %v4224 = vor.u32 %v4222, %v4223
    %v4225 = vshll.u32 2102212464, %v4213
    %v4226 = vshrl.u32 920167782, %v4214
    %v4227 = vor.u32 %v4225, %v4226
    %v4228 = vshll.u32 920167782, %v4213
    %v4229 = vshrl.u32 1326507024, %v4214
    %v4230 = vor.u32 %v4228, %v4229
    %vm4231 = vcmp.lt.s32.totalorder %v4212, 1
    %vm4232 = vcmp.lt.s32.totalorder %v4212, 2
    %vm4233 = vcmp.lt.s32.totalorder %v4212, 3
    %vm4234 = vcmp.lt.s32.totalorder %v4212, 4
    %v4235 = vsel %vm4231, %v4215, %v4218
    %v4236 = vsel %vm4234, %v4224, 2102212464
    %v4237 = vsel %vm4233, %v4221, %v4236
    %v4238 = vsel %vm4232, %v4235, %v4237
    %v4239 = vsel %vm4231, %v4218, %v4221
    %v4240 = vsel %vm4234, %v4227, 920167782
    %v4241 = vsel %vm4233, %v4224, %v4240
    %v4242 = vsel %vm4232, %v4239, %v4241
    %v4243 = vsel %vm4231, %v4221, %v4224
    %v4244 = vsel %vm4234, %v4230, 1326507024
    %v4245 = vsel %vm4233, %v4227, %v4244
    %v4246 = vsel %vm4232, %v4243, %v4245
    %v4247 = vshll.u32 %v4207, 8
    %v4248 = vmul.u32.u64.compose %v4247, %v4246
    %v4249 = vextract.low.u32 %v4248
    %v4250 = vextract.high.u32 %v4248
    %v4251 = vmul.u32.u64.compose %v4247, %v4242
    %v4252 = vextract.low.u32 %v4251
    %v4253 = vextract.high.u32 %v4251
    %v4254 = vmul.u32 %v4247, %v4238
    %v4255 = vadd.s32 %v4250, %v4252
    %vm4256 = vc.u32 %v4250, %v4252
    %v4257 = vadd.s32 %v4253, 1
    %v4258 = vsel %vm4256, %v4257, %v4253
    %v4259 = vadd.s32 %v4254, %v4258
    %v4260 = vadd.s32 %v4259, 536870912
    %v4261 = vshrl.u32 %v4260, 30
    %v4262 = vshll.u32 %v4261, 30
    %v4263 = vsub.s32 %v4259, %v4262
    %vm4264 = vcmp.lt.s32.totalorder %v4263, 0
    %v4265 = vsub.s32 0, %v4263
    %v4266 = vsel %vm4264, %v4265, %v4263
    %v4267 = vclz %v4266
    %v4268 = vsub.s32 %v4267, 2
    %vm4269 = vcmp.gt.s32.totalorder 0, %v4268
    %v4270 = vsel %vm4269, 0, %v4268
    %v4271 = vsub.s32 32, %v4270
    %v4272 = vshll.u32 %v4263, %v4270
    %v4273 = vshrl.u32 %v4255, %v4271
    %v4274 = vor.u32 %v4272, %v4273
    %v4275 = vsub.s32 4294967266, %v4270
    %v4276 = vadd.s32 %v4275, 127
    %v4277 = vshll.u32 %v4276, 23
    %v4278 = vor.u32 4788187, %v4277
    %v4279 = vand.u32 2147483647, %v4278
    %v4281 = vcvt.s32.f32 %v4274
    %v4282 = vmul.f32 %v4281, %v4279
    %v4283 = vxor.u32 %v4282, 2147483648
    %v4284 = vsel %vm4201, %v4283, %v4282
    %v4285 = vsub.s32 4, %v4261
    %v4286 = vsel %vm4201, %v4285, %v4261
    %v4287 = vsel %vm4200, %v4197, %v4284
    %v4288 = vsel %vm4200, 0, %v4286
    %v4289 = vcosq.f32.pop %v4287
    %v4290 = vsinq.f32.pop %v4287
    %vm4291 = vweird.f32 %v4197
    %v4292 = vadd.s32 %v4288, 3
    %v4293 = vand.u32 %v4292, 3
    %vm4294 = vcmp.lt.s32.totalorder %v4293, 2
    %vm4295 = vcmp.eq.s32.totalorder %v4293, 0
    %v4296 = vxor.u32 %v4290, 2147483648
    %v4297 = vsel %vm4295, %v4289, %v4296
    %vm4298 = vcmp.eq.s32.totalorder %v4293, 2
    %v4299 = vxor.u32 %v4289, 2147483648
    %v4300 = vsel %vm4298, %v4299, %v4290
    %v4301 = vsel %vm4294, %v4297, %v4300
    %v4302 = vsel %vm4291, nan, %v4301
    %v4303 = vand.u32 2147483647, %v4198
    %vm4304 = vcmp.le.f32.partialorder %v4303, 0.7853982
    %vm4305 = vcmp.lt.s32.totalorder %v4198, 0
    %v4306 = vand.u32 %v4198, 2139095040
    %v4307 = vshrl.u32 %v4306, 23
    %v4308 = vsub.s32 %v4307, 127
    %v4309 = vand.u32 2147483647, %v4198
    %v4310 = vand.u32 %v4309, 8388607
    %v4311 = vor.u32 %v4310, 8388608
    %v4312 = vsub.s32 0, %v4311
    %v4313 = vadd.s32 %v4308, 1
    %vm4314 = vcmp.gt.s32.totalorder %v4313, 0
    %v4315 = vsel %vm4314, %v4313, 0
    %v4316 = vshrl.u32 %v4315, 5
    %v4317 = vand.u32 %v4315, 31
    %v4318 = vsub.s32 32, %v4317
    %v4319 = vshrl.u32 683565275, %v4318
    %v4320 = vshll.u32 683565275, %v4317
    %v4321 = vshrl.u32 2475754826, %v4318
    %v4322 = vor.u32 %v4320, %v4321
    %v4323 = vshll.u32 2475754826, %v4317
    %v4324 = vshrl.u32 2131351028, %v4318
    %v4325 = vor.u32 %v4323, %v4324
    %v4326 = vshll.u32 2131351028, %v4317
    %v4327 = vshrl.u32 2102212464, %v4318
    %v4328 = vor.u32 %v4326, %v4327
    %v4329 = vshll.u32 2102212464, %v4317
    %v4330 = vshrl.u32 920167782, %v4318
    %v4331 = vor.u32 %v4329, %v4330
    %v4332 = vshll.u32 920167782, %v4317
    %v4333 = vshrl.u32 1326507024, %v4318
    %v4334 = vor.u32 %v4332, %v4333
    %vm4335 = vcmp.lt.s32.totalorder %v4316, 1
    %vm4336 = vcmp.lt.s32.totalorder %v4316, 2
    %vm4337 = vcmp.lt.s32.totalorder %v4316, 3
    %vm4338 = vcmp.lt.s32.totalorder %v4316, 4
    %v4339 = vsel %vm4335, %v4319, %v4322
    %v4340 = vsel %vm4338, %v4328, 2102212464
    %v4341 = vsel %vm4337, %v4325, %v4340
    %v4342 = vsel %vm4336, %v4339, %v4341
    %v4343 = vsel %vm4335, %v4322, %v4325
    %v4344 = vsel %vm4338, %v4331, 920167782
    %v4345 = vsel %vm4337, %v4328, %v4344
    %v4346 = vsel %vm4336, %v4343, %v4345
    %v4347 = vsel %vm4335, %v4325, %v4328
    %v4348 = vsel %vm4338, %v4334, 1326507024
    %v4349 = vsel %vm4337, %v4331, %v4348
    %v4350 = vsel %vm4336, %v4347, %v4349
    %v4351 = vshll.u32 %v4311, 8
    %v4352 = vmul.u32.u64.compose %v4351, %v4350
    %v4353 = vextract.low.u32 %v4352
    %v4354 = vextract.high.u32 %v4352
    %v4355 = vmul.u32.u64.compose %v4351, %v4346
    %v4356 = vextract.low.u32 %v4355
    %v4357 = vextract.high.u32 %v4355
    %v4358 = vmul.u32 %v4351, %v4342
    %v4359 = vadd.s32 %v4354, %v4356
    %vm4360 = vc.u32 %v4354, %v4356
    %v4361 = vadd.s32 %v4357, 1
    %v4362 = vsel %vm4360, %v4361, %v4357
    %v4363 = vadd.s32 %v4358, %v4362
    %v4364 = vadd.s32 %v4363, 536870912
    %v4365 = vshrl.u32 %v4364, 30
    %v4366 = vshll.u32 %v4365, 30
    %v4367 = vsub.s32 %v4363, %v4366
    %vm4368 = vcmp.lt.s32.totalorder %v4367, 0
    %v4369 = vsub.s32 0, %v4367
    %v4370 = vsel %vm4368, %v4369, %v4367
    %v4371 = vclz %v4370
    %v4372 = vsub.s32 %v4371, 2
    %vm4373 = vcmp.gt.s32.totalorder 0, %v4372
    %v4374 = vsel %vm4373, 0, %v4372
    %v4375 = vsub.s32 32, %v4374
    %v4376 = vshll.u32 %v4367, %v4374
    %v4377 = vshrl.u32 %v4359, %v4375
    %v4378 = vor.u32 %v4376, %v4377
    %v4379 = vsub.s32 4294967266, %v4374
    %v4380 = vadd.s32 %v4379, 127
    %v4381 = vshll.u32 %v4380, 23
    %v4382 = vor.u32 4788187, %v4381
    %v4383 = vand.u32 2147483647, %v4382
    %v4385 = vcvt.s32.f32 %v4378
    %v4386 = vmul.f32 %v4385, %v4383
    %v4387 = vxor.u32 %v4386, 2147483648
    %v4388 = vsel %vm4305, %v4387, %v4386
    %v4389 = vsub.s32 4, %v4365
    %v4390 = vsel %vm4305, %v4389, %v4365
    %v4391 = vsel %vm4304, %v4198, %v4388
    %v4392 = vsel %vm4304, 0, %v4390
    %v4393 = vcosq.f32.pop %v4391
    %v4394 = vsinq.f32.pop %v4391
    %vm4395 = vweird.f32 %v4198
    %v4396 = vadd.s32 %v4392, 3
    %v4397 = vand.u32 %v4396, 3
    %vm4398 = vcmp.lt.s32.totalorder %v4397, 2
    %vm4399 = vcmp.eq.s32.totalorder %v4397, 0
    %v4400 = vxor.u32 %v4394, 2147483648
    %v4401 = vsel %vm4399, %v4393, %v4400
    %vm4402 = vcmp.eq.s32.totalorder %v4397, 2
    %v4403 = vxor.u32 %v4393, 2147483648
    %v4404 = vsel %vm4402, %v4403, %v4394
    %v4405 = vsel %vm4398, %v4401, %v4404
    %v4406 = vsel %vm4395, nan, %v4405
    %v4407 = vld [vmem:[%s85] sm:$0xff]
    %v4408 = vmul.f32 %v4302, %v4302
    %v4409 = vmul.f32 %v4406, %v4406
    %4411 = vset.pattern.permute.xlu0 0
    %4412 = vperm.xlu0 %4411, %v4407
    %v4413 = vpop.permute.xlu0 %4412
    %v4415 = vmul.f32 %v4413, %v4408
    %v4416 = vmul.f32 %v4413, %v4409
    %v4417 = vadd.f32 %v4189, %v4415
    %v4418 = vadd.f32 %v4190, %v4416
    %4419 = vst.msk [vmem:[#allocation7] sm:$0xff] %vm3581, %v4417
    %4420 = vst.msk [vmem:[#allocation7 + $0x8] sm:$0xff] %vm3583, %v4418
    %v4421 = vld [vmem:[#allocation7] sm:$0xff]
    %v4422 = vld [vmem:[#allocation7 + $0x8] sm:$0xff]
    %4425 = vrot.lane.b32.xlu0 %v4421, 125
    %v4426 = vpop.permute.xlu0 %4425
    %4427 = vrot.lane.b32.xlu0 %v4422, 125
    %v4428 = vpop.permute.xlu0 %4427
    %vm4429 = vcmask 1022976
    %v4430 = vsel %vm4429, %v4426, %v4428
    %4431 = vrot.lane.b32.xlu0 %v4421, 122
    %v4432 = vpop.permute.xlu0 %4431
    %4433 = vrot.lane.b32.xlu0 %v4422, 122
    %v4434 = vpop.permute.xlu0 %4433
    %vm4435 = vcmask 998400
    %v4436 = vsel %vm4435, %v4432, %v4434
    %v4437 = vld [vmem:[%s87] sm:$0xff]
    %v4438 = vld [vmem:[%s89] sm:$0xff]
    %4440 = vset.pattern.permute.xlu0 0
    %4441 = vperm.xlu0 %4440, %v4438
    %v4442 = vpop.permute.xlu0 %4441
    %4444 = vrot.lane.b32.xlu0 %v4421, 123
    %v4445 = vpop.permute.xlu0 %4444
    %4446 = vrot.lane.b32.xlu0 %v4422, 123
    %v4447 = vpop.permute.xlu0 %4446
    %4448 = vrot.lane.b32.xlu0 %v4430, 123
    %v4449 = vpop.permute.xlu0 %4448
    %4450 = vrot.lane.b32.xlu0 %v4428, 123
    %v4451 = vpop.permute.xlu0 %4450
    %4452 = vrot.lane.b32.xlu0 %v4436, 123
    %v4453 = vpop.permute.xlu0 %4452
    %4454 = vrot.lane.b32.xlu0 %v4434, 123
    %v4455 = vpop.permute.xlu0 %4454
    %vm4456 = vcmask 1006592
    %v4457 = vsel %vm4456, %v4445, %v4447
    %v4458 = vsel %vm4456, %v4449, %v4451
    %v4459 = vsel %vm4456, %v4453, %v4455
    %v4464 = vsel %vm3859, %v4437, 0
    %4466 = vmatprep.subr.mxu0 0.0
    %4467 = vmatpush1.msra.mxu0 %v4457
    %4468 = vmatprep.subr.mxu0 0.0
    %4469 = vmatpush1.msra.mxu0 %v4458
    %4470 = vmatprep.subr.mxu0 0.0
    %4471 = vmatpush1.msra.mxu0 %v4459
    %4472 = vmatprep.subr.mxu0 0.0
    %4473 = vmatpush1.msra.mxu0 0.0
    %4474 = vmatprep.subr.mxu0 0.0
    %4475 = vmatpush1.msra.mxu0 0.0
    %4476 = vmatprep.subr.mxu0 0.0
    %4477 = vmatpush1.msra.mxu0 0.0
    %4478 = vmatprep.subr.mxu0 0.0
    %4479 = vmatpush1.msra.mxu0 0.0
    %4480 = vmatprep.subr.mxu0 0.0
    %4481 = vmatpush1.msra.mxu0 0.0
    %4482 = vmatprep.subr.mxu0 0.0
    %4483 = vmatpush1.msra.mxu0 0.0
    %4484 = vmatprep.subr.mxu0 0.0
    %4485 = vmatpush1.msra.mxu0 0.0
    %4486 = vmatprep.subr.mxu0 0.0
    %4487 = vmatpush1.msra.mxu0 0.0
    %4488 = vmatprep.subr.mxu0 0.0
    %4489 = vmatpush1.msra.mxu0 0.0
    %4490 = vmatprep.subr.mxu0 0.0
    %4491 = vmatpush1.msra.mxu0 0.0
    %4492 = vmatprep.subr.mxu0 0.0
    %4493 = vmatpush1.msra.mxu0 0.0
    %4494 = vmatprep.subr.mxu0 0.0
    %4495 = vmatpush1.msra.mxu0 0.0
    %4496 = vmatprep.subr.mxu0 0.0
    %4497 = vmatpush1.msra.mxu0 0.0
    %4498 = vmatprep.subr.mxu0 0.0
    %4499 = vmatpush1.msra.mxu0 0.0
    %4500 = vmatprep.subr.mxu0 0.0
    %4501 = vmatpush1.msra.mxu0 0.0
    %4502 = vmatprep.subr.mxu0 0.0
    %4503 = vmatpush1.msra.mxu0 0.0
    %4504 = vmatprep.subr.mxu0 0.0
    %4505 = vmatpush1.msra.mxu0 0.0
    %4506 = vmatprep.subr.mxu0 0.0
    %4507 = vmatpush1.msra.mxu0 0.0
    %4508 = vmatprep.subr.mxu0 0.0
    %4509 = vmatpush1.msra.mxu0 0.0
    %4510 = vmatprep.subr.mxu0 0.0
    %4511 = vmatpush1.msra.mxu0 0.0
    %4512 = vmatprep.subr.mxu0 0.0
    %4513 = vmatpush1.msra.mxu0 0.0
    %4514 = vmatprep.subr.mxu0 0.0
    %4515 = vmatpush1.msra.mxu0 0.0
    %4516 = vmatprep.subr.mxu0 0.0
    %4517 = vmatpush1.msra.mxu0 0.0
    %4518 = vmatprep.subr.mxu0 0.0
    %4519 = vmatpush1.msra.mxu0 0.0
    %4520 = vmatprep.subr.mxu0 0.0
    %4521 = vmatpush1.msra.mxu0 0.0
    %4522 = vmatprep.subr.mxu0 0.0
    %4523 = vmatpush1.msra.mxu0 0.0
    %4524 = vmatprep.subr.mxu0 0.0
    %4525 = vmatpush1.msra.mxu0 0.0
    %4526 = vmatprep.subr.mxu0 0.0
    %4527 = vmatpush1.msra.mxu0 0.0
    %4528 = vmatprep.subr.mxu0 0.0
    %4529 = vmatpush1.msra.mxu0 0.0
    %4530 = vmatprep.mubr.f32.mxu0 0.0
    %4531 = vmatmul.mubr.f32.gmra.mrb[0].mxu0 %v4464
    %v4532 = vpop.f32.mrb[0].mxu0
    %v4533 = vadd.f32 %v4442, %v4532
    %v4534 = vpop.f32.mrb[0].mxu0
    %4535 = vdwg.mxu0
    %v4536 = vld [vmem:[%s91] sm:$0xff]
    %4538 = vset.pattern.permute.xlu0 0
    %4539 = vperm.xlu0 %4538, %v4536
    %v4540 = vpop.permute.xlu0 %4539
    %v4542 = vmul.f32 %v4533, %v4540
    %v4543 = vand.u32 2147483647, %v4542
    %vm4544 = vcmp.le.f32.partialorder %v4543, 0.7853982
    %vm4545 = vcmp.lt.s32.totalorder %v4542, 0
    %v4546 = vand.u32 %v4542, 2139095040
    %v4547 = vshrl.u32 %v4546, 23
    %v4548 = vsub.s32 %v4547, 127
    %v4549 = vand.u32 2147483647, %v4542
    %v4550 = vand.u32 %v4549, 8388607
    %v4551 = vor.u32 %v4550, 8388608
    %v4552 = vsub.s32 0, %v4551
    %v4553 = vadd.s32 %v4548, 1
    %vm4554 = vcmp.gt.s32.totalorder %v4553, 0
    %v4555 = vsel %vm4554, %v4553, 0
    %v4556 = vshrl.u32 %v4555, 5
    %v4557 = vand.u32 %v4555, 31
    %v4558 = vsub.s32 32, %v4557
    %v4559 = vshrl.u32 683565275, %v4558
    %v4560 = vshll.u32 683565275, %v4557
    %v4561 = vshrl.u32 2475754826, %v4558
    %v4562 = vor.u32 %v4560, %v4561
    %v4563 = vshll.u32 2475754826, %v4557
    %v4564 = vshrl.u32 2131351028, %v4558
    %v4565 = vor.u32 %v4563, %v4564
    %v4566 = vshll.u32 2131351028, %v4557
    %v4567 = vshrl.u32 2102212464, %v4558
    %v4568 = vor.u32 %v4566, %v4567
    %v4569 = vshll.u32 2102212464, %v4557
    %v4570 = vshrl.u32 920167782, %v4558
    %v4571 = vor.u32 %v4569, %v4570
    %v4572 = vshll.u32 920167782, %v4557
    %v4573 = vshrl.u32 1326507024, %v4558
    %v4574 = vor.u32 %v4572, %v4573
    %vm4575 = vcmp.lt.s32.totalorder %v4556, 1
    %vm4576 = vcmp.lt.s32.totalorder %v4556, 2
    %vm4577 = vcmp.lt.s32.totalorder %v4556, 3
    %vm4578 = vcmp.lt.s32.totalorder %v4556, 4
    %v4579 = vsel %vm4575, %v4559, %v4562
    %v4580 = vsel %vm4578, %v4568, 2102212464
    %v4581 = vsel %vm4577, %v4565, %v4580
    %v4582 = vsel %vm4576, %v4579, %v4581
    %v4583 = vsel %vm4575, %v4562, %v4565
    %v4584 = vsel %vm4578, %v4571, 920167782
    %v4585 = vsel %vm4577, %v4568, %v4584
    %v4586 = vsel %vm4576, %v4583, %v4585
    %v4587 = vsel %vm4575, %v4565, %v4568
    %v4588 = vsel %vm4578, %v4574, 1326507024
    %v4589 = vsel %vm4577, %v4571, %v4588
    %v4590 = vsel %vm4576, %v4587, %v4589
    %v4591 = vshll.u32 %v4551, 8
    %v4592 = vmul.u32.u64.compose %v4591, %v4590
    %v4593 = vextract.low.u32 %v4592
    %v4594 = vextract.high.u32 %v4592
    %v4595 = vmul.u32.u64.compose %v4591, %v4586
    %v4596 = vextract.low.u32 %v4595
    %v4597 = vextract.high.u32 %v4595
    %v4598 = vmul.u32 %v4591, %v4582
    %v4599 = vadd.s32 %v4594, %v4596
    %vm4600 = vc.u32 %v4594, %v4596
    %v4601 = vadd.s32 %v4597, 1
    %v4602 = vsel %vm4600, %v4601, %v4597
    %v4603 = vadd.s32 %v4598, %v4602
    %v4604 = vadd.s32 %v4603, 536870912
    %v4605 = vshrl.u32 %v4604, 30
    %v4606 = vshll.u32 %v4605, 30
    %v4607 = vsub.s32 %v4603, %v4606
    %vm4608 = vcmp.lt.s32.totalorder %v4607, 0
    %v4609 = vsub.s32 0, %v4607
    %v4610 = vsel %vm4608, %v4609, %v4607
    %v4611 = vclz %v4610
    %v4612 = vsub.s32 %v4611, 2
    %vm4613 = vcmp.gt.s32.totalorder 0, %v4612
    %v4614 = vsel %vm4613, 0, %v4612
    %v4615 = vsub.s32 32, %v4614
    %v4616 = vshll.u32 %v4607, %v4614
    %v4617 = vshrl.u32 %v4599, %v4615
    %v4618 = vor.u32 %v4616, %v4617
    %v4619 = vsub.s32 4294967266, %v4614
    %v4620 = vadd.s32 %v4619, 127
    %v4621 = vshll.u32 %v4620, 23
    %v4622 = vor.u32 4788187, %v4621
    %v4623 = vand.u32 2147483647, %v4622
    %v4625 = vcvt.s32.f32 %v4618
    %v4626 = vmul.f32 %v4625, %v4623
    %v4627 = vxor.u32 %v4626, 2147483648
    %v4628 = vsel %vm4545, %v4627, %v4626
    %v4629 = vsub.s32 4, %v4605
    %v4630 = vsel %vm4545, %v4629, %v4605
    %v4631 = vsel %vm4544, %v4542, %v4628
    %v4632 = vsel %vm4544, 0, %v4630
    %v4633 = vcosq.f32.pop %v4631
    %v4634 = vsinq.f32.pop %v4631
    %vm4635 = vweird.f32 %v4542
    %v4636 = vadd.s32 %v4632, 3
    %v4637 = vand.u32 %v4636, 3
    %vm4638 = vcmp.lt.s32.totalorder %v4637, 2
    %vm4639 = vcmp.eq.s32.totalorder %v4637, 0
    %v4640 = vxor.u32 %v4634, 2147483648
    %v4641 = vsel %vm4639, %v4633, %v4640
    %vm4642 = vcmp.eq.s32.totalorder %v4637, 2
    %v4643 = vxor.u32 %v4633, 2147483648
    %v4644 = vsel %vm4642, %v4643, %v4634
    %v4645 = vsel %vm4638, %v4641, %v4644
    %v4646 = vsel %vm4635, nan, %v4645
    %v4647 = vld [vmem:[%s93] sm:$0xff]
    %v4648 = vmul.f32 %v4646, %v4646
    %4650 = vset.pattern.permute.xlu0 0
    %4651 = vperm.xlu0 %4650, %v4647
    %v4652 = vpop.permute.xlu0 %4651
    %v4654 = vmul.f32 %v4652, %v4648
    %v4655 = vadd.f32 %v4533, %v4654
    %4657 = vrot.lane.b32.xlu0 %v4655, 8
    %v4658 = vpop.permute.xlu0 %4657
    %4660 = vst.msk [vmem:[#allocation7] sm:$0xff] %vm3581, %v4658
    %4661 = vst.msk [vmem:[#allocation7 + $0x8] sm:$0xff] %vm3583, %v4658
    %v4662 = vld [vmem:[#allocation7] sm:$0xff]
    %v4663 = vld [vmem:[#allocation7 + $0x8] sm:$0xff]
    %4666 = vrot.lane.b32.xlu0 %v4662, 127
    %v4667 = vpop.permute.xlu0 %4666
    %4668 = vrot.lane.b32.xlu0 %v4663, 127
    %v4669 = vpop.permute.xlu0 %4668
    %v4670 = vsel %vm3825, %v4667, %v4669
    %4671 = vrot.lane.b32.xlu0 %v4662, 126
    %v4672 = vpop.permute.xlu0 %4671
    %4673 = vrot.lane.b32.xlu0 %v4663, 126
    %v4674 = vpop.permute.xlu0 %4673
    %v4675 = vsel %vm3831, %v4672, %v4674
    %v4676 = vld [vmem:[%s95] sm:$0xff]
    %v4677 = vld [vmem:[%s97] sm:$0xff]
    %4679 = vset.pattern.permute.xlu0 0
    %4680 = vperm.xlu0 %4679, %v4677
    %v4681 = vpop.permute.xlu0 %4680
    %4683 = vrot.lane.b32.xlu0 %v4662, 121
    %v4684 = vpop.permute.xlu0 %4683
    %4685 = vrot.lane.b32.xlu0 %v4663, 121
    %v4686 = vpop.permute.xlu0 %4685
    %4687 = vrot.lane.b32.xlu0 %v4670, 121
    %v4688 = vpop.permute.xlu0 %4687
    %4689 = vrot.lane.b32.xlu0 %v4669, 121
    %v4690 = vpop.permute.xlu0 %4689
    %4691 = vrot.lane.b32.xlu0 %v4675, 121
    %v4692 = vpop.permute.xlu0 %4691
    %4693 = vrot.lane.b32.xlu0 %v4674, 121
    %v4694 = vpop.permute.xlu0 %4693
    %v4695 = vsel %vm3852, %v4684, %v4686
    %v4696 = vsel %vm3852, %v4688, %v4690
    %v4697 = vsel %vm3852, %v4692, %v4694
    %v4702 = vsel %vm3859, %v4676, 0
    %4704 = vmatprep.subr.mxu0 0.0
    %4705 = vmatpush1.msra.mxu0 %v4695
    %4706 = vmatprep.subr.mxu0 0.0
    %4707 = vmatpush1.msra.mxu0 %v4696
    %4708 = vmatprep.subr.mxu0 0.0
    %4709 = vmatpush1.msra.mxu0 %v4697
    %4710 = vmatprep.subr.mxu0 0.0
    %4711 = vmatpush1.msra.mxu0 0.0
    %4712 = vmatprep.subr.mxu0 0.0
    %4713 = vmatpush1.msra.mxu0 0.0
    %4714 = vmatprep.subr.mxu0 0.0
    %4715 = vmatpush1.msra.mxu0 0.0
    %4716 = vmatprep.subr.mxu0 0.0
    %4717 = vmatpush1.msra.mxu0 0.0
    %4718 = vmatprep.subr.mxu0 0.0
    %4719 = vmatpush1.msra.mxu0 0.0
    %4720 = vmatprep.subr.mxu0 0.0
    %4721 = vmatpush1.msra.mxu0 0.0
    %4722 = vmatprep.subr.mxu0 0.0
    %4723 = vmatpush1.msra.mxu0 0.0
    %4724 = vmatprep.subr.mxu0 0.0
    %4725 = vmatpush1.msra.mxu0 0.0
    %4726 = vmatprep.subr.mxu0 0.0
    %4727 = vmatpush1.msra.mxu0 0.0
    %4728 = vmatprep.subr.mxu0 0.0
    %4729 = vmatpush1.msra.mxu0 0.0
    %4730 = vmatprep.subr.mxu0 0.0
    %4731 = vmatpush1.msra.mxu0 0.0
    %4732 = vmatprep.subr.mxu0 0.0
    %4733 = vmatpush1.msra.mxu0 0.0
    %4734 = vmatprep.subr.mxu0 0.0
    %4735 = vmatpush1.msra.mxu0 0.0
    %4736 = vmatprep.subr.mxu0 0.0
    %4737 = vmatpush1.msra.mxu0 0.0
    %4738 = vmatprep.subr.mxu0 0.0
    %4739 = vmatpush1.msra.mxu0 0.0
    %4740 = vmatprep.subr.mxu0 0.0
    %4741 = vmatpush1.msra.mxu0 0.0
    %4742 = vmatprep.subr.mxu0 0.0
    %4743 = vmatpush1.msra.mxu0 0.0
    %4744 = vmatprep.subr.mxu0 0.0
    %4745 = vmatpush1.msra.mxu0 0.0
    %4746 = vmatprep.subr.mxu0 0.0
    %4747 = vmatpush1.msra.mxu0 0.0
    %4748 = vmatprep.subr.mxu0 0.0
    %4749 = vmatpush1.msra.mxu0 0.0
    %4750 = vmatprep.subr.mxu0 0.0
    %4751 = vmatpush1.msra.mxu0 0.0
    %4752 = vmatprep.subr.mxu0 0.0
    %4753 = vmatpush1.msra.mxu0 0.0
    %4754 = vmatprep.subr.mxu0 0.0
    %4755 = vmatpush1.msra.mxu0 0.0
    %4756 = vmatprep.subr.mxu0 0.0
    %4757 = vmatpush1.msra.mxu0 0.0
    %4758 = vmatprep.subr.mxu0 0.0
    %4759 = vmatpush1.msra.mxu0 0.0
    %4760 = vmatprep.subr.mxu0 0.0
    %4761 = vmatpush1.msra.mxu0 0.0
    %4762 = vmatprep.subr.mxu0 0.0
    %4763 = vmatpush1.msra.mxu0 0.0
    %4764 = vmatprep.subr.mxu0 0.0
    %4765 = vmatpush1.msra.mxu0 0.0
    %4766 = vmatprep.subr.mxu0 0.0
    %4767 = vmatpush1.msra.mxu0 0.0
    %4768 = vmatprep.mubr.f32.mxu0 0.0
    %4769 = vmatmul.mubr.f32.gmra.mrb[0].mxu0 %v4702
    %v4770 = vpop.f32.mrb[0].mxu0
    %v4771 = vadd.f32 %v4681, %v4770
    %v4772 = vpop.f32.mrb[0].mxu0
    %4773 = vdwg.mxu0
    %v4774 = vld [vmem:[#allocation6] sm:$0xff]
    %v4775 = vld [vmem:[#allocation6 + $0x8] sm:$0xff]
    %4778 = vrot.lane.b32.xlu0 %v4774, 120
    %v4779 = vpop.permute.xlu0 %4778
    %4780 = vrot.lane.b32.xlu0 %v4775, 120
    %v4781 = vpop.permute.xlu0 %4780
    %v4782 = vsel %vm4179, %v4779, %v4781
    %v4784 = vadd.f32 %v4771, %v4782
    %4786 = vrot.lane.b32.xlu0 %v4784, 8
    %v4787 = vpop.permute.xlu0 %4786
    %4789 = vst.msk [vmem:[#allocation6] sm:$0xff] %vm3581, %v4787
    %4790 = vst.msk [vmem:[#allocation6 + $0x8] sm:$0xff] %vm3583, %v4787
    %v4791 = vld [vmem:[#allocation6] sm:$0xff]
    %v4792 = vld [vmem:[#allocation6 + $0x8] sm:$0xff]
    %v4793 = vld [vmem:[%s99] sm:$0xff]
    %4795 = vset.pattern.permute.xlu0 0
    %4796 = vperm.xlu0 %4795, %v4793
    %v4797 = vpop.permute.xlu0 %4796
    %v4799 = vmul.f32 %v4791, %v4797
    %v4800 = vmul.f32 %v4792, %v4797
    %v4801 = vand.u32 2147483647, %v4799
    %vm4802 = vcmp.le.f32.partialorder %v4801, 0.7853982
    %vm4803 = vcmp.lt.s32.totalorder %v4799, 0
    %v4804 = vand.u32 %v4799, 2139095040
    %v4805 = vshrl.u32 %v4804, 23
    %v4806 = vsub.s32 %v4805, 127
    %v4807 = vand.u32 2147483647, %v4799
    %v4808 = vand.u32 %v4807, 8388607
    %v4809 = vor.u32 %v4808, 8388608
    %v4810 = vsub.s32 0, %v4809
    %v4811 = vadd.s32 %v4806, 1
    %vm4812 = vcmp.gt.s32.totalorder %v4811, 0
    %v4813 = vsel %vm4812, %v4811, 0
    %v4814 = vshrl.u32 %v4813, 5
    %v4815 = vand.u32 %v4813, 31
    %v4816 = vsub.s32 32, %v4815
    %v4817 = vshrl.u32 683565275, %v4816
    %v4818 = vshll.u32 683565275, %v4815
    %v4819 = vshrl.u32 2475754826, %v4816
    %v4820 = vor.u32 %v4818, %v4819
    %v4821 = vshll.u32 2475754826, %v4815
    %v4822 = vshrl.u32 2131351028, %v4816
    %v4823 = vor.u32 %v4821, %v4822
    %v4824 = vshll.u32 2131351028, %v4815
    %v4825 = vshrl.u32 2102212464, %v4816
    %v4826 = vor.u32 %v4824, %v4825
    %v4827 = vshll.u32 2102212464, %v4815
    %v4828 = vshrl.u32 920167782, %v4816
    %v4829 = vor.u32 %v4827, %v4828
    %v4830 = vshll.u32 920167782, %v4815
    %v4831 = vshrl.u32 1326507024, %v4816
    %v4832 = vor.u32 %v4830, %v4831
    %vm4833 = vcmp.lt.s32.totalorder %v4814, 1
    %vm4834 = vcmp.lt.s32.totalorder %v4814, 2
    %vm4835 = vcmp.lt.s32.totalorder %v4814, 3
    %vm4836 = vcmp.lt.s32.totalorder %v4814, 4
    %v4837 = vsel %vm4833, %v4817, %v4820
    %v4838 = vsel %vm4836, %v4826, 2102212464
    %v4839 = vsel %vm4835, %v4823, %v4838
    %v4840 = vsel %vm4834, %v4837, %v4839
    %v4841 = vsel %vm4833, %v4820, %v4823
    %v4842 = vsel %vm4836, %v4829, 920167782
    %v4843 = vsel %vm4835, %v4826, %v4842
    %v4844 = vsel %vm4834, %v4841, %v4843
    %v4845 = vsel %vm4833, %v4823, %v4826
    %v4846 = vsel %vm4836, %v4832, 1326507024
    %v4847 = vsel %vm4835, %v4829, %v4846
    %v4848 = vsel %vm4834, %v4845, %v4847
    %v4849 = vshll.u32 %v4809, 8
    %v4850 = vmul.u32.u64.compose %v4849, %v4848
    %v4851 = vextract.low.u32 %v4850
    %v4852 = vextract.high.u32 %v4850
    %v4853 = vmul.u32.u64.compose %v4849, %v4844
    %v4854 = vextract.low.u32 %v4853
    %v4855 = vextract.high.u32 %v4853
    %v4856 = vmul.u32 %v4849, %v4840
    %v4857 = vadd.s32 %v4852, %v4854
    %vm4858 = vc.u32 %v4852, %v4854
    %v4859 = vadd.s32 %v4855, 1
    %v4860 = vsel %vm4858, %v4859, %v4855
    %v4861 = vadd.s32 %v4856, %v4860
    %v4862 = vadd.s32 %v4861, 536870912
    %v4863 = vshrl.u32 %v4862, 30
    %v4864 = vshll.u32 %v4863, 30
    %v4865 = vsub.s32 %v4861, %v4864
    %vm4866 = vcmp.lt.s32.totalorder %v4865, 0
    %v4867 = vsub.s32 0, %v4865
    %v4868 = vsel %vm4866, %v4867, %v4865
    %v4869 = vclz %v4868
    %v4870 = vsub.s32 %v4869, 2
    %vm4871 = vcmp.gt.s32.totalorder 0, %v4870
    %v4872 = vsel %vm4871, 0, %v4870
    %v4873 = vsub.s32 32, %v4872
    %v4874 = vshll.u32 %v4865, %v4872
    %v4875 = vshrl.u32 %v4857, %v4873
    %v4876 = vor.u32 %v4874, %v4875
    %v4877 = vsub.s32 4294967266, %v4872
    %v4878 = vadd.s32 %v4877, 127
    %v4879 = vshll.u32 %v4878, 23
    %v4880 = vor.u32 4788187, %v4879
    %v4881 = vand.u32 2147483647, %v4880
    %v4883 = vcvt.s32.f32 %v4876
    %v4884 = vmul.f32 %v4883, %v4881
    %v4885 = vxor.u32 %v4884, 2147483648
    %v4886 = vsel %vm4803, %v4885, %v4884
    %v4887 = vsub.s32 4, %v4863
    %v4888 = vsel %vm4803, %v4887, %v4863
    %v4889 = vsel %vm4802, %v4799, %v4886
    %v4890 = vsel %vm4802, 0, %v4888
    %v4891 = vcosq.f32.pop %v4889
    %v4892 = vsinq.f32.pop %v4889
    %vm4893 = vweird.f32 %v4799
    %v4894 = vadd.s32 %v4890, 3
    %v4895 = vand.u32 %v4894, 3
    %vm4896 = vcmp.lt.s32.totalorder %v4895, 2
    %vm4897 = vcmp.eq.s32.totalorder %v4895, 0
    %v4898 = vxor.u32 %v4892, 2147483648
    %v4899 = vsel %vm4897, %v4891, %v4898
    %vm4900 = vcmp.eq.s32.totalorder %v4895, 2
    %v4901 = vxor.u32 %v4891, 2147483648
    %v4902 = vsel %vm4900, %v4901, %v4892
    %v4903 = vsel %vm4896, %v4899, %v4902
    %v4904 = vsel %vm4893, nan, %v4903
    %v4905 = vand.u32 2147483647, %v4800
    %vm4906 = vcmp.le.f32.partialorder %v4905, 0.7853982
    %vm4907 = vcmp.lt.s32.totalorder %v4800, 0
    %v4908 = vand.u32 %v4800, 2139095040
    %v4909 = vshrl.u32 %v4908, 23
    %v4910 = vsub.s32 %v4909, 127
    %v4911 = vand.u32 2147483647, %v4800
    %v4912 = vand.u32 %v4911, 8388607
    %v4913 = vor.u32 %v4912, 8388608
    %v4914 = vsub.s32 0, %v4913
    %v4915 = vadd.s32 %v4910, 1
    %vm4916 = vcmp.gt.s32.totalorder %v4915, 0
    %v4917 = vsel %vm4916, %v4915, 0
    %v4918 = vshrl.u32 %v4917, 5
    %v4919 = vand.u32 %v4917, 31
    %v4920 = vsub.s32 32, %v4919
    %v4921 = vshrl.u32 683565275, %v4920
    %v4922 = vshll.u32 683565275, %v4919
    %v4923 = vshrl.u32 2475754826, %v4920
    %v4924 = vor.u32 %v4922, %v4923
    %v4925 = vshll.u32 2475754826, %v4919
    %v4926 = vshrl.u32 2131351028, %v4920
    %v4927 = vor.u32 %v4925, %v4926
    %v4928 = vshll.u32 2131351028, %v4919
    %v4929 = vshrl.u32 2102212464, %v4920
    %v4930 = vor.u32 %v4928, %v4929
    %v4931 = vshll.u32 2102212464, %v4919
    %v4932 = vshrl.u32 920167782, %v4920
    %v4933 = vor.u32 %v4931, %v4932
    %v4934 = vshll.u32 920167782, %v4919
    %v4935 = vshrl.u32 1326507024, %v4920
    %v4936 = vor.u32 %v4934, %v4935
    %vm4937 = vcmp.lt.s32.totalorder %v4918, 1
    %vm4938 = vcmp.lt.s32.totalorder %v4918, 2
    %vm4939 = vcmp.lt.s32.totalorder %v4918, 3
    %vm4940 = vcmp.lt.s32.totalorder %v4918, 4
    %v4941 = vsel %vm4937, %v4921, %v4924
    %v4942 = vsel %vm4940, %v4930, 2102212464
    %v4943 = vsel %vm4939, %v4927, %v4942
    %v4944 = vsel %vm4938, %v4941, %v4943
    %v4945 = vsel %vm4937, %v4924, %v4927
    %v4946 = vsel %vm4940, %v4933, 920167782
    %v4947 = vsel %vm4939, %v4930, %v4946
    %v4948 = vsel %vm4938, %v4945, %v4947
    %v4949 = vsel %vm4937, %v4927, %v4930
    %v4950 = vsel %vm4940, %v4936, 1326507024
    %v4951 = vsel %vm4939, %v4933, %v4950
    %v4952 = vsel %vm4938, %v4949, %v4951
    %v4953 = vshll.u32 %v4913, 8
    %v4954 = vmul.u32.u64.compose %v4953, %v4952
    %v4955 = vextract.low.u32 %v4954
    %v4956 = vextract.high.u32 %v4954
    %v4957 = vmul.u32.u64.compose %v4953, %v4948
    %v4958 = vextract.low.u32 %v4957
    %v4959 = vextract.high.u32 %v4957
    %v4960 = vmul.u32 %v4953, %v4944
    %v4961 = vadd.s32 %v4956, %v4958
    %vm4962 = vc.u32 %v4956, %v4958
    %v4963 = vadd.s32 %v4959, 1
    %v4964 = vsel %vm4962, %v4963, %v4959
    %v4965 = vadd.s32 %v4960, %v4964
    %v4966 = vadd.s32 %v4965, 536870912
    %v4967 = vshrl.u32 %v4966, 30
    %v4968 = vshll.u32 %v4967, 30
    %v4969 = vsub.s32 %v4965, %v4968
    %vm4970 = vcmp.lt.s32.totalorder %v4969, 0
    %v4971 = vsub.s32 0, %v4969
    %v4972 = vsel %vm4970, %v4971, %v4969
    %v4973 = vclz %v4972
    %v4974 = vsub.s32 %v4973, 2
    %vm4975 = vcmp.gt.s32.totalorder 0, %v4974
    %v4976 = vsel %vm4975, 0, %v4974
    %v4977 = vsub.s32 32, %v4976
    %v4978 = vshll.u32 %v4969, %v4976
    %v4979 = vshrl.u32 %v4961, %v4977
    %v4980 = vor.u32 %v4978, %v4979
    %v4981 = vsub.s32 4294967266, %v4976
    %v4982 = vadd.s32 %v4981, 127
    %v4983 = vshll.u32 %v4982, 23
    %v4984 = vor.u32 4788187, %v4983
    %v4985 = vand.u32 2147483647, %v4984
    %v4987 = vcvt.s32.f32 %v4980
    %v4988 = vmul.f32 %v4987, %v4985
    %v4989 = vxor.u32 %v4988, 2147483648
    %v4990 = vsel %vm4907, %v4989, %v4988
    %v4991 = vsub.s32 4, %v4967
    %v4992 = vsel %vm4907, %v4991, %v4967
    %v4993 = vsel %vm4906, %v4800, %v4990
    %v4994 = vsel %vm4906, 0, %v4992
    %v4995 = vcosq.f32.pop %v4993
    %v4996 = vsinq.f32.pop %v4993
    %vm4997 = vweird.f32 %v4800
    %v4998 = vadd.s32 %v4994, 3
    %v4999 = vand.u32 %v4998, 3
    %vm5000 = vcmp.lt.s32.totalorder %v4999, 2
    %vm5001 = vcmp.eq.s32.totalorder %v4999, 0
    %v5002 = vxor.u32 %v4996, 2147483648
    %v5003 = vsel %vm5001, %v4995, %v5002
    %vm5004 = vcmp.eq.s32.totalorder %v4999, 2
    %v5005 = vxor.u32 %v4995, 2147483648
    %v5006 = vsel %vm5004, %v5005, %v4996
    %v5007 = vsel %vm5000, %v5003, %v5006
    %v5008 = vsel %vm4997, nan, %v5007
    %v5009 = vld [vmem:[%s101] sm:$0xff]
    %v5010 = vmul.f32 %v4904, %v4904
    %v5011 = vmul.f32 %v5008, %v5008
    %5013 = vset.pattern.permute.xlu0 0
    %5014 = vperm.xlu0 %5013, %v5009
    %v5015 = vpop.permute.xlu0 %5014
    %v5017 = vmul.f32 %v5015, %v5010
    %v5018 = vmul.f32 %v5015, %v5011
    %v5019 = vadd.f32 %v4791, %v5017
    %v5020 = vadd.f32 %v4792, %v5018
    %5021 = vst.msk [vmem:[#allocation7] sm:$0xff] %vm3581, %v5019
    %5022 = vst.msk [vmem:[#allocation7 + $0x8] sm:$0xff] %vm3583, %v5020
    %v5023 = vld [vmem:[#allocation7] sm:$0xff]
    %v5024 = vld [vmem:[#allocation7 + $0x8] sm:$0xff]
    %5027 = vrot.lane.b32.xlu0 %v5023, 123
    %v5028 = vpop.permute.xlu0 %5027
    %5029 = vrot.lane.b32.xlu0 %v5024, 123
    %v5030 = vpop.permute.xlu0 %5029
    %v5031 = vsel %vm4456, %v5028, %v5030
    %5032 = vrot.lane.b32.xlu0 %v5023, 118
    %v5033 = vpop.permute.xlu0 %5032
    %5034 = vrot.lane.b32.xlu0 %v5024, 118
    %v5035 = vpop.permute.xlu0 %5034
    %vm5036 = vcmask 965632
    %v5037 = vsel %vm5036, %v5033, %v5035
    %v5038 = vld [vmem:[%s103] sm:$0xff]
    %v5039 = vld [vmem:[%s105] sm:$0xff]
    %5041 = vset.pattern.permute.xlu0 0
    %5042 = vperm.xlu0 %5041, %v5039
    %v5043 = vpop.permute.xlu0 %5042
    %5045 = vrot.lane.b32.xlu0 %v5023, 125
    %v5046 = vpop.permute.xlu0 %5045
    %5047 = vrot.lane.b32.xlu0 %v5024, 125
    %v5048 = vpop.permute.xlu0 %5047
    %5049 = vrot.lane.b32.xlu0 %v5031, 125
    %v5050 = vpop.permute.xlu0 %5049
    %5051 = vrot.lane.b32.xlu0 %v5030, 125
    %v5052 = vpop.permute.xlu0 %5051
    %5053 = vrot.lane.b32.xlu0 %v5037, 125
    %v5054 = vpop.permute.xlu0 %5053
    %5055 = vrot.lane.b32.xlu0 %v5035, 125
    %v5056 = vpop.permute.xlu0 %5055
    %v5057 = vsel %vm4429, %v5046, %v5048
    %v5058 = vsel %vm4429, %v5050, %v5052
    %v5059 = vsel %vm4429, %v5054, %v5056
    %v5064 = vsel %vm3859, %v5038, 0
    %5066 = vmatprep.subr.mxu0 0.0
    %5067 = vmatpush1.msra.mxu0 %v5057
    %5068 = vmatprep.subr.mxu0 0.0
    %5069 = vmatpush1.msra.mxu0 %v5058
    %5070 = vmatprep.subr.mxu0 0.0
    %5071 = vmatpush1.msra.mxu0 %v5059
    %5072 = vmatprep.subr.mxu0 0.0
    %5073 = vmatpush1.msra.mxu0 0.0
    %5074 = vmatprep.subr.mxu0 0.0
    %5075 = vmatpush1.msra.mxu0 0.0
    %5076 = vmatprep.subr.mxu0 0.0
    %5077 = vmatpush1.msra.mxu0 0.0
    %5078 = vmatprep.subr.mxu0 0.0
    %5079 = vmatpush1.msra.mxu0 0.0
    %5080 = vmatprep.subr.mxu0 0.0
    %5081 = vmatpush1.msra.mxu0 0.0
    %5082 = vmatprep.subr.mxu0 0.0
    %5083 = vmatpush1.msra.mxu0 0.0
    %5084 = vmatprep.subr.mxu0 0.0
    %5085 = vmatpush1.msra.mxu0 0.0
    %5086 = vmatprep.subr.mxu0 0.0
    %5087 = vmatpush1.msra.mxu0 0.0
    %5088 = vmatprep.subr.mxu0 0.0
    %5089 = vmatpush1.msra.mxu0 0.0
    %5090 = vmatprep.subr.mxu0 0.0
    %5091 = vmatpush1.msra.mxu0 0.0
    %5092 = vmatprep.subr.mxu0 0.0
    %5093 = vmatpush1.msra.mxu0 0.0
    %5094 = vmatprep.subr.mxu0 0.0
    %5095 = vmatpush1.msra.mxu0 0.0
    %5096 = vmatprep.subr.mxu0 0.0
    %5097 = vmatpush1.msra.mxu0 0.0
    %5098 = vmatprep.subr.mxu0 0.0
    %5099 = vmatpush1.msra.mxu0 0.0
    %5100 = vmatprep.subr.mxu0 0.0
    %5101 = vmatpush1.msra.mxu0 0.0
    %5102 = vmatprep.subr.mxu0 0.0
    %5103 = vmatpush1.msra.mxu0 0.0
    %5104 = vmatprep.subr.mxu0 0.0
    %5105 = vmatpush1.msra.mxu0 0.0
    %5106 = vmatprep.subr.mxu0 0.0
    %5107 = vmatpush1.msra.mxu0 0.0
    %5108 = vmatprep.subr.mxu0 0.0
    %5109 = vmatpush1.msra.mxu0 0.0
    %5110 = vmatprep.subr.mxu0 0.0
    %5111 = vmatpush1.msra.mxu0 0.0
    %5112 = vmatprep.subr.mxu0 0.0
    %5113 = vmatpush1.msra.mxu0 0.0
    %5114 = vmatprep.subr.mxu0 0.0
    %5115 = vmatpush1.msra.mxu0 0.0
    %5116 = vmatprep.subr.mxu0 0.0
    %5117 = vmatpush1.msra.mxu0 0.0
    %5118 = vmatprep.subr.mxu0 0.0
    %5119 = vmatpush1.msra.mxu0 0.0
    %5120 = vmatprep.subr.mxu0 0.0
    %5121 = vmatpush1.msra.mxu0 0.0
    %5122 = vmatprep.subr.mxu0 0.0
    %5123 = vmatpush1.msra.mxu0 0.0
    %5124 = vmatprep.subr.mxu0 0.0
    %5125 = vmatpush1.msra.mxu0 0.0
    %5126 = vmatprep.subr.mxu0 0.0
    %5127 = vmatpush1.msra.mxu0 0.0
    %5128 = vmatprep.subr.mxu0 0.0
    %5129 = vmatpush1.msra.mxu0 0.0
    %5130 = vmatprep.mubr.f32.mxu0 0.0
    %5131 = vmatmul.mubr.f32.gmra.mrb[0].mxu0 %v5064
    %v5132 = vpop.f32.mrb[0].mxu0
    %v5133 = vadd.f32 %v5043, %v5132
    %v5134 = vpop.f32.mrb[0].mxu0
    %5135 = vdwg.mxu0
    %v5136 = vld [vmem:[%s107] sm:$0xff]
    %5138 = vset.pattern.permute.xlu0 0
    %5139 = vperm.xlu0 %5138, %v5136
    %v5140 = vpop.permute.xlu0 %5139
    %v5142 = vmul.f32 %v5133, %v5140
    %v5143 = vand.u32 2147483647, %v5142
    %vm5144 = vcmp.le.f32.partialorder %v5143, 0.7853982
    %vm5145 = vcmp.lt.s32.totalorder %v5142, 0
    %v5146 = vand.u32 %v5142, 2139095040
    %v5147 = vshrl.u32 %v5146, 23
    %v5148 = vsub.s32 %v5147, 127
    %v5149 = vand.u32 2147483647, %v5142
    %v5150 = vand.u32 %v5149, 8388607
    %v5151 = vor.u32 %v5150, 8388608
    %v5152 = vsub.s32 0, %v5151
    %v5153 = vadd.s32 %v5148, 1
    %vm5154 = vcmp.gt.s32.totalorder %v5153, 0
    %v5155 = vsel %vm5154, %v5153, 0
    %v5156 = vshrl.u32 %v5155, 5
    %v5157 = vand.u32 %v5155, 31
    %v5158 = vsub.s32 32, %v5157
    %v5159 = vshrl.u32 683565275, %v5158
    %v5160 = vshll.u32 683565275, %v5157
    %v5161 = vshrl.u32 2475754826, %v5158
    %v5162 = vor.u32 %v5160, %v5161
    %v5163 = vshll.u32 2475754826, %v5157
    %v5164 = vshrl.u32 2131351028, %v5158
    %v5165 = vor.u32 %v5163, %v5164
    %v5166 = vshll.u32 2131351028, %v5157
    %v5167 = vshrl.u32 2102212464, %v5158
    %v5168 = vor.u32 %v5166, %v5167
    %v5169 = vshll.u32 2102212464, %v5157
    %v5170 = vshrl.u32 920167782, %v5158
    %v5171 = vor.u32 %v5169, %v5170
    %v5172 = vshll.u32 920167782, %v5157
    %v5173 = vshrl.u32 1326507024, %v5158
    %v5174 = vor.u32 %v5172, %v5173
    %vm5175 = vcmp.lt.s32.totalorder %v5156, 1
    %vm5176 = vcmp.lt.s32.totalorder %v5156, 2
    %vm5177 = vcmp.lt.s32.totalorder %v5156, 3
    %vm5178 = vcmp.lt.s32.totalorder %v5156, 4
    %v5179 = vsel %vm5175, %v5159, %v5162
    %v5180 = vsel %vm5178, %v5168, 2102212464
    %v5181 = vsel %vm5177, %v5165, %v5180
    %v5182 = vsel %vm5176, %v5179, %v5181
    %v5183 = vsel %vm5175, %v5162, %v5165
    %v5184 = vsel %vm5178, %v5171, 920167782
    %v5185 = vsel %vm5177, %v5168, %v5184
    %v5186 = vsel %vm5176, %v5183, %v5185
    %v5187 = vsel %vm5175, %v5165, %v5168
    %v5188 = vsel %vm5178, %v5174, 1326507024
    %v5189 = vsel %vm5177, %v5171, %v5188
    %v5190 = vsel %vm5176, %v5187, %v5189
    %v5191 = vshll.u32 %v5151, 8
    %v5192 = vmul.u32.u64.compose %v5191, %v5190
    %v5193 = vextract.low.u32 %v5192
    %v5194 = vextract.high.u32 %v5192
    %v5195 = vmul.u32.u64.compose %v5191, %v5186
    %v5196 = vextract.low.u32 %v5195
    %v5197 = vextract.high.u32 %v5195
    %v5198 = vmul.u32 %v5191, %v5182
    %v5199 = vadd.s32 %v5194, %v5196
    %vm5200 = vc.u32 %v5194, %v5196
    %v5201 = vadd.s32 %v5197, 1
    %v5202 = vsel %vm5200, %v5201, %v5197
    %v5203 = vadd.s32 %v5198, %v5202
    %v5204 = vadd.s32 %v5203, 536870912
    %v5205 = vshrl.u32 %v5204, 30
    %v5206 = vshll.u32 %v5205, 30
    %v5207 = vsub.s32 %v5203, %v5206
    %vm5208 = vcmp.lt.s32.totalorder %v5207, 0
    %v5209 = vsub.s32 0, %v5207
    %v5210 = vsel %vm5208, %v5209, %v5207
    %v5211 = vclz %v5210
    %v5212 = vsub.s32 %v5211, 2
    %vm5213 = vcmp.gt.s32.totalorder 0, %v5212
    %v5214 = vsel %vm5213, 0, %v5212
    %v5215 = vsub.s32 32, %v5214
    %v5216 = vshll.u32 %v5207, %v5214
    %v5217 = vshrl.u32 %v5199, %v5215
    %v5218 = vor.u32 %v5216, %v5217
    %v5219 = vsub.s32 4294967266, %v5214
    %v5220 = vadd.s32 %v5219, 127
    %v5221 = vshll.u32 %v5220, 23
    %v5222 = vor.u32 4788187, %v5221
    %v5223 = vand.u32 2147483647, %v5222
    %v5225 = vcvt.s32.f32 %v5218
    %v5226 = vmul.f32 %v5225, %v5223
    %v5227 = vxor.u32 %v5226, 2147483648
    %v5228 = vsel %vm5145, %v5227, %v5226
    %v5229 = vsub.s32 4, %v5205
    %v5230 = vsel %vm5145, %v5229, %v5205
    %v5231 = vsel %vm5144, %v5142, %v5228
    %v5232 = vsel %vm5144, 0, %v5230
    %v5233 = vcosq.f32.pop %v5231
    %v5234 = vsinq.f32.pop %v5231
    %vm5235 = vweird.f32 %v5142
    %v5236 = vadd.s32 %v5232, 3
    %v5237 = vand.u32 %v5236, 3
    %vm5238 = vcmp.lt.s32.totalorder %v5237, 2
    %vm5239 = vcmp.eq.s32.totalorder %v5237, 0
    %v5240 = vxor.u32 %v5234, 2147483648
    %v5241 = vsel %vm5239, %v5233, %v5240
    %vm5242 = vcmp.eq.s32.totalorder %v5237, 2
    %v5243 = vxor.u32 %v5233, 2147483648
    %v5244 = vsel %vm5242, %v5243, %v5234
    %v5245 = vsel %vm5238, %v5241, %v5244
    %v5246 = vsel %vm5235, nan, %v5245
    %v5247 = vld [vmem:[%s109] sm:$0xff]
    %v5248 = vmul.f32 %v5246, %v5246
    %5250 = vset.pattern.permute.xlu0 0
    %5251 = vperm.xlu0 %5250, %v5247
    %v5252 = vpop.permute.xlu0 %5251
    %v5254 = vmul.f32 %v5252, %v5248
    %v5255 = vadd.f32 %v5133, %v5254
    %5257 = vrot.lane.b32.xlu0 %v5255, 8
    %v5258 = vpop.permute.xlu0 %5257
    %5260 = vst.msk [vmem:[#allocation7] sm:$0xff] %vm3581, %v5258
    %5261 = vst.msk [vmem:[#allocation7 + $0x8] sm:$0xff] %vm3583, %v5258
    %v5262 = vld [vmem:[#allocation7] sm:$0xff]
    %v5263 = vld [vmem:[#allocation7 + $0x8] sm:$0xff]
    %5266 = vrot.lane.b32.xlu0 %v5262, 127
    %v5267 = vpop.permute.xlu0 %5266
    %5268 = vrot.lane.b32.xlu0 %v5263, 127
    %v5269 = vpop.permute.xlu0 %5268
    %v5270 = vsel %vm3825, %v5267, %v5269
    %5271 = vrot.lane.b32.xlu0 %v5262, 126
    %v5272 = vpop.permute.xlu0 %5271
    %5273 = vrot.lane.b32.xlu0 %v5263, 126
    %v5274 = vpop.permute.xlu0 %5273
    %v5275 = vsel %vm3831, %v5272, %v5274
    %v5276 = vld [vmem:[%s111] sm:$0xff]
    %v5277 = vld [vmem:[%s113] sm:$0xff]
    %5279 = vset.pattern.permute.xlu0 0
    %5280 = vperm.xlu0 %5279, %v5277
    %v5281 = vpop.permute.xlu0 %5280
    %5283 = vrot.lane.b32.xlu0 %v5262, 121
    %v5284 = vpop.permute.xlu0 %5283
    %5285 = vrot.lane.b32.xlu0 %v5263, 121
    %v5286 = vpop.permute.xlu0 %5285
    %5287 = vrot.lane.b32.xlu0 %v5270, 121
    %v5288 = vpop.permute.xlu0 %5287
    %5289 = vrot.lane.b32.xlu0 %v5269, 121
    %v5290 = vpop.permute.xlu0 %5289
    %5291 = vrot.lane.b32.xlu0 %v5275, 121
    %v5292 = vpop.permute.xlu0 %5291
    %5293 = vrot.lane.b32.xlu0 %v5274, 121
    %v5294 = vpop.permute.xlu0 %5293
    %v5295 = vsel %vm3852, %v5284, %v5286
    %v5296 = vsel %vm3852, %v5288, %v5290
    %v5297 = vsel %vm3852, %v5292, %v5294
    %v5302 = vsel %vm3859, %v5276, 0
    %5304 = vmatprep.subr.mxu0 0.0
    %5305 = vmatpush1.msra.mxu0 %v5295
    %5306 = vmatprep.subr.mxu0 0.0
    %5307 = vmatpush1.msra.mxu0 %v5296
    %5308 = vmatprep.subr.mxu0 0.0
    %5309 = vmatpush1.msra.mxu0 %v5297
    %5310 = vmatprep.subr.mxu0 0.0
    %5311 = vmatpush1.msra.mxu0 0.0
    %5312 = vmatprep.subr.mxu0 0.0
    %5313 = vmatpush1.msra.mxu0 0.0
    %5314 = vmatprep.subr.mxu0 0.0
    %5315 = vmatpush1.msra.mxu0 0.0
    %5316 = vmatprep.subr.mxu0 0.0
    %5317 = vmatpush1.msra.mxu0 0.0
    %5318 = vmatprep.subr.mxu0 0.0
    %5319 = vmatpush1.msra.mxu0 0.0
    %5320 = vmatprep.subr.mxu0 0.0
    %5321 = vmatpush1.msra.mxu0 0.0
    %5322 = vmatprep.subr.mxu0 0.0
    %5323 = vmatpush1.msra.mxu0 0.0
    %5324 = vmatprep.subr.mxu0 0.0
    %5325 = vmatpush1.msra.mxu0 0.0
    %5326 = vmatprep.subr.mxu0 0.0
    %5327 = vmatpush1.msra.mxu0 0.0
    %5328 = vmatprep.subr.mxu0 0.0
    %5329 = vmatpush1.msra.mxu0 0.0
    %5330 = vmatprep.subr.mxu0 0.0
    %5331 = vmatpush1.msra.mxu0 0.0
    %5332 = vmatprep.subr.mxu0 0.0
    %5333 = vmatpush1.msra.mxu0 0.0
    %5334 = vmatprep.subr.mxu0 0.0
    %5335 = vmatpush1.msra.mxu0 0.0
    %5336 = vmatprep.subr.mxu0 0.0
    %5337 = vmatpush1.msra.mxu0 0.0
    %5338 = vmatprep.subr.mxu0 0.0
    %5339 = vmatpush1.msra.mxu0 0.0
    %5340 = vmatprep.subr.mxu0 0.0
    %5341 = vmatpush1.msra.mxu0 0.0
    %5342 = vmatprep.subr.mxu0 0.0
    %5343 = vmatpush1.msra.mxu0 0.0
    %5344 = vmatprep.subr.mxu0 0.0
    %5345 = vmatpush1.msra.mxu0 0.0
    %5346 = vmatprep.subr.mxu0 0.0
    %5347 = vmatpush1.msra.mxu0 0.0
    %5348 = vmatprep.subr.mxu0 0.0
    %5349 = vmatpush1.msra.mxu0 0.0
    %5350 = vmatprep.subr.mxu0 0.0
    %5351 = vmatpush1.msra.mxu0 0.0
    %5352 = vmatprep.subr.mxu0 0.0
    %5353 = vmatpush1.msra.mxu0 0.0
    %5354 = vmatprep.subr.mxu0 0.0
    %5355 = vmatpush1.msra.mxu0 0.0
    %5356 = vmatprep.subr.mxu0 0.0
    %5357 = vmatpush1.msra.mxu0 0.0
    %5358 = vmatprep.subr.mxu0 0.0
    %5359 = vmatpush1.msra.mxu0 0.0
    %5360 = vmatprep.subr.mxu0 0.0
    %5361 = vmatpush1.msra.mxu0 0.0
    %5362 = vmatprep.subr.mxu0 0.0
    %5363 = vmatpush1.msra.mxu0 0.0
    %5364 = vmatprep.subr.mxu0 0.0
    %5365 = vmatpush1.msra.mxu0 0.0
    %5366 = vmatprep.subr.mxu0 0.0
    %5367 = vmatpush1.msra.mxu0 0.0
    %5368 = vmatprep.mubr.f32.mxu0 0.0
    %5369 = vmatmul.mubr.f32.gmra.mrb[0].mxu0 %v5302
    %v5370 = vpop.f32.mrb[0].mxu0
    %v5371 = vadd.f32 %v5281, %v5370
    %v5372 = vpop.f32.mrb[0].mxu0
    %5373 = vdwg.mxu0
    %v5374 = vld [vmem:[#allocation6] sm:$0xff]
    %v5375 = vld [vmem:[#allocation6 + $0x8] sm:$0xff]
    %5378 = vrot.lane.b32.xlu0 %v5374, 120
    %v5379 = vpop.permute.xlu0 %5378
    %5380 = vrot.lane.b32.xlu0 %v5375, 120
    %v5381 = vpop.permute.xlu0 %5380
    %v5382 = vsel %vm4179, %v5379, %v5381
    %v5384 = vadd.f32 %v5371, %v5382
    %5386 = vrot.lane.b32.xlu0 %v5384, 8
    %v5387 = vpop.permute.xlu0 %5386
    %5389 = vst.msk [vmem:[#allocation6] sm:$0xff] %vm3581, %v5387
    %5390 = vst.msk [vmem:[#allocation6 + $0x8] sm:$0xff] %vm3583, %v5387
    %v5391 = vld [vmem:[#allocation6] sm:$0xff]
    %v5392 = vld [vmem:[#allocation6 + $0x8] sm:$0xff]
    %v5393 = vld [vmem:[%s115] sm:$0xff]
    %5395 = vset.pattern.permute.xlu0 0
    %5396 = vperm.xlu0 %5395, %v5393
    %v5397 = vpop.permute.xlu0 %5396
    %v5399 = vmul.f32 %v5391, %v5397
    %v5400 = vmul.f32 %v5392, %v5397
    %v5401 = vand.u32 2147483647, %v5399
    %vm5402 = vcmp.le.f32.partialorder %v5401, 0.7853982
    %vm5403 = vcmp.lt.s32.totalorder %v5399, 0
    %v5404 = vand.u32 %v5399, 2139095040
    %v5405 = vshrl.u32 %v5404, 23
    %v5406 = vsub.s32 %v5405, 127
    %v5407 = vand.u32 2147483647, %v5399
    %v5408 = vand.u32 %v5407, 8388607
    %v5409 = vor.u32 %v5408, 8388608
    %v5410 = vsub.s32 0, %v5409
    %v5411 = vadd.s32 %v5406, 1
    %vm5412 = vcmp.gt.s32.totalorder %v5411, 0
    %v5413 = vsel %vm5412, %v5411, 0
    %v5414 = vshrl.u32 %v5413, 5
    %v5415 = vand.u32 %v5413, 31
    %v5416 = vsub.s32 32, %v5415
    %v5417 = vshrl.u32 683565275, %v5416
    %v5418 = vshll.u32 683565275, %v5415
    %v5419 = vshrl.u32 2475754826, %v5416
    %v5420 = vor.u32 %v5418, %v5419
    %v5421 = vshll.u32 2475754826, %v5415
    %v5422 = vshrl.u32 2131351028, %v5416
    %v5423 = vor.u32 %v5421, %v5422
    %v5424 = vshll.u32 2131351028, %v5415
    %v5425 = vshrl.u32 2102212464, %v5416
    %v5426 = vor.u32 %v5424, %v5425
    %v5427 = vshll.u32 2102212464, %v5415
    %v5428 = vshrl.u32 920167782, %v5416
    %v5429 = vor.u32 %v5427, %v5428
    %v5430 = vshll.u32 920167782, %v5415
    %v5431 = vshrl.u32 1326507024, %v5416
    %v5432 = vor.u32 %v5430, %v5431
    %vm5433 = vcmp.lt.s32.totalorder %v5414, 1
    %vm5434 = vcmp.lt.s32.totalorder %v5414, 2
    %vm5435 = vcmp.lt.s32.totalorder %v5414, 3
    %vm5436 = vcmp.lt.s32.totalorder %v5414, 4
    %v5437 = vsel %vm5433, %v5417, %v5420
    %v5438 = vsel %vm5436, %v5426, 2102212464
    %v5439 = vsel %vm5435, %v5423, %v5438
    %v5440 = vsel %vm5434, %v5437, %v5439
    %v5441 = vsel %vm5433, %v5420, %v5423
    %v5442 = vsel %vm5436, %v5429, 920167782
    %v5443 = vsel %vm5435, %v5426, %v5442
    %v5444 = vsel %vm5434, %v5441, %v5443
    %v5445 = vsel %vm5433, %v5423, %v5426
    %v5446 = vsel %vm5436, %v5432, 1326507024
    %v5447 = vsel %vm5435, %v5429, %v5446
    %v5448 = vsel %vm5434, %v5445, %v5447
    %v5449 = vshll.u32 %v5409, 8
    %v5450 = vmul.u32.u64.compose %v5449, %v5448
    %v5451 = vextract.low.u32 %v5450
    %v5452 = vextract.high.u32 %v5450
    %v5453 = vmul.u32.u64.compose %v5449, %v5444
    %v5454 = vextract.low.u32 %v5453
    %v5455 = vextract.high.u32 %v5453
    %v5456 = vmul.u32 %v5449, %v5440
    %v5457 = vadd.s32 %v5452, %v5454
    %vm5458 = vc.u32 %v5452, %v5454
    %v5459 = vadd.s32 %v5455, 1
    %v5460 = vsel %vm5458, %v5459, %v5455
    %v5461 = vadd.s32 %v5456, %v5460
    %v5462 = vadd.s32 %v5461, 536870912
    %v5463 = vshrl.u32 %v5462, 30
    %v5464 = vshll.u32 %v5463, 30
    %v5465 = vsub.s32 %v5461, %v5464
    %vm5466 = vcmp.lt.s32.totalorder %v5465, 0
    %v5467 = vsub.s32 0, %v5465
    %v5468 = vsel %vm5466, %v5467, %v5465
    %v5469 = vclz %v5468
    %v5470 = vsub.s32 %v5469, 2
    %vm5471 = vcmp.gt.s32.totalorder 0, %v5470
    %v5472 = vsel %vm5471, 0, %v5470
    %v5473 = vsub.s32 32, %v5472
    %v5474 = vshll.u32 %v5465, %v5472
    %v5475 = vshrl.u32 %v5457, %v5473
    %v5476 = vor.u32 %v5474, %v5475
    %v5477 = vsub.s32 4294967266, %v5472
    %v5478 = vadd.s32 %v5477, 127
    %v5479 = vshll.u32 %v5478, 23
    %v5480 = vor.u32 4788187, %v5479
    %v5481 = vand.u32 2147483647, %v5480
    %v5483 = vcvt.s32.f32 %v5476
    %v5484 = vmul.f32 %v5483, %v5481
    %v5485 = vxor.u32 %v5484, 2147483648
    %v5486 = vsel %vm5403, %v5485, %v5484
    %v5487 = vsub.s32 4, %v5463
    %v5488 = vsel %vm5403, %v5487, %v5463
    %v5489 = vsel %vm5402, %v5399, %v5486
    %v5490 = vsel %vm5402, 0, %v5488
    %v5491 = vcosq.f32.pop %v5489
    %v5492 = vsinq.f32.pop %v5489
    %vm5493 = vweird.f32 %v5399
    %v5494 = vadd.s32 %v5490, 3
    %v5495 = vand.u32 %v5494, 3
    %vm5496 = vcmp.lt.s32.totalorder %v5495, 2
    %vm5497 = vcmp.eq.s32.totalorder %v5495, 0
    %v5498 = vxor.u32 %v5492, 2147483648
    %v5499 = vsel %vm5497, %v5491, %v5498
    %vm5500 = vcmp.eq.s32.totalorder %v5495, 2
    %v5501 = vxor.u32 %v5491, 2147483648
    %v5502 = vsel %vm5500, %v5501, %v5492
    %v5503 = vsel %vm5496, %v5499, %v5502
    %v5504 = vsel %vm5493, nan, %v5503
    %v5505 = vand.u32 2147483647, %v5400
    %vm5506 = vcmp.le.f32.partialorder %v5505, 0.7853982
    %vm5507 = vcmp.lt.s32.totalorder %v5400, 0
    %v5508 = vand.u32 %v5400, 2139095040
    %v5509 = vshrl.u32 %v5508, 23
    %v5510 = vsub.s32 %v5509, 127
    %v5511 = vand.u32 2147483647, %v5400
    %v5512 = vand.u32 %v5511, 8388607
    %v5513 = vor.u32 %v5512, 8388608
    %v5514 = vsub.s32 0, %v5513
    %v5515 = vadd.s32 %v5510, 1
    %vm5516 = vcmp.gt.s32.totalorder %v5515, 0
    %v5517 = vsel %vm5516, %v5515, 0
    %v5518 = vshrl.u32 %v5517, 5
    %v5519 = vand.u32 %v5517, 31
    %v5520 = vsub.s32 32, %v5519
    %v5521 = vshrl.u32 683565275, %v5520
    %v5522 = vshll.u32 683565275, %v5519
    %v5523 = vshrl.u32 2475754826, %v5520
    %v5524 = vor.u32 %v5522, %v5523
    %v5525 = vshll.u32 2475754826, %v5519
    %v5526 = vshrl.u32 2131351028, %v5520
    %v5527 = vor.u32 %v5525, %v5526
    %v5528 = vshll.u32 2131351028, %v5519
    %v5529 = vshrl.u32 2102212464, %v5520
    %v5530 = vor.u32 %v5528, %v5529
    %v5531 = vshll.u32 2102212464, %v5519
    %v5532 = vshrl.u32 920167782, %v5520
    %v5533 = vor.u32 %v5531, %v5532
    %v5534 = vshll.u32 920167782, %v5519
    %v5535 = vshrl.u32 1326507024, %v5520
    %v5536 = vor.u32 %v5534, %v5535
    %vm5537 = vcmp.lt.s32.totalorder %v5518, 1
    %vm5538 = vcmp.lt.s32.totalorder %v5518, 2
    %vm5539 = vcmp.lt.s32.totalorder %v5518, 3
    %vm5540 = vcmp.lt.s32.totalorder %v5518, 4
    %v5541 = vsel %vm5537, %v5521, %v5524
    %v5542 = vsel %vm5540, %v5530, 2102212464
    %v5543 = vsel %vm5539, %v5527, %v5542
    %v5544 = vsel %vm5538, %v5541, %v5543
    %v5545 = vsel %vm5537, %v5524, %v5527
    %v5546 = vsel %vm5540, %v5533, 920167782
    %v5547 = vsel %vm5539, %v5530, %v5546
    %v5548 = vsel %vm5538, %v5545, %v5547
    %v5549 = vsel %vm5537, %v5527, %v5530
    %v5550 = vsel %vm5540, %v5536, 1326507024
    %v5551 = vsel %vm5539, %v5533, %v5550
    %v5552 = vsel %vm5538, %v5549, %v5551
    %v5553 = vshll.u32 %v5513, 8
    %v5554 = vmul.u32.u64.compose %v5553, %v5552
    %v5555 = vextract.low.u32 %v5554
    %v5556 = vextract.high.u32 %v5554
    %v5557 = vmul.u32.u64.compose %v5553, %v5548
    %v5558 = vextract.low.u32 %v5557
    %v5559 = vextract.high.u32 %v5557
    %v5560 = vmul.u32 %v5553, %v5544
    %v5561 = vadd.s32 %v5556, %v5558
    %vm5562 = vc.u32 %v5556, %v5558
    %v5563 = vadd.s32 %v5559, 1
    %v5564 = vsel %vm5562, %v5563, %v5559
    %v5565 = vadd.s32 %v5560, %v5564
    %v5566 = vadd.s32 %v5565, 536870912
    %v5567 = vshrl.u32 %v5566, 30
    %v5568 = vshll.u32 %v5567, 30
    %v5569 = vsub.s32 %v5565, %v5568
    %vm5570 = vcmp.lt.s32.totalorder %v5569, 0
    %v5571 = vsub.s32 0, %v5569
    %v5572 = vsel %vm5570, %v5571, %v5569
    %v5573 = vclz %v5572
    %v5574 = vsub.s32 %v5573, 2
    %vm5575 = vcmp.gt.s32.totalorder 0, %v5574
    %v5576 = vsel %vm5575, 0, %v5574
    %v5577 = vsub.s32 32, %v5576
    %v5578 = vshll.u32 %v5569, %v5576
    %v5579 = vshrl.u32 %v5561, %v5577
    %v5580 = vor.u32 %v5578, %v5579
    %v5581 = vsub.s32 4294967266, %v5576
    %v5582 = vadd.s32 %v5581, 127
    %v5583 = vshll.u32 %v5582, 23
    %v5584 = vor.u32 4788187, %v5583
    %v5585 = vand.u32 2147483647, %v5584
    %v5587 = vcvt.s32.f32 %v5580
    %v5588 = vmul.f32 %v5587, %v5585
    %v5589 = vxor.u32 %v5588, 2147483648
    %v5590 = vsel %vm5507, %v5589, %v5588
    %v5591 = vsub.s32 4, %v5567
    %v5592 = vsel %vm5507, %v5591, %v5567
    %v5593 = vsel %vm5506, %v5400, %v5590
    %v5594 = vsel %vm5506, 0, %v5592
    %v5595 = vcosq.f32.pop %v5593
    %v5596 = vsinq.f32.pop %v5593
    %vm5597 = vweird.f32 %v5400
    %v5598 = vadd.s32 %v5594, 3
    %v5599 = vand.u32 %v5598, 3
    %vm5600 = vcmp.lt.s32.totalorder %v5599, 2
    %vm5601 = vcmp.eq.s32.totalorder %v5599, 0
    %v5602 = vxor.u32 %v5596, 2147483648
    %v5603 = vsel %vm5601, %v5595, %v5602
    %vm5604 = vcmp.eq.s32.totalorder %v5599, 2
    %v5605 = vxor.u32 %v5595, 2147483648
    %v5606 = vsel %vm5604, %v5605, %v5596
    %v5607 = vsel %vm5600, %v5603, %v5606
    %v5608 = vsel %vm5597, nan, %v5607
    %v5609 = vld [vmem:[%s117] sm:$0xff]
    %v5610 = vmul.f32 %v5504, %v5504
    %v5611 = vmul.f32 %v5608, %v5608
    %5613 = vset.pattern.permute.xlu0 0
    %5614 = vperm.xlu0 %5613, %v5609
    %v5615 = vpop.permute.xlu0 %5614
    %v5617 = vmul.f32 %v5615, %v5610
    %v5618 = vmul.f32 %v5615, %v5611
    %v5619 = vadd.f32 %v5391, %v5617
    %v5620 = vadd.f32 %v5392, %v5618
    %5621 = vst.msk [vmem:[#allocation7] sm:$0xff] %vm3581, %v5619
    %5622 = vst.msk [vmem:[#allocation7 + $0x8] sm:$0xff] %vm3583, %v5620
    %v5623 = vld [vmem:[#allocation7] sm:$0xff]
    %v5624 = vld [vmem:[#allocation7 + $0x8] sm:$0xff]
    %5627 = vrot.lane.b32.xlu0 %v5623, 127
    %v5628 = vpop.permute.xlu0 %5627
    %5629 = vrot.lane.b32.xlu0 %v5624, 127
    %v5630 = vpop.permute.xlu0 %5629
    %v5631 = vsel %vm3825, %v5628, %v5630
    %5632 = vrot.lane.b32.xlu0 %v5623, 126
    %v5633 = vpop.permute.xlu0 %5632
    %5634 = vrot.lane.b32.xlu0 %v5624, 126
    %v5635 = vpop.permute.xlu0 %5634
    %v5636 = vsel %vm3831, %v5633, %v5635
    %5637 = vrot.lane.b32.xlu0 %v5623, 125
    %v5638 = vpop.permute.xlu0 %5637
    %5639 = vrot.lane.b32.xlu0 %v5624, 125
    %v5640 = vpop.permute.xlu0 %5639
    %v5641 = vsel %vm4429, %v5638, %v5640
    %5642 = vrot.lane.b32.xlu0 %v5623, 124
    %v5643 = vpop.permute.xlu0 %5642
    %5644 = vrot.lane.b32.xlu0 %v5624, 124
    %v5645 = vpop.permute.xlu0 %5644
    %vm5646 = vcmask 1014784
    %v5647 = vsel %vm5646, %v5643, %v5645
    %5648 = vrot.lane.b32.xlu0 %v5623, 123
    %v5649 = vpop.permute.xlu0 %5648
    %5650 = vrot.lane.b32.xlu0 %v5624, 123
    %v5651 = vpop.permute.xlu0 %5650
    %v5652 = vsel %vm4456, %v5649, %v5651
    %5653 = vrot.lane.b32.xlu0 %v5623, 122
    %v5654 = vpop.permute.xlu0 %5653
    %5655 = vrot.lane.b32.xlu0 %v5624, 122
    %v5656 = vpop.permute.xlu0 %5655
    %v5657 = vsel %vm4435, %v5654, %v5656
    %v5658 = vld [vmem:[%s119] sm:$0x1]
    %v5659 = vld [vmem:[#allocation8] sm:$0x1]
    %5661 = vset.pattern.permute.xlu0 0
    %5662 = vperm.xlu0 %5661, %v5659
    %v5663 = vpop.permute.xlu0 %5662
    %v5665 = vlaneseq
    %v5666 = vshrl.u32 %v5665, 7
    %v5667 = vsub.s32 0, %v5666
    %v5668 = vrot.slane %v5663, %v5667
    %5669 = vrot.lane.b32.xlu0 %v5631, 123
    %v5670 = vpop.permute.xlu0 %5669
    %5671 = vrot.lane.b32.xlu0 %v5630, 123
    %v5672 = vpop.permute.xlu0 %5671
    %5673 = vrot.lane.b32.xlu0 %v5636, 123
    %v5674 = vpop.permute.xlu0 %5673
    %5675 = vrot.lane.b32.xlu0 %v5635, 123
    %v5676 = vpop.permute.xlu0 %5675
    %5677 = vrot.lane.b32.xlu0 %v5641, 123
    %v5678 = vpop.permute.xlu0 %5677
    %5679 = vrot.lane.b32.xlu0 %v5640, 123
    %v5680 = vpop.permute.xlu0 %5679
    %5681 = vrot.lane.b32.xlu0 %v5647, 123
    %v5682 = vpop.permute.xlu0 %5681
    %5683 = vrot.lane.b32.xlu0 %v5645, 123
    %v5684 = vpop.permute.xlu0 %5683
    %5685 = vrot.lane.b32.xlu0 %v5652, 123
    %v5686 = vpop.permute.xlu0 %5685
    %5687 = vrot.lane.b32.xlu0 %v5651, 123
    %v5688 = vpop.permute.xlu0 %5687
    %5689 = vrot.lane.b32.xlu0 %v5657, 123
    %v5690 = vpop.permute.xlu0 %5689
    %5691 = vrot.lane.b32.xlu0 %v5656, 123
    %v5692 = vpop.permute.xlu0 %5691
    %v5693 = vsel %vm4456, %v5670, %v5672
    %v5694 = vsel %vm4456, %v5674, %v5676
    %v5695 = vsel %vm4456, %v5678, %v5680
    %v5696 = vsel %vm4456, %v5682, %v5684
    %v5697 = vsel %vm4456, %v5686, %v5688
    %v5698 = vsel %vm4456, %v5690, %v5692
    %v5707 = vsel %vm337, %v5658, 0
    %5709 = vmatprep.subr.mxu0 0.0
    %5710 = vmatpush1.msra.mxu0 %v5652
    %5711 = vmatprep.subr.mxu0 0.0
    %5712 = vmatpush1.msra.mxu0 %v5693
    %5713 = vmatprep.subr.mxu0 0.0
    %5714 = vmatpush1.msra.mxu0 %v5694
    %5715 = vmatprep.subr.mxu0 0.0
    %5716 = vmatpush1.msra.mxu0 %v5695
    %5717 = vmatprep.subr.mxu0 0.0
    %5718 = vmatpush1.msra.mxu0 %v5696
    %5719 = vmatprep.subr.mxu0 0.0
    %5720 = vmatpush1.msra.mxu0 %v5697
    %5721 = vmatprep.subr.mxu0 0.0
    %5722 = vmatpush1.msra.mxu0 %v5698
    %5723 = vmatprep.subr.mxu0 0.0
    %5724 = vmatpush1.msra.mxu0 0.0
    %5725 = vmatprep.subr.mxu0 0.0
    %5726 = vmatpush1.msra.mxu0 0.0
    %5727 = vmatprep.subr.mxu0 0.0
    %5728 = vmatpush1.msra.mxu0 0.0
    %5729 = vmatprep.subr.mxu0 0.0
    %5730 = vmatpush1.msra.mxu0 0.0
    %5731 = vmatprep.subr.mxu0 0.0
    %5732 = vmatpush1.msra.mxu0 0.0
    %5733 = vmatprep.subr.mxu0 0.0
    %5734 = vmatpush1.msra.mxu0 0.0
    %5735 = vmatprep.subr.mxu0 0.0
    %5736 = vmatpush1.msra.mxu0 0.0
    %5737 = vmatprep.subr.mxu0 0.0
    %5738 = vmatpush1.msra.mxu0 0.0
    %5739 = vmatprep.subr.mxu0 0.0
    %5740 = vmatpush1.msra.mxu0 0.0
    %5741 = vmatprep.subr.mxu0 0.0
    %5742 = vmatpush1.msra.mxu0 0.0
    %5743 = vmatprep.subr.mxu0 0.0
    %5744 = vmatpush1.msra.mxu0 0.0
    %5745 = vmatprep.subr.mxu0 0.0
    %5746 = vmatpush1.msra.mxu0 0.0
    %5747 = vmatprep.subr.mxu0 0.0
    %5748 = vmatpush1.msra.mxu0 0.0
    %5749 = vmatprep.subr.mxu0 0.0
    %5750 = vmatpush1.msra.mxu0 0.0
    %5751 = vmatprep.subr.mxu0 0.0
    %5752 = vmatpush1.msra.mxu0 0.0
    %5753 = vmatprep.subr.mxu0 0.0
    %5754 = vmatpush1.msra.mxu0 0.0
    %5755 = vmatprep.subr.mxu0 0.0
    %5756 = vmatpush1.msra.mxu0 0.0
    %5757 = vmatprep.subr.mxu0 0.0
    %5758 = vmatpush1.msra.mxu0 0.0
    %5759 = vmatprep.subr.mxu0 0.0
    %5760 = vmatpush1.msra.mxu0 0.0
    %5761 = vmatprep.subr.mxu0 0.0
    %5762 = vmatpush1.msra.mxu0 0.0
    %5763 = vmatprep.subr.mxu0 0.0
    %5764 = vmatpush1.msra.mxu0 0.0
    %5765 = vmatprep.subr.mxu0 0.0
    %5766 = vmatpush1.msra.mxu0 0.0
    %5767 = vmatprep.subr.mxu0 0.0
    %5768 = vmatpush1.msra.mxu0 0.0
    %5769 = vmatprep.subr.mxu0 0.0
    %5770 = vmatpush1.msra.mxu0 0.0
    %5771 = vmatprep.subr.mxu0 0.0
    %5772 = vmatpush1.msra.mxu0 0.0
    %5773 = vmatprep.mubr.f32.mxu0 0.0
    %5774 = vmatmul.mubr.f32.gmra.mrb[0].mxu0 %v5707
    %v5775 = vpop.f32.mrb[0].mxu0
    %v5776 = vadd.f32 %v5668, %v5775
    %v5777 = vpop.f32.mrb[0].mxu0
    %5778 = vdwg.mxu0
    %v5779 = vtanh.pop %v5776
    %5780 = vst [vmem:[#allocation9] sm:$0x1] %v5779
    // Predicated region
    $region246: #{onnx_wrapper_forward.1} parent=1 // pred_check
      _
    $region247: #{onnx_wrapper_forward.1} parent=1 // pred_check_branch
      %5782 = sbr.rel (0) target = $region249
    $region248: #{onnx_wrapper_forward.1} parent=1 // pred_region
      %s5784 = ssub.s32 16, 16
      %5785 = vsyncadd [#allocation10], %s5784
      %s5787 = sshll.u32 [#allocation9], 4
      %s5788 = int_to_ptr.vmem [resolvable:$true] %s5787
      %5790 = dma.vmem_to_hbm [thread:$0]  %s5788, 16, %s123, [#allocation10]
    $region249: #{onnx_wrapper_forward.1} parent=1 // pred_fallthru
      _
    // Predicated region
    $region250: #{onnx_wrapper_forward.1} parent=1 // pred_check
      _
    $region251: #{onnx_wrapper_forward.1} parent=1 // pred_check_branch
      %5792 = sbr.rel (0) target = $region253
    $region252: #{onnx_wrapper_forward.1} parent=1 // pred_region
      %5793 = dma.done [#allocation10], 16
    $region253: #{onnx_wrapper_forward.1} parent=1 // pred_fallthru
      _
    %5794 = vsyncpa [#allocation10], 1

</llo_original>
